<compile_context>
chip_gen: v7x
topology: tpu7x:2x2x1
jax: 0.10.0
libtpu: 0.0.40
codegen_flags: <defaults>
</compile_context>

<pallas_src>
import functools

import jax
import jax.numpy as jnp
import numpy as np
from jax.experimental import pallas as pl
from jax.experimental.pallas import tpu as pltpu

_BF16_PACK = 16  # bf16 rows per packed (8,128) 32-bit vreg (sublane pack)


def _round_up(v, m):
    return ((v + m - 1) // m) * m


def _fused_block_kernel(x_ref, w1_ref, w2_ref, w3_ref, shift_ref, mask_ref,
                        out_ref, col_ref, x1b_ref, x2b_ref,
                        *, cin_p, cout_p, P, margin, sd, sh):
    """One batch element per grid step.

    x_ref    : (Cin_p, Pext)  bf16 margin-extended, zero-padded, flattened volume
    w*_ref   : (Cout_p, 27*C_p) bf16, tap-major/channel-minor, BN scale folded in
    shift_ref: (Cout_p, 3) f32 per-channel BN shifts [b1, b2, b3]
    mask_ref : (1, P) f32 — 1.0 at interior voxels, 0.0 at pad voxels
    out_ref  : (Cout_p, P) bf16 (padded-flat; host slices the interior)
    col_ref  : (27*Cmax_p, P) bf16 VMEM scratch (im2col slab)
    x1b_ref  : (Cout_p, Pext) bf16 VMEM scratch (masked x1: conv2 input + residual)
    x2b_ref  : (Cout_p, Pext) bf16 VMEM scratch (masked x2: conv3 input)
    """
    # Zero only the two halo-margin strips (never written elsewhere); the
    # interior is fully overwritten below before any read.  Keeping the margins
    # exactly zero also keeps the mask-multiply NaN-free.
    zeros_strip = jnp.zeros((cout_p, margin), jnp.bfloat16)
    x1b_ref[:, 0:margin] = zeros_strip
    x1b_ref[:, margin + P:margin + P + margin] = zeros_strip
    x2b_ref[:, 0:margin] = zeros_strip
    x2b_ref[:, margin + P:margin + P + margin] = zeros_strip

    mask = mask_ref[...]                                   # (1, P) f32 {0,1}

    def conv_shift(src_ref, cpad, w_ref, shift):
        # Build the im2col slab: one static lane-offset slice per tap.  cpad is
        # a multiple of the bf16 sublane pack, so each copy is a full-vreg,
        # unmasked store.
        for t in range(27):
            kd, kh, kw = t // 9, (t // 3) % 3, t % 3
            off = margin + (kd - 1) * sd + (kh - 1) * sh + (kw - 1)
            col_ref[t * cpad:(t + 1) * cpad, :] = src_ref[:, off:off + P]
        # Single fat-K MXU matmul (bf16 operands, f32 accumulation).  BN scale
        # is pre-folded into w on the host, so only the shift remains here.
        acc = jnp.dot(w_ref[...], col_ref[0:27 * cpad, :],
                      preferred_element_type=jnp.float32)   # (Cout_p, P) f32
        return acc + shift

    # layer 1: x1 = relu(bn1(conv1(x)))   (pad voxels forced to exact zero)
    y1 = jnp.maximum(conv_shift(x_ref, cin_p, w1_ref, shift_ref[:, 0:1]), 0.0)
    x1b_ref[:, margin:margin + P] = (y1 * mask).astype(jnp.bfloat16)

    # layer 2: x2 = relu(bn2(conv2(x1)))
    y2 = jnp.maximum(conv_shift(x1b_ref, cout_p, w2_ref, shift_ref[:, 1:2]), 0.0)
    x2b_ref[:, margin:margin + P] = (y2 * mask).astype(jnp.bfloat16)

    # layer 3 + skip: out = relu(x1 + bn3(conv3(x2)))
    # Residual comes straight from the bf16 masked x1 slab (no f32 copy).
    y3 = conv_shift(x2b_ref, cout_p, w3_ref, shift_ref[:, 2:3])
    x1r = x1b_ref[:, margin:margin + P].astype(jnp.float32)
    out_ref[...] = jnp.maximum(x1r + y3, 0.0).astype(out_ref.dtype)


def residual_block_forward(x_ncdhw, params):
    """Pallas implementation of residual_block.forward (eval-mode BN).

    x_ncdhw: (N, Cin, D, H, W) float32 (PyTorch NCDHW layout).
    params : three (w, scale, shift) tuples; w is PyTorch-layout
             (Cout, Cin', 3, 3, 3); scale/shift are the folded eval-mode BN affine.
    """
    N, Cin, D, H, W = x_ncdhw.shape
    (w1, s1, b1), (w2, s2, b2), (w3, s3, b3) = params
    Cout = w1.shape[0]

    cin_p = _round_up(Cin, _BF16_PACK)
    cout_p = _round_up(Cout, _BF16_PACK)
    cmax_p = max(cin_p, cout_p)

    sd = (H + 2) * (W + 2)                    # flat stride of one padded D-plane
    sh = (W + 2)                              # flat stride of one padded H-row
    P = (D + 2) * sd                          # padded, flattened volume
    margin = pl.cdiv(sd + sh + 1, 128) * 128  # lane-aligned halo for tap slices
    Pext = P + 2 * margin

    # --- VMEM budget (no spatial tiling yet): hard guard + explicit limit ----
    vmem_needed = (
        27 * cmax_p * P * 2            # im2col slab (bf16)
        + 2 * cout_p * Pext * 2        # x1b + x2b extended activation slabs
        + 2 * cin_p * Pext * 2         # double-buffered input block
        + 2 * cout_p * P * 2           # double-buffered bf16 output block
        + 4 * cout_p * P * 4)          # hidden f32 matmul / elementwise temps
    assert vmem_needed <= 48 * 1024 * 1024, (
        f"residual_block working set ~{vmem_needed / 2**20:.1f} MiB exceeds the "
        "conservative VMEM budget; spatial (D) tiling with a 3-voxel halo is "
        "required for this size (see TODO).")
    vmem_limit = int(min(max(2 * vmem_needed, 32 * 1024 * 1024),
                         56 * 1024 * 1024))

    # --- host prep: cast to bf16 first, then pad channels / spatial / margin --
    xb = x_ncdhw.astype(jnp.bfloat16)
    xp = jnp.pad(xb, ((0, 0), (0, cin_p - Cin), (1, 1), (1, 1), (1, 1)))
    xe = jnp.pad(xp.reshape(N, cin_p, P), ((0, 0), (0, 0), (margin, margin)))

    def prep_w(w, scale, ci_pad):
        # (Cout, Cin', 3,3,3) -> fold BN scale -> pad channels -> tap-major /
        # channel-minor (Cout_p, 27*Cin'_p) bf16.
        co, ci = w.shape[0], w.shape[1]
        wf = w.astype(jnp.float32) * scale[:, None, None, None, None]
        wf = jnp.pad(wf, ((0, cout_p - co), (0, ci_pad - ci),
                          (0, 0), (0, 0), (0, 0)))
        return (jnp.transpose(wf, (0, 2, 3, 4, 1))
                .reshape(cout_p, 27 * ci_pad).astype(jnp.bfloat16))

    w1m = prep_w(w1, s1, cin_p)
    w2m = prep_w(w2, s2, cout_p)
    w3m = prep_w(w3, s3, cout_p)
    shifts = jnp.pad(jnp.stack([b1, b2, b3], axis=1).astype(jnp.float32),
                     ((0, cout_p - Cout), (0, 0)))

    interior = jnp.zeros((D + 2, H + 2, W + 2), jnp.float32)
    interior = interior.at[1:-1, 1:-1, 1:-1].set(1.0)
    mask = interior.reshape(1, P)

    kernel = functools.partial(_fused_block_kernel, cin_p=cin_p, cout_p=cout_p,
                               P=P, margin=margin, sd=sd, sh=sh)

    out_flat = pl.pallas_call(
        kernel,
        out_shape=jax.ShapeDtypeStruct((N, cout_p, P), jnp.bfloat16),
        grid_spec=pltpu.PrefetchScalarGridSpec(
            num_scalar_prefetch=0,
            grid=(N,),
            in_specs=[
                pl.BlockSpec((None, cin_p, Pext), lambda n: (n, 0, 0)),   # x
                pl.BlockSpec((cout_p, 27 * cin_p), lambda n: (0, 0)),     # w1
                pl.BlockSpec((cout_p, 27 * cout_p), lambda n: (0, 0)),    # w2
                pl.BlockSpec((cout_p, 27 * cout_p), lambda n: (0, 0)),    # w3
                pl.BlockSpec((cout_p, 3), lambda n: (0, 0)),              # shifts
                pl.BlockSpec((1, P), lambda n: (0, 0)),                   # mask
            ],
            out_specs=pl.BlockSpec((None, cout_p, P), lambda n: (n, 0, 0)),
            scratch_shapes=[
                pltpu.VMEM((27 * cmax_p, P), jnp.bfloat16),   # im2col slab
                pltpu.VMEM((cout_p, Pext), jnp.bfloat16),     # x1 extended
                pltpu.VMEM((cout_p, Pext), jnp.bfloat16),     # x2 extended
            ]),
        compiler_params=pltpu.CompilerParams(
            dimension_semantics=("parallel",),
            vmem_limit_bytes=vmem_limit),
    )(xe, w1m, w2m, w3m, shifts, mask)

    out = out_flat.reshape(N, cout_p, D + 2, H + 2, W + 2)
    return out[:, :Cout, 1:-1, 1:-1, 1:-1].astype(jnp.float32)   # NCDHW, unpadded


def fold_bn(gamma, beta, running_mean, running_var, eps=1e-5):
    scale = gamma / jnp.sqrt(running_var + eps)
    shift = beta - running_mean * scale
    return scale, shift


def reference_forward(x, params):
    """Pure-JAX NCDHW reference mirroring the kernel's bf16 operand/output path."""
    def q(v):  # emulate bf16 storage/operands (f32 accumulation everywhere)
        return v.astype(jnp.bfloat16).astype(jnp.float32)

    def conv_shift(x, w, scale, shift):
        wf = w * scale[:, None, None, None, None]     # BN scale folded into w
        y = jax.lax.conv_general_dilated(
            q(x), q(wf), window_strides=(1, 1, 1),
            padding=((1, 1), (1, 1), (1, 1)),
            dimension_numbers=('NCDHW', 'OIDHW', 'NCDHW'))
        return y + shift[None, :, None, None, None]

    (w1, s1, b1), (w2, s2, b2), (w3, s3, b3) = params
    x1 = q(jax.nn.relu(conv_shift(x, w1, s1, b1)))    # kernel keeps x1 in bf16
    x2 = jax.nn.relu(conv_shift(x1, w2, s2, b2))
    x3 = conv_shift(q(x2), w3, s3, b3)
    return q(jax.nn.relu(x1 + x3))                    # kernel output is bf16


if __name__ == "__main__":
    key = jax.random.PRNGKey(0)
    N, Cin, Cout, D, H, W = 2, 4, 8, 8, 8, 8
    keys = jax.random.split(key, 8)

    x = jax.random.normal(keys[0], (N, Cin, D, H, W), jnp.float32)

    def make_conv_bn(kw, kbn, cin, cout):
        # PyTorch Conv3d weight layout: (Cout, Cin, 3, 3, 3), no bias.
        w = jax.random.normal(kw, (cout, cin, 3, 3, 3), jnp.float32) * 0.1
        kg, kb, km, kv = jax.random.split(kbn, 4)
        gamma = jax.random.uniform(kg, (cout,), jnp.float32, 0.5, 1.5)
        beta = jax.random.normal(kb, (cout,), jnp.float32) * 0.1
        mean = jax.random.normal(km, (cout,), jnp.float32) * 0.1
        var = jax.random.uniform(kv, (cout,), jnp.float32, 0.5, 1.5)
        scale, shift = fold_bn(gamma, beta, mean, var)
        return w, scale, shift

    params = (
        make_conv_bn(keys[1], keys[2], Cin, Cout),
        make_conv_bn(keys[3], keys[4], Cout, Cout),
        make_conv_bn(keys[5], keys[6], Cout, Cout),
    )

    out = residual_block_forward(x, params)
    out = jax.block_until_ready(out)
    assert out.shape == (N, Cout, D, H, W)

    # Correctness check against a pure-JAX reference (same bf16 path).
    ref = reference_forward(x, params)
    np.testing.assert_allclose(np.asarray(out), np.asarray(ref),
                               atol=2e-2, rtol=2e-2)

    print("KERNEL_OK")
</pallas_src>

<mosaic_0001>
module attributes {stable_mosaic.version = 11 : i64} {
  func.func @_fused_block_kernel(%arg0: i32, %arg1: memref<1x16x1256xbf16, #tpu.memory_space<vmem>>, %arg2: memref<16x432xbf16, #tpu.memory_space<vmem>>, %arg3: memref<16x432xbf16, #tpu.memory_space<vmem>>, %arg4: memref<16x432xbf16, #tpu.memory_space<vmem>>, %arg5: memref<16x3xf32, #tpu.memory_space<vmem>>, %arg6: memref<1x1000xf32, #tpu.memory_space<vmem>>, %arg7: memref<1x16x1000xbf16, #tpu.memory_space<vmem>>, %arg8: memref<432x1000xbf16, #tpu.memory_space<vmem>>, %arg9: memref<16x1256xbf16, #tpu.memory_space<vmem>>, %arg10: memref<16x1256xbf16, #tpu.memory_space<vmem>>) attributes {dimension_semantics = [#tpu.dimension_semantics<parallel>], iteration_bounds = array<i64: 2>, scalar_prefetch = 0 : i64, scratch_operands = 3 : i64, tpu.core_type = #tpu.core_type<tc>, window_params = [{transform_indices = @transform_0, window_bounds = array<i64: 1, 16, 1256>}, {pipeline_mode = #tpu.pipeline_mode<synchronous>, transform_indices = @transform_1, window_bounds = array<i64: 16, 432>}, {pipeline_mode = #tpu.pipeline_mode<synchronous>, transform_indices = @transform_2, window_bounds = array<i64: 16, 432>}, {pipeline_mode = #tpu.pipeline_mode<synchronous>, transform_indices = @transform_3, window_bounds = array<i64: 16, 432>}, {pipeline_mode = #tpu.pipeline_mode<synchronous>, transform_indices = @transform_4, window_bounds = array<i64: 16, 3>}, {pipeline_mode = #tpu.pipeline_mode<synchronous>, transform_indices = @transform_5, window_bounds = array<i64: 1, 1000>}, {transform_indices = @transform_6, window_bounds = array<i64: 1, 16, 1000>}]} {
    %cst = arith.constant 0.000000e+00 : bf16
    %0 = vector.broadcast %cst : bf16 to vector<16x128xbf16>
    %c0 = arith.constant 0 : index
    %c0_0 = arith.constant 0 : index
    %1 = vector.load %arg9[%c0, %c0_0] : memref<16x1256xbf16, #tpu.memory_space<vmem>>, vector<16x128xbf16>
    tpu.vector_store %arg9[%c0, %c0_0], %0 {strides = array<i32>} : memref<16x1256xbf16, #tpu.memory_space<vmem>>, vector<16x128xbf16>,
    %c0_1 = arith.constant 0 : index
    %c1128 = arith.constant 1128 : index
    %2 = vector.load %arg9[%c0_1, %c1128] : memref<16x1256xbf16, #tpu.memory_space<vmem>>, vector<16x128xbf16>
    tpu.vector_store %arg9[%c0_1, %c1128], %0 {strides = array<i32>} : memref<16x1256xbf16, #tpu.memory_space<vmem>>, vector<16x128xbf16>,
    %c0_2 = arith.constant 0 : index
    %c0_3 = arith.constant 0 : index
    %3 = vector.load %arg10[%c0_2, %c0_3] : memref<16x1256xbf16, #tpu.memory_space<vmem>>, vector<16x128xbf16>
    tpu.vector_store %arg10[%c0_2, %c0_3], %0 {strides = array<i32>} : memref<16x1256xbf16, #tpu.memory_space<vmem>>, vector<16x128xbf16>,
    %c0_4 = arith.constant 0 : index
    %c1128_5 = arith.constant 1128 : index
    %4 = vector.load %arg10[%c0_4, %c1128_5] : memref<16x1256xbf16, #tpu.memory_space<vmem>>, vector<16x128xbf16>
    tpu.vector_store %arg10[%c0_4, %c1128_5], %0 {strides = array<i32>} : memref<16x1256xbf16, #tpu.memory_space<vmem>>, vector<16x128xbf16>,
    %c0_6 = arith.constant 0 : index
    %c0_7 = arith.constant 0 : index
    %5 = vector.load %arg6[%c0_6, %c0_7] : memref<1x1000xf32, #tpu.memory_space<vmem>>, vector<1x1000xf32>
    %c0_8 = arith.constant 0 : index
    %c0_9 = arith.constant 0 : index
    %6 = vector.load %arg5[%c0_8, %c0_9] : memref<16x3xf32, #tpu.memory_space<vmem>>, vector<16x1xf32>
    %c0_10 = arith.constant 0 : index
    %c0_11 = arith.constant 0 : index
    %c17 = arith.constant 17 : index
    %7 = vector.load %arg1[%c0_10, %c0_11, %c17] : memref<1x16x1256xbf16, #tpu.memory_space<vmem>>, vector<1x16x1000xbf16>
    %8 = vector.shape_cast %7 : vector<1x16x1000xbf16> to vector<16x1000xbf16>
    %c0_12 = arith.constant 0 : index
    %c0_13 = arith.constant 0 : index
    %9 = vector.load %arg8[%c0_12, %c0_13] : memref<432x1000xbf16, #tpu.memory_space<vmem>>, vector<16x1000xbf16>
    tpu.vector_store %arg8[%c0_12, %c0_13], %8 {strides = array<i32>} : memref<432x1000xbf16, #tpu.memory_space<vmem>>, vector<16x1000xbf16>,
    %c0_14 = arith.constant 0 : index
    %c0_15 = arith.constant 0 : index
    %c18 = arith.constant 18 : index
    %10 = vector.load %arg1[%c0_14, %c0_15, %c18] : memref<1x16x1256xbf16, #tpu.memory_space<vmem>>, vector<1x16x1000xbf16>
    %11 = vector.shape_cast %10 : vector<1x16x1000xbf16> to vector<16x1000xbf16>
    %c16 = arith.constant 16 : index
    %c0_16 = arith.constant 0 : index
    %12 = vector.load %arg8[%c16, %c0_16] : memref<432x1000xbf16, #tpu.memory_space<vmem>>, vector<16x1000xbf16>
    tpu.vector_store %arg8[%c16, %c0_16], %11 {strides = array<i32>} : memref<432x1000xbf16, #tpu.memory_space<vmem>>, vector<16x1000xbf16>,
    %c0_17 = arith.constant 0 : index
    %c0_18 = arith.constant 0 : index
    %c19 = arith.constant 19 : index
    %13 = vector.load %arg1[%c0_17, %c0_18, %c19] : memref<1x16x1256xbf16, #tpu.memory_space<vmem>>, vector<1x16x1000xbf16>
    %14 = vector.shape_cast %13 : vector<1x16x1000xbf16> to vector<16x1000xbf16>
    %c32 = arith.constant 32 : index
    %c0_19 = arith.constant 0 : index
    %15 = vector.load %arg8[%c32, %c0_19] : memref<432x1000xbf16, #tpu.memory_space<vmem>>, vector<16x1000xbf16>
    tpu.vector_store %arg8[%c32, %c0_19], %14 {strides = array<i32>} : memref<432x1000xbf16, #tpu.memory_space<vmem>>, vector<16x1000xbf16>,
    %c0_20 = arith.constant 0 : index
    %c0_21 = arith.constant 0 : index
    %c27 = arith.constant 27 : index
    %16 = vector.load %arg1[%c0_20, %c0_21, %c27] : memref<1x16x1256xbf16, #tpu.memory_space<vmem>>, vector<1x16x1000xbf16>
    %17 = vector.shape_cast %16 : vector<1x16x1000xbf16> to vector<16x1000xbf16>
    %c48 = arith.constant 48 : index
    %c0_22 = arith.constant 0 : index
    %18 = vector.load %arg8[%c48, %c0_22] : memref<432x1000xbf16, #tpu.memory_space<vmem>>, vector<16x1000xbf16>
    tpu.vector_store %arg8[%c48, %c0_22], %17 {strides = array<i32>} : memref<432x1000xbf16, #tpu.memory_space<vmem>>, vector<16x1000xbf16>,
    %c0_23 = arith.constant 0 : index
    %c0_24 = arith.constant 0 : index
    %c28 = arith.constant 28 : index
    %19 = vector.load %arg1[%c0_23, %c0_24, %c28] : memref<1x16x1256xbf16, #tpu.memory_space<vmem>>, vector<1x16x1000xbf16>
    %20 = vector.shape_cast %19 : vector<1x16x1000xbf16> to vector<16x1000xbf16>
    %c64 = arith.constant 64 : index
    %c0_25 = arith.constant 0 : index
    %21 = vector.load %arg8[%c64, %c0_25] : memref<432x1000xbf16, #tpu.memory_space<vmem>>, vector<16x1000xbf16>
    tpu.vector_store %arg8[%c64, %c0_25], %20 {strides = array<i32>} : memref<432x1000xbf16, #tpu.memory_space<vmem>>, vector<16x1000xbf16>,
    %c0_26 = arith.constant 0 : index
    %c0_27 = arith.constant 0 : index
    %c29 = arith.constant 29 : index
    %22 = vector.load %arg1[%c0_26, %c0_27, %c29] : memref<1x16x1256xbf16, #tpu.memory_space<vmem>>, vector<1x16x1000xbf16>
    %23 = vector.shape_cast %22 : vector<1x16x1000xbf16> to vector<16x1000xbf16>
    %c80 = arith.constant 80 : index
    %c0_28 = arith.constant 0 : index
    %24 = vector.load %arg8[%c80, %c0_28] : memref<432x1000xbf16, #tpu.memory_space<vmem>>, vector<16x1000xbf16>
    tpu.vector_store %arg8[%c80, %c0_28], %23 {strides = array<i32>} : memref<432x1000xbf16, #tpu.memory_space<vmem>>, vector<16x1000xbf16>,
    %c0_29 = arith.constant 0 : index
    %c0_30 = arith.constant 0 : index
    %c37 = arith.constant 37 : index
    %25 = vector.load %arg1[%c0_29, %c0_30, %c37] : memref<1x16x1256xbf16, #tpu.memory_space<vmem>>, vector<1x16x1000xbf16>
    %26 = vector.shape_cast %25 : vector<1x16x1000xbf16> to vector<16x1000xbf16>
    %c96 = arith.constant 96 : index
    %c0_31 = arith.constant 0 : index
    %27 = vector.load %arg8[%c96, %c0_31] : memref<432x1000xbf16, #tpu.memory_space<vmem>>, vector<16x1000xbf16>
    tpu.vector_store %arg8[%c96, %c0_31], %26 {strides = array<i32>} : memref<432x1000xbf16, #tpu.memory_space<vmem>>, vector<16x1000xbf16>,
    %c0_32 = arith.constant 0 : index
    %c0_33 = arith.constant 0 : index
    %c38 = arith.constant 38 : index
    %28 = vector.load %arg1[%c0_32, %c0_33, %c38] : memref<1x16x1256xbf16, #tpu.memory_space<vmem>>, vector<1x16x1000xbf16>
    %29 = vector.shape_cast %28 : vector<1x16x1000xbf16> to vector<16x1000xbf16>
    %c112 = arith.constant 112 : index
    %c0_34 = arith.constant 0 : index
    %30 = vector.load %arg8[%c112, %c0_34] : memref<432x1000xbf16, #tpu.memory_space<vmem>>, vector<16x1000xbf16>
    tpu.vector_store %arg8[%c112, %c0_34], %29 {strides = array<i32>} : memref<432x1000xbf16, #tpu.memory_space<vmem>>, vector<16x1000xbf16>,
    %c0_35 = arith.constant 0 : index
    %c0_36 = arith.constant 0 : index
    %c39 = arith.constant 39 : index
    %31 = vector.load %arg1[%c0_35, %c0_36, %c39] : memref<1x16x1256xbf16, #tpu.memory_space<vmem>>, vector<1x16x1000xbf16>
    %32 = vector.shape_cast %31 : vector<1x16x1000xbf16> to vector<16x1000xbf16>
    %c128 = arith.constant 128 : index
    %c0_37 = arith.constant 0 : index
    %33 = vector.load %arg8[%c128, %c0_37] : memref<432x1000xbf16, #tpu.memory_space<vmem>>, vector<16x1000xbf16>
    tpu.vector_store %arg8[%c128, %c0_37], %32 {strides = array<i32>} : memref<432x1000xbf16, #tpu.memory_space<vmem>>, vector<16x1000xbf16>,
    %c0_38 = arith.constant 0 : index
    %c0_39 = arith.constant 0 : index
    %c117 = arith.constant 117 : index
    %34 = vector.load %arg1[%c0_38, %c0_39, %c117] : memref<1x16x1256xbf16, #tpu.memory_space<vmem>>, vector<1x16x1000xbf16>
    %35 = vector.shape_cast %34 : vector<1x16x1000xbf16> to vector<16x1000xbf16>
    %c144 = arith.constant 144 : index
    %c0_40 = arith.constant 0 : index
    %36 = vector.load %arg8[%c144, %c0_40] : memref<432x1000xbf16, #tpu.memory_space<vmem>>, vector<16x1000xbf16>
    tpu.vector_store %arg8[%c144, %c0_40], %35 {strides = array<i32>} : memref<432x1000xbf16, #tpu.memory_space<vmem>>, vector<16x1000xbf16>,
    %c0_41 = arith.constant 0 : index
    %c0_42 = arith.constant 0 : index
    %c118 = arith.constant 118 : index
    %37 = vector.load %arg1[%c0_41, %c0_42, %c118] : memref<1x16x1256xbf16, #tpu.memory_space<vmem>>, vector<1x16x1000xbf16>
    %38 = vector.shape_cast %37 : vector<1x16x1000xbf16> to vector<16x1000xbf16>
    %c160 = arith.constant 160 : index
    %c0_43 = arith.constant 0 : index
    %39 = vector.load %arg8[%c160, %c0_43] : memref<432x1000xbf16, #tpu.memory_space<vmem>>, vector<16x1000xbf16>
    tpu.vector_store %arg8[%c160, %c0_43], %38 {strides = array<i32>} : memref<432x1000xbf16, #tpu.memory_space<vmem>>, vector<16x1000xbf16>,
    %c0_44 = arith.constant 0 : index
    %c0_45 = arith.constant 0 : index
    %c119 = arith.constant 119 : index
    %40 = vector.load %arg1[%c0_44, %c0_45, %c119] : memref<1x16x1256xbf16, #tpu.memory_space<vmem>>, vector<1x16x1000xbf16>
    %41 = vector.shape_cast %40 : vector<1x16x1000xbf16> to vector<16x1000xbf16>
    %c176 = arith.constant 176 : index
    %c0_46 = arith.constant 0 : index
    %42 = vector.load %arg8[%c176, %c0_46] : memref<432x1000xbf16, #tpu.memory_space<vmem>>, vector<16x1000xbf16>
    tpu.vector_store %arg8[%c176, %c0_46], %41 {strides = array<i32>} : memref<432x1000xbf16, #tpu.memory_space<vmem>>, vector<16x1000xbf16>,
    %c0_47 = arith.constant 0 : index
    %c0_48 = arith.constant 0 : index
    %c127 = arith.constant 127 : index
    %43 = vector.load %arg1[%c0_47, %c0_48, %c127] : memref<1x16x1256xbf16, #tpu.memory_space<vmem>>, vector<1x16x1000xbf16>
    %44 = vector.shape_cast %43 : vector<1x16x1000xbf16> to vector<16x1000xbf16>
    %c192 = arith.constant 192 : index
    %c0_49 = arith.constant 0 : index
    %45 = vector.load %arg8[%c192, %c0_49] : memref<432x1000xbf16, #tpu.memory_space<vmem>>, vector<16x1000xbf16>
    tpu.vector_store %arg8[%c192, %c0_49], %44 {strides = array<i32>} : memref<432x1000xbf16, #tpu.memory_space<vmem>>, vector<16x1000xbf16>,
    %c0_50 = arith.constant 0 : index
    %c0_51 = arith.constant 0 : index
    %c128_52 = arith.constant 128 : index
    %46 = vector.load %arg1[%c0_50, %c0_51, %c128_52] : memref<1x16x1256xbf16, #tpu.memory_space<vmem>>, vector<1x16x1000xbf16>
    %47 = vector.shape_cast %46 : vector<1x16x1000xbf16> to vector<16x1000xbf16>
    %c208 = arith.constant 208 : index
    %c0_53 = arith.constant 0 : index
    %48 = vector.load %arg8[%c208, %c0_53] : memref<432x1000xbf16, #tpu.memory_space<vmem>>, vector<16x1000xbf16>
    tpu.vector_store %arg8[%c208, %c0_53], %47 {strides = array<i32>} : memref<432x1000xbf16, #tpu.memory_space<vmem>>, vector<16x1000xbf16>,
    %c0_54 = arith.constant 0 : index
    %c0_55 = arith.constant 0 : index
    %c129 = arith.constant 129 : index
    %49 = vector.load %arg1[%c0_54, %c0_55, %c129] : memref<1x16x1256xbf16, #tpu.memory_space<vmem>>, vector<1x16x1000xbf16>
    %50 = vector.shape_cast %49 : vector<1x16x1000xbf16> to vector<16x1000xbf16>
    %c224 = arith.constant 224 : index
    %c0_56 = arith.constant 0 : index
    %51 = vector.load %arg8[%c224, %c0_56] : memref<432x1000xbf16, #tpu.memory_space<vmem>>, vector<16x1000xbf16>
    tpu.vector_store %arg8[%c224, %c0_56], %50 {strides = array<i32>} : memref<432x1000xbf16, #tpu.memory_space<vmem>>, vector<16x1000xbf16>,
    %c0_57 = arith.constant 0 : index
    %c0_58 = arith.constant 0 : index
    %c137 = arith.constant 137 : index
    %52 = vector.load %arg1[%c0_57, %c0_58, %c137] : memref<1x16x1256xbf16, #tpu.memory_space<vmem>>, vector<1x16x1000xbf16>
    %53 = vector.shape_cast %52 : vector<1x16x1000xbf16> to vector<16x1000xbf16>
    %c240 = arith.constant 240 : index
    %c0_59 = arith.constant 0 : index
    %54 = vector.load %arg8[%c240, %c0_59] : memref<432x1000xbf16, #tpu.memory_space<vmem>>, vector<16x1000xbf16>
    tpu.vector_store %arg8[%c240, %c0_59], %53 {strides = array<i32>} : memref<432x1000xbf16, #tpu.memory_space<vmem>>, vector<16x1000xbf16>,
    %c0_60 = arith.constant 0 : index
    %c0_61 = arith.constant 0 : index
    %c138 = arith.constant 138 : index
    %55 = vector.load %arg1[%c0_60, %c0_61, %c138] : memref<1x16x1256xbf16, #tpu.memory_space<vmem>>, vector<1x16x1000xbf16>
    %56 = vector.shape_cast %55 : vector<1x16x1000xbf16> to vector<16x1000xbf16>
    %c256 = arith.constant 256 : index
    %c0_62 = arith.constant 0 : index
    %57 = vector.load %arg8[%c256, %c0_62] : memref<432x1000xbf16, #tpu.memory_space<vmem>>, vector<16x1000xbf16>
    tpu.vector_store %arg8[%c256, %c0_62], %56 {strides = array<i32>} : memref<432x1000xbf16, #tpu.memory_space<vmem>>, vector<16x1000xbf16>,
    %c0_63 = arith.constant 0 : index
    %c0_64 = arith.constant 0 : index
    %c139 = arith.constant 139 : index
    %58 = vector.load %arg1[%c0_63, %c0_64, %c139] : memref<1x16x1256xbf16, #tpu.memory_space<vmem>>, vector<1x16x1000xbf16>
    %59 = vector.shape_cast %58 : vector<1x16x1000xbf16> to vector<16x1000xbf16>
    %c272 = arith.constant 272 : index
    %c0_65 = arith.constant 0 : index
    %60 = vector.load %arg8[%c272, %c0_65] : memref<432x1000xbf16, #tpu.memory_space<vmem>>, vector<16x1000xbf16>
    tpu.vector_store %arg8[%c272, %c0_65], %59 {strides = array<i32>} : memref<432x1000xbf16, #tpu.memory_space<vmem>>, vector<16x1000xbf16>,
    %c0_66 = arith.constant 0 : index
    %c0_67 = arith.constant 0 : index
    %c217 = arith.constant 217 : index
    %61 = vector.load %arg1[%c0_66, %c0_67, %c217] : memref<1x16x1256xbf16, #tpu.memory_space<vmem>>, vector<1x16x1000xbf16>
    %62 = vector.shape_cast %61 : vector<1x16x1000xbf16> to vector<16x1000xbf16>
    %c288 = arith.constant 288 : index
    %c0_68 = arith.constant 0 : index
    %63 = vector.load %arg8[%c288, %c0_68] : memref<432x1000xbf16, #tpu.memory_space<vmem>>, vector<16x1000xbf16>
    tpu.vector_store %arg8[%c288, %c0_68], %62 {strides = array<i32>} : memref<432x1000xbf16, #tpu.memory_space<vmem>>, vector<16x1000xbf16>,
    %c0_69 = arith.constant 0 : index
    %c0_70 = arith.constant 0 : index
    %c218 = arith.constant 218 : index
    %64 = vector.load %arg1[%c0_69, %c0_70, %c218] : memref<1x16x1256xbf16, #tpu.memory_space<vmem>>, vector<1x16x1000xbf16>
    %65 = vector.shape_cast %64 : vector<1x16x1000xbf16> to vector<16x1000xbf16>
    %c304 = arith.constant 304 : index
    %c0_71 = arith.constant 0 : index
    %66 = vector.load %arg8[%c304, %c0_71] : memref<432x1000xbf16, #tpu.memory_space<vmem>>, vector<16x1000xbf16>
    tpu.vector_store %arg8[%c304, %c0_71], %65 {strides = array<i32>} : memref<432x1000xbf16, #tpu.memory_space<vmem>>, vector<16x1000xbf16>,
    %c0_72 = arith.constant 0 : index
    %c0_73 = arith.constant 0 : index
    %c219 = arith.constant 219 : index
    %67 = vector.load %arg1[%c0_72, %c0_73, %c219] : memref<1x16x1256xbf16, #tpu.memory_space<vmem>>, vector<1x16x1000xbf16>
    %68 = vector.shape_cast %67 : vector<1x16x1000xbf16> to vector<16x1000xbf16>
    %c320 = arith.constant 320 : index
    %c0_74 = arith.constant 0 : index
    %69 = vector.load %arg8[%c320, %c0_74] : memref<432x1000xbf16, #tpu.memory_space<vmem>>, vector<16x1000xbf16>
    tpu.vector_store %arg8[%c320, %c0_74], %68 {strides = array<i32>} : memref<432x1000xbf16, #tpu.memory_space<vmem>>, vector<16x1000xbf16>,
    %c0_75 = arith.constant 0 : index
    %c0_76 = arith.constant 0 : index
    %c227 = arith.constant 227 : index
    %70 = vector.load %arg1[%c0_75, %c0_76, %c227] : memref<1x16x1256xbf16, #tpu.memory_space<vmem>>, vector<1x16x1000xbf16>
    %71 = vector.shape_cast %70 : vector<1x16x1000xbf16> to vector<16x1000xbf16>
    %c336 = arith.constant 336 : index
    %c0_77 = arith.constant 0 : index
    %72 = vector.load %arg8[%c336, %c0_77] : memref<432x1000xbf16, #tpu.memory_space<vmem>>, vector<16x1000xbf16>
    tpu.vector_store %arg8[%c336, %c0_77], %71 {strides = array<i32>} : memref<432x1000xbf16, #tpu.memory_space<vmem>>, vector<16x1000xbf16>,
    %c0_78 = arith.constant 0 : index
    %c0_79 = arith.constant 0 : index
    %c228 = arith.constant 228 : index
    %73 = vector.load %arg1[%c0_78, %c0_79, %c228] : memref<1x16x1256xbf16, #tpu.memory_space<vmem>>, vector<1x16x1000xbf16>
    %74 = vector.shape_cast %73 : vector<1x16x1000xbf16> to vector<16x1000xbf16>
    %c352 = arith.constant 352 : index
    %c0_80 = arith.constant 0 : index
    %75 = vector.load %arg8[%c352, %c0_80] : memref<432x1000xbf16, #tpu.memory_space<vmem>>, vector<16x1000xbf16>
    tpu.vector_store %arg8[%c352, %c0_80], %74 {strides = array<i32>} : memref<432x1000xbf16, #tpu.memory_space<vmem>>, vector<16x1000xbf16>,
    %c0_81 = arith.constant 0 : index
    %c0_82 = arith.constant 0 : index
    %c229 = arith.constant 229 : index
    %76 = vector.load %arg1[%c0_81, %c0_82, %c229] : memref<1x16x1256xbf16, #tpu.memory_space<vmem>>, vector<1x16x1000xbf16>
    %77 = vector.shape_cast %76 : vector<1x16x1000xbf16> to vector<16x1000xbf16>
    %c368 = arith.constant 368 : index
    %c0_83 = arith.constant 0 : index
    %78 = vector.load %arg8[%c368, %c0_83] : memref<432x1000xbf16, #tpu.memory_space<vmem>>, vector<16x1000xbf16>
    tpu.vector_store %arg8[%c368, %c0_83], %77 {strides = array<i32>} : memref<432x1000xbf16, #tpu.memory_space<vmem>>, vector<16x1000xbf16>,
    %c0_84 = arith.constant 0 : index
    %c0_85 = arith.constant 0 : index
    %c237 = arith.constant 237 : index
    %79 = vector.load %arg1[%c0_84, %c0_85, %c237] : memref<1x16x1256xbf16, #tpu.memory_space<vmem>>, vector<1x16x1000xbf16>
    %80 = vector.shape_cast %79 : vector<1x16x1000xbf16> to vector<16x1000xbf16>
    %c384 = arith.constant 384 : index
    %c0_86 = arith.constant 0 : index
    %81 = vector.load %arg8[%c384, %c0_86] : memref<432x1000xbf16, #tpu.memory_space<vmem>>, vector<16x1000xbf16>
    tpu.vector_store %arg8[%c384, %c0_86], %80 {strides = array<i32>} : memref<432x1000xbf16, #tpu.memory_space<vmem>>, vector<16x1000xbf16>,
    %c0_87 = arith.constant 0 : index
    %c0_88 = arith.constant 0 : index
    %c238 = arith.constant 238 : index
    %82 = vector.load %arg1[%c0_87, %c0_88, %c238] : memref<1x16x1256xbf16, #tpu.memory_space<vmem>>, vector<1x16x1000xbf16>
    %83 = vector.shape_cast %82 : vector<1x16x1000xbf16> to vector<16x1000xbf16>
    %c400 = arith.constant 400 : index
    %c0_89 = arith.constant 0 : index
    %84 = vector.load %arg8[%c400, %c0_89] : memref<432x1000xbf16, #tpu.memory_space<vmem>>, vector<16x1000xbf16>
    tpu.vector_store %arg8[%c400, %c0_89], %83 {strides = array<i32>} : memref<432x1000xbf16, #tpu.memory_space<vmem>>, vector<16x1000xbf16>,
    %c0_90 = arith.constant 0 : index
    %c0_91 = arith.constant 0 : index
    %c239 = arith.constant 239 : index
    %85 = vector.load %arg1[%c0_90, %c0_91, %c239] : memref<1x16x1256xbf16, #tpu.memory_space<vmem>>, vector<1x16x1000xbf16>
    %86 = vector.shape_cast %85 : vector<1x16x1000xbf16> to vector<16x1000xbf16>
    %c416 = arith.constant 416 : index
    %c0_92 = arith.constant 0 : index
    %87 = vector.load %arg8[%c416, %c0_92] : memref<432x1000xbf16, #tpu.memory_space<vmem>>, vector<16x1000xbf16>
    tpu.vector_store %arg8[%c416, %c0_92], %86 {strides = array<i32>} : memref<432x1000xbf16, #tpu.memory_space<vmem>>, vector<16x1000xbf16>,
    %c0_93 = arith.constant 0 : index
    %c0_94 = arith.constant 0 : index
    %88 = vector.load %arg2[%c0_93, %c0_94] : memref<16x432xbf16, #tpu.memory_space<vmem>>, vector<16x432xbf16>
    %c0_95 = arith.constant 0 : index
    %c0_96 = arith.constant 0 : index
    %89 = vector.load %arg8[%c0_95, %c0_96] : memref<432x1000xbf16, #tpu.memory_space<vmem>>, vector<432x1000xbf16>
    %cst_97 = arith.constant dense<0.000000e+00> : vector<16x1000xf32>
    %90 = tpu.matmul %88, %89, %cst_97 {dimension_numbers = #tpu.dot_dimension_numbers<[1], [0], [0], [1], [0, 0, 1, 1], [], []>} : vector<16x432xbf16>, vector<432x1000xbf16>, vector<16x1000xf32> -> vector<16x1000xf32>
    %91 = vector.broadcast %6 : vector<16x1xf32> to vector<16x1000xf32>
    %92 = arith.addf %90, %91 : vector<16x1000xf32>
    %cst_98 = arith.constant 0.000000e+00 : f32
    %93 = vector.broadcast %cst_98 : f32 to vector<16x1000xf32>
    %94 = arith.maximumf %92, %93 : vector<16x1000xf32>
    %95 = vector.broadcast %5 : vector<1x1000xf32> to vector<16x1000xf32>
    %96 = arith.mulf %94, %95 : vector<16x1000xf32>
    %97 = arith.truncf %96 : vector<16x1000xf32> to vector<16x1000xbf16>
    %c0_99 = arith.constant 0 : index
    %c128_100 = arith.constant 128 : index
    %98 = vector.load %arg9[%c0_99, %c128_100] : memref<16x1256xbf16, #tpu.memory_space<vmem>>, vector<16x1000xbf16>
    tpu.vector_store %arg9[%c0_99, %c128_100], %97 {strides = array<i32>} : memref<16x1256xbf16, #tpu.memory_space<vmem>>, vector<16x1000xbf16>,
    %c0_101 = arith.constant 0 : index
    %c1 = arith.constant 1 : index
    %99 = vector.load %arg5[%c0_101, %c1] : memref<16x3xf32, #tpu.memory_space<vmem>>, vector<16x1xf32>
    %c0_102 = arith.constant 0 : index
    %c17_103 = arith.constant 17 : index
    %100 = vector.load %arg9[%c0_102, %c17_103] : memref<16x1256xbf16, #tpu.memory_space<vmem>>, vector<16x1000xbf16>
    %c0_104 = arith.constant 0 : index
    %c0_105 = arith.constant 0 : index
    %101 = vector.load %arg8[%c0_104, %c0_105] : memref<432x1000xbf16, #tpu.memory_space<vmem>>, vector<16x1000xbf16>
    tpu.vector_store %arg8[%c0_104, %c0_105], %100 {strides = array<i32>} : memref<432x1000xbf16, #tpu.memory_space<vmem>>, vector<16x1000xbf16>,
    %c0_106 = arith.constant 0 : index
    %c18_107 = arith.constant 18 : index
    %102 = vector.load %arg9[%c0_106, %c18_107] : memref<16x1256xbf16, #tpu.memory_space<vmem>>, vector<16x1000xbf16>
    %c16_108 = arith.constant 16 : index
    %c0_109 = arith.constant 0 : index
    %103 = vector.load %arg8[%c16_108, %c0_109] : memref<432x1000xbf16, #tpu.memory_space<vmem>>, vector<16x1000xbf16>
    tpu.vector_store %arg8[%c16_108, %c0_109], %102 {strides = array<i32>} : memref<432x1000xbf16, #tpu.memory_space<vmem>>, vector<16x1000xbf16>,
    %c0_110 = arith.constant 0 : index
    %c19_111 = arith.constant 19 : index
    %104 = vector.load %arg9[%c0_110, %c19_111] : memref<16x1256xbf16, #tpu.memory_space<vmem>>, vector<16x1000xbf16>
    %c32_112 = arith.constant 32 : index
    %c0_113 = arith.constant 0 : index
    %105 = vector.load %arg8[%c32_112, %c0_113] : memref<432x1000xbf16, #tpu.memory_space<vmem>>, vector<16x1000xbf16>
    tpu.vector_store %arg8[%c32_112, %c0_113], %104 {strides = array<i32>} : memref<432x1000xbf16, #tpu.memory_space<vmem>>, vector<16x1000xbf16>,
    %c0_114 = arith.constant 0 : index
    %c27_115 = arith.constant 27 : index
    %106 = vector.load %arg9[%c0_114, %c27_115] : memref<16x1256xbf16, #tpu.memory_space<vmem>>, vector<16x1000xbf16>
    %c48_116 = arith.constant 48 : index
    %c0_117 = arith.constant 0 : index
    %107 = vector.load %arg8[%c48_116, %c0_117] : memref<432x1000xbf16, #tpu.memory_space<vmem>>, vector<16x1000xbf16>
    tpu.vector_store %arg8[%c48_116, %c0_117], %106 {strides = array<i32>} : memref<432x1000xbf16, #tpu.memory_space<vmem>>, vector<16x1000xbf16>,
    %c0_118 = arith.constant 0 : index
    %c28_119 = arith.constant 28 : index
    %108 = vector.load %arg9[%c0_118, %c28_119] : memref<16x1256xbf16, #tpu.memory_space<vmem>>, vector<16x1000xbf16>
    %c64_120 = arith.constant 64 : index
    %c0_121 = arith.constant 0 : index
    %109 = vector.load %arg8[%c64_120, %c0_121] : memref<432x1000xbf16, #tpu.memory_space<vmem>>, vector<16x1000xbf16>
    tpu.vector_store %arg8[%c64_120, %c0_121], %108 {strides = array<i32>} : memref<432x1000xbf16, #tpu.memory_space<vmem>>, vector<16x1000xbf16>,
    %c0_122 = arith.constant 0 : index
    %c29_123 = arith.constant 29 : index
    %110 = vector.load %arg9[%c0_122, %c29_123] : memref<16x1256xbf16, #tpu.memory_space<vmem>>, vector<16x1000xbf16>
    %c80_124 = arith.constant 80 : index
    %c0_125 = arith.constant 0 : index
    %111 = vector.load %arg8[%c80_124, %c0_125] : memref<432x1000xbf16, #tpu.memory_space<vmem>>, vector<16x1000xbf16>
    tpu.vector_store %arg8[%c80_124, %c0_125], %110 {strides = array<i32>} : memref<432x1000xbf16, #tpu.memory_space<vmem>>, vector<16x1000xbf16>,
    %c0_126 = arith.constant 0 : index
    %c37_127 = arith.constant 37 : index
    %112 = vector.load %arg9[%c0_126, %c37_127] : memref<16x1256xbf16, #tpu.memory_space<vmem>>, vector<16x1000xbf16>
    %c96_128 = arith.constant 96 : index
    %c0_129 = arith.constant 0 : index
    %113 = vector.load %arg8[%c96_128, %c0_129] : memref<432x1000xbf16, #tpu.memory_space<vmem>>, vector<16x1000xbf16>
    tpu.vector_store %arg8[%c96_128, %c0_129], %112 {strides = array<i32>} : memref<432x1000xbf16, #tpu.memory_space<vmem>>, vector<16x1000xbf16>,
    %c0_130 = arith.constant 0 : index
    %c38_131 = arith.constant 38 : index
    %114 = vector.load %arg9[%c0_130, %c38_131] : memref<16x1256xbf16, #tpu.memory_space<vmem>>, vector<16x1000xbf16>
    %c112_132 = arith.constant 112 : index
    %c0_133 = arith.constant 0 : index
    %115 = vector.load %arg8[%c112_132, %c0_133] : memref<432x1000xbf16, #tpu.memory_space<vmem>>, vector<16x1000xbf16>
    tpu.vector_store %arg8[%c112_132, %c0_133], %114 {strides = array<i32>} : memref<432x1000xbf16, #tpu.memory_space<vmem>>, vector<16x1000xbf16>,
    %c0_134 = arith.constant 0 : index
    %c39_135 = arith.constant 39 : index
    %116 = vector.load %arg9[%c0_134, %c39_135] : memref<16x1256xbf16, #tpu.memory_space<vmem>>, vector<16x1000xbf16>
    %c128_136 = arith.constant 128 : index
    %c0_137 = arith.constant 0 : index
    %117 = vector.load %arg8[%c128_136, %c0_137] : memref<432x1000xbf16, #tpu.memory_space<vmem>>, vector<16x1000xbf16>
    tpu.vector_store %arg8[%c128_136, %c0_137], %116 {strides = array<i32>} : memref<432x1000xbf16, #tpu.memory_space<vmem>>, vector<16x1000xbf16>,
    %c0_138 = arith.constant 0 : index
    %c117_139 = arith.constant 117 : index
    %118 = vector.load %arg9[%c0_138, %c117_139] : memref<16x1256xbf16, #tpu.memory_space<vmem>>, vector<16x1000xbf16>
    %c144_140 = arith.constant 144 : index
    %c0_141 = arith.constant 0 : index
    %119 = vector.load %arg8[%c144_140, %c0_141] : memref<432x1000xbf16, #tpu.memory_space<vmem>>, vector<16x1000xbf16>
    tpu.vector_store %arg8[%c144_140, %c0_141], %118 {strides = array<i32>} : memref<432x1000xbf16, #tpu.memory_space<vmem>>, vector<16x1000xbf16>,
    %c0_142 = arith.constant 0 : index
    %c118_143 = arith.constant 118 : index
    %120 = vector.load %arg9[%c0_142, %c118_143] : memref<16x1256xbf16, #tpu.memory_space<vmem>>, vector<16x1000xbf16>
    %c160_144 = arith.constant 160 : index
    %c0_145 = arith.constant 0 : index
    %121 = vector.load %arg8[%c160_144, %c0_145] : memref<432x1000xbf16, #tpu.memory_space<vmem>>, vector<16x1000xbf16>
    tpu.vector_store %arg8[%c160_144, %c0_145], %120 {strides = array<i32>} : memref<432x1000xbf16, #tpu.memory_space<vmem>>, vector<16x1000xbf16>,
    %c0_146 = arith.constant 0 : index
    %c119_147 = arith.constant 119 : index
    %122 = vector.load %arg9[%c0_146, %c119_147] : memref<16x1256xbf16, #tpu.memory_space<vmem>>, vector<16x1000xbf16>
    %c176_148 = arith.constant 176 : index
    %c0_149 = arith.constant 0 : index
    %123 = vector.load %arg8[%c176_148, %c0_149] : memref<432x1000xbf16, #tpu.memory_space<vmem>>, vector<16x1000xbf16>
    tpu.vector_store %arg8[%c176_148, %c0_149], %122 {strides = array<i32>} : memref<432x1000xbf16, #tpu.memory_space<vmem>>, vector<16x1000xbf16>,
    %c0_150 = arith.constant 0 : index
    %c127_151 = arith.constant 127 : index
    %124 = vector.load %arg9[%c0_150, %c127_151] : memref<16x1256xbf16, #tpu.memory_space<vmem>>, vector<16x1000xbf16>
    %c192_152 = arith.constant 192 : index
    %c0_153 = arith.constant 0 : index
    %125 = vector.load %arg8[%c192_152, %c0_153] : memref<432x1000xbf16, #tpu.memory_space<vmem>>, vector<16x1000xbf16>
    tpu.vector_store %arg8[%c192_152, %c0_153], %124 {strides = array<i32>} : memref<432x1000xbf16, #tpu.memory_space<vmem>>, vector<16x1000xbf16>,
    %c0_154 = arith.constant 0 : index
    %c128_155 = arith.constant 128 : index
    %126 = vector.load %arg9[%c0_154, %c128_155] : memref<16x1256xbf16, #tpu.memory_space<vmem>>, vector<16x1000xbf16>
    %c208_156 = arith.constant 208 : index
    %c0_157 = arith.constant 0 : index
    %127 = vector.load %arg8[%c208_156, %c0_157] : memref<432x1000xbf16, #tpu.memory_space<vmem>>, vector<16x1000xbf16>
    tpu.vector_store %arg8[%c208_156, %c0_157], %126 {strides = array<i32>} : memref<432x1000xbf16, #tpu.memory_space<vmem>>, vector<16x1000xbf16>,
    %c0_158 = arith.constant 0 : index
    %c129_159 = arith.constant 129 : index
    %128 = vector.load %arg9[%c0_158, %c129_159] : memref<16x1256xbf16, #tpu.memory_space<vmem>>, vector<16x1000xbf16>
    %c224_160 = arith.constant 224 : index
    %c0_161 = arith.constant 0 : index
    %129 = vector.load %arg8[%c224_160, %c0_161] : memref<432x1000xbf16, #tpu.memory_space<vmem>>, vector<16x1000xbf16>
    tpu.vector_store %arg8[%c224_160, %c0_161], %128 {strides = array<i32>} : memref<432x1000xbf16, #tpu.memory_space<vmem>>, vector<16x1000xbf16>,
    %c0_162 = arith.constant 0 : index
    %c137_163 = arith.constant 137 : index
    %130 = vector.load %arg9[%c0_162, %c137_163] : memref<16x1256xbf16, #tpu.memory_space<vmem>>, vector<16x1000xbf16>
    %c240_164 = arith.constant 240 : index
    %c0_165 = arith.constant 0 : index
    %131 = vector.load %arg8[%c240_164, %c0_165] : memref<432x1000xbf16, #tpu.memory_space<vmem>>, vector<16x1000xbf16>
    tpu.vector_store %arg8[%c240_164, %c0_165], %130 {strides = array<i32>} : memref<432x1000xbf16, #tpu.memory_space<vmem>>, vector<16x1000xbf16>,
    %c0_166 = arith.constant 0 : index
    %c138_167 = arith.constant 138 : index
    %132 = vector.load %arg9[%c0_166, %c138_167] : memref<16x1256xbf16, #tpu.memory_space<vmem>>, vector<16x1000xbf16>
    %c256_168 = arith.constant 256 : index
    %c0_169 = arith.constant 0 : index
    %133 = vector.load %arg8[%c256_168, %c0_169] : memref<432x1000xbf16, #tpu.memory_space<vmem>>, vector<16x1000xbf16>
    tpu.vector_store %arg8[%c256_168, %c0_169], %132 {strides = array<i32>} : memref<432x1000xbf16, #tpu.memory_space<vmem>>, vector<16x1000xbf16>,
    %c0_170 = arith.constant 0 : index
    %c139_171 = arith.constant 139 : index
    %134 = vector.load %arg9[%c0_170, %c139_171] : memref<16x1256xbf16, #tpu.memory_space<vmem>>, vector<16x1000xbf16>
    %c272_172 = arith.constant 272 : index
    %c0_173 = arith.constant 0 : index
    %135 = vector.load %arg8[%c272_172, %c0_173] : memref<432x1000xbf16, #tpu.memory_space<vmem>>, vector<16x1000xbf16>
    tpu.vector_store %arg8[%c272_172, %c0_173], %134 {strides = array<i32>} : memref<432x1000xbf16, #tpu.memory_space<vmem>>, vector<16x1000xbf16>,
    %c0_174 = arith.constant 0 : index
    %c217_175 = arith.constant 217 : index
    %136 = vector.load %arg9[%c0_174, %c217_175] : memref<16x1256xbf16, #tpu.memory_space<vmem>>, vector<16x1000xbf16>
    %c288_176 = arith.constant 288 : index
    %c0_177 = arith.constant 0 : index
    %137 = vector.load %arg8[%c288_176, %c0_177] : memref<432x1000xbf16, #tpu.memory_space<vmem>>, vector<16x1000xbf16>
    tpu.vector_store %arg8[%c288_176, %c0_177], %136 {strides = array<i32>} : memref<432x1000xbf16, #tpu.memory_space<vmem>>, vector<16x1000xbf16>,
    %c0_178 = arith.constant 0 : index
    %c218_179 = arith.constant 218 : index
    %138 = vector.load %arg9[%c0_178, %c218_179] : memref<16x1256xbf16, #tpu.memory_space<vmem>>, vector<16x1000xbf16>
    %c304_180 = arith.constant 304 : index
    %c0_181 = arith.constant 0 : index
    %139 = vector.load %arg8[%c304_180, %c0_181] : memref<432x1000xbf16, #tpu.memory_space<vmem>>, vector<16x1000xbf16>
    tpu.vector_store %arg8[%c304_180, %c0_181], %138 {strides = array<i32>} : memref<432x1000xbf16, #tpu.memory_space<vmem>>, vector<16x1000xbf16>,
    %c0_182 = arith.constant 0 : index
    %c219_183 = arith.constant 219 : index
    %140 = vector.load %arg9[%c0_182, %c219_183] : memref<16x1256xbf16, #tpu.memory_space<vmem>>, vector<16x1000xbf16>
    %c320_184 = arith.constant 320 : index
    %c0_185 = arith.constant 0 : index
    %141 = vector.load %arg8[%c320_184, %c0_185] : memref<432x1000xbf16, #tpu.memory_space<vmem>>, vector<16x1000xbf16>
    tpu.vector_store %arg8[%c320_184, %c0_185], %140 {strides = array<i32>} : memref<432x1000xbf16, #tpu.memory_space<vmem>>, vector<16x1000xbf16>,
    %c0_186 = arith.constant 0 : index
    %c227_187 = arith.constant 227 : index
    %142 = vector.load %arg9[%c0_186, %c227_187] : memref<16x1256xbf16, #tpu.memory_space<vmem>>, vector<16x1000xbf16>
    %c336_188 = arith.constant 336 : index
    %c0_189 = arith.constant 0 : index
    %143 = vector.load %arg8[%c336_188, %c0_189] : memref<432x1000xbf16, #tpu.memory_space<vmem>>, vector<16x1000xbf16>
    tpu.vector_store %arg8[%c336_188, %c0_189], %142 {strides = array<i32>} : memref<432x1000xbf16, #tpu.memory_space<vmem>>, vector<16x1000xbf16>,
    %c0_190 = arith.constant 0 : index
    %c228_191 = arith.constant 228 : index
    %144 = vector.load %arg9[%c0_190, %c228_191] : memref<16x1256xbf16, #tpu.memory_space<vmem>>, vector<16x1000xbf16>
    %c352_192 = arith.constant 352 : index
    %c0_193 = arith.constant 0 : index
    %145 = vector.load %arg8[%c352_192, %c0_193] : memref<432x1000xbf16, #tpu.memory_space<vmem>>, vector<16x1000xbf16>
    tpu.vector_store %arg8[%c352_192, %c0_193], %144 {strides = array<i32>} : memref<432x1000xbf16, #tpu.memory_space<vmem>>, vector<16x1000xbf16>,
    %c0_194 = arith.constant 0 : index
    %c229_195 = arith.constant 229 : index
    %146 = vector.load %arg9[%c0_194, %c229_195] : memref<16x1256xbf16, #tpu.memory_space<vmem>>, vector<16x1000xbf16>
    %c368_196 = arith.constant 368 : index
    %c0_197 = arith.constant 0 : index
    %147 = vector.load %arg8[%c368_196, %c0_197] : memref<432x1000xbf16, #tpu.memory_space<vmem>>, vector<16x1000xbf16>
    tpu.vector_store %arg8[%c368_196, %c0_197], %146 {strides = array<i32>} : memref<432x1000xbf16, #tpu.memory_space<vmem>>, vector<16x1000xbf16>,
    %c0_198 = arith.constant 0 : index
    %c237_199 = arith.constant 237 : index
    %148 = vector.load %arg9[%c0_198, %c237_199] : memref<16x1256xbf16, #tpu.memory_space<vmem>>, vector<16x1000xbf16>
    %c384_200 = arith.constant 384 : index
    %c0_201 = arith.constant 0 : index
    %149 = vector.load %arg8[%c384_200, %c0_201] : memref<432x1000xbf16, #tpu.memory_space<vmem>>, vector<16x1000xbf16>
    tpu.vector_store %arg8[%c384_200, %c0_201], %148 {strides = array<i32>} : memref<432x1000xbf16, #tpu.memory_space<vmem>>, vector<16x1000xbf16>,
    %c0_202 = arith.constant 0 : index
    %c238_203 = arith.constant 238 : index
    %150 = vector.load %arg9[%c0_202, %c238_203] : memref<16x1256xbf16, #tpu.memory_space<vmem>>, vector<16x1000xbf16>
    %c400_204 = arith.constant 400 : index
    %c0_205 = arith.constant 0 : index
    %151 = vector.load %arg8[%c400_204, %c0_205] : memref<432x1000xbf16, #tpu.memory_space<vmem>>, vector<16x1000xbf16>
    tpu.vector_store %arg8[%c400_204, %c0_205], %150 {strides = array<i32>} : memref<432x1000xbf16, #tpu.memory_space<vmem>>, vector<16x1000xbf16>,
    %c0_206 = arith.constant 0 : index
    %c239_207 = arith.constant 239 : index
    %152 = vector.load %arg9[%c0_206, %c239_207] : memref<16x1256xbf16, #tpu.memory_space<vmem>>, vector<16x1000xbf16>
    %c416_208 = arith.constant 416 : index
    %c0_209 = arith.constant 0 : index
    %153 = vector.load %arg8[%c416_208, %c0_209] : memref<432x1000xbf16, #tpu.memory_space<vmem>>, vector<16x1000xbf16>
    tpu.vector_store %arg8[%c416_208, %c0_209], %152 {strides = array<i32>} : memref<432x1000xbf16, #tpu.memory_space<vmem>>, vector<16x1000xbf16>,
    %c0_210 = arith.constant 0 : index
    %c0_211 = arith.constant 0 : index
    %154 = vector.load %arg3[%c0_210, %c0_211] : memref<16x432xbf16, #tpu.memory_space<vmem>>, vector<16x432xbf16>
    %c0_212 = arith.constant 0 : index
    %c0_213 = arith.constant 0 : index
    %155 = vector.load %arg8[%c0_212, %c0_213] : memref<432x1000xbf16, #tpu.memory_space<vmem>>, vector<432x1000xbf16>
    %cst_214 = arith.constant dense<0.000000e+00> : vector<16x1000xf32>
    %156 = tpu.matmul %154, %155, %cst_214 {dimension_numbers = #tpu.dot_dimension_numbers<[1], [0], [0], [1], [0, 0, 1, 1], [], []>} : vector<16x432xbf16>, vector<432x1000xbf16>, vector<16x1000xf32> -> vector<16x1000xf32>
    %157 = vector.broadcast %99 : vector<16x1xf32> to vector<16x1000xf32>
    %158 = arith.addf %156, %157 : vector<16x1000xf32>
    %cst_215 = arith.constant 0.000000e+00 : f32
    %159 = vector.broadcast %cst_215 : f32 to vector<16x1000xf32>
    %160 = arith.maximumf %158, %159 : vector<16x1000xf32>
    %161 = vector.broadcast %5 : vector<1x1000xf32> to vector<16x1000xf32>
    %162 = arith.mulf %160, %161 : vector<16x1000xf32>
    %163 = arith.truncf %162 : vector<16x1000xf32> to vector<16x1000xbf16>
    %c0_216 = arith.constant 0 : index
    %c128_217 = arith.constant 128 : index
    %164 = vector.load %arg10[%c0_216, %c128_217] : memref<16x1256xbf16, #tpu.memory_space<vmem>>, vector<16x1000xbf16>
    tpu.vector_store %arg10[%c0_216, %c128_217], %163 {strides = array<i32>} : memref<16x1256xbf16, #tpu.memory_space<vmem>>, vector<16x1000xbf16>,
    %c0_218 = arith.constant 0 : index
    %c2 = arith.constant 2 : index
    %165 = vector.load %arg5[%c0_218, %c2] : memref<16x3xf32, #tpu.memory_space<vmem>>, vector<16x1xf32>
    %c0_219 = arith.constant 0 : index
    %c17_220 = arith.constant 17 : index
    %166 = vector.load %arg10[%c0_219, %c17_220] : memref<16x1256xbf16, #tpu.memory_space<vmem>>, vector<16x1000xbf16>
    %c0_221 = arith.constant 0 : index
    %c0_222 = arith.constant 0 : index
    %167 = vector.load %arg8[%c0_221, %c0_222] : memref<432x1000xbf16, #tpu.memory_space<vmem>>, vector<16x1000xbf16>
    tpu.vector_store %arg8[%c0_221, %c0_222], %166 {strides = array<i32>} : memref<432x1000xbf16, #tpu.memory_space<vmem>>, vector<16x1000xbf16>,
    %c0_223 = arith.constant 0 : index
    %c18_224 = arith.constant 18 : index
    %168 = vector.load %arg10[%c0_223, %c18_224] : memref<16x1256xbf16, #tpu.memory_space<vmem>>, vector<16x1000xbf16>
    %c16_225 = arith.constant 16 : index
    %c0_226 = arith.constant 0 : index
    %169 = vector.load %arg8[%c16_225, %c0_226] : memref<432x1000xbf16, #tpu.memory_space<vmem>>, vector<16x1000xbf16>
    tpu.vector_store %arg8[%c16_225, %c0_226], %168 {strides = array<i32>} : memref<432x1000xbf16, #tpu.memory_space<vmem>>, vector<16x1000xbf16>,
    %c0_227 = arith.constant 0 : index
    %c19_228 = arith.constant 19 : index
    %170 = vector.load %arg10[%c0_227, %c19_228] : memref<16x1256xbf16, #tpu.memory_space<vmem>>, vector<16x1000xbf16>
    %c32_229 = arith.constant 32 : index
    %c0_230 = arith.constant 0 : index
    %171 = vector.load %arg8[%c32_229, %c0_230] : memref<432x1000xbf16, #tpu.memory_space<vmem>>, vector<16x1000xbf16>
    tpu.vector_store %arg8[%c32_229, %c0_230], %170 {strides = array<i32>} : memref<432x1000xbf16, #tpu.memory_space<vmem>>, vector<16x1000xbf16>,
    %c0_231 = arith.constant 0 : index
    %c27_232 = arith.constant 27 : index
    %172 = vector.load %arg10[%c0_231, %c27_232] : memref<16x1256xbf16, #tpu.memory_space<vmem>>, vector<16x1000xbf16>
    %c48_233 = arith.constant 48 : index
    %c0_234 = arith.constant 0 : index
    %173 = vector.load %arg8[%c48_233, %c0_234] : memref<432x1000xbf16, #tpu.memory_space<vmem>>, vector<16x1000xbf16>
    tpu.vector_store %arg8[%c48_233, %c0_234], %172 {strides = array<i32>} : memref<432x1000xbf16, #tpu.memory_space<vmem>>, vector<16x1000xbf16>,
    %c0_235 = arith.constant 0 : index
    %c28_236 = arith.constant 28 : index
    %174 = vector.load %arg10[%c0_235, %c28_236] : memref<16x1256xbf16, #tpu.memory_space<vmem>>, vector<16x1000xbf16>
    %c64_237 = arith.constant 64 : index
    %c0_238 = arith.constant 0 : index
    %175 = vector.load %arg8[%c64_237, %c0_238] : memref<432x1000xbf16, #tpu.memory_space<vmem>>, vector<16x1000xbf16>
    tpu.vector_store %arg8[%c64_237, %c0_238], %174 {strides = array<i32>} : memref<432x1000xbf16, #tpu.memory_space<vmem>>, vector<16x1000xbf16>,
    %c0_239 = arith.constant 0 : index
    %c29_240 = arith.constant 29 : index
    %176 = vector.load %arg10[%c0_239, %c29_240] : memref<16x1256xbf16, #tpu.memory_space<vmem>>, vector<16x1000xbf16>
    %c80_241 = arith.constant 80 : index
    %c0_242 = arith.constant 0 : index
    %177 = vector.load %arg8[%c80_241, %c0_242] : memref<432x1000xbf16, #tpu.memory_space<vmem>>, vector<16x1000xbf16>
    tpu.vector_store %arg8[%c80_241, %c0_242], %176 {strides = array<i32>} : memref<432x1000xbf16, #tpu.memory_space<vmem>>, vector<16x1000xbf16>,
    %c0_243 = arith.constant 0 : index
    %c37_244 = arith.constant 37 : index
    %178 = vector.load %arg10[%c0_243, %c37_244] : memref<16x1256xbf16, #tpu.memory_space<vmem>>, vector<16x1000xbf16>
    %c96_245 = arith.constant 96 : index
    %c0_246 = arith.constant 0 : index
    %179 = vector.load %arg8[%c96_245, %c0_246] : memref<432x1000xbf16, #tpu.memory_space<vmem>>, vector<16x1000xbf16>
    tpu.vector_store %arg8[%c96_245, %c0_246], %178 {strides = array<i32>} : memref<432x1000xbf16, #tpu.memory_space<vmem>>, vector<16x1000xbf16>,
    %c0_247 = arith.constant 0 : index
    %c38_248 = arith.constant 38 : index
    %180 = vector.load %arg10[%c0_247, %c38_248] : memref<16x1256xbf16, #tpu.memory_space<vmem>>, vector<16x1000xbf16>
    %c112_249 = arith.constant 112 : index
    %c0_250 = arith.constant 0 : index
    %181 = vector.load %arg8[%c112_249, %c0_250] : memref<432x1000xbf16, #tpu.memory_space<vmem>>, vector<16x1000xbf16>
    tpu.vector_store %arg8[%c112_249, %c0_250], %180 {strides = array<i32>} : memref<432x1000xbf16, #tpu.memory_space<vmem>>, vector<16x1000xbf16>,
    %c0_251 = arith.constant 0 : index
    %c39_252 = arith.constant 39 : index
    %182 = vector.load %arg10[%c0_251, %c39_252] : memref<16x1256xbf16, #tpu.memory_space<vmem>>, vector<16x1000xbf16>
    %c128_253 = arith.constant 128 : index
    %c0_254 = arith.constant 0 : index
    %183 = vector.load %arg8[%c128_253, %c0_254] : memref<432x1000xbf16, #tpu.memory_space<vmem>>, vector<16x1000xbf16>
    tpu.vector_store %arg8[%c128_253, %c0_254], %182 {strides = array<i32>} : memref<432x1000xbf16, #tpu.memory_space<vmem>>, vector<16x1000xbf16>,
    %c0_255 = arith.constant 0 : index
    %c117_256 = arith.constant 117 : index
    %184 = vector.load %arg10[%c0_255, %c117_256] : memref<16x1256xbf16, #tpu.memory_space<vmem>>, vector<16x1000xbf16>
    %c144_257 = arith.constant 144 : index
    %c0_258 = arith.constant 0 : index
    %185 = vector.load %arg8[%c144_257, %c0_258] : memref<432x1000xbf16, #tpu.memory_space<vmem>>, vector<16x1000xbf16>
    tpu.vector_store %arg8[%c144_257, %c0_258], %184 {strides = array<i32>} : memref<432x1000xbf16, #tpu.memory_space<vmem>>, vector<16x1000xbf16>,
    %c0_259 = arith.constant 0 : index
    %c118_260 = arith.constant 118 : index
    %186 = vector.load %arg10[%c0_259, %c118_260] : memref<16x1256xbf16, #tpu.memory_space<vmem>>, vector<16x1000xbf16>
    %c160_261 = arith.constant 160 : index
    %c0_262 = arith.constant 0 : index
    %187 = vector.load %arg8[%c160_261, %c0_262] : memref<432x1000xbf16, #tpu.memory_space<vmem>>, vector<16x1000xbf16>
    tpu.vector_store %arg8[%c160_261, %c0_262], %186 {strides = array<i32>} : memref<432x1000xbf16, #tpu.memory_space<vmem>>, vector<16x1000xbf16>,
    %c0_263 = arith.constant 0 : index
    %c119_264 = arith.constant 119 : index
    %188 = vector.load %arg10[%c0_263, %c119_264] : memref<16x1256xbf16, #tpu.memory_space<vmem>>, vector<16x1000xbf16>
    %c176_265 = arith.constant 176 : index
    %c0_266 = arith.constant 0 : index
    %189 = vector.load %arg8[%c176_265, %c0_266] : memref<432x1000xbf16, #tpu.memory_space<vmem>>, vector<16x1000xbf16>
    tpu.vector_store %arg8[%c176_265, %c0_266], %188 {strides = array<i32>} : memref<432x1000xbf16, #tpu.memory_space<vmem>>, vector<16x1000xbf16>,
    %c0_267 = arith.constant 0 : index
    %c127_268 = arith.constant 127 : index
    %190 = vector.load %arg10[%c0_267, %c127_268] : memref<16x1256xbf16, #tpu.memory_space<vmem>>, vector<16x1000xbf16>
    %c192_269 = arith.constant 192 : index
    %c0_270 = arith.constant 0 : index
    %191 = vector.load %arg8[%c192_269, %c0_270] : memref<432x1000xbf16, #tpu.memory_space<vmem>>, vector<16x1000xbf16>
    tpu.vector_store %arg8[%c192_269, %c0_270], %190 {strides = array<i32>} : memref<432x1000xbf16, #tpu.memory_space<vmem>>, vector<16x1000xbf16>,
    %c0_271 = arith.constant 0 : index
    %c128_272 = arith.constant 128 : index
    %192 = vector.load %arg10[%c0_271, %c128_272] : memref<16x1256xbf16, #tpu.memory_space<vmem>>, vector<16x1000xbf16>
    %c208_273 = arith.constant 208 : index
    %c0_274 = arith.constant 0 : index
    %193 = vector.load %arg8[%c208_273, %c0_274] : memref<432x1000xbf16, #tpu.memory_space<vmem>>, vector<16x1000xbf16>
    tpu.vector_store %arg8[%c208_273, %c0_274], %192 {strides = array<i32>} : memref<432x1000xbf16, #tpu.memory_space<vmem>>, vector<16x1000xbf16>,
    %c0_275 = arith.constant 0 : index
    %c129_276 = arith.constant 129 : index
    %194 = vector.load %arg10[%c0_275, %c129_276] : memref<16x1256xbf16, #tpu.memory_space<vmem>>, vector<16x1000xbf16>
    %c224_277 = arith.constant 224 : index
    %c0_278 = arith.constant 0 : index
    %195 = vector.load %arg8[%c224_277, %c0_278] : memref<432x1000xbf16, #tpu.memory_space<vmem>>, vector<16x1000xbf16>
    tpu.vector_store %arg8[%c224_277, %c0_278], %194 {strides = array<i32>} : memref<432x1000xbf16, #tpu.memory_space<vmem>>, vector<16x1000xbf16>,
    %c0_279 = arith.constant 0 : index
    %c137_280 = arith.constant 137 : index
    %196 = vector.load %arg10[%c0_279, %c137_280] : memref<16x1256xbf16, #tpu.memory_space<vmem>>, vector<16x1000xbf16>
    %c240_281 = arith.constant 240 : index
    %c0_282 = arith.constant 0 : index
    %197 = vector.load %arg8[%c240_281, %c0_282] : memref<432x1000xbf16, #tpu.memory_space<vmem>>, vector<16x1000xbf16>
    tpu.vector_store %arg8[%c240_281, %c0_282], %196 {strides = array<i32>} : memref<432x1000xbf16, #tpu.memory_space<vmem>>, vector<16x1000xbf16>,
    %c0_283 = arith.constant 0 : index
    %c138_284 = arith.constant 138 : index
    %198 = vector.load %arg10[%c0_283, %c138_284] : memref<16x1256xbf16, #tpu.memory_space<vmem>>, vector<16x1000xbf16>
    %c256_285 = arith.constant 256 : index
    %c0_286 = arith.constant 0 : index
    %199 = vector.load %arg8[%c256_285, %c0_286] : memref<432x1000xbf16, #tpu.memory_space<vmem>>, vector<16x1000xbf16>
    tpu.vector_store %arg8[%c256_285, %c0_286], %198 {strides = array<i32>} : memref<432x1000xbf16, #tpu.memory_space<vmem>>, vector<16x1000xbf16>,
    %c0_287 = arith.constant 0 : index
    %c139_288 = arith.constant 139 : index
    %200 = vector.load %arg10[%c0_287, %c139_288] : memref<16x1256xbf16, #tpu.memory_space<vmem>>, vector<16x1000xbf16>
    %c272_289 = arith.constant 272 : index
    %c0_290 = arith.constant 0 : index
    %201 = vector.load %arg8[%c272_289, %c0_290] : memref<432x1000xbf16, #tpu.memory_space<vmem>>, vector<16x1000xbf16>
    tpu.vector_store %arg8[%c272_289, %c0_290], %200 {strides = array<i32>} : memref<432x1000xbf16, #tpu.memory_space<vmem>>, vector<16x1000xbf16>,
    %c0_291 = arith.constant 0 : index
    %c217_292 = arith.constant 217 : index
    %202 = vector.load %arg10[%c0_291, %c217_292] : memref<16x1256xbf16, #tpu.memory_space<vmem>>, vector<16x1000xbf16>
    %c288_293 = arith.constant 288 : index
    %c0_294 = arith.constant 0 : index
    %203 = vector.load %arg8[%c288_293, %c0_294] : memref<432x1000xbf16, #tpu.memory_space<vmem>>, vector<16x1000xbf16>
    tpu.vector_store %arg8[%c288_293, %c0_294], %202 {strides = array<i32>} : memref<432x1000xbf16, #tpu.memory_space<vmem>>, vector<16x1000xbf16>,
    %c0_295 = arith.constant 0 : index
    %c218_296 = arith.constant 218 : index
    %204 = vector.load %arg10[%c0_295, %c218_296] : memref<16x1256xbf16, #tpu.memory_space<vmem>>, vector<16x1000xbf16>
    %c304_297 = arith.constant 304 : index
    %c0_298 = arith.constant 0 : index
    %205 = vector.load %arg8[%c304_297, %c0_298] : memref<432x1000xbf16, #tpu.memory_space<vmem>>, vector<16x1000xbf16>
    tpu.vector_store %arg8[%c304_297, %c0_298], %204 {strides = array<i32>} : memref<432x1000xbf16, #tpu.memory_space<vmem>>, vector<16x1000xbf16>,
    %c0_299 = arith.constant 0 : index
    %c219_300 = arith.constant 219 : index
    %206 = vector.load %arg10[%c0_299, %c219_300] : memref<16x1256xbf16, #tpu.memory_space<vmem>>, vector<16x1000xbf16>
    %c320_301 = arith.constant 320 : index
    %c0_302 = arith.constant 0 : index
    %207 = vector.load %arg8[%c320_301, %c0_302] : memref<432x1000xbf16, #tpu.memory_space<vmem>>, vector<16x1000xbf16>
    tpu.vector_store %arg8[%c320_301, %c0_302], %206 {strides = array<i32>} : memref<432x1000xbf16, #tpu.memory_space<vmem>>, vector<16x1000xbf16>,
    %c0_303 = arith.constant 0 : index
    %c227_304 = arith.constant 227 : index
    %208 = vector.load %arg10[%c0_303, %c227_304] : memref<16x1256xbf16, #tpu.memory_space<vmem>>, vector<16x1000xbf16>
    %c336_305 = arith.constant 336 : index
    %c0_306 = arith.constant 0 : index
    %209 = vector.load %arg8[%c336_305, %c0_306] : memref<432x1000xbf16, #tpu.memory_space<vmem>>, vector<16x1000xbf16>
    tpu.vector_store %arg8[%c336_305, %c0_306], %208 {strides = array<i32>} : memref<432x1000xbf16, #tpu.memory_space<vmem>>, vector<16x1000xbf16>,
    %c0_307 = arith.constant 0 : index
    %c228_308 = arith.constant 228 : index
    %210 = vector.load %arg10[%c0_307, %c228_308] : memref<16x1256xbf16, #tpu.memory_space<vmem>>, vector<16x1000xbf16>
    %c352_309 = arith.constant 352 : index
    %c0_310 = arith.constant 0 : index
    %211 = vector.load %arg8[%c352_309, %c0_310] : memref<432x1000xbf16, #tpu.memory_space<vmem>>, vector<16x1000xbf16>
    tpu.vector_store %arg8[%c352_309, %c0_310], %210 {strides = array<i32>} : memref<432x1000xbf16, #tpu.memory_space<vmem>>, vector<16x1000xbf16>,
    %c0_311 = arith.constant 0 : index
    %c229_312 = arith.constant 229 : index
    %212 = vector.load %arg10[%c0_311, %c229_312] : memref<16x1256xbf16, #tpu.memory_space<vmem>>, vector<16x1000xbf16>
    %c368_313 = arith.constant 368 : index
    %c0_314 = arith.constant 0 : index
    %213 = vector.load %arg8[%c368_313, %c0_314] : memref<432x1000xbf16, #tpu.memory_space<vmem>>, vector<16x1000xbf16>
    tpu.vector_store %arg8[%c368_313, %c0_314], %212 {strides = array<i32>} : memref<432x1000xbf16, #tpu.memory_space<vmem>>, vector<16x1000xbf16>,
    %c0_315 = arith.constant 0 : index
    %c237_316 = arith.constant 237 : index
    %214 = vector.load %arg10[%c0_315, %c237_316] : memref<16x1256xbf16, #tpu.memory_space<vmem>>, vector<16x1000xbf16>
    %c384_317 = arith.constant 384 : index
    %c0_318 = arith.constant 0 : index
    %215 = vector.load %arg8[%c384_317, %c0_318] : memref<432x1000xbf16, #tpu.memory_space<vmem>>, vector<16x1000xbf16>
    tpu.vector_store %arg8[%c384_317, %c0_318], %214 {strides = array<i32>} : memref<432x1000xbf16, #tpu.memory_space<vmem>>, vector<16x1000xbf16>,
    %c0_319 = arith.constant 0 : index
    %c238_320 = arith.constant 238 : index
    %216 = vector.load %arg10[%c0_319, %c238_320] : memref<16x1256xbf16, #tpu.memory_space<vmem>>, vector<16x1000xbf16>
    %c400_321 = arith.constant 400 : index
    %c0_322 = arith.constant 0 : index
    %217 = vector.load %arg8[%c400_321, %c0_322] : memref<432x1000xbf16, #tpu.memory_space<vmem>>, vector<16x1000xbf16>
    tpu.vector_store %arg8[%c400_321, %c0_322], %216 {strides = array<i32>} : memref<432x1000xbf16, #tpu.memory_space<vmem>>, vector<16x1000xbf16>,
    %c0_323 = arith.constant 0 : index
    %c239_324 = arith.constant 239 : index
    %218 = vector.load %arg10[%c0_323, %c239_324] : memref<16x1256xbf16, #tpu.memory_space<vmem>>, vector<16x1000xbf16>
    %c416_325 = arith.constant 416 : index
    %c0_326 = arith.constant 0 : index
    %219 = vector.load %arg8[%c416_325, %c0_326] : memref<432x1000xbf16, #tpu.memory_space<vmem>>, vector<16x1000xbf16>
    tpu.vector_store %arg8[%c416_325, %c0_326], %218 {strides = array<i32>} : memref<432x1000xbf16, #tpu.memory_space<vmem>>, vector<16x1000xbf16>,
    %c0_327 = arith.constant 0 : index
    %c0_328 = arith.constant 0 : index
    %220 = vector.load %arg4[%c0_327, %c0_328] : memref<16x432xbf16, #tpu.memory_space<vmem>>, vector<16x432xbf16>
    %c0_329 = arith.constant 0 : index
    %c0_330 = arith.constant 0 : index
    %221 = vector.load %arg8[%c0_329, %c0_330] : memref<432x1000xbf16, #tpu.memory_space<vmem>>, vector<432x1000xbf16>
    %cst_331 = arith.constant dense<0.000000e+00> : vector<16x1000xf32>
    %222 = tpu.matmul %220, %221, %cst_331 {dimension_numbers = #tpu.dot_dimension_numbers<[1], [0], [0], [1], [0, 0, 1, 1], [], []>} : vector<16x432xbf16>, vector<432x1000xbf16>, vector<16x1000xf32> -> vector<16x1000xf32>
    %223 = vector.broadcast %165 : vector<16x1xf32> to vector<16x1000xf32>
    %224 = arith.addf %222, %223 : vector<16x1000xf32>
    %c0_332 = arith.constant 0 : index
    %c128_333 = arith.constant 128 : index
    %225 = vector.load %arg9[%c0_332, %c128_333] : memref<16x1256xbf16, #tpu.memory_space<vmem>>, vector<16x1000xbf16>
    %226 = arith.extf %225 : vector<16x1000xbf16> to vector<16x1000xf32>
    %227 = arith.addf %226, %224 : vector<16x1000xf32>
    %cst_334 = arith.constant 0.000000e+00 : f32
    %228 = vector.broadcast %cst_334 : f32 to vector<16x1000xf32>
    %229 = arith.maximumf %227, %228 : vector<16x1000xf32>
    %230 = arith.truncf %229 : vector<16x1000xf32> to vector<16x1000xbf16>
    %c0_335 = arith.constant 0 : index
    %c0_336 = arith.constant 0 : index
    %c0_337 = arith.constant 0 : index
    %231 = vector.load %arg7[%c0_335, %c0_336, %c0_337] : memref<1x16x1000xbf16, #tpu.memory_space<vmem>>, vector<1x16x1000xbf16>
    %232 = vector.shape_cast %231 : vector<1x16x1000xbf16> to vector<16x1000xbf16>
    %233 = vector.shape_cast %230 : vector<16x1000xbf16> to vector<1x16x1000xbf16>
    tpu.vector_store %arg7[%c0_335, %c0_336, %c0_337], %233 {strides = array<i32>} : memref<1x16x1000xbf16, #tpu.memory_space<vmem>>, vector<1x16x1000xbf16>,
    return
  }
  func.func @transform_0(%arg0: i32) -> (i32, i32, i32) {
    %c0_i32 = arith.constant 0 : i32
    %c0_i32_0 = arith.constant 0 : i32
    %c0_i32_1 = arith.constant 0 : i32
    return %arg0, %c0_i32, %c0_i32_0 : i32, i32, i32
  }
  func.func @transform_1(%arg0: i32) -> (i32, i32) {
    %c0_i32 = arith.constant 0 : i32
    %c0_i32_0 = arith.constant 0 : i32
    %c0_i32_1 = arith.constant 0 : i32
    return %c0_i32, %c0_i32_0 : i32, i32
  }
  func.func @transform_2(%arg0: i32) -> (i32, i32) {
    %c0_i32 = arith.constant 0 : i32
    %c0_i32_0 = arith.constant 0 : i32
    %c0_i32_1 = arith.constant 0 : i32
    return %c0_i32, %c0_i32_0 : i32, i32
  }
  func.func @transform_3(%arg0: i32) -> (i32, i32) {
    %c0_i32 = arith.constant 0 : i32
    %c0_i32_0 = arith.constant 0 : i32
    %c0_i32_1 = arith.constant 0 : i32
    return %c0_i32, %c0_i32_0 : i32, i32
  }
  func.func @transform_4(%arg0: i32) -> (i32, i32) {
    %c0_i32 = arith.constant 0 : i32
    %c0_i32_0 = arith.constant 0 : i32
    %c0_i32_1 = arith.constant 0 : i32
    return %c0_i32, %c0_i32_0 : i32, i32
  }
  func.func @transform_5(%arg0: i32) -> (i32, i32) {
    %c0_i32 = arith.constant 0 : i32
    %c0_i32_0 = arith.constant 0 : i32
    %c0_i32_1 = arith.constant 0 : i32
    return %c0_i32, %c0_i32_0 : i32, i32
  }
  func.func @transform_6(%arg0: i32) -> (i32, i32, i32) {
    %c0_i32 = arith.constant 0 : i32
    %c0_i32_0 = arith.constant 0 : i32
    %c0_i32_1 = arith.constant 0 : i32
    return %arg0, %c0_i32, %c0_i32_0 : i32, i32, i32
  }
}

</mosaic_0001>

<llo_original>
// kernel: tpu_custom_call.1
$region0: #{tpu_custom_call.1}
  #allocation0 [shape = 'u32[]', space=smem, size = 0x4, offset = 0x4, fixed_abs, tag = 'smem constant byte address 0x4 - core index']
  #allocation1 [shape = 'u32[144,128]{1,0:T(1,128)}', space=vmem, size = 0x12000, scoped, tag = 'internal scratch']
  #allocation2 [shape = 'bf16[432,1000]{1,0:T(16,128)(2,1)}', space=vmem, size = 0xd8000, scoped, tag = 'scratch operand']
  #allocation3 [shape = 'bf16[16,1256]{1,0:T(16,128)(2,1)}', space=vmem, size = 0xa000, scoped, tag = 'scratch operand']
  #allocation4 [shape = 'bf16[16,1256]{1,0:T(16,128)(2,1)}', space=vmem, size = 0xa000, scoped, tag = 'scratch operand']
  %s0 = inlined_call_operand.hbm [shape: bf16[2,16,1256], index: 0, kind: input, shape index: {}]
  %s1 = inlined_call_operand.hbm [shape: bf16[16,432], index: 1, kind: input, shape index: {}]
  %s2 = inlined_call_operand.hbm [shape: bf16[16,432], index: 2, kind: input, shape index: {}]
  %s3 = inlined_call_operand.hbm [shape: bf16[16,432], index: 3, kind: input, shape index: {}]
  %s4 = inlined_call_operand.vmem [shape: f32[16,3], index: 4, kind: input, shape index: {}]
  %s5 = inlined_call_operand.vmem [shape: f32[1,1000], index: 5, kind: input, shape index: {}]
  %s6 = inlined_call_operand.hbm [shape: bf16[2,16,1000], index: 6, kind: output, shape index: {}]
  %s7 = sld [smem:[#allocation0]]
  $region73: #{tpu_custom_call.1} parent=0
    _
  %s9 = ssub.s32 1, %s7
  %s10 = scalar_select 0, %s9, %s7
  $region1: #{tpu_custom_call.1} parent=0
    #allocation5 [shape = 'u8[81920]{0}', space=vmem, size = 0x14000, scoped, tag = 'input window, operand 0']
    #allocation6 [shape = 's32[2]{0}', space=sflag, size = 0x8, scoped, tag = 'scoped memory for tpu_custom_call.1']
    #allocation7 [shape = 's32[2]{0}', space=sflag, size = 0x8, scoped, tag = 'scoped memory for tpu_custom_call.1']
    #allocation8 [shape = 'u8[16384]{0}', space=vmem, size = 0x4000, scoped, tag = 'input window, operand 1, single buffered']
    #allocation9 [shape = 's32[1]{0}', space=sflag, size = 0x4, scoped, tag = 'scoped memory for tpu_custom_call.1']
    #allocation10 [shape = 'u8[16384]{0}', space=vmem, size = 0x4000, scoped, tag = 'input window, operand 2, single buffered']
    #allocation11 [shape = 'u8[16384]{0}', space=vmem, size = 0x4000, scoped, tag = 'input window, operand 3, single buffered']
    #allocation12 [shape = 's32[1]{0}', space=sflag, size = 0x4, scoped, tag = 'scoped memory for tpu_custom_call.1']
    #allocation13 [shape = 'u8[65536]{0}', space=vmem, size = 0x10000, scoped, tag = 'output window, operand 0']
    %11 = vsyncpa [#allocation6], 0
    %s12 = scalar_lea.sflag [#allocation6], 1
    %13 = vsyncpa %s12, 0
    %14 = vsyncpa [#allocation9], 0
    %15 = vsyncpa [#allocation12], 0
    %16 = vsyncpa [#allocation7], 0
    %s17 = scalar_lea.sflag [#allocation7], 1
    %18 = vsyncpa %s17, 0
    loop: start=0, step=1, limit=4
    $region2: #{tpu_custom_call.1} parent=1 // loop_pre_header
      _
    $region3: #{tpu_custom_call.1} parent=1 // loop_header
      %s20 = sphi 0, %s24
      %p21 = scmp.ge.s32.totalorder %s20, 4
      %s30 = sphi 0, %s32
      %s33 = sphi 0, %s30
      %s34 = sphi 0, %s33
      %s50 = sphi 0, %s34
      %s54 = sphi 0, %s54
      %s56 = sphi 0, %s54
      %s57 = sphi 0, %s56
      %s71 = sphi 0, %s57
      %s75 = sphi 0, %s75
      %s77 = sphi 0, %s75
      %s78 = sphi 0, %s77
      %s92 = sphi 0, %s78
      %s96 = sphi 0, %s96
      %s98 = sphi 0, %s96
      %s99 = sphi 0, %s98
      %s113 = sphi 0, %s99
      %s117 = sphi 0, %s117
      %s119 = sphi 0, %s117
      %s120 = sphi 0, %s119
      %s134 = sphi 0, %s120
      %s138 = sphi 0, %s138
      %s140 = sphi 0, %s138
      %s141 = sphi 0, %s140
      %s155 = sphi 0, %s141
      %s161 = sphi 0, %s163
      %s164 = sphi 0, %s161
      %s165 = sphi 0, %s164
      %s181 = sphi 0, %s165
    $region4: #{tpu_custom_call.1} parent=1 // loop_header_branch
      %23 = sbr.rel (%p21) target = $region8
    $region5: #{tpu_custom_call.1} parent=1 // loop_body
      %s25 = ssub.s32 %s20, 1
      %s26 = ssub.s32 %s20, 2
      %s27 = sadd.s32 %s20, 1
      %s28 = ssub.s32 %s20, %s27
      %p29 = scmp.eq.s32.totalorder %s28, 0
      %s31 = sadd.s32 %s30, 1
      %s32 = scalar_select %p29, %s30, %s31
      %p35 = pneg %p29
      %p36 = scmp.eq.s32.totalorder %s20, 1
      %p37 = por %p35, %p36
      %p38 = scmp.ne.s32.totalorder %s30, %s33
      %p39 = scmp.eq.s32.totalorder %s20, 0
      %p40 = por %p38, %p39
      %p41 = scmp.ne.s32.totalorder %s30, %s33
      %p42 = scmp.eq.s32.totalorder %s25, 1
      %p43 = por %p41, %p42
      %p44 = scmp.ne.s32.totalorder %s33, %s34
      %p45 = scmp.eq.s32.totalorder %s25, 0
      %p46 = por %p44, %p45
      %p47 = scmp.ne.s32.totalorder %s33, %s34
      %p48 = scmp.eq.s32.totalorder %s26, 1
      %p49 = por %p47, %p48
      %p51 = scmp.ne.s32.totalorder %s34, %s50
      %p52 = scmp.eq.s32.totalorder %s26, 0
      %p53 = por %p51, %p52
      %s55 = sadd.s32 %s54, 1
      %p58 = scmp.eq.s32.totalorder %s20, 1
      %p59 = scmp.ne.s32.totalorder %s54, %s56
      %p60 = scmp.eq.s32.totalorder %s20, 0
      %p61 = por %p59, %p60
      %p62 = scmp.ne.s32.totalorder %s54, %s56
      %p63 = scmp.eq.s32.totalorder %s25, 1
      %p64 = por %p62, %p63
      %p65 = scmp.ne.s32.totalorder %s56, %s57
      %p66 = scmp.eq.s32.totalorder %s25, 0
      %p67 = por %p65, %p66
      %p68 = scmp.ne.s32.totalorder %s56, %s57
      %p69 = scmp.eq.s32.totalorder %s26, 1
      %p70 = por %p68, %p69
      %p72 = scmp.ne.s32.totalorder %s57, %s71
      %p73 = scmp.eq.s32.totalorder %s26, 0
      %p74 = por %p72, %p73
      %s76 = sadd.s32 %s75, 1
      %p79 = scmp.eq.s32.totalorder %s20, 1
      %p80 = scmp.ne.s32.totalorder %s75, %s77
      %p81 = scmp.eq.s32.totalorder %s20, 0
      %p82 = por %p80, %p81
      %p83 = scmp.ne.s32.totalorder %s75, %s77
      %p84 = scmp.eq.s32.totalorder %s25, 1
      %p85 = por %p83, %p84
      %p86 = scmp.ne.s32.totalorder %s77, %s78
      %p87 = scmp.eq.s32.totalorder %s25, 0
      %p88 = por %p86, %p87
      %p89 = scmp.ne.s32.totalorder %s77, %s78
      %p90 = scmp.eq.s32.totalorder %s26, 1
      %p91 = por %p89, %p90
      %p93 = scmp.ne.s32.totalorder %s78, %s92
      %p94 = scmp.eq.s32.totalorder %s26, 0
      %p95 = por %p93, %p94
      %s97 = sadd.s32 %s96, 1
      %p100 = scmp.eq.s32.totalorder %s20, 1
      %p101 = scmp.ne.s32.totalorder %s96, %s98
      %p102 = scmp.eq.s32.totalorder %s20, 0
      %p103 = por %p101, %p102
      %p104 = scmp.ne.s32.totalorder %s96, %s98
      %p105 = scmp.eq.s32.totalorder %s25, 1
      %p106 = por %p104, %p105
      %p107 = scmp.ne.s32.totalorder %s98, %s99
      %p108 = scmp.eq.s32.totalorder %s25, 0
      %p109 = por %p107, %p108
      %p110 = scmp.ne.s32.totalorder %s98, %s99
      %p111 = scmp.eq.s32.totalorder %s26, 1
      %p112 = por %p110, %p111
      %p114 = scmp.ne.s32.totalorder %s99, %s113
      %p115 = scmp.eq.s32.totalorder %s26, 0
      %p116 = por %p114, %p115
      %s118 = sadd.s32 %s117, 1
      %p121 = scmp.eq.s32.totalorder %s20, 1
      %p122 = scmp.ne.s32.totalorder %s117, %s119
      %p123 = scmp.eq.s32.totalorder %s20, 0
      %p124 = por %p122, %p123
      %p125 = scmp.ne.s32.totalorder %s117, %s119
      %p126 = scmp.eq.s32.totalorder %s25, 1
      %p127 = por %p125, %p126
      %p128 = scmp.ne.s32.totalorder %s119, %s120
      %p129 = scmp.eq.s32.totalorder %s25, 0
      %p130 = por %p128, %p129
      %p131 = scmp.ne.s32.totalorder %s119, %s120
      %p132 = scmp.eq.s32.totalorder %s26, 1
      %p133 = por %p131, %p132
      %p135 = scmp.ne.s32.totalorder %s120, %s134
      %p136 = scmp.eq.s32.totalorder %s26, 0
      %p137 = por %p135, %p136
      %s139 = sadd.s32 %s138, 1
      %p142 = scmp.eq.s32.totalorder %s20, 1
      %p143 = scmp.ne.s32.totalorder %s138, %s140
      %p144 = scmp.eq.s32.totalorder %s20, 0
      %p145 = por %p143, %p144
      %p146 = scmp.ne.s32.totalorder %s138, %s140
      %p147 = scmp.eq.s32.totalorder %s25, 1
      %p148 = por %p146, %p147
      %p149 = scmp.ne.s32.totalorder %s140, %s141
      %p150 = scmp.eq.s32.totalorder %s25, 0
      %p151 = por %p149, %p150
      %p152 = scmp.ne.s32.totalorder %s140, %s141
      %p153 = scmp.eq.s32.totalorder %s26, 1
      %p154 = por %p152, %p153
      %p156 = scmp.ne.s32.totalorder %s141, %s155
      %p157 = scmp.eq.s32.totalorder %s26, 0
      %p158 = por %p156, %p157
      %s159 = ssub.s32 %s20, %s27
      %p160 = scmp.eq.s32.totalorder %s159, 0
      %s162 = sadd.s32 %s161, 1
      %s163 = scalar_select %p160, %s161, %s162
      %p166 = pneg %p160
      %p167 = scmp.eq.s32.totalorder %s20, 1
      %p168 = por %p166, %p167
      %p169 = scmp.ne.s32.totalorder %s161, %s164
      %p170 = scmp.eq.s32.totalorder %s20, 0
      %p171 = por %p169, %p170
      %p172 = scmp.ne.s32.totalorder %s161, %s164
      %p173 = scmp.eq.s32.totalorder %s25, 1
      %p174 = por %p172, %p173
      %p175 = scmp.ne.s32.totalorder %s164, %s165
      %p176 = scmp.eq.s32.totalorder %s25, 0
      %p177 = por %p175, %p176
      %p178 = scmp.ne.s32.totalorder %s164, %s165
      %p179 = scmp.eq.s32.totalorder %s26, 1
      %p180 = por %p178, %p179
      %p182 = scmp.ne.s32.totalorder %s165, %s181
      %p183 = scmp.eq.s32.totalorder %s26, 0
      %p184 = por %p182, %p183
      %p185 = scmp.le.s32.totalorder 1, %s20
      %p186 = scmp.lt.s32.totalorder %s20, 3
      %p187 = pnand %p185, %p186
      %p188 = pneg %p187
      // Predicated region
      $region9: #{tpu_custom_call.1} parent=5 // pred_check
        _
      $region10: #{tpu_custom_call.1} parent=5 // pred_check_branch
        %190 = sbr.rel (%p187) target = $region12
      $region11: #{tpu_custom_call.1} parent=5 // pred_region
        %s191 = ssub.s32 %s20, 1
        // Predicated region
        $region13: #{tpu_custom_call.1} parent=11 // pred_check
          %p192 = pneg %p67
        $region14: #{tpu_custom_call.1} parent=11 // pred_check_branch
          %194 = sbr.rel (%p192) target = $region16
        $region15: #{tpu_custom_call.1} parent=11 // pred_region
          %s196 = ssub.s32 512, 512
          %197 = vsyncadd [#allocation9], %s196
          %s198 = sshll.u32 [#allocation8], 4
          %s199 = int_to_ptr.vmem [resolvable:$true] %s198
          %204 = dma.hbm_to_vmem [thread:$0]  %s1, 512, %s199, [#allocation9], 256, 256, 16
        $region16: #{tpu_custom_call.1} parent=11 // pred_fallthru
          _
        // Predicated region
        $region17: #{tpu_custom_call.1} parent=11 // pred_check
          %p205 = pneg %p88
        $region18: #{tpu_custom_call.1} parent=11 // pred_check_branch
          %207 = sbr.rel (%p205) target = $region20
        $region19: #{tpu_custom_call.1} parent=11 // pred_region
          %s209 = ssub.s32 512, 512
          %210 = vsyncadd [#allocation9], %s209
          %s211 = sshll.u32 [#allocation10], 4
          %s212 = int_to_ptr.vmem [resolvable:$true] %s211
          %217 = dma.hbm_to_vmem [thread:$0]  %s2, 512, %s212, [#allocation9], 256, 256, 16
        $region20: #{tpu_custom_call.1} parent=11 // pred_fallthru
          _
        // Predicated region
        $region21: #{tpu_custom_call.1} parent=11 // pred_check
          %p218 = pneg %p109
        $region22: #{tpu_custom_call.1} parent=11 // pred_check_branch
          %220 = sbr.rel (%p218) target = $region24
        $region23: #{tpu_custom_call.1} parent=11 // pred_region
          %s222 = ssub.s32 512, 512
          %223 = vsyncadd [#allocation12], %s222
          %s224 = sshll.u32 [#allocation11], 4
          %s225 = int_to_ptr.vmem [resolvable:$true] %s224
          %230 = dma.hbm_to_vmem [thread:$0]  %s3, 512, %s225, [#allocation12], 256, 256, 16
        $region24: #{tpu_custom_call.1} parent=11 // pred_fallthru
          _
        // Predicated region
        $region25: #{tpu_custom_call.1} parent=11 // pred_check
          %p231 = pneg %p130
        $region26: #{tpu_custom_call.1} parent=11 // pred_check_branch
          %233 = sbr.rel (%p231) target = $region28
        $region27: #{tpu_custom_call.1} parent=11 // pred_region
          _
        $region28: #{tpu_custom_call.1} parent=11 // pred_fallthru
          _
        // Predicated region
        $region29: #{tpu_custom_call.1} parent=11 // pred_check
          %p234 = pneg %p151
        $region30: #{tpu_custom_call.1} parent=11 // pred_check_branch
          %236 = sbr.rel (%p234) target = $region32
        $region31: #{tpu_custom_call.1} parent=11 // pred_region
          _
        $region32: #{tpu_custom_call.1} parent=11 // pred_fallthru
          _
      $region12: #{tpu_custom_call.1} parent=5 // pred_fallthru
        _
      %p237 = scmp.lt.s32.totalorder %s20, 2
      // Predicated region
      $region33: #{tpu_custom_call.1} parent=5 // pred_check
        %p238 = pneg %p237
      $region34: #{tpu_custom_call.1} parent=5 // pred_check_branch
        %240 = sbr.rel (%p238) target = $region36
      $region35: #{tpu_custom_call.1} parent=5 // pred_region
        // Predicated region
        $region37: #{tpu_custom_call.1} parent=35 // pred_check
          %p241 = pneg %p40
        $region38: #{tpu_custom_call.1} parent=35 // pred_check_branch
          %243 = sbr.rel (%p241) target = $region40
        $region39: #{tpu_custom_call.1} parent=35 // pred_region
          %s244 = sand.u32 %s30, 1
          %s245 = scalar_lea.sflag [#allocation6], %s244
          %s246 = sand.u32 %s30, 1
          %s247 = smul.addr %s246, 80
          %s248 = scalar_lea.vmem [#allocation5], %s247
          %s250 = ssub.s32 1280, 1280
          %251 = vsyncadd %s245, %s250
          %s252 = smul.addr %s20, 20
          %s253 = smul.addr %s252, 64
          %s254 = scalar_lea.hbm %s0, %s253
          %s255 = sshll.u32 %s248, 4
          %s256 = int_to_ptr.vmem [resolvable:$true] %s255
          %261 = dma.hbm_to_vmem [thread:$0]  %s254, 1280, %s256, %s245, 640, 640, 40
        $region40: #{tpu_custom_call.1} parent=35 // pred_fallthru
          _
      $region36: #{tpu_custom_call.1} parent=5 // pred_fallthru
        _
      %p262 = scmp.le.s32.totalorder 1, %s20
      %p263 = scmp.lt.s32.totalorder %s20, 3
      %p264 = pnand %p262, %p263
      %p265 = pneg %p264
      // Predicated region
      $region41: #{tpu_custom_call.1} parent=5 // pred_check
        _
      $region42: #{tpu_custom_call.1} parent=5 // pred_check_branch
        %267 = sbr.rel (%p264) target = $region44
      $region43: #{tpu_custom_call.1} parent=5 // pred_region
        %s268 = ssub.s32 %s20, 1
        %s269 = sand.u32 %s33, 1
        %s270 = scalar_lea.sflag [#allocation6], %s269
        %s271 = sand.u32 %s33, 1
        %s272 = smul.addr %s271, 80
        %s273 = scalar_lea.vmem [#allocation5], %s272
        // Predicated region
        $region45: #{tpu_custom_call.1} parent=43 // pred_check
          %p274 = pneg %p46
        $region46: #{tpu_custom_call.1} parent=43 // pred_check_branch
          %276 = sbr.rel (%p274) target = $region48
        $region47: #{tpu_custom_call.1} parent=43 // pred_region
          %277 = dma.done %s270, 1280
        $region48: #{tpu_custom_call.1} parent=43 // pred_fallthru
          _
        // Predicated region
        $region49: #{tpu_custom_call.1} parent=43 // pred_check
          %p278 = pneg %p67
        $region50: #{tpu_custom_call.1} parent=43 // pred_check_branch
          %280 = sbr.rel (%p278) target = $region52
        $region51: #{tpu_custom_call.1} parent=43 // pred_region
          %281 = dma.done [#allocation9], 512
        $region52: #{tpu_custom_call.1} parent=43 // pred_fallthru
          _
        // Predicated region
        $region53: #{tpu_custom_call.1} parent=43 // pred_check
          %p282 = pneg %p88
        $region54: #{tpu_custom_call.1} parent=43 // pred_check_branch
          %284 = sbr.rel (%p282) target = $region56
        $region55: #{tpu_custom_call.1} parent=43 // pred_region
          %285 = dma.done [#allocation9], 512
        $region56: #{tpu_custom_call.1} parent=43 // pred_fallthru
          _
        // Predicated region
        $region57: #{tpu_custom_call.1} parent=43 // pred_check
          %p286 = pneg %p109
        $region58: #{tpu_custom_call.1} parent=43 // pred_check_branch
          %288 = sbr.rel (%p286) target = $region60
        $region59: #{tpu_custom_call.1} parent=43 // pred_region
          %289 = dma.done [#allocation12], 512
        $region60: #{tpu_custom_call.1} parent=43 // pred_fallthru
          _
        %s290 = sand.u32 %s33, 1
        %s291 = scalar_lea.sflag [#allocation6], %s290
        %s292 = sand.u32 %s33, 1
        %s293 = smul.addr %s292, 80
        %s294 = scalar_lea.vmem [#allocation5], %s293
        %p295 = pneg %p46
        %p296 = pneg %p43
        %p297 = pneg %p67
        %p298 = pneg %p64
        %p299 = pneg %p88
        %p300 = pneg %p85
        %p301 = pneg %p109
        %p302 = pneg %p106
        %p303 = pneg %p130
        %p304 = pneg %p127
        %p305 = pneg %p151
        %p306 = pneg %p148
        %p307 = pneg %p177
        %p308 = pneg %p174
        %s309 = sand.u32 %s164, 1
        %s310 = scalar_lea.sflag [#allocation7], %s309
        %s311 = sand.u32 %s164, 1
        %s312 = smul.addr %s311, 64
        %s313 = scalar_lea.vmem [#allocation13], %s312
        %315 = vst [vmem:[#allocation3] sm:$0xff] 0
        %vm316 = vcmask 1048384
        %317 = vst.msk [vmem:[#allocation3 + $0x40] sm:$0xff] %vm316, 0
        %vm318 = vcmask 850944
        %319 = vst.msk [vmem:[#allocation3 + $0x48] sm:$0xff] %vm318, 0
        %320 = vst [vmem:[#allocation4] sm:$0xff] 0
        %321 = vst.msk [vmem:[#allocation4 + $0x40] sm:$0xff] %vm316, 0
        %322 = vst.msk [vmem:[#allocation4 + $0x48] sm:$0xff] %vm318, 0
        %v323 = vld [vmem:[%s5] sm:$0xff]
        %v324 = vld [vmem:[%s4] sm:$0xff]
        %v325 = vld [vmem:[%s4 + $0x8] sm:$0xff]
        %v326 = vld [vmem:[%s273] sm:$0xff]
        %v327 = vld [vmem:[%s273 + $0x8] sm:$0xff]
        %v328 = vld [vmem:[%s273 + $0x10] sm:$0xff]
        %v329 = vld [vmem:[%s273 + $0x18] sm:$0xff]
        %v330 = vld [vmem:[%s273 + $0x28] sm:$0xff]
        %v331 = vld [vmem:[%s273 + $0x30] sm:$0xff]
        %v332 = vld [vmem:[%s273 + $0x38] sm:$0xff]
        %v333 = vld [vmem:[%s273 + $0x40] sm:$0xff]
        %v342 = vunpack.c.l.b16 %v326
        %v343 = vunpack.c.h.b16 %v326
        %v344 = vunpack.c.l.b16 %v327
        %v345 = vunpack.c.h.b16 %v327
        %v346 = vunpack.c.l.b16 %v328
        %v347 = vunpack.c.h.b16 %v328
        %v348 = vunpack.c.l.b16 %v329
        %v349 = vunpack.c.h.b16 %v329
        %v350 = vunpack.c.l.b16 %v330
        %v351 = vunpack.c.h.b16 %v330
        %v352 = vunpack.c.l.b16 %v331
        %v353 = vunpack.c.h.b16 %v331
        %v354 = vunpack.c.l.b16 %v332
        %v355 = vunpack.c.h.b16 %v332
        %v356 = vunpack.c.l.b16 %v333
        %v357 = vunpack.c.h.b16 %v333
        %v358 = vpack.c.b16 %v350, %v342
        %v359 = vpack.c.b16 %v351, %v343
        %v360 = vpack.c.b16 %v352, %v344
        %v361 = vpack.c.b16 %v353, %v345
        %v362 = vpack.c.b16 %v354, %v346
        %v363 = vpack.c.b16 %v355, %v347
        %v364 = vpack.c.b16 %v356, %v348
        %v365 = vpack.c.b16 %v357, %v349
        %366 = vrot.lane.b32.xlu0 %v358, 111
        %v367 = vpop.permute.xlu0 %366
        %368 = vrot.lane.b32.xlu0 %v359, 111
        %v369 = vpop.permute.xlu0 %368
        %370 = vrot.lane.b32.xlu0 %v360, 111
        %v371 = vpop.permute.xlu0 %370
        %372 = vrot.lane.b32.xlu0 %v361, 111
        %v373 = vpop.permute.xlu0 %372
        %374 = vrot.lane.b32.xlu0 %v362, 111
        %v375 = vpop.permute.xlu0 %374
        %376 = vrot.lane.b32.xlu0 %v363, 111
        %v377 = vpop.permute.xlu0 %376
        %378 = vrot.lane.b32.xlu0 %v364, 111
        %v379 = vpop.permute.xlu0 %378
        %380 = vrot.lane.b32.xlu0 %v365, 111
        %v381 = vpop.permute.xlu0 %380
        %vm382 = vcmask 908288
        %v383 = vsel %vm382, %v367, %v369
        %v384 = vsel %vm382, %v369, %v371
        %v385 = vsel %vm382, %v371, %v373
        %v386 = vsel %vm382, %v373, %v375
        %v387 = vsel %vm382, %v375, %v377
        %v388 = vsel %vm382, %v377, %v379
        %v389 = vsel %vm382, %v379, %v381
        %398 = vst [vmem:[#allocation2] sm:$0xff] %v383
        %399 = vst [vmem:[#allocation2 + $0x8] sm:$0xff] %v384
        %400 = vst [vmem:[#allocation2 + $0x10] sm:$0xff] %v385
        %401 = vst [vmem:[#allocation2 + $0x18] sm:$0xff] %v386
        %402 = vst [vmem:[#allocation2 + $0x20] sm:$0xff] %v387
        %403 = vst [vmem:[#allocation2 + $0x28] sm:$0xff] %v388
        %404 = vst [vmem:[#allocation2 + $0x30] sm:$0xff] %v389
        %405 = vst.msk [vmem:[#allocation2 + $0x38] sm:$0xff] %vm318, %v381
        %v406 = vld [vmem:[%s273] sm:$0xff]
        %v407 = vld [vmem:[%s273 + $0x8] sm:$0xff]
        %v408 = vld [vmem:[%s273 + $0x10] sm:$0xff]
        %v409 = vld [vmem:[%s273 + $0x18] sm:$0xff]
        %v410 = vld [vmem:[%s273 + $0x28] sm:$0xff]
        %v411 = vld [vmem:[%s273 + $0x30] sm:$0xff]
        %v412 = vld [vmem:[%s273 + $0x38] sm:$0xff]
        %v413 = vld [vmem:[%s273 + $0x40] sm:$0xff]
        %v422 = vunpack.c.l.b16 %v406
        %v423 = vunpack.c.h.b16 %v406
        %v424 = vunpack.c.l.b16 %v407
        %v425 = vunpack.c.h.b16 %v407
        %v426 = vunpack.c.l.b16 %v408
        %v427 = vunpack.c.h.b16 %v408
        %v428 = vunpack.c.l.b16 %v409
        %v429 = vunpack.c.h.b16 %v409
        %v430 = vunpack.c.l.b16 %v410
        %v431 = vunpack.c.h.b16 %v410
        %v432 = vunpack.c.l.b16 %v411
        %v433 = vunpack.c.h.b16 %v411
        %v434 = vunpack.c.l.b16 %v412
        %v435 = vunpack.c.h.b16 %v412
        %v436 = vunpack.c.l.b16 %v413
        %v437 = vunpack.c.h.b16 %v413
        %v438 = vpack.c.b16 %v430, %v422
        %v439 = vpack.c.b16 %v431, %v423
        %v440 = vpack.c.b16 %v432, %v424
        %v441 = vpack.c.b16 %v433, %v425
        %v442 = vpack.c.b16 %v434, %v426
        %v443 = vpack.c.b16 %v435, %v427
        %v444 = vpack.c.b16 %v436, %v428
        %v445 = vpack.c.b16 %v437, %v429
        %446 = vrot.lane.b32.xlu0 %v438, 110
        %v447 = vpop.permute.xlu0 %446
        %448 = vrot.lane.b32.xlu0 %v439, 110
        %v449 = vpop.permute.xlu0 %448
        %450 = vrot.lane.b32.xlu0 %v440, 110
        %v451 = vpop.permute.xlu0 %450
        %452 = vrot.lane.b32.xlu0 %v441, 110
        %v453 = vpop.permute.xlu0 %452
        %454 = vrot.lane.b32.xlu0 %v442, 110
        %v455 = vpop.permute.xlu0 %454
        %456 = vrot.lane.b32.xlu0 %v443, 110
        %v457 = vpop.permute.xlu0 %456
        %458 = vrot.lane.b32.xlu0 %v444, 110
        %v459 = vpop.permute.xlu0 %458
        %460 = vrot.lane.b32.xlu0 %v445, 110
        %v461 = vpop.permute.xlu0 %460
        %vm462 = vcmask 900096
        %v463 = vsel %vm462, %v447, %v449
        %v464 = vsel %vm462, %v449, %v451
        %v465 = vsel %vm462, %v451, %v453
        %v466 = vsel %vm462, %v453, %v455
        %v467 = vsel %vm462, %v455, %v457
        %v468 = vsel %vm462, %v457, %v459
        %v469 = vsel %vm462, %v459, %v461
        %478 = vst [vmem:[#allocation2 + $0x40] sm:$0xff] %v463
        %479 = vst [vmem:[#allocation2 + $0x48] sm:$0xff] %v464
        %480 = vst [vmem:[#allocation2 + $0x50] sm:$0xff] %v465
        %481 = vst [vmem:[#allocation2 + $0x58] sm:$0xff] %v466
        %482 = vst [vmem:[#allocation2 + $0x60] sm:$0xff] %v467
        %483 = vst [vmem:[#allocation2 + $0x68] sm:$0xff] %v468
        %484 = vst [vmem:[#allocation2 + $0x70] sm:$0xff] %v469
        %485 = vst.msk [vmem:[#allocation2 + $0x78] sm:$0xff] %vm318, %v461
        %v486 = vld [vmem:[%s273] sm:$0xff]
        %v487 = vld [vmem:[%s273 + $0x8] sm:$0xff]
        %v488 = vld [vmem:[%s273 + $0x10] sm:$0xff]
        %v489 = vld [vmem:[%s273 + $0x18] sm:$0xff]
        %v490 = vld [vmem:[%s273 + $0x28] sm:$0xff]
        %v491 = vld [vmem:[%s273 + $0x30] sm:$0xff]
        %v492 = vld [vmem:[%s273 + $0x38] sm:$0xff]
        %v493 = vld [vmem:[%s273 + $0x40] sm:$0xff]
        %v502 = vunpack.c.l.b16 %v486
        %v503 = vunpack.c.h.b16 %v486
        %v504 = vunpack.c.l.b16 %v487
        %v505 = vunpack.c.h.b16 %v487
        %v506 = vunpack.c.l.b16 %v488
        %v507 = vunpack.c.h.b16 %v488
        %v508 = vunpack.c.l.b16 %v489
        %v509 = vunpack.c.h.b16 %v489
        %v510 = vunpack.c.l.b16 %v490
        %v511 = vunpack.c.h.b16 %v490
        %v512 = vunpack.c.l.b16 %v491
        %v513 = vunpack.c.h.b16 %v491
        %v514 = vunpack.c.l.b16 %v492
        %v515 = vunpack.c.h.b16 %v492
        %v516 = vunpack.c.l.b16 %v493
        %v517 = vunpack.c.h.b16 %v493
        %v518 = vpack.c.b16 %v510, %v502
        %v519 = vpack.c.b16 %v511, %v503
        %v520 = vpack.c.b16 %v512, %v504
        %v521 = vpack.c.b16 %v513, %v505
        %v522 = vpack.c.b16 %v514, %v506
        %v523 = vpack.c.b16 %v515, %v507
        %v524 = vpack.c.b16 %v516, %v508
        %v525 = vpack.c.b16 %v517, %v509
        %526 = vrot.lane.b32.xlu0 %v518, 109
        %v527 = vpop.permute.xlu0 %526
        %528 = vrot.lane.b32.xlu0 %v519, 109
        %v529 = vpop.permute.xlu0 %528
        %530 = vrot.lane.b32.xlu0 %v520, 109
        %v531 = vpop.permute.xlu0 %530
        %532 = vrot.lane.b32.xlu0 %v521, 109
        %v533 = vpop.permute.xlu0 %532
        %534 = vrot.lane.b32.xlu0 %v522, 109
        %v535 = vpop.permute.xlu0 %534
        %536 = vrot.lane.b32.xlu0 %v523, 109
        %v537 = vpop.permute.xlu0 %536
        %538 = vrot.lane.b32.xlu0 %v524, 109
        %v539 = vpop.permute.xlu0 %538
        %540 = vrot.lane.b32.xlu0 %v525, 109
        %v541 = vpop.permute.xlu0 %540
        %vm542 = vcmask 891904
        %v543 = vsel %vm542, %v527, %v529
        %v544 = vsel %vm542, %v529, %v531
        %v545 = vsel %vm542, %v531, %v533
        %v546 = vsel %vm542, %v533, %v535
        %v547 = vsel %vm542, %v535, %v537
        %v548 = vsel %vm542, %v537, %v539
        %v549 = vsel %vm542, %v539, %v541
        %558 = vst [vmem:[#allocation2 + $0x80] sm:$0xff] %v543
        %559 = vst [vmem:[#allocation2 + $0x88] sm:$0xff] %v544
        %560 = vst [vmem:[#allocation2 + $0x90] sm:$0xff] %v545
        %561 = vst [vmem:[#allocation2 + $0x98] sm:$0xff] %v546
        %562 = vst [vmem:[#allocation2 + $0xa0] sm:$0xff] %v547
        %563 = vst [vmem:[#allocation2 + $0xa8] sm:$0xff] %v548
        %564 = vst [vmem:[#allocation2 + $0xb0] sm:$0xff] %v549
        %565 = vst.msk [vmem:[#allocation2 + $0xb8] sm:$0xff] %vm318, %v541
        %v566 = vld [vmem:[%s273] sm:$0xff]
        %v567 = vld [vmem:[%s273 + $0x8] sm:$0xff]
        %v568 = vld [vmem:[%s273 + $0x10] sm:$0xff]
        %v569 = vld [vmem:[%s273 + $0x18] sm:$0xff]
        %v570 = vld [vmem:[%s273 + $0x20] sm:$0xf]
        %v571 = vld [vmem:[%s273 + $0x28] sm:$0xff]
        %v572 = vld [vmem:[%s273 + $0x30] sm:$0xff]
        %v573 = vld [vmem:[%s273 + $0x38] sm:$0xff]
        %v574 = vld [vmem:[%s273 + $0x40] sm:$0xff]
        %v575 = vld [vmem:[%s273 + $0x48] sm:$0xf]
        %v586 = vunpack.c.l.b16 %v566
        %v587 = vunpack.c.h.b16 %v566
        %v588 = vunpack.c.l.b16 %v567
        %v589 = vunpack.c.h.b16 %v567
        %v590 = vunpack.c.l.b16 %v568
        %v591 = vunpack.c.h.b16 %v568
        %v592 = vunpack.c.l.b16 %v569
        %v593 = vunpack.c.h.b16 %v569
        %v594 = vunpack.c.l.b16 %v570
        %v595 = vunpack.c.l.b16 %v571
        %v596 = vunpack.c.h.b16 %v571
        %v597 = vunpack.c.l.b16 %v572
        %v598 = vunpack.c.h.b16 %v572
        %v599 = vunpack.c.l.b16 %v573
        %v600 = vunpack.c.h.b16 %v573
        %v601 = vunpack.c.l.b16 %v574
        %v602 = vunpack.c.h.b16 %v574
        %v603 = vunpack.c.l.b16 %v575
        %v604 = vpack.c.b16 %v595, %v586
        %v605 = vpack.c.b16 %v596, %v587
        %v606 = vpack.c.b16 %v597, %v588
        %v607 = vpack.c.b16 %v598, %v589
        %v608 = vpack.c.b16 %v599, %v590
        %v609 = vpack.c.b16 %v600, %v591
        %v610 = vpack.c.b16 %v601, %v592
        %v611 = vpack.c.b16 %v602, %v593
        %v612 = vpack.c.b16 %v603, %v594
        %613 = vrot.lane.b32.xlu0 %v604, 101
        %v614 = vpop.permute.xlu0 %613
        %615 = vrot.lane.b32.xlu0 %v605, 101
        %v616 = vpop.permute.xlu0 %615
        %617 = vrot.lane.b32.xlu0 %v606, 101
        %v618 = vpop.permute.xlu0 %617
        %619 = vrot.lane.b32.xlu0 %v607, 101
        %v620 = vpop.permute.xlu0 %619
        %621 = vrot.lane.b32.xlu0 %v608, 101
        %v622 = vpop.permute.xlu0 %621
        %623 = vrot.lane.b32.xlu0 %v609, 101
        %v624 = vpop.permute.xlu0 %623
        %625 = vrot.lane.b32.xlu0 %v610, 101
        %v626 = vpop.permute.xlu0 %625
        %627 = vrot.lane.b32.xlu0 %v611, 101
        %v628 = vpop.permute.xlu0 %627
        %629 = vrot.lane.b32.xlu0 %v612, 101
        %v630 = vpop.permute.xlu0 %629
        %vm631 = vcmask 826368
        %v632 = vsel %vm631, %v614, %v616
        %v633 = vsel %vm631, %v616, %v618
        %v634 = vsel %vm631, %v618, %v620
        %v635 = vsel %vm631, %v620, %v622
        %v636 = vsel %vm631, %v622, %v624
        %v637 = vsel %vm631, %v624, %v626
        %v638 = vsel %vm631, %v626, %v628
        %v639 = vsel %vm631, %v628, %v630
        %648 = vst [vmem:[#allocation2 + $0xc0] sm:$0xff] %v632
        %649 = vst [vmem:[#allocation2 + $0xc8] sm:$0xff] %v633
        %650 = vst [vmem:[#allocation2 + $0xd0] sm:$0xff] %v634
        %651 = vst [vmem:[#allocation2 + $0xd8] sm:$0xff] %v635
        %652 = vst [vmem:[#allocation2 + $0xe0] sm:$0xff] %v636
        %653 = vst [vmem:[#allocation2 + $0xe8] sm:$0xff] %v637
        %654 = vst [vmem:[#allocation2 + $0xf0] sm:$0xff] %v638
        %655 = vst.msk [vmem:[#allocation2 + $0xf8] sm:$0xff] %vm318, %v639
        %v656 = vld [vmem:[%s273] sm:$0xff]
        %v657 = vld [vmem:[%s273 + $0x8] sm:$0xff]
        %v658 = vld [vmem:[%s273 + $0x10] sm:$0xff]
        %v659 = vld [vmem:[%s273 + $0x18] sm:$0xff]
        %v660 = vld [vmem:[%s273 + $0x20] sm:$0xf]
        %v661 = vld [vmem:[%s273 + $0x28] sm:$0xff]
        %v662 = vld [vmem:[%s273 + $0x30] sm:$0xff]
        %v663 = vld [vmem:[%s273 + $0x38] sm:$0xff]
        %v664 = vld [vmem:[%s273 + $0x40] sm:$0xff]
        %v665 = vld [vmem:[%s273 + $0x48] sm:$0xf]
        %v676 = vunpack.c.l.b16 %v656
        %v677 = vunpack.c.h.b16 %v656
        %v678 = vunpack.c.l.b16 %v657
        %v679 = vunpack.c.h.b16 %v657
        %v680 = vunpack.c.l.b16 %v658
        %v681 = vunpack.c.h.b16 %v658
        %v682 = vunpack.c.l.b16 %v659
        %v683 = vunpack.c.h.b16 %v659
        %v684 = vunpack.c.l.b16 %v660
        %v685 = vunpack.c.l.b16 %v661
        %v686 = vunpack.c.h.b16 %v661
        %v687 = vunpack.c.l.b16 %v662
        %v688 = vunpack.c.h.b16 %v662
        %v689 = vunpack.c.l.b16 %v663
        %v690 = vunpack.c.h.b16 %v663
        %v691 = vunpack.c.l.b16 %v664
        %v692 = vunpack.c.h.b16 %v664
        %v693 = vunpack.c.l.b16 %v665
        %v694 = vpack.c.b16 %v685, %v676
        %v695 = vpack.c.b16 %v686, %v677
        %v696 = vpack.c.b16 %v687, %v678
        %v697 = vpack.c.b16 %v688, %v679
        %v698 = vpack.c.b16 %v689, %v680
        %v699 = vpack.c.b16 %v690, %v681
        %v700 = vpack.c.b16 %v691, %v682
        %v701 = vpack.c.b16 %v692, %v683
        %v702 = vpack.c.b16 %v693, %v684
        %703 = vrot.lane.b32.xlu0 %v694, 100
        %v704 = vpop.permute.xlu0 %703
        %705 = vrot.lane.b32.xlu0 %v695, 100
        %v706 = vpop.permute.xlu0 %705
        %707 = vrot.lane.b32.xlu0 %v696, 100
        %v708 = vpop.permute.xlu0 %707
        %709 = vrot.lane.b32.xlu0 %v697, 100
        %v710 = vpop.permute.xlu0 %709
        %711 = vrot.lane.b32.xlu0 %v698, 100
        %v712 = vpop.permute.xlu0 %711
        %713 = vrot.lane.b32.xlu0 %v699, 100
        %v714 = vpop.permute.xlu0 %713
        %715 = vrot.lane.b32.xlu0 %v700, 100
        %v716 = vpop.permute.xlu0 %715
        %717 = vrot.lane.b32.xlu0 %v701, 100
        %v718 = vpop.permute.xlu0 %717
        %719 = vrot.lane.b32.xlu0 %v702, 100
        %v720 = vpop.permute.xlu0 %719
        %vm721 = vcmask 818176
        %v722 = vsel %vm721, %v704, %v706
        %v723 = vsel %vm721, %v706, %v708
        %v724 = vsel %vm721, %v708, %v710
        %v725 = vsel %vm721, %v710, %v712
        %v726 = vsel %vm721, %v712, %v714
        %v727 = vsel %vm721, %v714, %v716
        %v728 = vsel %vm721, %v716, %v718
        %v729 = vsel %vm721, %v718, %v720
        %738 = vst [vmem:[#allocation2 + $0x100] sm:$0xff] %v722
        %739 = vst [vmem:[#allocation2 + $0x108] sm:$0xff] %v723
        %740 = vst [vmem:[#allocation2 + $0x110] sm:$0xff] %v724
        %741 = vst [vmem:[#allocation2 + $0x118] sm:$0xff] %v725
        %742 = vst [vmem:[#allocation2 + $0x120] sm:$0xff] %v726
        %743 = vst [vmem:[#allocation2 + $0x128] sm:$0xff] %v727
        %744 = vst [vmem:[#allocation2 + $0x130] sm:$0xff] %v728
        %745 = vst.msk [vmem:[#allocation2 + $0x138] sm:$0xff] %vm318, %v729
        %v746 = vld [vmem:[%s273] sm:$0xff]
        %v747 = vld [vmem:[%s273 + $0x8] sm:$0xff]
        %v748 = vld [vmem:[%s273 + $0x10] sm:$0xff]
        %v749 = vld [vmem:[%s273 + $0x18] sm:$0xff]
        %v750 = vld [vmem:[%s273 + $0x20] sm:$0xf]
        %v751 = vld [vmem:[%s273 + $0x28] sm:$0xff]
        %v752 = vld [vmem:[%s273 + $0x30] sm:$0xff]
        %v753 = vld [vmem:[%s273 + $0x38] sm:$0xff]
        %v754 = vld [vmem:[%s273 + $0x40] sm:$0xff]
        %v755 = vld [vmem:[%s273 + $0x48] sm:$0xf]
        %v766 = vunpack.c.l.b16 %v746
        %v767 = vunpack.c.h.b16 %v746
        %v768 = vunpack.c.l.b16 %v747
        %v769 = vunpack.c.h.b16 %v747
        %v770 = vunpack.c.l.b16 %v748
        %v771 = vunpack.c.h.b16 %v748
        %v772 = vunpack.c.l.b16 %v749
        %v773 = vunpack.c.h.b16 %v749
        %v774 = vunpack.c.l.b16 %v750
        %v775 = vunpack.c.l.b16 %v751
        %v776 = vunpack.c.h.b16 %v751
        %v777 = vunpack.c.l.b16 %v752
        %v778 = vunpack.c.h.b16 %v752
        %v779 = vunpack.c.l.b16 %v753
        %v780 = vunpack.c.h.b16 %v753
        %v781 = vunpack.c.l.b16 %v754
        %v782 = vunpack.c.h.b16 %v754
        %v783 = vunpack.c.l.b16 %v755
        %v784 = vpack.c.b16 %v775, %v766
        %v785 = vpack.c.b16 %v776, %v767
        %v786 = vpack.c.b16 %v777, %v768
        %v787 = vpack.c.b16 %v778, %v769
        %v788 = vpack.c.b16 %v779, %v770
        %v789 = vpack.c.b16 %v780, %v771
        %v790 = vpack.c.b16 %v781, %v772
        %v791 = vpack.c.b16 %v782, %v773
        %v792 = vpack.c.b16 %v783, %v774
        %793 = vrot.lane.b32.xlu0 %v784, 99
        %v794 = vpop.permute.xlu0 %793
        %795 = vrot.lane.b32.xlu0 %v785, 99
        %v796 = vpop.permute.xlu0 %795
        %797 = vrot.lane.b32.xlu0 %v786, 99
        %v798 = vpop.permute.xlu0 %797
        %799 = vrot.lane.b32.xlu0 %v787, 99
        %v800 = vpop.permute.xlu0 %799
        %801 = vrot.lane.b32.xlu0 %v788, 99
        %v802 = vpop.permute.xlu0 %801
        %803 = vrot.lane.b32.xlu0 %v789, 99
        %v804 = vpop.permute.xlu0 %803
        %805 = vrot.lane.b32.xlu0 %v790, 99
        %v806 = vpop.permute.xlu0 %805
        %807 = vrot.lane.b32.xlu0 %v791, 99
        %v808 = vpop.permute.xlu0 %807
        %809 = vrot.lane.b32.xlu0 %v792, 99
        %v810 = vpop.permute.xlu0 %809
        %vm811 = vcmask 809984
        %v812 = vsel %vm811, %v794, %v796
        %v813 = vsel %vm811, %v796, %v798
        %v814 = vsel %vm811, %v798, %v800
        %v815 = vsel %vm811, %v800, %v802
        %v816 = vsel %vm811, %v802, %v804
        %v817 = vsel %vm811, %v804, %v806
        %v818 = vsel %vm811, %v806, %v808
        %v819 = vsel %vm811, %v808, %v810
        %828 = vst [vmem:[#allocation2 + $0x140] sm:$0xff] %v812
        %829 = vst [vmem:[#allocation2 + $0x148] sm:$0xff] %v813
        %830 = vst [vmem:[#allocation2 + $0x150] sm:$0xff] %v814
        %831 = vst [vmem:[#allocation2 + $0x158] sm:$0xff] %v815
        %832 = vst [vmem:[#allocation2 + $0x160] sm:$0xff] %v816
        %833 = vst [vmem:[#allocation2 + $0x168] sm:$0xff] %v817
        %834 = vst [vmem:[#allocation2 + $0x170] sm:$0xff] %v818
        %835 = vst.msk [vmem:[#allocation2 + $0x178] sm:$0xff] %vm318, %v819
        %v836 = vld [vmem:[%s273] sm:$0xff]
        %v837 = vld [vmem:[%s273 + $0x8] sm:$0xff]
        %v838 = vld [vmem:[%s273 + $0x10] sm:$0xff]
        %v839 = vld [vmem:[%s273 + $0x18] sm:$0xff]
        %v840 = vld [vmem:[%s273 + $0x20] sm:$0xf]
        %v841 = vld [vmem:[%s273 + $0x28] sm:$0xff]
        %v842 = vld [vmem:[%s273 + $0x30] sm:$0xff]
        %v843 = vld [vmem:[%s273 + $0x38] sm:$0xff]
        %v844 = vld [vmem:[%s273 + $0x40] sm:$0xff]
        %v845 = vld [vmem:[%s273 + $0x48] sm:$0xf]
        %v856 = vunpack.c.l.b16 %v836
        %v857 = vunpack.c.h.b16 %v836
        %v858 = vunpack.c.l.b16 %v837
        %v859 = vunpack.c.h.b16 %v837
        %v860 = vunpack.c.l.b16 %v838
        %v861 = vunpack.c.h.b16 %v838
        %v862 = vunpack.c.l.b16 %v839
        %v863 = vunpack.c.h.b16 %v839
        %v864 = vunpack.c.l.b16 %v840
        %v865 = vunpack.c.l.b16 %v841
        %v866 = vunpack.c.h.b16 %v841
        %v867 = vunpack.c.l.b16 %v842
        %v868 = vunpack.c.h.b16 %v842
        %v869 = vunpack.c.l.b16 %v843
        %v870 = vunpack.c.h.b16 %v843
        %v871 = vunpack.c.l.b16 %v844
        %v872 = vunpack.c.h.b16 %v844
        %v873 = vunpack.c.l.b16 %v845
        %v874 = vpack.c.b16 %v865, %v856
        %v875 = vpack.c.b16 %v866, %v857
        %v876 = vpack.c.b16 %v867, %v858
        %v877 = vpack.c.b16 %v868, %v859
        %v878 = vpack.c.b16 %v869, %v860
        %v879 = vpack.c.b16 %v870, %v861
        %v880 = vpack.c.b16 %v871, %v862
        %v881 = vpack.c.b16 %v872, %v863
        %v882 = vpack.c.b16 %v873, %v864
        %883 = vrot.lane.b32.xlu0 %v874, 91
        %v884 = vpop.permute.xlu0 %883
        %885 = vrot.lane.b32.xlu0 %v875, 91
        %v886 = vpop.permute.xlu0 %885
        %887 = vrot.lane.b32.xlu0 %v876, 91
        %v888 = vpop.permute.xlu0 %887
        %889 = vrot.lane.b32.xlu0 %v877, 91
        %v890 = vpop.permute.xlu0 %889
        %891 = vrot.lane.b32.xlu0 %v878, 91
        %v892 = vpop.permute.xlu0 %891
        %893 = vrot.lane.b32.xlu0 %v879, 91
        %v894 = vpop.permute.xlu0 %893
        %895 = vrot.lane.b32.xlu0 %v880, 91
        %v896 = vpop.permute.xlu0 %895
        %897 = vrot.lane.b32.xlu0 %v881, 91
        %v898 = vpop.permute.xlu0 %897
        %899 = vrot.lane.b32.xlu0 %v882, 91
        %v900 = vpop.permute.xlu0 %899
        %vm901 = vcmask 744448
        %v902 = vsel %vm901, %v884, %v886
        %v903 = vsel %vm901, %v886, %v888
        %v904 = vsel %vm901, %v888, %v890
        %v905 = vsel %vm901, %v890, %v892
        %v906 = vsel %vm901, %v892, %v894
        %v907 = vsel %vm901, %v894, %v896
        %v908 = vsel %vm901, %v896, %v898
        %v909 = vsel %vm901, %v898, %v900
        %918 = vst [vmem:[#allocation2 + $0x180] sm:$0xff] %v902
        %919 = vst [vmem:[#allocation2 + $0x188] sm:$0xff] %v903
        %920 = vst [vmem:[#allocation2 + $0x190] sm:$0xff] %v904
        %921 = vst [vmem:[#allocation2 + $0x198] sm:$0xff] %v905
        %922 = vst [vmem:[#allocation2 + $0x1a0] sm:$0xff] %v906
        %923 = vst [vmem:[#allocation2 + $0x1a8] sm:$0xff] %v907
        %924 = vst [vmem:[#allocation2 + $0x1b0] sm:$0xff] %v908
        %925 = vst.msk [vmem:[#allocation2 + $0x1b8] sm:$0xff] %vm318, %v909
        %v926 = vld [vmem:[%s273] sm:$0xff]
        %v927 = vld [vmem:[%s273 + $0x8] sm:$0xff]
        %v928 = vld [vmem:[%s273 + $0x10] sm:$0xff]
        %v929 = vld [vmem:[%s273 + $0x18] sm:$0xff]
        %v930 = vld [vmem:[%s273 + $0x20] sm:$0xf]
        %v931 = vld [vmem:[%s273 + $0x28] sm:$0xff]
        %v932 = vld [vmem:[%s273 + $0x30] sm:$0xff]
        %v933 = vld [vmem:[%s273 + $0x38] sm:$0xff]
        %v934 = vld [vmem:[%s273 + $0x40] sm:$0xff]
        %v935 = vld [vmem:[%s273 + $0x48] sm:$0xf]
        %v946 = vunpack.c.l.b16 %v926
        %v947 = vunpack.c.h.b16 %v926
        %v948 = vunpack.c.l.b16 %v927
        %v949 = vunpack.c.h.b16 %v927
        %v950 = vunpack.c.l.b16 %v928
        %v951 = vunpack.c.h.b16 %v928
        %v952 = vunpack.c.l.b16 %v929
        %v953 = vunpack.c.h.b16 %v929
        %v954 = vunpack.c.l.b16 %v930
        %v955 = vunpack.c.l.b16 %v931
        %v956 = vunpack.c.h.b16 %v931
        %v957 = vunpack.c.l.b16 %v932
        %v958 = vunpack.c.h.b16 %v932
        %v959 = vunpack.c.l.b16 %v933
        %v960 = vunpack.c.h.b16 %v933
        %v961 = vunpack.c.l.b16 %v934
        %v962 = vunpack.c.h.b16 %v934
        %v963 = vunpack.c.l.b16 %v935
        %v964 = vpack.c.b16 %v955, %v946
        %v965 = vpack.c.b16 %v956, %v947
        %v966 = vpack.c.b16 %v957, %v948
        %v967 = vpack.c.b16 %v958, %v949
        %v968 = vpack.c.b16 %v959, %v950
        %v969 = vpack.c.b16 %v960, %v951
        %v970 = vpack.c.b16 %v961, %v952
        %v971 = vpack.c.b16 %v962, %v953
        %v972 = vpack.c.b16 %v963, %v954
        %973 = vrot.lane.b32.xlu0 %v964, 90
        %v974 = vpop.permute.xlu0 %973
        %975 = vrot.lane.b32.xlu0 %v965, 90
        %v976 = vpop.permute.xlu0 %975
        %977 = vrot.lane.b32.xlu0 %v966, 90
        %v978 = vpop.permute.xlu0 %977
        %979 = vrot.lane.b32.xlu0 %v967, 90
        %v980 = vpop.permute.xlu0 %979
        %981 = vrot.lane.b32.xlu0 %v968, 90
        %v982 = vpop.permute.xlu0 %981
        %983 = vrot.lane.b32.xlu0 %v969, 90
        %v984 = vpop.permute.xlu0 %983
        %985 = vrot.lane.b32.xlu0 %v970, 90
        %v986 = vpop.permute.xlu0 %985
        %987 = vrot.lane.b32.xlu0 %v971, 90
        %v988 = vpop.permute.xlu0 %987
        %989 = vrot.lane.b32.xlu0 %v972, 90
        %v990 = vpop.permute.xlu0 %989
        %vm991 = vcmask 736256
        %v992 = vsel %vm991, %v974, %v976
        %v993 = vsel %vm991, %v976, %v978
        %v994 = vsel %vm991, %v978, %v980
        %v995 = vsel %vm991, %v980, %v982
        %v996 = vsel %vm991, %v982, %v984
        %v997 = vsel %vm991, %v984, %v986
        %v998 = vsel %vm991, %v986, %v988
        %v999 = vsel %vm991, %v988, %v990
        %1008 = vst [vmem:[#allocation2 + $0x1c0] sm:$0xff] %v992
        %1009 = vst [vmem:[#allocation2 + $0x1c8] sm:$0xff] %v993
        %1010 = vst [vmem:[#allocation2 + $0x1d0] sm:$0xff] %v994
        %1011 = vst [vmem:[#allocation2 + $0x1d8] sm:$0xff] %v995
        %1012 = vst [vmem:[#allocation2 + $0x1e0] sm:$0xff] %v996
        %1013 = vst [vmem:[#allocation2 + $0x1e8] sm:$0xff] %v997
        %1014 = vst [vmem:[#allocation2 + $0x1f0] sm:$0xff] %v998
        %1015 = vst.msk [vmem:[#allocation2 + $0x1f8] sm:$0xff] %vm318, %v999
        %v1016 = vld [vmem:[%s273] sm:$0xff]
        %v1017 = vld [vmem:[%s273 + $0x8] sm:$0xff]
        %v1018 = vld [vmem:[%s273 + $0x10] sm:$0xff]
        %v1019 = vld [vmem:[%s273 + $0x18] sm:$0xff]
        %v1020 = vld [vmem:[%s273 + $0x20] sm:$0xf]
        %v1021 = vld [vmem:[%s273 + $0x28] sm:$0xff]
        %v1022 = vld [vmem:[%s273 + $0x30] sm:$0xff]
        %v1023 = vld [vmem:[%s273 + $0x38] sm:$0xff]
        %v1024 = vld [vmem:[%s273 + $0x40] sm:$0xff]
        %v1025 = vld [vmem:[%s273 + $0x48] sm:$0xf]
        %v1036 = vunpack.c.l.b16 %v1016
        %v1037 = vunpack.c.h.b16 %v1016
        %v1038 = vunpack.c.l.b16 %v1017
        %v1039 = vunpack.c.h.b16 %v1017
        %v1040 = vunpack.c.l.b16 %v1018
        %v1041 = vunpack.c.h.b16 %v1018
        %v1042 = vunpack.c.l.b16 %v1019
        %v1043 = vunpack.c.h.b16 %v1019
        %v1044 = vunpack.c.l.b16 %v1020
        %v1045 = vunpack.c.l.b16 %v1021
        %v1046 = vunpack.c.h.b16 %v1021
        %v1047 = vunpack.c.l.b16 %v1022
        %v1048 = vunpack.c.h.b16 %v1022
        %v1049 = vunpack.c.l.b16 %v1023
        %v1050 = vunpack.c.h.b16 %v1023
        %v1051 = vunpack.c.l.b16 %v1024
        %v1052 = vunpack.c.h.b16 %v1024
        %v1053 = vunpack.c.l.b16 %v1025
        %v1054 = vpack.c.b16 %v1045, %v1036
        %v1055 = vpack.c.b16 %v1046, %v1037
        %v1056 = vpack.c.b16 %v1047, %v1038
        %v1057 = vpack.c.b16 %v1048, %v1039
        %v1058 = vpack.c.b16 %v1049, %v1040
        %v1059 = vpack.c.b16 %v1050, %v1041
        %v1060 = vpack.c.b16 %v1051, %v1042
        %v1061 = vpack.c.b16 %v1052, %v1043
        %v1062 = vpack.c.b16 %v1053, %v1044
        %1063 = vrot.lane.b32.xlu0 %v1054, 89
        %v1064 = vpop.permute.xlu0 %1063
        %1065 = vrot.lane.b32.xlu0 %v1055, 89
        %v1066 = vpop.permute.xlu0 %1065
        %1067 = vrot.lane.b32.xlu0 %v1056, 89
        %v1068 = vpop.permute.xlu0 %1067
        %1069 = vrot.lane.b32.xlu0 %v1057, 89
        %v1070 = vpop.permute.xlu0 %1069
        %1071 = vrot.lane.b32.xlu0 %v1058, 89
        %v1072 = vpop.permute.xlu0 %1071
        %1073 = vrot.lane.b32.xlu0 %v1059, 89
        %v1074 = vpop.permute.xlu0 %1073
        %1075 = vrot.lane.b32.xlu0 %v1060, 89
        %v1076 = vpop.permute.xlu0 %1075
        %1077 = vrot.lane.b32.xlu0 %v1061, 89
        %v1078 = vpop.permute.xlu0 %1077
        %1079 = vrot.lane.b32.xlu0 %v1062, 89
        %v1080 = vpop.permute.xlu0 %1079
        %vm1081 = vcmask 728064
        %v1082 = vsel %vm1081, %v1064, %v1066
        %v1083 = vsel %vm1081, %v1066, %v1068
        %v1084 = vsel %vm1081, %v1068, %v1070
        %v1085 = vsel %vm1081, %v1070, %v1072
        %v1086 = vsel %vm1081, %v1072, %v1074
        %v1087 = vsel %vm1081, %v1074, %v1076
        %v1088 = vsel %vm1081, %v1076, %v1078
        %v1089 = vsel %vm1081, %v1078, %v1080
        %1098 = vst [vmem:[#allocation2 + $0x200] sm:$0xff] %v1082
        %1099 = vst [vmem:[#allocation2 + $0x208] sm:$0xff] %v1083
        %1100 = vst [vmem:[#allocation2 + $0x210] sm:$0xff] %v1084
        %1101 = vst [vmem:[#allocation2 + $0x218] sm:$0xff] %v1085
        %1102 = vst [vmem:[#allocation2 + $0x220] sm:$0xff] %v1086
        %1103 = vst [vmem:[#allocation2 + $0x228] sm:$0xff] %v1087
        %1104 = vst [vmem:[#allocation2 + $0x230] sm:$0xff] %v1088
        %1105 = vst.msk [vmem:[#allocation2 + $0x238] sm:$0xff] %vm318, %v1089
        %v1106 = vld [vmem:[%s273] sm:$0xff]
        %v1107 = vld [vmem:[%s273 + $0x8] sm:$0xff]
        %v1108 = vld [vmem:[%s273 + $0x10] sm:$0xff]
        %v1109 = vld [vmem:[%s273 + $0x18] sm:$0xff]
        %v1110 = vld [vmem:[%s273 + $0x20] sm:$0xf]
        %v1111 = vld [vmem:[%s273 + $0x28] sm:$0xff]
        %v1112 = vld [vmem:[%s273 + $0x30] sm:$0xff]
        %v1113 = vld [vmem:[%s273 + $0x38] sm:$0xff]
        %v1114 = vld [vmem:[%s273 + $0x40] sm:$0xff]
        %v1115 = vld [vmem:[%s273 + $0x48] sm:$0xf]
        %v1126 = vunpack.c.l.b16 %v1106
        %v1127 = vunpack.c.h.b16 %v1106
        %v1128 = vunpack.c.l.b16 %v1107
        %v1129 = vunpack.c.h.b16 %v1107
        %v1130 = vunpack.c.l.b16 %v1108
        %v1131 = vunpack.c.h.b16 %v1108
        %v1132 = vunpack.c.l.b16 %v1109
        %v1133 = vunpack.c.h.b16 %v1109
        %v1134 = vunpack.c.l.b16 %v1110
        %v1135 = vunpack.c.l.b16 %v1111
        %v1136 = vunpack.c.h.b16 %v1111
        %v1137 = vunpack.c.l.b16 %v1112
        %v1138 = vunpack.c.h.b16 %v1112
        %v1139 = vunpack.c.l.b16 %v1113
        %v1140 = vunpack.c.h.b16 %v1113
        %v1141 = vunpack.c.l.b16 %v1114
        %v1142 = vunpack.c.h.b16 %v1114
        %v1143 = vunpack.c.l.b16 %v1115
        %v1144 = vpack.c.b16 %v1135, %v1126
        %v1145 = vpack.c.b16 %v1136, %v1127
        %v1146 = vpack.c.b16 %v1137, %v1128
        %v1147 = vpack.c.b16 %v1138, %v1129
        %v1148 = vpack.c.b16 %v1139, %v1130
        %v1149 = vpack.c.b16 %v1140, %v1131
        %v1150 = vpack.c.b16 %v1141, %v1132
        %v1151 = vpack.c.b16 %v1142, %v1133
        %v1152 = vpack.c.b16 %v1143, %v1134
        %1153 = vrot.lane.b32.xlu0 %v1144, 11
        %v1154 = vpop.permute.xlu0 %1153
        %1155 = vrot.lane.b32.xlu0 %v1145, 11
        %v1156 = vpop.permute.xlu0 %1155
        %1157 = vrot.lane.b32.xlu0 %v1146, 11
        %v1158 = vpop.permute.xlu0 %1157
        %1159 = vrot.lane.b32.xlu0 %v1147, 11
        %v1160 = vpop.permute.xlu0 %1159
        %1161 = vrot.lane.b32.xlu0 %v1148, 11
        %v1162 = vpop.permute.xlu0 %1161
        %1163 = vrot.lane.b32.xlu0 %v1149, 11
        %v1164 = vpop.permute.xlu0 %1163
        %1165 = vrot.lane.b32.xlu0 %v1150, 11
        %v1166 = vpop.permute.xlu0 %1165
        %1167 = vrot.lane.b32.xlu0 %v1151, 11
        %v1168 = vpop.permute.xlu0 %1167
        %1169 = vrot.lane.b32.xlu0 %v1152, 11
        %v1170 = vpop.permute.xlu0 %1169
        %vm1171 = vcmask 89088
        %v1172 = vsel %vm1171, %v1154, %v1156
        %v1173 = vsel %vm1171, %v1156, %v1158
        %v1174 = vsel %vm1171, %v1158, %v1160
        %v1175 = vsel %vm1171, %v1160, %v1162
        %v1176 = vsel %vm1171, %v1162, %v1164
        %v1177 = vsel %vm1171, %v1164, %v1166
        %v1178 = vsel %vm1171, %v1166, %v1168
        %v1179 = vsel %vm1171, %v1168, %v1170
        %1188 = vst [vmem:[#allocation2 + $0x240] sm:$0xff] %v1172
        %1189 = vst [vmem:[#allocation2 + $0x248] sm:$0xff] %v1173
        %1190 = vst [vmem:[#allocation2 + $0x250] sm:$0xff] %v1174
        %1191 = vst [vmem:[#allocation2 + $0x258] sm:$0xff] %v1175
        %1192 = vst [vmem:[#allocation2 + $0x260] sm:$0xff] %v1176
        %1193 = vst [vmem:[#allocation2 + $0x268] sm:$0xff] %v1177
        %1194 = vst [vmem:[#allocation2 + $0x270] sm:$0xff] %v1178
        %1195 = vst.msk [vmem:[#allocation2 + $0x278] sm:$0xff] %vm318, %v1179
        %v1196 = vld [vmem:[%s273] sm:$0xff]
        %v1197 = vld [vmem:[%s273 + $0x8] sm:$0xff]
        %v1198 = vld [vmem:[%s273 + $0x10] sm:$0xff]
        %v1199 = vld [vmem:[%s273 + $0x18] sm:$0xff]
        %v1200 = vld [vmem:[%s273 + $0x20] sm:$0xf]
        %v1201 = vld [vmem:[%s273 + $0x28] sm:$0xff]
        %v1202 = vld [vmem:[%s273 + $0x30] sm:$0xff]
        %v1203 = vld [vmem:[%s273 + $0x38] sm:$0xff]
        %v1204 = vld [vmem:[%s273 + $0x40] sm:$0xff]
        %v1205 = vld [vmem:[%s273 + $0x48] sm:$0xf]
        %v1216 = vunpack.c.l.b16 %v1196
        %v1217 = vunpack.c.h.b16 %v1196
        %v1218 = vunpack.c.l.b16 %v1197
        %v1219 = vunpack.c.h.b16 %v1197
        %v1220 = vunpack.c.l.b16 %v1198
        %v1221 = vunpack.c.h.b16 %v1198
        %v1222 = vunpack.c.l.b16 %v1199
        %v1223 = vunpack.c.h.b16 %v1199
        %v1224 = vunpack.c.l.b16 %v1200
        %v1225 = vunpack.c.l.b16 %v1201
        %v1226 = vunpack.c.h.b16 %v1201
        %v1227 = vunpack.c.l.b16 %v1202
        %v1228 = vunpack.c.h.b16 %v1202
        %v1229 = vunpack.c.l.b16 %v1203
        %v1230 = vunpack.c.h.b16 %v1203
        %v1231 = vunpack.c.l.b16 %v1204
        %v1232 = vunpack.c.h.b16 %v1204
        %v1233 = vunpack.c.l.b16 %v1205
        %v1234 = vpack.c.b16 %v1225, %v1216
        %v1235 = vpack.c.b16 %v1226, %v1217
        %v1236 = vpack.c.b16 %v1227, %v1218
        %v1237 = vpack.c.b16 %v1228, %v1219
        %v1238 = vpack.c.b16 %v1229, %v1220
        %v1239 = vpack.c.b16 %v1230, %v1221
        %v1240 = vpack.c.b16 %v1231, %v1222
        %v1241 = vpack.c.b16 %v1232, %v1223
        %v1242 = vpack.c.b16 %v1233, %v1224
        %1243 = vrot.lane.b32.xlu0 %v1234, 10
        %v1244 = vpop.permute.xlu0 %1243
        %1245 = vrot.lane.b32.xlu0 %v1235, 10
        %v1246 = vpop.permute.xlu0 %1245
        %1247 = vrot.lane.b32.xlu0 %v1236, 10
        %v1248 = vpop.permute.xlu0 %1247
        %1249 = vrot.lane.b32.xlu0 %v1237, 10
        %v1250 = vpop.permute.xlu0 %1249
        %1251 = vrot.lane.b32.xlu0 %v1238, 10
        %v1252 = vpop.permute.xlu0 %1251
        %1253 = vrot.lane.b32.xlu0 %v1239, 10
        %v1254 = vpop.permute.xlu0 %1253
        %1255 = vrot.lane.b32.xlu0 %v1240, 10
        %v1256 = vpop.permute.xlu0 %1255
        %1257 = vrot.lane.b32.xlu0 %v1241, 10
        %v1258 = vpop.permute.xlu0 %1257
        %1259 = vrot.lane.b32.xlu0 %v1242, 10
        %v1260 = vpop.permute.xlu0 %1259
        %vm1261 = vcmask 80896
        %v1262 = vsel %vm1261, %v1244, %v1246
        %v1263 = vsel %vm1261, %v1246, %v1248
        %v1264 = vsel %vm1261, %v1248, %v1250
        %v1265 = vsel %vm1261, %v1250, %v1252
        %v1266 = vsel %vm1261, %v1252, %v1254
        %v1267 = vsel %vm1261, %v1254, %v1256
        %v1268 = vsel %vm1261, %v1256, %v1258
        %v1269 = vsel %vm1261, %v1258, %v1260
        %1278 = vst [vmem:[#allocation2 + $0x280] sm:$0xff] %v1262
        %1279 = vst [vmem:[#allocation2 + $0x288] sm:$0xff] %v1263
        %1280 = vst [vmem:[#allocation2 + $0x290] sm:$0xff] %v1264
        %1281 = vst [vmem:[#allocation2 + $0x298] sm:$0xff] %v1265
        %1282 = vst [vmem:[#allocation2 + $0x2a0] sm:$0xff] %v1266
        %1283 = vst [vmem:[#allocation2 + $0x2a8] sm:$0xff] %v1267
        %1284 = vst [vmem:[#allocation2 + $0x2b0] sm:$0xff] %v1268
        %1285 = vst.msk [vmem:[#allocation2 + $0x2b8] sm:$0xff] %vm318, %v1269
        %v1286 = vld [vmem:[%s273] sm:$0xff]
        %v1287 = vld [vmem:[%s273 + $0x8] sm:$0xff]
        %v1288 = vld [vmem:[%s273 + $0x10] sm:$0xff]
        %v1289 = vld [vmem:[%s273 + $0x18] sm:$0xff]
        %v1290 = vld [vmem:[%s273 + $0x20] sm:$0xf]
        %v1291 = vld [vmem:[%s273 + $0x28] sm:$0xff]
        %v1292 = vld [vmem:[%s273 + $0x30] sm:$0xff]
        %v1293 = vld [vmem:[%s273 + $0x38] sm:$0xff]
        %v1294 = vld [vmem:[%s273 + $0x40] sm:$0xff]
        %v1295 = vld [vmem:[%s273 + $0x48] sm:$0xf]
        %v1306 = vunpack.c.l.b16 %v1286
        %v1307 = vunpack.c.h.b16 %v1286
        %v1308 = vunpack.c.l.b16 %v1287
        %v1309 = vunpack.c.h.b16 %v1287
        %v1310 = vunpack.c.l.b16 %v1288
        %v1311 = vunpack.c.h.b16 %v1288
        %v1312 = vunpack.c.l.b16 %v1289
        %v1313 = vunpack.c.h.b16 %v1289
        %v1314 = vunpack.c.l.b16 %v1290
        %v1315 = vunpack.c.l.b16 %v1291
        %v1316 = vunpack.c.h.b16 %v1291
        %v1317 = vunpack.c.l.b16 %v1292
        %v1318 = vunpack.c.h.b16 %v1292
        %v1319 = vunpack.c.l.b16 %v1293
        %v1320 = vunpack.c.h.b16 %v1293
        %v1321 = vunpack.c.l.b16 %v1294
        %v1322 = vunpack.c.h.b16 %v1294
        %v1323 = vunpack.c.l.b16 %v1295
        %v1324 = vpack.c.b16 %v1315, %v1306
        %v1325 = vpack.c.b16 %v1316, %v1307
        %v1326 = vpack.c.b16 %v1317, %v1308
        %v1327 = vpack.c.b16 %v1318, %v1309
        %v1328 = vpack.c.b16 %v1319, %v1310
        %v1329 = vpack.c.b16 %v1320, %v1311
        %v1330 = vpack.c.b16 %v1321, %v1312
        %v1331 = vpack.c.b16 %v1322, %v1313
        %v1332 = vpack.c.b16 %v1323, %v1314
        %1333 = vrot.lane.b32.xlu0 %v1324, 9
        %v1334 = vpop.permute.xlu0 %1333
        %1335 = vrot.lane.b32.xlu0 %v1325, 9
        %v1336 = vpop.permute.xlu0 %1335
        %1337 = vrot.lane.b32.xlu0 %v1326, 9
        %v1338 = vpop.permute.xlu0 %1337
        %1339 = vrot.lane.b32.xlu0 %v1327, 9
        %v1340 = vpop.permute.xlu0 %1339
        %1341 = vrot.lane.b32.xlu0 %v1328, 9
        %v1342 = vpop.permute.xlu0 %1341
        %1343 = vrot.lane.b32.xlu0 %v1329, 9
        %v1344 = vpop.permute.xlu0 %1343
        %1345 = vrot.lane.b32.xlu0 %v1330, 9
        %v1346 = vpop.permute.xlu0 %1345
        %1347 = vrot.lane.b32.xlu0 %v1331, 9
        %v1348 = vpop.permute.xlu0 %1347
        %1349 = vrot.lane.b32.xlu0 %v1332, 9
        %v1350 = vpop.permute.xlu0 %1349
        %vm1351 = vcmask 72704
        %v1352 = vsel %vm1351, %v1334, %v1336
        %v1353 = vsel %vm1351, %v1336, %v1338
        %v1354 = vsel %vm1351, %v1338, %v1340
        %v1355 = vsel %vm1351, %v1340, %v1342
        %v1356 = vsel %vm1351, %v1342, %v1344
        %v1357 = vsel %vm1351, %v1344, %v1346
        %v1358 = vsel %vm1351, %v1346, %v1348
        %v1359 = vsel %vm1351, %v1348, %v1350
        %1368 = vst [vmem:[#allocation2 + $0x2c0] sm:$0xff] %v1352
        %1369 = vst [vmem:[#allocation2 + $0x2c8] sm:$0xff] %v1353
        %1370 = vst [vmem:[#allocation2 + $0x2d0] sm:$0xff] %v1354
        %1371 = vst [vmem:[#allocation2 + $0x2d8] sm:$0xff] %v1355
        %1372 = vst [vmem:[#allocation2 + $0x2e0] sm:$0xff] %v1356
        %1373 = vst [vmem:[#allocation2 + $0x2e8] sm:$0xff] %v1357
        %1374 = vst [vmem:[#allocation2 + $0x2f0] sm:$0xff] %v1358
        %1375 = vst.msk [vmem:[#allocation2 + $0x2f8] sm:$0xff] %vm318, %v1359
        %v1376 = vld [vmem:[%s273] sm:$0xff]
        %v1377 = vld [vmem:[%s273 + $0x8] sm:$0xff]
        %v1378 = vld [vmem:[%s273 + $0x10] sm:$0xff]
        %v1379 = vld [vmem:[%s273 + $0x18] sm:$0xff]
        %v1380 = vld [vmem:[%s273 + $0x20] sm:$0xf]
        %v1381 = vld [vmem:[%s273 + $0x28] sm:$0xff]
        %v1382 = vld [vmem:[%s273 + $0x30] sm:$0xff]
        %v1383 = vld [vmem:[%s273 + $0x38] sm:$0xff]
        %v1384 = vld [vmem:[%s273 + $0x40] sm:$0xff]
        %v1385 = vld [vmem:[%s273 + $0x48] sm:$0xf]
        %v1396 = vunpack.c.l.b16 %v1376
        %v1397 = vunpack.c.h.b16 %v1376
        %v1398 = vunpack.c.l.b16 %v1377
        %v1399 = vunpack.c.h.b16 %v1377
        %v1400 = vunpack.c.l.b16 %v1378
        %v1401 = vunpack.c.h.b16 %v1378
        %v1402 = vunpack.c.l.b16 %v1379
        %v1403 = vunpack.c.h.b16 %v1379
        %v1404 = vunpack.c.l.b16 %v1380
        %v1405 = vunpack.c.l.b16 %v1381
        %v1406 = vunpack.c.h.b16 %v1381
        %v1407 = vunpack.c.l.b16 %v1382
        %v1408 = vunpack.c.h.b16 %v1382
        %v1409 = vunpack.c.l.b16 %v1383
        %v1410 = vunpack.c.h.b16 %v1383
        %v1411 = vunpack.c.l.b16 %v1384
        %v1412 = vunpack.c.h.b16 %v1384
        %v1413 = vunpack.c.l.b16 %v1385
        %v1414 = vpack.c.b16 %v1405, %v1396
        %v1415 = vpack.c.b16 %v1406, %v1397
        %v1416 = vpack.c.b16 %v1407, %v1398
        %v1417 = vpack.c.b16 %v1408, %v1399
        %v1418 = vpack.c.b16 %v1409, %v1400
        %v1419 = vpack.c.b16 %v1410, %v1401
        %v1420 = vpack.c.b16 %v1411, %v1402
        %v1421 = vpack.c.b16 %v1412, %v1403
        %v1422 = vpack.c.b16 %v1413, %v1404
        %1423 = vrot.lane.b32.xlu0 %v1414, 1
        %v1424 = vpop.permute.xlu0 %1423
        %1425 = vrot.lane.b32.xlu0 %v1415, 1
        %v1426 = vpop.permute.xlu0 %1425
        %1427 = vrot.lane.b32.xlu0 %v1416, 1
        %v1428 = vpop.permute.xlu0 %1427
        %1429 = vrot.lane.b32.xlu0 %v1417, 1
        %v1430 = vpop.permute.xlu0 %1429
        %1431 = vrot.lane.b32.xlu0 %v1418, 1
        %v1432 = vpop.permute.xlu0 %1431
        %1433 = vrot.lane.b32.xlu0 %v1419, 1
        %v1434 = vpop.permute.xlu0 %1433
        %1435 = vrot.lane.b32.xlu0 %v1420, 1
        %v1436 = vpop.permute.xlu0 %1435
        %1437 = vrot.lane.b32.xlu0 %v1421, 1
        %v1438 = vpop.permute.xlu0 %1437
        %1439 = vrot.lane.b32.xlu0 %v1422, 1
        %v1440 = vpop.permute.xlu0 %1439
        %vm1441 = vcmask 7168
        %v1442 = vsel %vm1441, %v1424, %v1426
        %v1443 = vsel %vm1441, %v1426, %v1428
        %v1444 = vsel %vm1441, %v1428, %v1430
        %v1445 = vsel %vm1441, %v1430, %v1432
        %v1446 = vsel %vm1441, %v1432, %v1434
        %v1447 = vsel %vm1441, %v1434, %v1436
        %v1448 = vsel %vm1441, %v1436, %v1438
        %v1449 = vsel %vm1441, %v1438, %v1440
        %1458 = vst [vmem:[#allocation2 + $0x300] sm:$0xff] %v1442
        %1459 = vst [vmem:[#allocation2 + $0x308] sm:$0xff] %v1443
        %1460 = vst [vmem:[#allocation2 + $0x310] sm:$0xff] %v1444
        %1461 = vst [vmem:[#allocation2 + $0x318] sm:$0xff] %v1445
        %1462 = vst [vmem:[#allocation2 + $0x320] sm:$0xff] %v1446
        %1463 = vst [vmem:[#allocation2 + $0x328] sm:$0xff] %v1447
        %1464 = vst [vmem:[#allocation2 + $0x330] sm:$0xff] %v1448
        %1465 = vst.msk [vmem:[#allocation2 + $0x338] sm:$0xff] %vm318, %v1449
        %v1466 = vld [vmem:[%s273 + $0x4] sm:$0xff]
        %v1467 = vld [vmem:[%s273 + $0xc] sm:$0xff]
        %v1468 = vld [vmem:[%s273 + $0x14] sm:$0xff]
        %v1469 = vld [vmem:[%s273 + $0x1c] sm:$0xff]
        %v1470 = vld [vmem:[%s273 + $0x2c] sm:$0xff]
        %v1471 = vld [vmem:[%s273 + $0x34] sm:$0xff]
        %v1472 = vld [vmem:[%s273 + $0x3c] sm:$0xff]
        %v1473 = vld [vmem:[%s273 + $0x44] sm:$0xff]
        %v1482 = vunpack.c.l.b16 %v1466
        %v1483 = vunpack.c.h.b16 %v1466
        %v1484 = vunpack.c.l.b16 %v1467
        %v1485 = vunpack.c.h.b16 %v1467
        %v1486 = vunpack.c.l.b16 %v1468
        %v1487 = vunpack.c.h.b16 %v1468
        %v1488 = vunpack.c.l.b16 %v1469
        %v1489 = vunpack.c.h.b16 %v1469
        %v1490 = vunpack.c.l.b16 %v1470
        %v1491 = vunpack.c.h.b16 %v1470
        %v1492 = vunpack.c.l.b16 %v1471
        %v1493 = vunpack.c.h.b16 %v1471
        %v1494 = vunpack.c.l.b16 %v1472
        %v1495 = vunpack.c.h.b16 %v1472
        %v1496 = vunpack.c.l.b16 %v1473
        %v1497 = vunpack.c.h.b16 %v1473
        %v1498 = vpack.c.b16 %v1490, %v1482
        %v1499 = vpack.c.b16 %v1491, %v1483
        %v1500 = vpack.c.b16 %v1492, %v1484
        %v1501 = vpack.c.b16 %v1493, %v1485
        %v1502 = vpack.c.b16 %v1494, %v1486
        %v1503 = vpack.c.b16 %v1495, %v1487
        %v1504 = vpack.c.b16 %v1496, %v1488
        %v1505 = vpack.c.b16 %v1497, %v1489
        %1514 = vst [vmem:[#allocation2 + $0x340] sm:$0xff] %v1498
        %1515 = vst [vmem:[#allocation2 + $0x348] sm:$0xff] %v1499
        %1516 = vst [vmem:[#allocation2 + $0x350] sm:$0xff] %v1500
        %1517 = vst [vmem:[#allocation2 + $0x358] sm:$0xff] %v1501
        %1518 = vst [vmem:[#allocation2 + $0x360] sm:$0xff] %v1502
        %1519 = vst [vmem:[#allocation2 + $0x368] sm:$0xff] %v1503
        %1520 = vst [vmem:[#allocation2 + $0x370] sm:$0xff] %v1504
        %1521 = vst.msk [vmem:[#allocation2 + $0x378] sm:$0xff] %vm318, %v1505
        %v1522 = vld [vmem:[%s273 + $0x4] sm:$0xff]
        %v1523 = vld [vmem:[%s273 + $0xc] sm:$0xff]
        %v1524 = vld [vmem:[%s273 + $0x14] sm:$0xff]
        %v1525 = vld [vmem:[%s273 + $0x1c] sm:$0xff]
        %v1526 = vld [vmem:[%s273 + $0x2c] sm:$0xff]
        %v1527 = vld [vmem:[%s273 + $0x34] sm:$0xff]
        %v1528 = vld [vmem:[%s273 + $0x3c] sm:$0xff]
        %v1529 = vld [vmem:[%s273 + $0x44] sm:$0xff]
        %v1538 = vunpack.c.l.b16 %v1522
        %v1539 = vunpack.c.h.b16 %v1522
        %v1540 = vunpack.c.l.b16 %v1523
        %v1541 = vunpack.c.h.b16 %v1523
        %v1542 = vunpack.c.l.b16 %v1524
        %v1543 = vunpack.c.h.b16 %v1524
        %v1544 = vunpack.c.l.b16 %v1525
        %v1545 = vunpack.c.h.b16 %v1525
        %v1546 = vunpack.c.l.b16 %v1526
        %v1547 = vunpack.c.h.b16 %v1526
        %v1548 = vunpack.c.l.b16 %v1527
        %v1549 = vunpack.c.h.b16 %v1527
        %v1550 = vunpack.c.l.b16 %v1528
        %v1551 = vunpack.c.h.b16 %v1528
        %v1552 = vunpack.c.l.b16 %v1529
        %v1553 = vunpack.c.h.b16 %v1529
        %v1554 = vpack.c.b16 %v1546, %v1538
        %v1555 = vpack.c.b16 %v1547, %v1539
        %v1556 = vpack.c.b16 %v1548, %v1540
        %v1557 = vpack.c.b16 %v1549, %v1541
        %v1558 = vpack.c.b16 %v1550, %v1542
        %v1559 = vpack.c.b16 %v1551, %v1543
        %v1560 = vpack.c.b16 %v1552, %v1544
        %v1561 = vpack.c.b16 %v1553, %v1545
        %1562 = vrot.lane.b32.xlu0 %v1554, 127
        %v1563 = vpop.permute.xlu0 %1562
        %1564 = vrot.lane.b32.xlu0 %v1555, 127
        %v1565 = vpop.permute.xlu0 %1564
        %1566 = vrot.lane.b32.xlu0 %v1556, 127
        %v1567 = vpop.permute.xlu0 %1566
        %1568 = vrot.lane.b32.xlu0 %v1557, 127
        %v1569 = vpop.permute.xlu0 %1568
        %1570 = vrot.lane.b32.xlu0 %v1558, 127
        %v1571 = vpop.permute.xlu0 %1570
        %1572 = vrot.lane.b32.xlu0 %v1559, 127
        %v1573 = vpop.permute.xlu0 %1572
        %1574 = vrot.lane.b32.xlu0 %v1560, 127
        %v1575 = vpop.permute.xlu0 %1574
        %1576 = vrot.lane.b32.xlu0 %v1561, 127
        %v1577 = vpop.permute.xlu0 %1576
        %vm1578 = vcmask 1039360
        %v1579 = vsel %vm1578, %v1563, %v1565
        %v1580 = vsel %vm1578, %v1565, %v1567
        %v1581 = vsel %vm1578, %v1567, %v1569
        %v1582 = vsel %vm1578, %v1569, %v1571
        %v1583 = vsel %vm1578, %v1571, %v1573
        %v1584 = vsel %vm1578, %v1573, %v1575
        %v1585 = vsel %vm1578, %v1575, %v1577
        %1594 = vst [vmem:[#allocation2 + $0x380] sm:$0xff] %v1579
        %1595 = vst [vmem:[#allocation2 + $0x388] sm:$0xff] %v1580
        %1596 = vst [vmem:[#allocation2 + $0x390] sm:$0xff] %v1581
        %1597 = vst [vmem:[#allocation2 + $0x398] sm:$0xff] %v1582
        %1598 = vst [vmem:[#allocation2 + $0x3a0] sm:$0xff] %v1583
        %1599 = vst [vmem:[#allocation2 + $0x3a8] sm:$0xff] %v1584
        %1600 = vst [vmem:[#allocation2 + $0x3b0] sm:$0xff] %v1585
        %1601 = vst.msk [vmem:[#allocation2 + $0x3b8] sm:$0xff] %vm318, %v1577
        %v1602 = vld [vmem:[%s273 + $0x4] sm:$0xff]
        %v1603 = vld [vmem:[%s273 + $0xc] sm:$0xff]
        %v1604 = vld [vmem:[%s273 + $0x14] sm:$0xff]
        %v1605 = vld [vmem:[%s273 + $0x1c] sm:$0xff]
        %v1606 = vld [vmem:[%s273 + $0x2c] sm:$0xff]
        %v1607 = vld [vmem:[%s273 + $0x34] sm:$0xff]
        %v1608 = vld [vmem:[%s273 + $0x3c] sm:$0xff]
        %v1609 = vld [vmem:[%s273 + $0x44] sm:$0xff]
        %v1618 = vunpack.c.l.b16 %v1602
        %v1619 = vunpack.c.h.b16 %v1602
        %v1620 = vunpack.c.l.b16 %v1603
        %v1621 = vunpack.c.h.b16 %v1603
        %v1622 = vunpack.c.l.b16 %v1604
        %v1623 = vunpack.c.h.b16 %v1604
        %v1624 = vunpack.c.l.b16 %v1605
        %v1625 = vunpack.c.h.b16 %v1605
        %v1626 = vunpack.c.l.b16 %v1606
        %v1627 = vunpack.c.h.b16 %v1606
        %v1628 = vunpack.c.l.b16 %v1607
        %v1629 = vunpack.c.h.b16 %v1607
        %v1630 = vunpack.c.l.b16 %v1608
        %v1631 = vunpack.c.h.b16 %v1608
        %v1632 = vunpack.c.l.b16 %v1609
        %v1633 = vunpack.c.h.b16 %v1609
        %v1634 = vpack.c.b16 %v1626, %v1618
        %v1635 = vpack.c.b16 %v1627, %v1619
        %v1636 = vpack.c.b16 %v1628, %v1620
        %v1637 = vpack.c.b16 %v1629, %v1621
        %v1638 = vpack.c.b16 %v1630, %v1622
        %v1639 = vpack.c.b16 %v1631, %v1623
        %v1640 = vpack.c.b16 %v1632, %v1624
        %v1641 = vpack.c.b16 %v1633, %v1625
        %1642 = vrot.lane.b32.xlu0 %v1634, 119
        %v1643 = vpop.permute.xlu0 %1642
        %1644 = vrot.lane.b32.xlu0 %v1635, 119
        %v1645 = vpop.permute.xlu0 %1644
        %1646 = vrot.lane.b32.xlu0 %v1636, 119
        %v1647 = vpop.permute.xlu0 %1646
        %1648 = vrot.lane.b32.xlu0 %v1637, 119
        %v1649 = vpop.permute.xlu0 %1648
        %1650 = vrot.lane.b32.xlu0 %v1638, 119
        %v1651 = vpop.permute.xlu0 %1650
        %1652 = vrot.lane.b32.xlu0 %v1639, 119
        %v1653 = vpop.permute.xlu0 %1652
        %1654 = vrot.lane.b32.xlu0 %v1640, 119
        %v1655 = vpop.permute.xlu0 %1654
        %1656 = vrot.lane.b32.xlu0 %v1641, 119
        %v1657 = vpop.permute.xlu0 %1656
        %vm1658 = vcmask 973824
        %v1659 = vsel %vm1658, %v1643, %v1645
        %v1660 = vsel %vm1658, %v1645, %v1647
        %v1661 = vsel %vm1658, %v1647, %v1649
        %v1662 = vsel %vm1658, %v1649, %v1651
        %v1663 = vsel %vm1658, %v1651, %v1653
        %v1664 = vsel %vm1658, %v1653, %v1655
        %v1665 = vsel %vm1658, %v1655, %v1657
        %1674 = vst [vmem:[#allocation2 + $0x3c0] sm:$0xff] %v1659
        %1675 = vst [vmem:[#allocation2 + $0x3c8] sm:$0xff] %v1660
        %1676 = vst [vmem:[#allocation2 + $0x3d0] sm:$0xff] %v1661
        %1677 = vst [vmem:[#allocation2 + $0x3d8] sm:$0xff] %v1662
        %1678 = vst [vmem:[#allocation2 + $0x3e0] sm:$0xff] %v1663
        %1679 = vst [vmem:[#allocation2 + $0x3e8] sm:$0xff] %v1664
        %1680 = vst [vmem:[#allocation2 + $0x3f0] sm:$0xff] %v1665
        %1681 = vst.msk [vmem:[#allocation2 + $0x3f8] sm:$0xff] %vm318, %v1657
        %v1682 = vld [vmem:[%s273 + $0x4] sm:$0xff]
        %v1683 = vld [vmem:[%s273 + $0xc] sm:$0xff]
        %v1684 = vld [vmem:[%s273 + $0x14] sm:$0xff]
        %v1685 = vld [vmem:[%s273 + $0x1c] sm:$0xff]
        %v1686 = vld [vmem:[%s273 + $0x2c] sm:$0xff]
        %v1687 = vld [vmem:[%s273 + $0x34] sm:$0xff]
        %v1688 = vld [vmem:[%s273 + $0x3c] sm:$0xff]
        %v1689 = vld [vmem:[%s273 + $0x44] sm:$0xff]
        %v1698 = vunpack.c.l.b16 %v1682
        %v1699 = vunpack.c.h.b16 %v1682
        %v1700 = vunpack.c.l.b16 %v1683
        %v1701 = vunpack.c.h.b16 %v1683
        %v1702 = vunpack.c.l.b16 %v1684
        %v1703 = vunpack.c.h.b16 %v1684
        %v1704 = vunpack.c.l.b16 %v1685
        %v1705 = vunpack.c.h.b16 %v1685
        %v1706 = vunpack.c.l.b16 %v1686
        %v1707 = vunpack.c.h.b16 %v1686
        %v1708 = vunpack.c.l.b16 %v1687
        %v1709 = vunpack.c.h.b16 %v1687
        %v1710 = vunpack.c.l.b16 %v1688
        %v1711 = vunpack.c.h.b16 %v1688
        %v1712 = vunpack.c.l.b16 %v1689
        %v1713 = vunpack.c.h.b16 %v1689
        %v1714 = vpack.c.b16 %v1706, %v1698
        %v1715 = vpack.c.b16 %v1707, %v1699
        %v1716 = vpack.c.b16 %v1708, %v1700
        %v1717 = vpack.c.b16 %v1709, %v1701
        %v1718 = vpack.c.b16 %v1710, %v1702
        %v1719 = vpack.c.b16 %v1711, %v1703
        %v1720 = vpack.c.b16 %v1712, %v1704
        %v1721 = vpack.c.b16 %v1713, %v1705
        %1722 = vrot.lane.b32.xlu0 %v1714, 118
        %v1723 = vpop.permute.xlu0 %1722
        %1724 = vrot.lane.b32.xlu0 %v1715, 118
        %v1725 = vpop.permute.xlu0 %1724
        %1726 = vrot.lane.b32.xlu0 %v1716, 118
        %v1727 = vpop.permute.xlu0 %1726
        %1728 = vrot.lane.b32.xlu0 %v1717, 118
        %v1729 = vpop.permute.xlu0 %1728
        %1730 = vrot.lane.b32.xlu0 %v1718, 118
        %v1731 = vpop.permute.xlu0 %1730
        %1732 = vrot.lane.b32.xlu0 %v1719, 118
        %v1733 = vpop.permute.xlu0 %1732
        %1734 = vrot.lane.b32.xlu0 %v1720, 118
        %v1735 = vpop.permute.xlu0 %1734
        %1736 = vrot.lane.b32.xlu0 %v1721, 118
        %v1737 = vpop.permute.xlu0 %1736
        %vm1738 = vcmask 965632
        %v1739 = vsel %vm1738, %v1723, %v1725
        %v1740 = vsel %vm1738, %v1725, %v1727
        %v1741 = vsel %vm1738, %v1727, %v1729
        %v1742 = vsel %vm1738, %v1729, %v1731
        %v1743 = vsel %vm1738, %v1731, %v1733
        %v1744 = vsel %vm1738, %v1733, %v1735
        %v1745 = vsel %vm1738, %v1735, %v1737
        %1754 = vst [vmem:[#allocation2 + $0x400] sm:$0xff] %v1739
        %1755 = vst [vmem:[#allocation2 + $0x408] sm:$0xff] %v1740
        %1756 = vst [vmem:[#allocation2 + $0x410] sm:$0xff] %v1741
        %1757 = vst [vmem:[#allocation2 + $0x418] sm:$0xff] %v1742
        %1758 = vst [vmem:[#allocation2 + $0x420] sm:$0xff] %v1743
        %1759 = vst [vmem:[#allocation2 + $0x428] sm:$0xff] %v1744
        %1760 = vst [vmem:[#allocation2 + $0x430] sm:$0xff] %v1745
        %1761 = vst.msk [vmem:[#allocation2 + $0x438] sm:$0xff] %vm318, %v1737
        %v1762 = vld [vmem:[%s273 + $0x4] sm:$0xff]
        %v1763 = vld [vmem:[%s273 + $0xc] sm:$0xff]
        %v1764 = vld [vmem:[%s273 + $0x14] sm:$0xff]
        %v1765 = vld [vmem:[%s273 + $0x1c] sm:$0xff]
        %v1766 = vld [vmem:[%s273 + $0x2c] sm:$0xff]
        %v1767 = vld [vmem:[%s273 + $0x34] sm:$0xff]
        %v1768 = vld [vmem:[%s273 + $0x3c] sm:$0xff]
        %v1769 = vld [vmem:[%s273 + $0x44] sm:$0xff]
        %v1778 = vunpack.c.l.b16 %v1762
        %v1779 = vunpack.c.h.b16 %v1762
        %v1780 = vunpack.c.l.b16 %v1763
        %v1781 = vunpack.c.h.b16 %v1763
        %v1782 = vunpack.c.l.b16 %v1764
        %v1783 = vunpack.c.h.b16 %v1764
        %v1784 = vunpack.c.l.b16 %v1765
        %v1785 = vunpack.c.h.b16 %v1765
        %v1786 = vunpack.c.l.b16 %v1766
        %v1787 = vunpack.c.h.b16 %v1766
        %v1788 = vunpack.c.l.b16 %v1767
        %v1789 = vunpack.c.h.b16 %v1767
        %v1790 = vunpack.c.l.b16 %v1768
        %v1791 = vunpack.c.h.b16 %v1768
        %v1792 = vunpack.c.l.b16 %v1769
        %v1793 = vunpack.c.h.b16 %v1769
        %v1794 = vpack.c.b16 %v1786, %v1778
        %v1795 = vpack.c.b16 %v1787, %v1779
        %v1796 = vpack.c.b16 %v1788, %v1780
        %v1797 = vpack.c.b16 %v1789, %v1781
        %v1798 = vpack.c.b16 %v1790, %v1782
        %v1799 = vpack.c.b16 %v1791, %v1783
        %v1800 = vpack.c.b16 %v1792, %v1784
        %v1801 = vpack.c.b16 %v1793, %v1785
        %1802 = vrot.lane.b32.xlu0 %v1794, 117
        %v1803 = vpop.permute.xlu0 %1802
        %1804 = vrot.lane.b32.xlu0 %v1795, 117
        %v1805 = vpop.permute.xlu0 %1804
        %1806 = vrot.lane.b32.xlu0 %v1796, 117
        %v1807 = vpop.permute.xlu0 %1806
        %1808 = vrot.lane.b32.xlu0 %v1797, 117
        %v1809 = vpop.permute.xlu0 %1808
        %1810 = vrot.lane.b32.xlu0 %v1798, 117
        %v1811 = vpop.permute.xlu0 %1810
        %1812 = vrot.lane.b32.xlu0 %v1799, 117
        %v1813 = vpop.permute.xlu0 %1812
        %1814 = vrot.lane.b32.xlu0 %v1800, 117
        %v1815 = vpop.permute.xlu0 %1814
        %1816 = vrot.lane.b32.xlu0 %v1801, 117
        %v1817 = vpop.permute.xlu0 %1816
        %vm1818 = vcmask 957440
        %v1819 = vsel %vm1818, %v1803, %v1805
        %v1820 = vsel %vm1818, %v1805, %v1807
        %v1821 = vsel %vm1818, %v1807, %v1809
        %v1822 = vsel %vm1818, %v1809, %v1811
        %v1823 = vsel %vm1818, %v1811, %v1813
        %v1824 = vsel %vm1818, %v1813, %v1815
        %v1825 = vsel %vm1818, %v1815, %v1817
        %1834 = vst [vmem:[#allocation2 + $0x440] sm:$0xff] %v1819
        %1835 = vst [vmem:[#allocation2 + $0x448] sm:$0xff] %v1820
        %1836 = vst [vmem:[#allocation2 + $0x450] sm:$0xff] %v1821
        %1837 = vst [vmem:[#allocation2 + $0x458] sm:$0xff] %v1822
        %1838 = vst [vmem:[#allocation2 + $0x460] sm:$0xff] %v1823
        %1839 = vst [vmem:[#allocation2 + $0x468] sm:$0xff] %v1824
        %1840 = vst [vmem:[#allocation2 + $0x470] sm:$0xff] %v1825
        %1841 = vst.msk [vmem:[#allocation2 + $0x478] sm:$0xff] %vm318, %v1817
        %v1842 = vld [vmem:[%s273 + $0x4] sm:$0xff]
        %v1843 = vld [vmem:[%s273 + $0xc] sm:$0xff]
        %v1844 = vld [vmem:[%s273 + $0x14] sm:$0xff]
        %v1845 = vld [vmem:[%s273 + $0x1c] sm:$0xff]
        %v1846 = vld [vmem:[%s273 + $0x24] sm:$0xf]
        %v1847 = vld [vmem:[%s273 + $0x2c] sm:$0xff]
        %v1848 = vld [vmem:[%s273 + $0x34] sm:$0xff]
        %v1849 = vld [vmem:[%s273 + $0x3c] sm:$0xff]
        %v1850 = vld [vmem:[%s273 + $0x44] sm:$0xff]
        %v1851 = vld [vmem:[%s273 + $0x4c] sm:$0xf]
        %v1862 = vunpack.c.l.b16 %v1842
        %v1863 = vunpack.c.h.b16 %v1842
        %v1864 = vunpack.c.l.b16 %v1843
        %v1865 = vunpack.c.h.b16 %v1843
        %v1866 = vunpack.c.l.b16 %v1844
        %v1867 = vunpack.c.h.b16 %v1844
        %v1868 = vunpack.c.l.b16 %v1845
        %v1869 = vunpack.c.h.b16 %v1845
        %v1870 = vunpack.c.l.b16 %v1846
        %v1871 = vunpack.c.l.b16 %v1847
        %v1872 = vunpack.c.h.b16 %v1847
        %v1873 = vunpack.c.l.b16 %v1848
        %v1874 = vunpack.c.h.b16 %v1848
        %v1875 = vunpack.c.l.b16 %v1849
        %v1876 = vunpack.c.h.b16 %v1849
        %v1877 = vunpack.c.l.b16 %v1850
        %v1878 = vunpack.c.h.b16 %v1850
        %v1879 = vunpack.c.l.b16 %v1851
        %v1880 = vpack.c.b16 %v1871, %v1862
        %v1881 = vpack.c.b16 %v1872, %v1863
        %v1882 = vpack.c.b16 %v1873, %v1864
        %v1883 = vpack.c.b16 %v1874, %v1865
        %v1884 = vpack.c.b16 %v1875, %v1866
        %v1885 = vpack.c.b16 %v1876, %v1867
        %v1886 = vpack.c.b16 %v1877, %v1868
        %v1887 = vpack.c.b16 %v1878, %v1869
        %v1888 = vpack.c.b16 %v1879, %v1870
        %1889 = vrot.lane.b32.xlu0 %v1880, 39
        %v1890 = vpop.permute.xlu0 %1889
        %1891 = vrot.lane.b32.xlu0 %v1881, 39
        %v1892 = vpop.permute.xlu0 %1891
        %1893 = vrot.lane.b32.xlu0 %v1882, 39
        %v1894 = vpop.permute.xlu0 %1893
        %1895 = vrot.lane.b32.xlu0 %v1883, 39
        %v1896 = vpop.permute.xlu0 %1895
        %1897 = vrot.lane.b32.xlu0 %v1884, 39
        %v1898 = vpop.permute.xlu0 %1897
        %1899 = vrot.lane.b32.xlu0 %v1885, 39
        %v1900 = vpop.permute.xlu0 %1899
        %1901 = vrot.lane.b32.xlu0 %v1886, 39
        %v1902 = vpop.permute.xlu0 %1901
        %1903 = vrot.lane.b32.xlu0 %v1887, 39
        %v1904 = vpop.permute.xlu0 %1903
        %1905 = vrot.lane.b32.xlu0 %v1888, 39
        %v1906 = vpop.permute.xlu0 %1905
        %vm1907 = vcmask 318464
        %v1908 = vsel %vm1907, %v1890, %v1892
        %v1909 = vsel %vm1907, %v1892, %v1894
        %v1910 = vsel %vm1907, %v1894, %v1896
        %v1911 = vsel %vm1907, %v1896, %v1898
        %v1912 = vsel %vm1907, %v1898, %v1900
        %v1913 = vsel %vm1907, %v1900, %v1902
        %v1914 = vsel %vm1907, %v1902, %v1904
        %v1915 = vsel %vm1907, %v1904, %v1906
        %1924 = vst [vmem:[#allocation2 + $0x480] sm:$0xff] %v1908
        %1925 = vst [vmem:[#allocation2 + $0x488] sm:$0xff] %v1909
        %1926 = vst [vmem:[#allocation2 + $0x490] sm:$0xff] %v1910
        %1927 = vst [vmem:[#allocation2 + $0x498] sm:$0xff] %v1911
        %1928 = vst [vmem:[#allocation2 + $0x4a0] sm:$0xff] %v1912
        %1929 = vst [vmem:[#allocation2 + $0x4a8] sm:$0xff] %v1913
        %1930 = vst [vmem:[#allocation2 + $0x4b0] sm:$0xff] %v1914
        %1931 = vst.msk [vmem:[#allocation2 + $0x4b8] sm:$0xff] %vm318, %v1915
        %v1932 = vld [vmem:[%s273 + $0x4] sm:$0xff]
        %v1933 = vld [vmem:[%s273 + $0xc] sm:$0xff]
        %v1934 = vld [vmem:[%s273 + $0x14] sm:$0xff]
        %v1935 = vld [vmem:[%s273 + $0x1c] sm:$0xff]
        %v1936 = vld [vmem:[%s273 + $0x24] sm:$0xf]
        %v1937 = vld [vmem:[%s273 + $0x2c] sm:$0xff]
        %v1938 = vld [vmem:[%s273 + $0x34] sm:$0xff]
        %v1939 = vld [vmem:[%s273 + $0x3c] sm:$0xff]
        %v1940 = vld [vmem:[%s273 + $0x44] sm:$0xff]
        %v1941 = vld [vmem:[%s273 + $0x4c] sm:$0xf]
        %v1952 = vunpack.c.l.b16 %v1932
        %v1953 = vunpack.c.h.b16 %v1932
        %v1954 = vunpack.c.l.b16 %v1933
        %v1955 = vunpack.c.h.b16 %v1933
        %v1956 = vunpack.c.l.b16 %v1934
        %v1957 = vunpack.c.h.b16 %v1934
        %v1958 = vunpack.c.l.b16 %v1935
        %v1959 = vunpack.c.h.b16 %v1935
        %v1960 = vunpack.c.l.b16 %v1936
        %v1961 = vunpack.c.l.b16 %v1937
        %v1962 = vunpack.c.h.b16 %v1937
        %v1963 = vunpack.c.l.b16 %v1938
        %v1964 = vunpack.c.h.b16 %v1938
        %v1965 = vunpack.c.l.b16 %v1939
        %v1966 = vunpack.c.h.b16 %v1939
        %v1967 = vunpack.c.l.b16 %v1940
        %v1968 = vunpack.c.h.b16 %v1940
        %v1969 = vunpack.c.l.b16 %v1941
        %v1970 = vpack.c.b16 %v1961, %v1952
        %v1971 = vpack.c.b16 %v1962, %v1953
        %v1972 = vpack.c.b16 %v1963, %v1954
        %v1973 = vpack.c.b16 %v1964, %v1955
        %v1974 = vpack.c.b16 %v1965, %v1956
        %v1975 = vpack.c.b16 %v1966, %v1957
        %v1976 = vpack.c.b16 %v1967, %v1958
        %v1977 = vpack.c.b16 %v1968, %v1959
        %v1978 = vpack.c.b16 %v1969, %v1960
        %1979 = vrot.lane.b32.xlu0 %v1970, 38
        %v1980 = vpop.permute.xlu0 %1979
        %1981 = vrot.lane.b32.xlu0 %v1971, 38
        %v1982 = vpop.permute.xlu0 %1981
        %1983 = vrot.lane.b32.xlu0 %v1972, 38
        %v1984 = vpop.permute.xlu0 %1983
        %1985 = vrot.lane.b32.xlu0 %v1973, 38
        %v1986 = vpop.permute.xlu0 %1985
        %1987 = vrot.lane.b32.xlu0 %v1974, 38
        %v1988 = vpop.permute.xlu0 %1987
        %1989 = vrot.lane.b32.xlu0 %v1975, 38
        %v1990 = vpop.permute.xlu0 %1989
        %1991 = vrot.lane.b32.xlu0 %v1976, 38
        %v1992 = vpop.permute.xlu0 %1991
        %1993 = vrot.lane.b32.xlu0 %v1977, 38
        %v1994 = vpop.permute.xlu0 %1993
        %1995 = vrot.lane.b32.xlu0 %v1978, 38
        %v1996 = vpop.permute.xlu0 %1995
        %vm1997 = vcmask 310272
        %v1998 = vsel %vm1997, %v1980, %v1982
        %v1999 = vsel %vm1997, %v1982, %v1984
        %v2000 = vsel %vm1997, %v1984, %v1986
        %v2001 = vsel %vm1997, %v1986, %v1988
        %v2002 = vsel %vm1997, %v1988, %v1990
        %v2003 = vsel %vm1997, %v1990, %v1992
        %v2004 = vsel %vm1997, %v1992, %v1994
        %v2005 = vsel %vm1997, %v1994, %v1996
        %2014 = vst [vmem:[#allocation2 + $0x4c0] sm:$0xff] %v1998
        %2015 = vst [vmem:[#allocation2 + $0x4c8] sm:$0xff] %v1999
        %2016 = vst [vmem:[#allocation2 + $0x4d0] sm:$0xff] %v2000
        %2017 = vst [vmem:[#allocation2 + $0x4d8] sm:$0xff] %v2001
        %2018 = vst [vmem:[#allocation2 + $0x4e0] sm:$0xff] %v2002
        %2019 = vst [vmem:[#allocation2 + $0x4e8] sm:$0xff] %v2003
        %2020 = vst [vmem:[#allocation2 + $0x4f0] sm:$0xff] %v2004
        %2021 = vst.msk [vmem:[#allocation2 + $0x4f8] sm:$0xff] %vm318, %v2005
        %v2022 = vld [vmem:[%s273 + $0x4] sm:$0xff]
        %v2023 = vld [vmem:[%s273 + $0xc] sm:$0xff]
        %v2024 = vld [vmem:[%s273 + $0x14] sm:$0xff]
        %v2025 = vld [vmem:[%s273 + $0x1c] sm:$0xff]
        %v2026 = vld [vmem:[%s273 + $0x24] sm:$0xf]
        %v2027 = vld [vmem:[%s273 + $0x2c] sm:$0xff]
        %v2028 = vld [vmem:[%s273 + $0x34] sm:$0xff]
        %v2029 = vld [vmem:[%s273 + $0x3c] sm:$0xff]
        %v2030 = vld [vmem:[%s273 + $0x44] sm:$0xff]
        %v2031 = vld [vmem:[%s273 + $0x4c] sm:$0xf]
        %v2042 = vunpack.c.l.b16 %v2022
        %v2043 = vunpack.c.h.b16 %v2022
        %v2044 = vunpack.c.l.b16 %v2023
        %v2045 = vunpack.c.h.b16 %v2023
        %v2046 = vunpack.c.l.b16 %v2024
        %v2047 = vunpack.c.h.b16 %v2024
        %v2048 = vunpack.c.l.b16 %v2025
        %v2049 = vunpack.c.h.b16 %v2025
        %v2050 = vunpack.c.l.b16 %v2026
        %v2051 = vunpack.c.l.b16 %v2027
        %v2052 = vunpack.c.h.b16 %v2027
        %v2053 = vunpack.c.l.b16 %v2028
        %v2054 = vunpack.c.h.b16 %v2028
        %v2055 = vunpack.c.l.b16 %v2029
        %v2056 = vunpack.c.h.b16 %v2029
        %v2057 = vunpack.c.l.b16 %v2030
        %v2058 = vunpack.c.h.b16 %v2030
        %v2059 = vunpack.c.l.b16 %v2031
        %v2060 = vpack.c.b16 %v2051, %v2042
        %v2061 = vpack.c.b16 %v2052, %v2043
        %v2062 = vpack.c.b16 %v2053, %v2044
        %v2063 = vpack.c.b16 %v2054, %v2045
        %v2064 = vpack.c.b16 %v2055, %v2046
        %v2065 = vpack.c.b16 %v2056, %v2047
        %v2066 = vpack.c.b16 %v2057, %v2048
        %v2067 = vpack.c.b16 %v2058, %v2049
        %v2068 = vpack.c.b16 %v2059, %v2050
        %2069 = vrot.lane.b32.xlu0 %v2060, 37
        %v2070 = vpop.permute.xlu0 %2069
        %2071 = vrot.lane.b32.xlu0 %v2061, 37
        %v2072 = vpop.permute.xlu0 %2071
        %2073 = vrot.lane.b32.xlu0 %v2062, 37
        %v2074 = vpop.permute.xlu0 %2073
        %2075 = vrot.lane.b32.xlu0 %v2063, 37
        %v2076 = vpop.permute.xlu0 %2075
        %2077 = vrot.lane.b32.xlu0 %v2064, 37
        %v2078 = vpop.permute.xlu0 %2077
        %2079 = vrot.lane.b32.xlu0 %v2065, 37
        %v2080 = vpop.permute.xlu0 %2079
        %2081 = vrot.lane.b32.xlu0 %v2066, 37
        %v2082 = vpop.permute.xlu0 %2081
        %2083 = vrot.lane.b32.xlu0 %v2067, 37
        %v2084 = vpop.permute.xlu0 %2083
        %2085 = vrot.lane.b32.xlu0 %v2068, 37
        %v2086 = vpop.permute.xlu0 %2085
        %vm2087 = vcmask 302080
        %v2088 = vsel %vm2087, %v2070, %v2072
        %v2089 = vsel %vm2087, %v2072, %v2074
        %v2090 = vsel %vm2087, %v2074, %v2076
        %v2091 = vsel %vm2087, %v2076, %v2078
        %v2092 = vsel %vm2087, %v2078, %v2080
        %v2093 = vsel %vm2087, %v2080, %v2082
        %v2094 = vsel %vm2087, %v2082, %v2084
        %v2095 = vsel %vm2087, %v2084, %v2086
        %2104 = vst [vmem:[#allocation2 + $0x500] sm:$0xff] %v2088
        %2105 = vst [vmem:[#allocation2 + $0x508] sm:$0xff] %v2089
        %2106 = vst [vmem:[#allocation2 + $0x510] sm:$0xff] %v2090
        %2107 = vst [vmem:[#allocation2 + $0x518] sm:$0xff] %v2091
        %2108 = vst [vmem:[#allocation2 + $0x520] sm:$0xff] %v2092
        %2109 = vst [vmem:[#allocation2 + $0x528] sm:$0xff] %v2093
        %2110 = vst [vmem:[#allocation2 + $0x530] sm:$0xff] %v2094
        %2111 = vst.msk [vmem:[#allocation2 + $0x538] sm:$0xff] %vm318, %v2095
        %v2112 = vld [vmem:[%s273 + $0x4] sm:$0xff]
        %v2113 = vld [vmem:[%s273 + $0xc] sm:$0xff]
        %v2114 = vld [vmem:[%s273 + $0x14] sm:$0xff]
        %v2115 = vld [vmem:[%s273 + $0x1c] sm:$0xff]
        %v2116 = vld [vmem:[%s273 + $0x24] sm:$0xf]
        %v2117 = vld [vmem:[%s273 + $0x2c] sm:$0xff]
        %v2118 = vld [vmem:[%s273 + $0x34] sm:$0xff]
        %v2119 = vld [vmem:[%s273 + $0x3c] sm:$0xff]
        %v2120 = vld [vmem:[%s273 + $0x44] sm:$0xff]
        %v2121 = vld [vmem:[%s273 + $0x4c] sm:$0xf]
        %v2132 = vunpack.c.l.b16 %v2112
        %v2133 = vunpack.c.h.b16 %v2112
        %v2134 = vunpack.c.l.b16 %v2113
        %v2135 = vunpack.c.h.b16 %v2113
        %v2136 = vunpack.c.l.b16 %v2114
        %v2137 = vunpack.c.h.b16 %v2114
        %v2138 = vunpack.c.l.b16 %v2115
        %v2139 = vunpack.c.h.b16 %v2115
        %v2140 = vunpack.c.l.b16 %v2116
        %v2141 = vunpack.c.l.b16 %v2117
        %v2142 = vunpack.c.h.b16 %v2117
        %v2143 = vunpack.c.l.b16 %v2118
        %v2144 = vunpack.c.h.b16 %v2118
        %v2145 = vunpack.c.l.b16 %v2119
        %v2146 = vunpack.c.h.b16 %v2119
        %v2147 = vunpack.c.l.b16 %v2120
        %v2148 = vunpack.c.h.b16 %v2120
        %v2149 = vunpack.c.l.b16 %v2121
        %v2150 = vpack.c.b16 %v2141, %v2132
        %v2151 = vpack.c.b16 %v2142, %v2133
        %v2152 = vpack.c.b16 %v2143, %v2134
        %v2153 = vpack.c.b16 %v2144, %v2135
        %v2154 = vpack.c.b16 %v2145, %v2136
        %v2155 = vpack.c.b16 %v2146, %v2137
        %v2156 = vpack.c.b16 %v2147, %v2138
        %v2157 = vpack.c.b16 %v2148, %v2139
        %v2158 = vpack.c.b16 %v2149, %v2140
        %2159 = vrot.lane.b32.xlu0 %v2150, 29
        %v2160 = vpop.permute.xlu0 %2159
        %2161 = vrot.lane.b32.xlu0 %v2151, 29
        %v2162 = vpop.permute.xlu0 %2161
        %2163 = vrot.lane.b32.xlu0 %v2152, 29
        %v2164 = vpop.permute.xlu0 %2163
        %2165 = vrot.lane.b32.xlu0 %v2153, 29
        %v2166 = vpop.permute.xlu0 %2165
        %2167 = vrot.lane.b32.xlu0 %v2154, 29
        %v2168 = vpop.permute.xlu0 %2167
        %2169 = vrot.lane.b32.xlu0 %v2155, 29
        %v2170 = vpop.permute.xlu0 %2169
        %2171 = vrot.lane.b32.xlu0 %v2156, 29
        %v2172 = vpop.permute.xlu0 %2171
        %2173 = vrot.lane.b32.xlu0 %v2157, 29
        %v2174 = vpop.permute.xlu0 %2173
        %2175 = vrot.lane.b32.xlu0 %v2158, 29
        %v2176 = vpop.permute.xlu0 %2175
        %vm2177 = vcmask 236544
        %v2178 = vsel %vm2177, %v2160, %v2162
        %v2179 = vsel %vm2177, %v2162, %v2164
        %v2180 = vsel %vm2177, %v2164, %v2166
        %v2181 = vsel %vm2177, %v2166, %v2168
        %v2182 = vsel %vm2177, %v2168, %v2170
        %v2183 = vsel %vm2177, %v2170, %v2172
        %v2184 = vsel %vm2177, %v2172, %v2174
        %v2185 = vsel %vm2177, %v2174, %v2176
        %2194 = vst [vmem:[#allocation2 + $0x540] sm:$0xff] %v2178
        %2195 = vst [vmem:[#allocation2 + $0x548] sm:$0xff] %v2179
        %2196 = vst [vmem:[#allocation2 + $0x550] sm:$0xff] %v2180
        %2197 = vst [vmem:[#allocation2 + $0x558] sm:$0xff] %v2181
        %2198 = vst [vmem:[#allocation2 + $0x560] sm:$0xff] %v2182
        %2199 = vst [vmem:[#allocation2 + $0x568] sm:$0xff] %v2183
        %2200 = vst [vmem:[#allocation2 + $0x570] sm:$0xff] %v2184
        %2201 = vst.msk [vmem:[#allocation2 + $0x578] sm:$0xff] %vm318, %v2185
        %v2202 = vld [vmem:[%s273 + $0x4] sm:$0xff]
        %v2203 = vld [vmem:[%s273 + $0xc] sm:$0xff]
        %v2204 = vld [vmem:[%s273 + $0x14] sm:$0xff]
        %v2205 = vld [vmem:[%s273 + $0x1c] sm:$0xff]
        %v2206 = vld [vmem:[%s273 + $0x24] sm:$0xf]
        %v2207 = vld [vmem:[%s273 + $0x2c] sm:$0xff]
        %v2208 = vld [vmem:[%s273 + $0x34] sm:$0xff]
        %v2209 = vld [vmem:[%s273 + $0x3c] sm:$0xff]
        %v2210 = vld [vmem:[%s273 + $0x44] sm:$0xff]
        %v2211 = vld [vmem:[%s273 + $0x4c] sm:$0xf]
        %v2222 = vunpack.c.l.b16 %v2202
        %v2223 = vunpack.c.h.b16 %v2202
        %v2224 = vunpack.c.l.b16 %v2203
        %v2225 = vunpack.c.h.b16 %v2203
        %v2226 = vunpack.c.l.b16 %v2204
        %v2227 = vunpack.c.h.b16 %v2204
        %v2228 = vunpack.c.l.b16 %v2205
        %v2229 = vunpack.c.h.b16 %v2205
        %v2230 = vunpack.c.l.b16 %v2206
        %v2231 = vunpack.c.l.b16 %v2207
        %v2232 = vunpack.c.h.b16 %v2207
        %v2233 = vunpack.c.l.b16 %v2208
        %v2234 = vunpack.c.h.b16 %v2208
        %v2235 = vunpack.c.l.b16 %v2209
        %v2236 = vunpack.c.h.b16 %v2209
        %v2237 = vunpack.c.l.b16 %v2210
        %v2238 = vunpack.c.h.b16 %v2210
        %v2239 = vunpack.c.l.b16 %v2211
        %v2240 = vpack.c.b16 %v2231, %v2222
        %v2241 = vpack.c.b16 %v2232, %v2223
        %v2242 = vpack.c.b16 %v2233, %v2224
        %v2243 = vpack.c.b16 %v2234, %v2225
        %v2244 = vpack.c.b16 %v2235, %v2226
        %v2245 = vpack.c.b16 %v2236, %v2227
        %v2246 = vpack.c.b16 %v2237, %v2228
        %v2247 = vpack.c.b16 %v2238, %v2229
        %v2248 = vpack.c.b16 %v2239, %v2230
        %2249 = vrot.lane.b32.xlu0 %v2240, 28
        %v2250 = vpop.permute.xlu0 %2249
        %2251 = vrot.lane.b32.xlu0 %v2241, 28
        %v2252 = vpop.permute.xlu0 %2251
        %2253 = vrot.lane.b32.xlu0 %v2242, 28
        %v2254 = vpop.permute.xlu0 %2253
        %2255 = vrot.lane.b32.xlu0 %v2243, 28
        %v2256 = vpop.permute.xlu0 %2255
        %2257 = vrot.lane.b32.xlu0 %v2244, 28
        %v2258 = vpop.permute.xlu0 %2257
        %2259 = vrot.lane.b32.xlu0 %v2245, 28
        %v2260 = vpop.permute.xlu0 %2259
        %2261 = vrot.lane.b32.xlu0 %v2246, 28
        %v2262 = vpop.permute.xlu0 %2261
        %2263 = vrot.lane.b32.xlu0 %v2247, 28
        %v2264 = vpop.permute.xlu0 %2263
        %2265 = vrot.lane.b32.xlu0 %v2248, 28
        %v2266 = vpop.permute.xlu0 %2265
        %vm2267 = vcmask 228352
        %v2268 = vsel %vm2267, %v2250, %v2252
        %v2269 = vsel %vm2267, %v2252, %v2254
        %v2270 = vsel %vm2267, %v2254, %v2256
        %v2271 = vsel %vm2267, %v2256, %v2258
        %v2272 = vsel %vm2267, %v2258, %v2260
        %v2273 = vsel %vm2267, %v2260, %v2262
        %v2274 = vsel %vm2267, %v2262, %v2264
        %v2275 = vsel %vm2267, %v2264, %v2266
        %2284 = vst [vmem:[#allocation2 + $0x580] sm:$0xff] %v2268
        %2285 = vst [vmem:[#allocation2 + $0x588] sm:$0xff] %v2269
        %2286 = vst [vmem:[#allocation2 + $0x590] sm:$0xff] %v2270
        %2287 = vst [vmem:[#allocation2 + $0x598] sm:$0xff] %v2271
        %2288 = vst [vmem:[#allocation2 + $0x5a0] sm:$0xff] %v2272
        %2289 = vst [vmem:[#allocation2 + $0x5a8] sm:$0xff] %v2273
        %2290 = vst [vmem:[#allocation2 + $0x5b0] sm:$0xff] %v2274
        %2291 = vst.msk [vmem:[#allocation2 + $0x5b8] sm:$0xff] %vm318, %v2275
        %v2292 = vld [vmem:[%s273 + $0x4] sm:$0xff]
        %v2293 = vld [vmem:[%s273 + $0xc] sm:$0xff]
        %v2294 = vld [vmem:[%s273 + $0x14] sm:$0xff]
        %v2295 = vld [vmem:[%s273 + $0x1c] sm:$0xff]
        %v2296 = vld [vmem:[%s273 + $0x24] sm:$0xf]
        %v2297 = vld [vmem:[%s273 + $0x2c] sm:$0xff]
        %v2298 = vld [vmem:[%s273 + $0x34] sm:$0xff]
        %v2299 = vld [vmem:[%s273 + $0x3c] sm:$0xff]
        %v2300 = vld [vmem:[%s273 + $0x44] sm:$0xff]
        %v2301 = vld [vmem:[%s273 + $0x4c] sm:$0xf]
        %v2312 = vunpack.c.l.b16 %v2292
        %v2313 = vunpack.c.h.b16 %v2292
        %v2314 = vunpack.c.l.b16 %v2293
        %v2315 = vunpack.c.h.b16 %v2293
        %v2316 = vunpack.c.l.b16 %v2294
        %v2317 = vunpack.c.h.b16 %v2294
        %v2318 = vunpack.c.l.b16 %v2295
        %v2319 = vunpack.c.h.b16 %v2295
        %v2320 = vunpack.c.l.b16 %v2296
        %v2321 = vunpack.c.l.b16 %v2297
        %v2322 = vunpack.c.h.b16 %v2297
        %v2323 = vunpack.c.l.b16 %v2298
        %v2324 = vunpack.c.h.b16 %v2298
        %v2325 = vunpack.c.l.b16 %v2299
        %v2326 = vunpack.c.h.b16 %v2299
        %v2327 = vunpack.c.l.b16 %v2300
        %v2328 = vunpack.c.h.b16 %v2300
        %v2329 = vunpack.c.l.b16 %v2301
        %v2330 = vpack.c.b16 %v2321, %v2312
        %v2331 = vpack.c.b16 %v2322, %v2313
        %v2332 = vpack.c.b16 %v2323, %v2314
        %v2333 = vpack.c.b16 %v2324, %v2315
        %v2334 = vpack.c.b16 %v2325, %v2316
        %v2335 = vpack.c.b16 %v2326, %v2317
        %v2336 = vpack.c.b16 %v2327, %v2318
        %v2337 = vpack.c.b16 %v2328, %v2319
        %v2338 = vpack.c.b16 %v2329, %v2320
        %2339 = vrot.lane.b32.xlu0 %v2330, 27
        %v2340 = vpop.permute.xlu0 %2339
        %2341 = vrot.lane.b32.xlu0 %v2331, 27
        %v2342 = vpop.permute.xlu0 %2341
        %2343 = vrot.lane.b32.xlu0 %v2332, 27
        %v2344 = vpop.permute.xlu0 %2343
        %2345 = vrot.lane.b32.xlu0 %v2333, 27
        %v2346 = vpop.permute.xlu0 %2345
        %2347 = vrot.lane.b32.xlu0 %v2334, 27
        %v2348 = vpop.permute.xlu0 %2347
        %2349 = vrot.lane.b32.xlu0 %v2335, 27
        %v2350 = vpop.permute.xlu0 %2349
        %2351 = vrot.lane.b32.xlu0 %v2336, 27
        %v2352 = vpop.permute.xlu0 %2351
        %2353 = vrot.lane.b32.xlu0 %v2337, 27
        %v2354 = vpop.permute.xlu0 %2353
        %2355 = vrot.lane.b32.xlu0 %v2338, 27
        %v2356 = vpop.permute.xlu0 %2355
        %vm2357 = vcmask 220160
        %v2358 = vsel %vm2357, %v2340, %v2342
        %v2359 = vsel %vm2357, %v2342, %v2344
        %v2360 = vsel %vm2357, %v2344, %v2346
        %v2361 = vsel %vm2357, %v2346, %v2348
        %v2362 = vsel %vm2357, %v2348, %v2350
        %v2363 = vsel %vm2357, %v2350, %v2352
        %v2364 = vsel %vm2357, %v2352, %v2354
        %v2365 = vsel %vm2357, %v2354, %v2356
        %2374 = vst [vmem:[#allocation2 + $0x5c0] sm:$0xff] %v2358
        %2375 = vst [vmem:[#allocation2 + $0x5c8] sm:$0xff] %v2359
        %2376 = vst [vmem:[#allocation2 + $0x5d0] sm:$0xff] %v2360
        %2377 = vst [vmem:[#allocation2 + $0x5d8] sm:$0xff] %v2361
        %2378 = vst [vmem:[#allocation2 + $0x5e0] sm:$0xff] %v2362
        %2379 = vst [vmem:[#allocation2 + $0x5e8] sm:$0xff] %v2363
        %2380 = vst [vmem:[#allocation2 + $0x5f0] sm:$0xff] %v2364
        %2381 = vst.msk [vmem:[#allocation2 + $0x5f8] sm:$0xff] %vm318, %v2365
        %v2382 = vld [vmem:[%s273 + $0x4] sm:$0xff]
        %v2383 = vld [vmem:[%s273 + $0xc] sm:$0xff]
        %v2384 = vld [vmem:[%s273 + $0x14] sm:$0xff]
        %v2385 = vld [vmem:[%s273 + $0x1c] sm:$0xff]
        %v2386 = vld [vmem:[%s273 + $0x24] sm:$0xf]
        %v2387 = vld [vmem:[%s273 + $0x2c] sm:$0xff]
        %v2388 = vld [vmem:[%s273 + $0x34] sm:$0xff]
        %v2389 = vld [vmem:[%s273 + $0x3c] sm:$0xff]
        %v2390 = vld [vmem:[%s273 + $0x44] sm:$0xff]
        %v2391 = vld [vmem:[%s273 + $0x4c] sm:$0xf]
        %v2402 = vunpack.c.l.b16 %v2382
        %v2403 = vunpack.c.h.b16 %v2382
        %v2404 = vunpack.c.l.b16 %v2383
        %v2405 = vunpack.c.h.b16 %v2383
        %v2406 = vunpack.c.l.b16 %v2384
        %v2407 = vunpack.c.h.b16 %v2384
        %v2408 = vunpack.c.l.b16 %v2385
        %v2409 = vunpack.c.h.b16 %v2385
        %v2410 = vunpack.c.l.b16 %v2386
        %v2411 = vunpack.c.l.b16 %v2387
        %v2412 = vunpack.c.h.b16 %v2387
        %v2413 = vunpack.c.l.b16 %v2388
        %v2414 = vunpack.c.h.b16 %v2388
        %v2415 = vunpack.c.l.b16 %v2389
        %v2416 = vunpack.c.h.b16 %v2389
        %v2417 = vunpack.c.l.b16 %v2390
        %v2418 = vunpack.c.h.b16 %v2390
        %v2419 = vunpack.c.l.b16 %v2391
        %v2420 = vpack.c.b16 %v2411, %v2402
        %v2421 = vpack.c.b16 %v2412, %v2403
        %v2422 = vpack.c.b16 %v2413, %v2404
        %v2423 = vpack.c.b16 %v2414, %v2405
        %v2424 = vpack.c.b16 %v2415, %v2406
        %v2425 = vpack.c.b16 %v2416, %v2407
        %v2426 = vpack.c.b16 %v2417, %v2408
        %v2427 = vpack.c.b16 %v2418, %v2409
        %v2428 = vpack.c.b16 %v2419, %v2410
        %2429 = vrot.lane.b32.xlu0 %v2420, 19
        %v2430 = vpop.permute.xlu0 %2429
        %2431 = vrot.lane.b32.xlu0 %v2421, 19
        %v2432 = vpop.permute.xlu0 %2431
        %2433 = vrot.lane.b32.xlu0 %v2422, 19
        %v2434 = vpop.permute.xlu0 %2433
        %2435 = vrot.lane.b32.xlu0 %v2423, 19
        %v2436 = vpop.permute.xlu0 %2435
        %2437 = vrot.lane.b32.xlu0 %v2424, 19
        %v2438 = vpop.permute.xlu0 %2437
        %2439 = vrot.lane.b32.xlu0 %v2425, 19
        %v2440 = vpop.permute.xlu0 %2439
        %2441 = vrot.lane.b32.xlu0 %v2426, 19
        %v2442 = vpop.permute.xlu0 %2441
        %2443 = vrot.lane.b32.xlu0 %v2427, 19
        %v2444 = vpop.permute.xlu0 %2443
        %2445 = vrot.lane.b32.xlu0 %v2428, 19
        %v2446 = vpop.permute.xlu0 %2445
        %vm2447 = vcmask 154624
        %v2448 = vsel %vm2447, %v2430, %v2432
        %v2449 = vsel %vm2447, %v2432, %v2434
        %v2450 = vsel %vm2447, %v2434, %v2436
        %v2451 = vsel %vm2447, %v2436, %v2438
        %v2452 = vsel %vm2447, %v2438, %v2440
        %v2453 = vsel %vm2447, %v2440, %v2442
        %v2454 = vsel %vm2447, %v2442, %v2444
        %v2455 = vsel %vm2447, %v2444, %v2446
        %2464 = vst [vmem:[#allocation2 + $0x600] sm:$0xff] %v2448
        %2465 = vst [vmem:[#allocation2 + $0x608] sm:$0xff] %v2449
        %2466 = vst [vmem:[#allocation2 + $0x610] sm:$0xff] %v2450
        %2467 = vst [vmem:[#allocation2 + $0x618] sm:$0xff] %v2451
        %2468 = vst [vmem:[#allocation2 + $0x620] sm:$0xff] %v2452
        %2469 = vst [vmem:[#allocation2 + $0x628] sm:$0xff] %v2453
        %2470 = vst [vmem:[#allocation2 + $0x630] sm:$0xff] %v2454
        %2471 = vst.msk [vmem:[#allocation2 + $0x638] sm:$0xff] %vm318, %v2455
        %v2472 = vld [vmem:[%s273 + $0x4] sm:$0xff]
        %v2473 = vld [vmem:[%s273 + $0xc] sm:$0xff]
        %v2474 = vld [vmem:[%s273 + $0x14] sm:$0xff]
        %v2475 = vld [vmem:[%s273 + $0x1c] sm:$0xff]
        %v2476 = vld [vmem:[%s273 + $0x24] sm:$0xf]
        %v2477 = vld [vmem:[%s273 + $0x2c] sm:$0xff]
        %v2478 = vld [vmem:[%s273 + $0x34] sm:$0xff]
        %v2479 = vld [vmem:[%s273 + $0x3c] sm:$0xff]
        %v2480 = vld [vmem:[%s273 + $0x44] sm:$0xff]
        %v2481 = vld [vmem:[%s273 + $0x4c] sm:$0xf]
        %v2492 = vunpack.c.l.b16 %v2472
        %v2493 = vunpack.c.h.b16 %v2472
        %v2494 = vunpack.c.l.b16 %v2473
        %v2495 = vunpack.c.h.b16 %v2473
        %v2496 = vunpack.c.l.b16 %v2474
        %v2497 = vunpack.c.h.b16 %v2474
        %v2498 = vunpack.c.l.b16 %v2475
        %v2499 = vunpack.c.h.b16 %v2475
        %v2500 = vunpack.c.l.b16 %v2476
        %v2501 = vunpack.c.l.b16 %v2477
        %v2502 = vunpack.c.h.b16 %v2477
        %v2503 = vunpack.c.l.b16 %v2478
        %v2504 = vunpack.c.h.b16 %v2478
        %v2505 = vunpack.c.l.b16 %v2479
        %v2506 = vunpack.c.h.b16 %v2479
        %v2507 = vunpack.c.l.b16 %v2480
        %v2508 = vunpack.c.h.b16 %v2480
        %v2509 = vunpack.c.l.b16 %v2481
        %v2510 = vpack.c.b16 %v2501, %v2492
        %v2511 = vpack.c.b16 %v2502, %v2493
        %v2512 = vpack.c.b16 %v2503, %v2494
        %v2513 = vpack.c.b16 %v2504, %v2495
        %v2514 = vpack.c.b16 %v2505, %v2496
        %v2515 = vpack.c.b16 %v2506, %v2497
        %v2516 = vpack.c.b16 %v2507, %v2498
        %v2517 = vpack.c.b16 %v2508, %v2499
        %v2518 = vpack.c.b16 %v2509, %v2500
        %2519 = vrot.lane.b32.xlu0 %v2510, 18
        %v2520 = vpop.permute.xlu0 %2519
        %2521 = vrot.lane.b32.xlu0 %v2511, 18
        %v2522 = vpop.permute.xlu0 %2521
        %2523 = vrot.lane.b32.xlu0 %v2512, 18
        %v2524 = vpop.permute.xlu0 %2523
        %2525 = vrot.lane.b32.xlu0 %v2513, 18
        %v2526 = vpop.permute.xlu0 %2525
        %2527 = vrot.lane.b32.xlu0 %v2514, 18
        %v2528 = vpop.permute.xlu0 %2527
        %2529 = vrot.lane.b32.xlu0 %v2515, 18
        %v2530 = vpop.permute.xlu0 %2529
        %2531 = vrot.lane.b32.xlu0 %v2516, 18
        %v2532 = vpop.permute.xlu0 %2531
        %2533 = vrot.lane.b32.xlu0 %v2517, 18
        %v2534 = vpop.permute.xlu0 %2533
        %2535 = vrot.lane.b32.xlu0 %v2518, 18
        %v2536 = vpop.permute.xlu0 %2535
        %vm2537 = vcmask 146432
        %v2538 = vsel %vm2537, %v2520, %v2522
        %v2539 = vsel %vm2537, %v2522, %v2524
        %v2540 = vsel %vm2537, %v2524, %v2526
        %v2541 = vsel %vm2537, %v2526, %v2528
        %v2542 = vsel %vm2537, %v2528, %v2530
        %v2543 = vsel %vm2537, %v2530, %v2532
        %v2544 = vsel %vm2537, %v2532, %v2534
        %v2545 = vsel %vm2537, %v2534, %v2536
        %2554 = vst [vmem:[#allocation2 + $0x640] sm:$0xff] %v2538
        %2555 = vst [vmem:[#allocation2 + $0x648] sm:$0xff] %v2539
        %2556 = vst [vmem:[#allocation2 + $0x650] sm:$0xff] %v2540
        %2557 = vst [vmem:[#allocation2 + $0x658] sm:$0xff] %v2541
        %2558 = vst [vmem:[#allocation2 + $0x660] sm:$0xff] %v2542
        %2559 = vst [vmem:[#allocation2 + $0x668] sm:$0xff] %v2543
        %2560 = vst [vmem:[#allocation2 + $0x670] sm:$0xff] %v2544
        %2561 = vst.msk [vmem:[#allocation2 + $0x678] sm:$0xff] %vm318, %v2545
        %v2562 = vld [vmem:[%s273 + $0x4] sm:$0xff]
        %v2563 = vld [vmem:[%s273 + $0xc] sm:$0xff]
        %v2564 = vld [vmem:[%s273 + $0x14] sm:$0xff]
        %v2565 = vld [vmem:[%s273 + $0x1c] sm:$0xff]
        %v2566 = vld [vmem:[%s273 + $0x24] sm:$0xf]
        %v2567 = vld [vmem:[%s273 + $0x2c] sm:$0xff]
        %v2568 = vld [vmem:[%s273 + $0x34] sm:$0xff]
        %v2569 = vld [vmem:[%s273 + $0x3c] sm:$0xff]
        %v2570 = vld [vmem:[%s273 + $0x44] sm:$0xff]
        %v2571 = vld [vmem:[%s273 + $0x4c] sm:$0xf]
        %v2582 = vunpack.c.l.b16 %v2562
        %v2583 = vunpack.c.h.b16 %v2562
        %v2584 = vunpack.c.l.b16 %v2563
        %v2585 = vunpack.c.h.b16 %v2563
        %v2586 = vunpack.c.l.b16 %v2564
        %v2587 = vunpack.c.h.b16 %v2564
        %v2588 = vunpack.c.l.b16 %v2565
        %v2589 = vunpack.c.h.b16 %v2565
        %v2590 = vunpack.c.l.b16 %v2566
        %v2591 = vunpack.c.l.b16 %v2567
        %v2592 = vunpack.c.h.b16 %v2567
        %v2593 = vunpack.c.l.b16 %v2568
        %v2594 = vunpack.c.h.b16 %v2568
        %v2595 = vunpack.c.l.b16 %v2569
        %v2596 = vunpack.c.h.b16 %v2569
        %v2597 = vunpack.c.l.b16 %v2570
        %v2598 = vunpack.c.h.b16 %v2570
        %v2599 = vunpack.c.l.b16 %v2571
        %v2600 = vpack.c.b16 %v2591, %v2582
        %v2601 = vpack.c.b16 %v2592, %v2583
        %v2602 = vpack.c.b16 %v2593, %v2584
        %v2603 = vpack.c.b16 %v2594, %v2585
        %v2604 = vpack.c.b16 %v2595, %v2586
        %v2605 = vpack.c.b16 %v2596, %v2587
        %v2606 = vpack.c.b16 %v2597, %v2588
        %v2607 = vpack.c.b16 %v2598, %v2589
        %v2608 = vpack.c.b16 %v2599, %v2590
        %2609 = vrot.lane.b32.xlu0 %v2600, 17
        %v2610 = vpop.permute.xlu0 %2609
        %2611 = vrot.lane.b32.xlu0 %v2601, 17
        %v2612 = vpop.permute.xlu0 %2611
        %2613 = vrot.lane.b32.xlu0 %v2602, 17
        %v2614 = vpop.permute.xlu0 %2613
        %2615 = vrot.lane.b32.xlu0 %v2603, 17
        %v2616 = vpop.permute.xlu0 %2615
        %2617 = vrot.lane.b32.xlu0 %v2604, 17
        %v2618 = vpop.permute.xlu0 %2617
        %2619 = vrot.lane.b32.xlu0 %v2605, 17
        %v2620 = vpop.permute.xlu0 %2619
        %2621 = vrot.lane.b32.xlu0 %v2606, 17
        %v2622 = vpop.permute.xlu0 %2621
        %2623 = vrot.lane.b32.xlu0 %v2607, 17
        %v2624 = vpop.permute.xlu0 %2623
        %2625 = vrot.lane.b32.xlu0 %v2608, 17
        %v2626 = vpop.permute.xlu0 %2625
        %vm2627 = vcmask 138240
        %v2628 = vsel %vm2627, %v2610, %v2612
        %v2629 = vsel %vm2627, %v2612, %v2614
        %v2630 = vsel %vm2627, %v2614, %v2616
        %v2631 = vsel %vm2627, %v2616, %v2618
        %v2632 = vsel %vm2627, %v2618, %v2620
        %v2633 = vsel %vm2627, %v2620, %v2622
        %v2634 = vsel %vm2627, %v2622, %v2624
        %v2635 = vsel %vm2627, %v2624, %v2626
        %2644 = vst [vmem:[#allocation2 + $0x680] sm:$0xff] %v2628
        %2645 = vst [vmem:[#allocation2 + $0x688] sm:$0xff] %v2629
        %2646 = vst [vmem:[#allocation2 + $0x690] sm:$0xff] %v2630
        %2647 = vst [vmem:[#allocation2 + $0x698] sm:$0xff] %v2631
        %2648 = vst [vmem:[#allocation2 + $0x6a0] sm:$0xff] %v2632
        %2649 = vst [vmem:[#allocation2 + $0x6a8] sm:$0xff] %v2633
        %2650 = vst [vmem:[#allocation2 + $0x6b0] sm:$0xff] %v2634
        %2651 = vst.msk [vmem:[#allocation2 + $0x6b8] sm:$0xff] %vm318, %v2635
        %v2652 = vld [vmem:[#allocation8] sm:$0xff]
        %v2653 = vld [vmem:[#allocation8 + $0x8] sm:$0xff]
        %v2654 = vld [vmem:[#allocation8 + $0x10] sm:$0xff]
        %v2655 = vld [vmem:[#allocation8 + $0x18] sm:$0xff]
        %v2656 = vld [vmem:[#allocation2] sm:$0xff]
        %v2657 = vld [vmem:[#allocation2 + $0x8] sm:$0xff]
        %v2658 = vld [vmem:[#allocation2 + $0x10] sm:$0xff]
        %v2659 = vld [vmem:[#allocation2 + $0x18] sm:$0xff]
        %v2660 = vld [vmem:[#allocation2 + $0x20] sm:$0xff]
        %v2661 = vld [vmem:[#allocation2 + $0x28] sm:$0xff]
        %v2662 = vld [vmem:[#allocation2 + $0x30] sm:$0xff]
        %v2663 = vld [vmem:[#allocation2 + $0x38] sm:$0xff]
        %v2664 = vld [vmem:[#allocation2 + $0x40] sm:$0xff]
        %v2665 = vld [vmem:[#allocation2 + $0x48] sm:$0xff]
        %v2666 = vld [vmem:[#allocation2 + $0x50] sm:$0xff]
        %v2667 = vld [vmem:[#allocation2 + $0x58] sm:$0xff]
        %v2668 = vld [vmem:[#allocation2 + $0x60] sm:$0xff]
        %v2669 = vld [vmem:[#allocation2 + $0x68] sm:$0xff]
        %v2670 = vld [vmem:[#allocation2 + $0x70] sm:$0xff]
        %v2671 = vld [vmem:[#allocation2 + $0x78] sm:$0xff]
        %v2672 = vld [vmem:[#allocation2 + $0x80] sm:$0xff]
        %v2673 = vld [vmem:[#allocation2 + $0x88] sm:$0xff]
        %v2674 = vld [vmem:[#allocation2 + $0x90] sm:$0xff]
        %v2675 = vld [vmem:[#allocation2 + $0x98] sm:$0xff]
        %v2676 = vld [vmem:[#allocation2 + $0xa0] sm:$0xff]
        %v2677 = vld [vmem:[#allocation2 + $0xa8] sm:$0xff]
        %v2678 = vld [vmem:[#allocation2 + $0xb0] sm:$0xff]
        %v2679 = vld [vmem:[#allocation2 + $0xb8] sm:$0xff]
        %v2680 = vld [vmem:[#allocation2 + $0xc0] sm:$0xff]
        %v2681 = vld [vmem:[#allocation2 + $0xc8] sm:$0xff]
        %v2682 = vld [vmem:[#allocation2 + $0xd0] sm:$0xff]
        %v2683 = vld [vmem:[#allocation2 + $0xd8] sm:$0xff]
        %v2684 = vld [vmem:[#allocation2 + $0xe0] sm:$0xff]
        %v2685 = vld [vmem:[#allocation2 + $0xe8] sm:$0xff]
        %v2686 = vld [vmem:[#allocation2 + $0xf0] sm:$0xff]
        %v2687 = vld [vmem:[#allocation2 + $0xf8] sm:$0xff]
        %v2688 = vld [vmem:[#allocation2 + $0x100] sm:$0xff]
        %v2689 = vld [vmem:[#allocation2 + $0x108] sm:$0xff]
        %v2690 = vld [vmem:[#allocation2 + $0x110] sm:$0xff]
        %v2691 = vld [vmem:[#allocation2 + $0x118] sm:$0xff]
        %v2692 = vld [vmem:[#allocation2 + $0x120] sm:$0xff]
        %v2693 = vld [vmem:[#allocation2 + $0x128] sm:$0xff]
        %v2694 = vld [vmem:[#allocation2 + $0x130] sm:$0xff]
        %v2695 = vld [vmem:[#allocation2 + $0x138] sm:$0xff]
        %v2696 = vld [vmem:[#allocation2 + $0x140] sm:$0xff]
        %v2697 = vld [vmem:[#allocation2 + $0x148] sm:$0xff]
        %v2698 = vld [vmem:[#allocation2 + $0x150] sm:$0xff]
        %v2699 = vld [vmem:[#allocation2 + $0x158] sm:$0xff]
        %v2700 = vld [vmem:[#allocation2 + $0x160] sm:$0xff]
        %v2701 = vld [vmem:[#allocation2 + $0x168] sm:$0xff]
        %v2702 = vld [vmem:[#allocation2 + $0x170] sm:$0xff]
        %v2703 = vld [vmem:[#allocation2 + $0x178] sm:$0xff]
        %v2704 = vld [vmem:[#allocation2 + $0x180] sm:$0xff]
        %v2705 = vld [vmem:[#allocation2 + $0x188] sm:$0xff]
        %v2706 = vld [vmem:[#allocation2 + $0x190] sm:$0xff]
        %v2707 = vld [vmem:[#allocation2 + $0x198] sm:$0xff]
        %v2708 = vld [vmem:[#allocation2 + $0x1a0] sm:$0xff]
        %v2709 = vld [vmem:[#allocation2 + $0x1a8] sm:$0xff]
        %v2710 = vld [vmem:[#allocation2 + $0x1b0] sm:$0xff]
        %v2711 = vld [vmem:[#allocation2 + $0x1b8] sm:$0xff]
        %v2712 = vld [vmem:[#allocation2 + $0x1c0] sm:$0xff]
        %v2713 = vld [vmem:[#allocation2 + $0x1c8] sm:$0xff]
        %v2714 = vld [vmem:[#allocation2 + $0x1d0] sm:$0xff]
        %v2715 = vld [vmem:[#allocation2 + $0x1d8] sm:$0xff]
        %v2716 = vld [vmem:[#allocation2 + $0x1e0] sm:$0xff]
        %v2717 = vld [vmem:[#allocation2 + $0x1e8] sm:$0xff]
        %v2718 = vld [vmem:[#allocation2 + $0x1f0] sm:$0xff]
        %v2719 = vld [vmem:[#allocation2 + $0x1f8] sm:$0xff]
        %v2720 = vld [vmem:[#allocation2 + $0x200] sm:$0xff]
        %v2721 = vld [vmem:[#allocation2 + $0x208] sm:$0xff]
        %v2722 = vld [vmem:[#allocation2 + $0x210] sm:$0xff]
        %v2723 = vld [vmem:[#allocation2 + $0x218] sm:$0xff]
        %v2724 = vld [vmem:[#allocation2 + $0x220] sm:$0xff]
        %v2725 = vld [vmem:[#allocation2 + $0x228] sm:$0xff]
        %v2726 = vld [vmem:[#allocation2 + $0x230] sm:$0xff]
        %v2727 = vld [vmem:[#allocation2 + $0x238] sm:$0xff]
        %v2728 = vld [vmem:[#allocation2 + $0x240] sm:$0xff]
        %v2729 = vld [vmem:[#allocation2 + $0x248] sm:$0xff]
        %v2730 = vld [vmem:[#allocation2 + $0x250] sm:$0xff]
        %v2731 = vld [vmem:[#allocation2 + $0x258] sm:$0xff]
        %v2732 = vld [vmem:[#allocation2 + $0x260] sm:$0xff]
        %v2733 = vld [vmem:[#allocation2 + $0x268] sm:$0xff]
        %v2734 = vld [vmem:[#allocation2 + $0x270] sm:$0xff]
        %v2735 = vld [vmem:[#allocation2 + $0x278] sm:$0xff]
        %v2736 = vld [vmem:[#allocation2 + $0x280] sm:$0xff]
        %v2737 = vld [vmem:[#allocation2 + $0x288] sm:$0xff]
        %v2738 = vld [vmem:[#allocation2 + $0x290] sm:$0xff]
        %v2739 = vld [vmem:[#allocation2 + $0x298] sm:$0xff]
        %v2740 = vld [vmem:[#allocation2 + $0x2a0] sm:$0xff]
        %v2741 = vld [vmem:[#allocation2 + $0x2a8] sm:$0xff]
        %v2742 = vld [vmem:[#allocation2 + $0x2b0] sm:$0xff]
        %v2743 = vld [vmem:[#allocation2 + $0x2b8] sm:$0xff]
        %v2744 = vld [vmem:[#allocation2 + $0x2c0] sm:$0xff]
        %v2745 = vld [vmem:[#allocation2 + $0x2c8] sm:$0xff]
        %v2746 = vld [vmem:[#allocation2 + $0x2d0] sm:$0xff]
        %v2747 = vld [vmem:[#allocation2 + $0x2d8] sm:$0xff]
        %v2748 = vld [vmem:[#allocation2 + $0x2e0] sm:$0xff]
        %v2749 = vld [vmem:[#allocation2 + $0x2e8] sm:$0xff]
        %v2750 = vld [vmem:[#allocation2 + $0x2f0] sm:$0xff]
        %v2751 = vld [vmem:[#allocation2 + $0x2f8] sm:$0xff]
        %v2752 = vld [vmem:[#allocation2 + $0x300] sm:$0xff]
        %v2753 = vld [vmem:[#allocation2 + $0x308] sm:$0xff]
        %v2754 = vld [vmem:[#allocation2 + $0x310] sm:$0xff]
        %v2755 = vld [vmem:[#allocation2 + $0x318] sm:$0xff]
        %v2756 = vld [vmem:[#allocation2 + $0x320] sm:$0xff]
        %v2757 = vld [vmem:[#allocation2 + $0x328] sm:$0xff]
        %v2758 = vld [vmem:[#allocation2 + $0x330] sm:$0xff]
        %v2759 = vld [vmem:[#allocation2 + $0x338] sm:$0xff]
        %v2760 = vld [vmem:[#allocation2 + $0x340] sm:$0xff]
        %v2761 = vld [vmem:[#allocation2 + $0x348] sm:$0xff]
        %v2762 = vld [vmem:[#allocation2 + $0x350] sm:$0xff]
        %v2763 = vld [vmem:[#allocation2 + $0x358] sm:$0xff]
        %v2764 = vld [vmem:[#allocation2 + $0x360] sm:$0xff]
        %v2765 = vld [vmem:[#allocation2 + $0x368] sm:$0xff]
        %v2766 = vld [vmem:[#allocation2 + $0x370] sm:$0xff]
        %v2767 = vld [vmem:[#allocation2 + $0x378] sm:$0xff]
        %v2768 = vld [vmem:[#allocation2 + $0x380] sm:$0xff]
        %v2769 = vld [vmem:[#allocation2 + $0x388] sm:$0xff]
        %v2770 = vld [vmem:[#allocation2 + $0x390] sm:$0xff]
        %v2771 = vld [vmem:[#allocation2 + $0x398] sm:$0xff]
        %v2772 = vld [vmem:[#allocation2 + $0x3a0] sm:$0xff]
        %v2773 = vld [vmem:[#allocation2 + $0x3a8] sm:$0xff]
        %v2774 = vld [vmem:[#allocation2 + $0x3b0] sm:$0xff]
        %v2775 = vld [vmem:[#allocation2 + $0x3b8] sm:$0xff]
        %v2776 = vld [vmem:[#allocation2 + $0x3c0] sm:$0xff]
        %v2777 = vld [vmem:[#allocation2 + $0x3c8] sm:$0xff]
        %v2778 = vld [vmem:[#allocation2 + $0x3d0] sm:$0xff]
        %v2779 = vld [vmem:[#allocation2 + $0x3d8] sm:$0xff]
        %v2780 = vld [vmem:[#allocation2 + $0x3e0] sm:$0xff]
        %v2781 = vld [vmem:[#allocation2 + $0x3e8] sm:$0xff]
        %v2782 = vld [vmem:[#allocation2 + $0x3f0] sm:$0xff]
        %v2783 = vld [vmem:[#allocation2 + $0x3f8] sm:$0xff]
        %v2784 = vld [vmem:[#allocation2 + $0x400] sm:$0xff]
        %v2785 = vld [vmem:[#allocation2 + $0x408] sm:$0xff]
        %v2786 = vld [vmem:[#allocation2 + $0x410] sm:$0xff]
        %v2787 = vld [vmem:[#allocation2 + $0x418] sm:$0xff]
        %v2788 = vld [vmem:[#allocation2 + $0x420] sm:$0xff]
        %v2789 = vld [vmem:[#allocation2 + $0x428] sm:$0xff]
        %v2790 = vld [vmem:[#allocation2 + $0x430] sm:$0xff]
        %v2791 = vld [vmem:[#allocation2 + $0x438] sm:$0xff]
        %v2792 = vld [vmem:[#allocation2 + $0x440] sm:$0xff]
        %v2793 = vld [vmem:[#allocation2 + $0x448] sm:$0xff]
        %v2794 = vld [vmem:[#allocation2 + $0x450] sm:$0xff]
        %v2795 = vld [vmem:[#allocation2 + $0x458] sm:$0xff]
        %v2796 = vld [vmem:[#allocation2 + $0x460] sm:$0xff]
        %v2797 = vld [vmem:[#allocation2 + $0x468] sm:$0xff]
        %v2798 = vld [vmem:[#allocation2 + $0x470] sm:$0xff]
        %v2799 = vld [vmem:[#allocation2 + $0x478] sm:$0xff]
        %v2800 = vld [vmem:[#allocation2 + $0x480] sm:$0xff]
        %v2801 = vld [vmem:[#allocation2 + $0x488] sm:$0xff]
        %v2802 = vld [vmem:[#allocation2 + $0x490] sm:$0xff]
        %v2803 = vld [vmem:[#allocation2 + $0x498] sm:$0xff]
        %v2804 = vld [vmem:[#allocation2 + $0x4a0] sm:$0xff]
        %v2805 = vld [vmem:[#allocation2 + $0x4a8] sm:$0xff]
        %v2806 = vld [vmem:[#allocation2 + $0x4b0] sm:$0xff]
        %v2807 = vld [vmem:[#allocation2 + $0x4b8] sm:$0xff]
        %v2808 = vld [vmem:[#allocation2 + $0x4c0] sm:$0xff]
        %v2809 = vld [vmem:[#allocation2 + $0x4c8] sm:$0xff]
        %v2810 = vld [vmem:[#allocation2 + $0x4d0] sm:$0xff]
        %v2811 = vld [vmem:[#allocation2 + $0x4d8] sm:$0xff]
        %v2812 = vld [vmem:[#allocation2 + $0x4e0] sm:$0xff]
        %v2813 = vld [vmem:[#allocation2 + $0x4e8] sm:$0xff]
        %v2814 = vld [vmem:[#allocation2 + $0x4f0] sm:$0xff]
        %v2815 = vld [vmem:[#allocation2 + $0x4f8] sm:$0xff]
        %v2816 = vld [vmem:[#allocation2 + $0x500] sm:$0xff]
        %v2817 = vld [vmem:[#allocation2 + $0x508] sm:$0xff]
        %v2818 = vld [vmem:[#allocation2 + $0x510] sm:$0xff]
        %v2819 = vld [vmem:[#allocation2 + $0x518] sm:$0xff]
        %v2820 = vld [vmem:[#allocation2 + $0x520] sm:$0xff]
        %v2821 = vld [vmem:[#allocation2 + $0x528] sm:$0xff]
        %v2822 = vld [vmem:[#allocation2 + $0x530] sm:$0xff]
        %v2823 = vld [vmem:[#allocation2 + $0x538] sm:$0xff]
        %v2824 = vld [vmem:[#allocation2 + $0x540] sm:$0xff]
        %v2825 = vld [vmem:[#allocation2 + $0x548] sm:$0xff]
        %v2826 = vld [vmem:[#allocation2 + $0x550] sm:$0xff]
        %v2827 = vld [vmem:[#allocation2 + $0x558] sm:$0xff]
        %v2828 = vld [vmem:[#allocation2 + $0x560] sm:$0xff]
        %v2829 = vld [vmem:[#allocation2 + $0x568] sm:$0xff]
        %v2830 = vld [vmem:[#allocation2 + $0x570] sm:$0xff]
        %v2831 = vld [vmem:[#allocation2 + $0x578] sm:$0xff]
        %v2832 = vld [vmem:[#allocation2 + $0x580] sm:$0xff]
        %v2833 = vld [vmem:[#allocation2 + $0x588] sm:$0xff]
        %v2834 = vld [vmem:[#allocation2 + $0x590] sm:$0xff]
        %v2835 = vld [vmem:[#allocation2 + $0x598] sm:$0xff]
        %v2836 = vld [vmem:[#allocation2 + $0x5a0] sm:$0xff]
        %v2837 = vld [vmem:[#allocation2 + $0x5a8] sm:$0xff]
        %v2838 = vld [vmem:[#allocation2 + $0x5b0] sm:$0xff]
        %v2839 = vld [vmem:[#allocation2 + $0x5b8] sm:$0xff]
        %v2840 = vld [vmem:[#allocation2 + $0x5c0] sm:$0xff]
        %v2841 = vld [vmem:[#allocation2 + $0x5c8] sm:$0xff]
        %v2842 = vld [vmem:[#allocation2 + $0x5d0] sm:$0xff]
        %v2843 = vld [vmem:[#allocation2 + $0x5d8] sm:$0xff]
        %v2844 = vld [vmem:[#allocation2 + $0x5e0] sm:$0xff]
        %v2845 = vld [vmem:[#allocation2 + $0x5e8] sm:$0xff]
        %v2846 = vld [vmem:[#allocation2 + $0x5f0] sm:$0xff]
        %v2847 = vld [vmem:[#allocation2 + $0x5f8] sm:$0xff]
        %v2848 = vld [vmem:[#allocation2 + $0x600] sm:$0xff]
        %v2849 = vld [vmem:[#allocation2 + $0x608] sm:$0xff]
        %v2850 = vld [vmem:[#allocation2 + $0x610] sm:$0xff]
        %v2851 = vld [vmem:[#allocation2 + $0x618] sm:$0xff]
        %v2852 = vld [vmem:[#allocation2 + $0x620] sm:$0xff]
        %v2853 = vld [vmem:[#allocation2 + $0x628] sm:$0xff]
        %v2854 = vld [vmem:[#allocation2 + $0x630] sm:$0xff]
        %v2855 = vld [vmem:[#allocation2 + $0x638] sm:$0xff]
        %v2856 = vld [vmem:[#allocation2 + $0x640] sm:$0xff]
        %v2857 = vld [vmem:[#allocation2 + $0x648] sm:$0xff]
        %v2858 = vld [vmem:[#allocation2 + $0x650] sm:$0xff]
        %v2859 = vld [vmem:[#allocation2 + $0x658] sm:$0xff]
        %v2860 = vld [vmem:[#allocation2 + $0x660] sm:$0xff]
        %v2861 = vld [vmem:[#allocation2 + $0x668] sm:$0xff]
        %v2862 = vld [vmem:[#allocation2 + $0x670] sm:$0xff]
        %v2863 = vld [vmem:[#allocation2 + $0x678] sm:$0xff]
        %v2864 = vld [vmem:[#allocation2 + $0x680] sm:$0xff]
        %v2865 = vld [vmem:[#allocation2 + $0x688] sm:$0xff]
        %v2866 = vld [vmem:[#allocation2 + $0x690] sm:$0xff]
        %v2867 = vld [vmem:[#allocation2 + $0x698] sm:$0xff]
        %v2868 = vld [vmem:[#allocation2 + $0x6a0] sm:$0xff]
        %v2869 = vld [vmem:[#allocation2 + $0x6a8] sm:$0xff]
        %v2870 = vld [vmem:[#allocation2 + $0x6b0] sm:$0xff]
        %v2871 = vld [vmem:[#allocation2 + $0x6b8] sm:$0xff]
        %2873 = vset.pattern.permute.xlu0 0
        %2874 = vperm.xlu0 %2873, %v324
        %v2875 = vpop.permute.xlu0 %2874
        %2878 = vset.pattern.permute.xlu0 0
        %2879 = vperm.xlu0 %2878, %v325
        %v2880 = vpop.permute.xlu0 %2879
        %v2886 = vunpack.c.l.b16 %v2652
        %v2887 = vunpack.c.h.b16 %v2652
        %v2888 = vunpack.c.l.b16 %v2653
        %v2889 = vunpack.c.h.b16 %v2653
        %v2890 = vunpack.c.l.b16 %v2654
        %v2891 = vunpack.c.h.b16 %v2654
        %v2892 = vunpack.c.l.b16 %v2655
        %v2893 = vunpack.c.h.b16 %v2655
        %v2894 = vpack.c.b16 %v2890, %v2886
        %v2895 = vpack.c.b16 %v2891, %v2887
        %v2896 = vpack.c.b16 %v2892, %v2888
        %v2897 = vpack.c.b16 %v2893, %v2889
        %vm2901 = vcmask 392192
        %v2903 = vsel %vm2901, %v2897, 0
        %2905 = vmatprep.subr.bf16.mxu0 %v2657
        %2906 = vmatpush1.bf16.msra.mxu0 %v2656
        %2907 = vmatprep.subr.bf16.mxu0 %v2665
        %2908 = vmatpush1.bf16.msra.mxu0 %v2664
        %2909 = vmatprep.subr.bf16.mxu0 %v2673
        %2910 = vmatpush1.bf16.msra.mxu0 %v2672
        %2911 = vmatprep.subr.bf16.mxu0 %v2681
        %2912 = vmatpush1.bf16.msra.mxu0 %v2680
        %2913 = vmatprep.subr.bf16.mxu0 %v2689
        %2914 = vmatpush1.bf16.msra.mxu0 %v2688
        %2915 = vmatprep.subr.bf16.mxu0 %v2697
        %2916 = vmatpush1.bf16.msra.mxu0 %v2696
        %2917 = vmatprep.subr.bf16.mxu0 %v2705
        %2918 = vmatpush1.bf16.msra.mxu0 %v2704
        %2919 = vmatprep.subr.bf16.mxu0 %v2713
        %2920 = vmatpush1.bf16.msra.mxu0 %v2712
        %2921 = vmatprep.subr.bf16.mxu0 %v2721
        %2922 = vmatpush1.bf16.msra.mxu0 %v2720
        %2923 = vmatprep.subr.bf16.mxu0 %v2729
        %2924 = vmatpush1.bf16.msra.mxu0 %v2728
        %2925 = vmatprep.subr.bf16.mxu0 %v2737
        %2926 = vmatpush1.bf16.msra.mxu0 %v2736
        %2927 = vmatprep.subr.bf16.mxu0 %v2745
        %2928 = vmatpush1.bf16.msra.mxu0 %v2744
        %2929 = vmatprep.subr.bf16.mxu0 %v2753
        %2930 = vmatpush1.bf16.msra.mxu0 %v2752
        %2931 = vmatprep.subr.bf16.mxu0 %v2761
        %2932 = vmatpush1.bf16.msra.mxu0 %v2760
        %2933 = vmatprep.subr.bf16.mxu0 %v2769
        %2934 = vmatpush1.bf16.msra.mxu0 %v2768
        %2935 = vmatprep.subr.bf16.mxu0 %v2777
        %2936 = vmatpush1.bf16.msra.mxu0 %v2776
        %2937 = vmatprep.mubr.bf16.mxu0 %v2895
        %2938 = vmatmul.mubr.bf16.gmra.mrb[0].mxu0 %v2894
        %v2939 = vpop.f32.mrb[0].mxu0
        %v2940 = vadd.f32 %v2875, %v2939
        %v2941 = vpop.f32.mrb[0].mxu0
        %v2942 = vadd.f32 %v2875, %v2941
        %v2943 = vpop.f32.mrb[0].mxu0
        %v2944 = vadd.f32 %v2880, %v2943
        %v2945 = vpop.f32.mrb[0].mxu0
        %v2946 = vadd.f32 %v2880, %v2945
        %2947 = vdwg.mxu0
        %2948 = vmatprep.subr.bf16.mxu0 %v2785
        %2949 = vmatpush1.bf16.msra.mxu0 %v2784
        %2950 = vmatprep.subr.bf16.mxu0 %v2793
        %2951 = vmatpush1.bf16.msra.mxu0 %v2792
        %2952 = vmatprep.subr.bf16.mxu0 %v2801
        %2953 = vmatpush1.bf16.msra.mxu0 %v2800
        %2954 = vmatprep.subr.bf16.mxu0 %v2809
        %2955 = vmatpush1.bf16.msra.mxu0 %v2808
        %2956 = vmatprep.subr.bf16.mxu0 %v2817
        %2957 = vmatpush1.bf16.msra.mxu0 %v2816
        %2958 = vmatprep.subr.bf16.mxu0 %v2825
        %2959 = vmatpush1.bf16.msra.mxu0 %v2824
        %2960 = vmatprep.subr.bf16.mxu0 %v2833
        %2961 = vmatpush1.bf16.msra.mxu0 %v2832
        %2962 = vmatprep.subr.bf16.mxu0 %v2841
        %2963 = vmatpush1.bf16.msra.mxu0 %v2840
        %2964 = vmatprep.subr.bf16.mxu0 %v2849
        %2965 = vmatpush1.bf16.msra.mxu0 %v2848
        %2966 = vmatprep.subr.bf16.mxu0 %v2857
        %2967 = vmatpush1.bf16.msra.mxu0 %v2856
        %2968 = vmatprep.subr.bf16.mxu0 %v2865
        %2969 = vmatpush1.bf16.msra.mxu0 %v2864
        %2970 = vmatprep.subr.bf16.mxu0 0
        %2971 = vmatpush1.bf16.msra.mxu0 0
        %2972 = vmatprep.subr.bf16.mxu0 0
        %2973 = vmatpush1.bf16.msra.mxu0 0
        %2974 = vmatprep.subr.bf16.mxu0 0
        %2975 = vmatpush1.bf16.msra.mxu0 0
        %2976 = vmatprep.subr.bf16.mxu0 0
        %2977 = vmatpush1.bf16.msra.mxu0 0
        %2978 = vmatprep.subr.bf16.mxu0 0
        %2979 = vmatpush1.bf16.msra.mxu0 0
        %2980 = vmatprep.mubr.bf16.mxu0 %v2903
        %2981 = vmatmul.mubr.bf16.gmra.mrb[0].mxu0 %v2896
        %v2982 = vpop.f32.mrb[0].mxu0
        %v2983 = vadd.f32 %v2940, %v2982
        %v2984 = vpop.f32.mrb[0].mxu0
        %v2985 = vadd.f32 %v2942, %v2984
        %v2986 = vpop.f32.mrb[0].mxu0
        %v2987 = vadd.f32 %v2944, %v2986
        %v2988 = vpop.f32.mrb[0].mxu0
        %v2989 = vadd.f32 %v2946, %v2988
        %2990 = vdwg.mxu0
        %2991 = vmatprep.subr.bf16.mxu0 %v2659
        %2992 = vmatpush1.bf16.msra.mxu0 %v2658
        %2993 = vmatprep.subr.bf16.mxu0 %v2667
        %2994 = vmatpush1.bf16.msra.mxu0 %v2666
        %2995 = vmatprep.subr.bf16.mxu0 %v2675
        %2996 = vmatpush1.bf16.msra.mxu0 %v2674
        %2997 = vmatprep.subr.bf16.mxu0 %v2683
        %2998 = vmatpush1.bf16.msra.mxu0 %v2682
        %2999 = vmatprep.subr.bf16.mxu0 %v2691
        %3000 = vmatpush1.bf16.msra.mxu0 %v2690
        %3001 = vmatprep.subr.bf16.mxu0 %v2699
        %3002 = vmatpush1.bf16.msra.mxu0 %v2698
        %3003 = vmatprep.subr.bf16.mxu0 %v2707
        %3004 = vmatpush1.bf16.msra.mxu0 %v2706
        %3005 = vmatprep.subr.bf16.mxu0 %v2715
        %3006 = vmatpush1.bf16.msra.mxu0 %v2714
        %3007 = vmatprep.subr.bf16.mxu0 %v2723
        %3008 = vmatpush1.bf16.msra.mxu0 %v2722
        %3009 = vmatprep.subr.bf16.mxu0 %v2731
        %3010 = vmatpush1.bf16.msra.mxu0 %v2730
        %3011 = vmatprep.subr.bf16.mxu0 %v2739
        %3012 = vmatpush1.bf16.msra.mxu0 %v2738
        %3013 = vmatprep.subr.bf16.mxu0 %v2747
        %3014 = vmatpush1.bf16.msra.mxu0 %v2746
        %3015 = vmatprep.subr.bf16.mxu0 %v2755
        %3016 = vmatpush1.bf16.msra.mxu0 %v2754
        %3017 = vmatprep.subr.bf16.mxu0 %v2763
        %3018 = vmatpush1.bf16.msra.mxu0 %v2762
        %3019 = vmatprep.subr.bf16.mxu0 %v2771
        %3020 = vmatpush1.bf16.msra.mxu0 %v2770
        %3021 = vmatprep.subr.bf16.mxu0 %v2779
        %3022 = vmatpush1.bf16.msra.mxu0 %v2778
        %3023 = vmatprep.mubr.bf16.mxu0 %v2895
        %3024 = vmatmul.mubr.bf16.gmra.mrb[0].mxu0 %v2894
        %v3025 = vpop.f32.mrb[0].mxu0
        %v3026 = vadd.f32 %v2875, %v3025
        %v3027 = vpop.f32.mrb[0].mxu0
        %v3028 = vadd.f32 %v2875, %v3027
        %v3029 = vpop.f32.mrb[0].mxu0
        %v3030 = vadd.f32 %v2880, %v3029
        %v3031 = vpop.f32.mrb[0].mxu0
        %v3032 = vadd.f32 %v2880, %v3031
        %3033 = vdwg.mxu0
        %3034 = vmatprep.subr.bf16.mxu0 %v2787
        %3035 = vmatpush1.bf16.msra.mxu0 %v2786
        %3036 = vmatprep.subr.bf16.mxu0 %v2795
        %3037 = vmatpush1.bf16.msra.mxu0 %v2794
        %3038 = vmatprep.subr.bf16.mxu0 %v2803
        %3039 = vmatpush1.bf16.msra.mxu0 %v2802
        %3040 = vmatprep.subr.bf16.mxu0 %v2811
        %3041 = vmatpush1.bf16.msra.mxu0 %v2810
        %3042 = vmatprep.subr.bf16.mxu0 %v2819
        %3043 = vmatpush1.bf16.msra.mxu0 %v2818
        %3044 = vmatprep.subr.bf16.mxu0 %v2827
        %3045 = vmatpush1.bf16.msra.mxu0 %v2826
        %3046 = vmatprep.subr.bf16.mxu0 %v2835
        %3047 = vmatpush1.bf16.msra.mxu0 %v2834
        %3048 = vmatprep.subr.bf16.mxu0 %v2843
        %3049 = vmatpush1.bf16.msra.mxu0 %v2842
        %3050 = vmatprep.subr.bf16.mxu0 %v2851
        %3051 = vmatpush1.bf16.msra.mxu0 %v2850
        %3052 = vmatprep.subr.bf16.mxu0 %v2859
        %3053 = vmatpush1.bf16.msra.mxu0 %v2858
        %3054 = vmatprep.subr.bf16.mxu0 %v2867
        %3055 = vmatpush1.bf16.msra.mxu0 %v2866
        %3056 = vmatprep.subr.bf16.mxu0 0
        %3057 = vmatpush1.bf16.msra.mxu0 0
        %3058 = vmatprep.subr.bf16.mxu0 0
        %3059 = vmatpush1.bf16.msra.mxu0 0
        %3060 = vmatprep.subr.bf16.mxu0 0
        %3061 = vmatpush1.bf16.msra.mxu0 0
        %3062 = vmatprep.subr.bf16.mxu0 0
        %3063 = vmatpush1.bf16.msra.mxu0 0
        %3064 = vmatprep.subr.bf16.mxu0 0
        %3065 = vmatpush1.bf16.msra.mxu0 0
        %3066 = vmatprep.mubr.bf16.mxu0 %v2903
        %3067 = vmatmul.mubr.bf16.gmra.mrb[0].mxu0 %v2896
        %v3068 = vpop.f32.mrb[0].mxu0
        %v3069 = vadd.f32 %v3026, %v3068
        %v3070 = vpop.f32.mrb[0].mxu0
        %v3071 = vadd.f32 %v3028, %v3070
        %v3072 = vpop.f32.mrb[0].mxu0
        %v3073 = vadd.f32 %v3030, %v3072
        %v3074 = vpop.f32.mrb[0].mxu0
        %v3075 = vadd.f32 %v3032, %v3074
        %3076 = vdwg.mxu0
        %3077 = vmatprep.subr.bf16.mxu0 %v2661
        %3078 = vmatpush1.bf16.msra.mxu0 %v2660
        %3079 = vmatprep.subr.bf16.mxu0 %v2669
        %3080 = vmatpush1.bf16.msra.mxu0 %v2668
        %3081 = vmatprep.subr.bf16.mxu0 %v2677
        %3082 = vmatpush1.bf16.msra.mxu0 %v2676
        %3083 = vmatprep.subr.bf16.mxu0 %v2685
        %3084 = vmatpush1.bf16.msra.mxu0 %v2684
        %3085 = vmatprep.subr.bf16.mxu0 %v2693
        %3086 = vmatpush1.bf16.msra.mxu0 %v2692
        %3087 = vmatprep.subr.bf16.mxu0 %v2701
        %3088 = vmatpush1.bf16.msra.mxu0 %v2700
        %3089 = vmatprep.subr.bf16.mxu0 %v2709
        %3090 = vmatpush1.bf16.msra.mxu0 %v2708
        %3091 = vmatprep.subr.bf16.mxu0 %v2717
        %3092 = vmatpush1.bf16.msra.mxu0 %v2716
        %3093 = vmatprep.subr.bf16.mxu0 %v2725
        %3094 = vmatpush1.bf16.msra.mxu0 %v2724
        %3095 = vmatprep.subr.bf16.mxu0 %v2733
        %3096 = vmatpush1.bf16.msra.mxu0 %v2732
        %3097 = vmatprep.subr.bf16.mxu0 %v2741
        %3098 = vmatpush1.bf16.msra.mxu0 %v2740
        %3099 = vmatprep.subr.bf16.mxu0 %v2749
        %3100 = vmatpush1.bf16.msra.mxu0 %v2748
        %3101 = vmatprep.subr.bf16.mxu0 %v2757
        %3102 = vmatpush1.bf16.msra.mxu0 %v2756
        %3103 = vmatprep.subr.bf16.mxu0 %v2765
        %3104 = vmatpush1.bf16.msra.mxu0 %v2764
        %3105 = vmatprep.subr.bf16.mxu0 %v2773
        %3106 = vmatpush1.bf16.msra.mxu0 %v2772
        %3107 = vmatprep.subr.bf16.mxu0 %v2781
        %3108 = vmatpush1.bf16.msra.mxu0 %v2780
        %3109 = vmatprep.mubr.bf16.mxu0 %v2895
        %3110 = vmatmul.mubr.bf16.gmra.mrb[0].mxu0 %v2894
        %v3111 = vpop.f32.mrb[0].mxu0
        %v3112 = vadd.f32 %v2875, %v3111
        %v3113 = vpop.f32.mrb[0].mxu0
        %v3114 = vadd.f32 %v2875, %v3113
        %v3115 = vpop.f32.mrb[0].mxu0
        %v3116 = vadd.f32 %v2880, %v3115
        %v3117 = vpop.f32.mrb[0].mxu0
        %v3118 = vadd.f32 %v2880, %v3117
        %3119 = vdwg.mxu0
        %3120 = vmatprep.subr.bf16.mxu0 %v2789
        %3121 = vmatpush1.bf16.msra.mxu0 %v2788
        %3122 = vmatprep.subr.bf16.mxu0 %v2797
        %3123 = vmatpush1.bf16.msra.mxu0 %v2796
        %3124 = vmatprep.subr.bf16.mxu0 %v2805
        %3125 = vmatpush1.bf16.msra.mxu0 %v2804
        %3126 = vmatprep.subr.bf16.mxu0 %v2813
        %3127 = vmatpush1.bf16.msra.mxu0 %v2812
        %3128 = vmatprep.subr.bf16.mxu0 %v2821
        %3129 = vmatpush1.bf16.msra.mxu0 %v2820
        %3130 = vmatprep.subr.bf16.mxu0 %v2829
        %3131 = vmatpush1.bf16.msra.mxu0 %v2828
        %3132 = vmatprep.subr.bf16.mxu0 %v2837
        %3133 = vmatpush1.bf16.msra.mxu0 %v2836
        %3134 = vmatprep.subr.bf16.mxu0 %v2845
        %3135 = vmatpush1.bf16.msra.mxu0 %v2844
        %3136 = vmatprep.subr.bf16.mxu0 %v2853
        %3137 = vmatpush1.bf16.msra.mxu0 %v2852
        %3138 = vmatprep.subr.bf16.mxu0 %v2861
        %3139 = vmatpush1.bf16.msra.mxu0 %v2860
        %3140 = vmatprep.subr.bf16.mxu0 %v2869
        %3141 = vmatpush1.bf16.msra.mxu0 %v2868
        %3142 = vmatprep.subr.bf16.mxu0 0
        %3143 = vmatpush1.bf16.msra.mxu0 0
        %3144 = vmatprep.subr.bf16.mxu0 0
        %3145 = vmatpush1.bf16.msra.mxu0 0
        %3146 = vmatprep.subr.bf16.mxu0 0
        %3147 = vmatpush1.bf16.msra.mxu0 0
        %3148 = vmatprep.subr.bf16.mxu0 0
        %3149 = vmatpush1.bf16.msra.mxu0 0
        %3150 = vmatprep.subr.bf16.mxu0 0
        %3151 = vmatpush1.bf16.msra.mxu0 0
        %3152 = vmatprep.mubr.bf16.mxu0 %v2903
        %3153 = vmatmul.mubr.bf16.gmra.mrb[0].mxu0 %v2896
        %v3154 = vpop.f32.mrb[0].mxu0
        %v3155 = vadd.f32 %v3112, %v3154
        %v3156 = vpop.f32.mrb[0].mxu0
        %v3157 = vadd.f32 %v3114, %v3156
        %v3158 = vpop.f32.mrb[0].mxu0
        %v3159 = vadd.f32 %v3116, %v3158
        %v3160 = vpop.f32.mrb[0].mxu0
        %v3161 = vadd.f32 %v3118, %v3160
        %3162 = vdwg.mxu0
        %3163 = vmatprep.subr.bf16.mxu0 %v2663
        %3164 = vmatpush1.bf16.msra.mxu0 %v2662
        %3165 = vmatprep.subr.bf16.mxu0 %v2671
        %3166 = vmatpush1.bf16.msra.mxu0 %v2670
        %3167 = vmatprep.subr.bf16.mxu0 %v2679
        %3168 = vmatpush1.bf16.msra.mxu0 %v2678
        %3169 = vmatprep.subr.bf16.mxu0 %v2687
        %3170 = vmatpush1.bf16.msra.mxu0 %v2686
        %3171 = vmatprep.subr.bf16.mxu0 %v2695
        %3172 = vmatpush1.bf16.msra.mxu0 %v2694
        %3173 = vmatprep.subr.bf16.mxu0 %v2703
        %3174 = vmatpush1.bf16.msra.mxu0 %v2702
        %3175 = vmatprep.subr.bf16.mxu0 %v2711
        %3176 = vmatpush1.bf16.msra.mxu0 %v2710
        %3177 = vmatprep.subr.bf16.mxu0 %v2719
        %3178 = vmatpush1.bf16.msra.mxu0 %v2718
        %3179 = vmatprep.subr.bf16.mxu0 %v2727
        %3180 = vmatpush1.bf16.msra.mxu0 %v2726
        %3181 = vmatprep.subr.bf16.mxu0 %v2735
        %3182 = vmatpush1.bf16.msra.mxu0 %v2734
        %3183 = vmatprep.subr.bf16.mxu0 %v2743
        %3184 = vmatpush1.bf16.msra.mxu0 %v2742
        %3185 = vmatprep.subr.bf16.mxu0 %v2751
        %3186 = vmatpush1.bf16.msra.mxu0 %v2750
        %3187 = vmatprep.subr.bf16.mxu0 %v2759
        %3188 = vmatpush1.bf16.msra.mxu0 %v2758
        %3189 = vmatprep.subr.bf16.mxu0 %v2767
        %3190 = vmatpush1.bf16.msra.mxu0 %v2766
        %3191 = vmatprep.subr.bf16.mxu0 %v2775
        %3192 = vmatpush1.bf16.msra.mxu0 %v2774
        %3193 = vmatprep.subr.bf16.mxu0 %v2783
        %3194 = vmatpush1.bf16.msra.mxu0 %v2782
        %3195 = vmatprep.mubr.bf16.mxu0 %v2895
        %3196 = vmatmul.mubr.bf16.gmra.mrb[0].mxu0 %v2894
        %v3197 = vpop.f32.mrb[0].mxu0
        %v3198 = vadd.f32 %v2875, %v3197
        %v3199 = vpop.f32.mrb[0].mxu0
        %v3200 = vadd.f32 %v2875, %v3199
        %v3201 = vpop.f32.mrb[0].mxu0
        %v3202 = vadd.f32 %v2880, %v3201
        %v3203 = vpop.f32.mrb[0].mxu0
        %v3204 = vadd.f32 %v2880, %v3203
        %3205 = vdwg.mxu0
        %3206 = vmatprep.subr.bf16.mxu0 %v2791
        %3207 = vmatpush1.bf16.msra.mxu0 %v2790
        %3208 = vmatprep.subr.bf16.mxu0 %v2799
        %3209 = vmatpush1.bf16.msra.mxu0 %v2798
        %3210 = vmatprep.subr.bf16.mxu0 %v2807
        %3211 = vmatpush1.bf16.msra.mxu0 %v2806
        %3212 = vmatprep.subr.bf16.mxu0 %v2815
        %3213 = vmatpush1.bf16.msra.mxu0 %v2814
        %3214 = vmatprep.subr.bf16.mxu0 %v2823
        %3215 = vmatpush1.bf16.msra.mxu0 %v2822
        %3216 = vmatprep.subr.bf16.mxu0 %v2831
        %3217 = vmatpush1.bf16.msra.mxu0 %v2830
        %3218 = vmatprep.subr.bf16.mxu0 %v2839
        %3219 = vmatpush1.bf16.msra.mxu0 %v2838
        %3220 = vmatprep.subr.bf16.mxu0 %v2847
        %3221 = vmatpush1.bf16.msra.mxu0 %v2846
        %3222 = vmatprep.subr.bf16.mxu0 %v2855
        %3223 = vmatpush1.bf16.msra.mxu0 %v2854
        %3224 = vmatprep.subr.bf16.mxu0 %v2863
        %3225 = vmatpush1.bf16.msra.mxu0 %v2862
        %3226 = vmatprep.subr.bf16.mxu0 %v2871
        %3227 = vmatpush1.bf16.msra.mxu0 %v2870
        %3228 = vmatprep.subr.bf16.mxu0 0
        %3229 = vmatpush1.bf16.msra.mxu0 0
        %3230 = vmatprep.subr.bf16.mxu0 0
        %3231 = vmatpush1.bf16.msra.mxu0 0
        %3232 = vmatprep.subr.bf16.mxu0 0
        %3233 = vmatpush1.bf16.msra.mxu0 0
        %3234 = vmatprep.subr.bf16.mxu0 0
        %3235 = vmatpush1.bf16.msra.mxu0 0
        %3236 = vmatprep.subr.bf16.mxu0 0
        %3237 = vmatpush1.bf16.msra.mxu0 0
        %3238 = vmatprep.mubr.bf16.mxu0 %v2903
        %3239 = vmatmul.mubr.bf16.gmra.mrb[0].mxu0 %v2896
        %v3240 = vpop.f32.mrb[0].mxu0
        %v3241 = vadd.f32 %v3198, %v3240
        %v3242 = vpop.f32.mrb[0].mxu0
        %v3243 = vadd.f32 %v3200, %v3242
        %v3244 = vpop.f32.mrb[0].mxu0
        %v3245 = vadd.f32 %v3202, %v3244
        %v3246 = vpop.f32.mrb[0].mxu0
        %v3247 = vadd.f32 %v3204, %v3246
        %3248 = vdwg.mxu0
        %v3249 = vmax.f32 %v2983, 0.0
        %v3250 = vmax.f32 %v2985, 0.0
        %v3251 = vmax.f32 %v3069, 0.0
        %v3252 = vmax.f32 %v3071, 0.0
        %v3253 = vmax.f32 %v3155, 0.0
        %v3254 = vmax.f32 %v3157, 0.0
        %v3255 = vmax.f32 %v3241, 0.0
        %v3256 = vmax.f32 %v3243, 0.0
        %v3257 = vmax.f32 %v2987, 0.0
        %v3258 = vmax.f32 %v2989, 0.0
        %v3259 = vmax.f32 %v3073, 0.0
        %v3260 = vmax.f32 %v3075, 0.0
        %v3261 = vmax.f32 %v3159, 0.0
        %v3262 = vmax.f32 %v3161, 0.0
        %v3263 = vmax.f32 %v3245, 0.0
        %v3264 = vmax.f32 %v3247, 0.0
        %v3266 = vlaneseq
        %v3267 = vshrl.u32 %v3266, 7
        %v3268 = vsub.s32 0, %v3267
        %v3269 = vrot.slane %v323, %v3268
        %v3270 = vlaneseq
        %v3271 = vshrl.u32 %v3270, 7
        %v3272 = vsub.s32 1, %v3271
        %v3273 = vrot.slane %v323, %v3272
        %v3274 = vlaneseq
        %v3275 = vshrl.u32 %v3274, 7
        %v3276 = vsub.s32 2, %v3275
        %v3277 = vrot.slane %v323, %v3276
        %v3278 = vlaneseq
        %v3279 = vshrl.u32 %v3278, 7
        %v3280 = vsub.s32 3, %v3279
        %v3281 = vrot.slane %v323, %v3280
        %v3282 = vlaneseq
        %v3283 = vshrl.u32 %v3282, 7
        %v3284 = vsub.s32 4, %v3283
        %v3285 = vrot.slane %v323, %v3284
        %v3286 = vlaneseq
        %v3287 = vshrl.u32 %v3286, 7
        %v3288 = vsub.s32 5, %v3287
        %v3289 = vrot.slane %v323, %v3288
        %v3290 = vlaneseq
        %v3291 = vshrl.u32 %v3290, 7
        %v3292 = vsub.s32 6, %v3291
        %v3293 = vrot.slane %v323, %v3292
        %v3294 = vlaneseq
        %v3295 = vshrl.u32 %v3294, 7
        %v3296 = vsub.s32 7, %v3295
        %v3297 = vrot.slane %v323, %v3296
        %v3306 = vmul.f32 %v3249, %v3269
        %v3307 = vmul.f32 %v3250, %v3273
        %v3308 = vmul.f32 %v3251, %v3277
        %v3309 = vmul.f32 %v3252, %v3281
        %v3310 = vmul.f32 %v3253, %v3285
        %v3311 = vmul.f32 %v3254, %v3289
        %v3312 = vmul.f32 %v3255, %v3293
        %v3313 = vmul.f32 %v3256, %v3297
        %v3314 = vmul.f32 %v3257, %v3269
        %v3315 = vmul.f32 %v3258, %v3273
        %v3316 = vmul.f32 %v3259, %v3277
        %v3317 = vmul.f32 %v3260, %v3281
        %v3318 = vmul.f32 %v3261, %v3285
        %v3319 = vmul.f32 %v3262, %v3289
        %v3320 = vmul.f32 %v3263, %v3293
        %v3321 = vmul.f32 %v3264, %v3297
        %v3322 = vpack.c.bf16 %v3314, %v3306
        %v3323 = vpack.c.bf16 %v3315, %v3307
        %v3324 = vpack.c.bf16 %v3316, %v3308
        %v3325 = vpack.c.bf16 %v3317, %v3309
        %v3326 = vpack.c.bf16 %v3318, %v3310
        %v3327 = vpack.c.bf16 %v3319, %v3311
        %v3328 = vpack.c.bf16 %v3320, %v3312
        %v3329 = vpack.c.bf16 %v3321, %v3313
        %3330 = vst [vmem:[#allocation3 + $0x8] sm:$0xff] %v3322
        %3331 = vst [vmem:[#allocation3 + $0x10] sm:$0xff] %v3323
        %3332 = vst [vmem:[#allocation3 + $0x18] sm:$0xff] %v3324
        %3333 = vst [vmem:[#allocation3 + $0x20] sm:$0xff] %v3325
        %3334 = vst [vmem:[#allocation3 + $0x28] sm:$0xff] %v3326
        %3335 = vst [vmem:[#allocation3 + $0x30] sm:$0xff] %v3327
        %3336 = vst [vmem:[#allocation3 + $0x38] sm:$0xff] %v3328
        %3337 = vst.msk [vmem:[#allocation3 + $0x40] sm:$0xff] %vm318, %v3329
        %v3338 = vld [vmem:[%s4] sm:$0xff]
        %v3339 = vld [vmem:[%s4 + $0x8] sm:$0xff]
        %v3340 = vld [vmem:[#allocation3] sm:$0xff]
        %v3341 = vld [vmem:[#allocation3 + $0x8] sm:$0xff]
        %v3342 = vld [vmem:[#allocation3 + $0x10] sm:$0xff]
        %v3343 = vld [vmem:[#allocation3 + $0x18] sm:$0xff]
        %v3344 = vld [vmem:[#allocation3 + $0x20] sm:$0xff]
        %v3345 = vld [vmem:[#allocation3 + $0x28] sm:$0xff]
        %v3346 = vld [vmem:[#allocation3 + $0x30] sm:$0xff]
        %v3347 = vld [vmem:[#allocation3 + $0x38] sm:$0xff]
        %3356 = vrot.lane.b32.xlu0 %v3340, 111
        %v3357 = vpop.permute.xlu0 %3356
        %3358 = vrot.lane.b32.xlu0 %v3341, 111
        %v3359 = vpop.permute.xlu0 %3358
        %3360 = vrot.lane.b32.xlu0 %v3342, 111
        %v3361 = vpop.permute.xlu0 %3360
        %3362 = vrot.lane.b32.xlu0 %v3343, 111
        %v3363 = vpop.permute.xlu0 %3362
        %3364 = vrot.lane.b32.xlu0 %v3344, 111
        %v3365 = vpop.permute.xlu0 %3364
        %3366 = vrot.lane.b32.xlu0 %v3345, 111
        %v3367 = vpop.permute.xlu0 %3366
        %3368 = vrot.lane.b32.xlu0 %v3346, 111
        %v3369 = vpop.permute.xlu0 %3368
        %3370 = vrot.lane.b32.xlu0 %v3347, 111
        %v3371 = vpop.permute.xlu0 %3370
        %v3372 = vsel %vm382, %v3357, %v3359
        %v3373 = vsel %vm382, %v3359, %v3361
        %v3374 = vsel %vm382, %v3361, %v3363
        %v3375 = vsel %vm382, %v3363, %v3365
        %v3376 = vsel %vm382, %v3365, %v3367
        %v3377 = vsel %vm382, %v3367, %v3369
        %v3378 = vsel %vm382, %v3369, %v3371
        %3387 = vst [vmem:[#allocation2] sm:$0xff] %v3372
        %3388 = vst [vmem:[#allocation2 + $0x8] sm:$0xff] %v3373
        %3389 = vst [vmem:[#allocation2 + $0x10] sm:$0xff] %v3374
        %3390 = vst [vmem:[#allocation2 + $0x18] sm:$0xff] %v3375
        %3391 = vst [vmem:[#allocation2 + $0x20] sm:$0xff] %v3376
        %3392 = vst [vmem:[#allocation2 + $0x28] sm:$0xff] %v3377
        %3393 = vst [vmem:[#allocation2 + $0x30] sm:$0xff] %v3378
        %3394 = vst.msk [vmem:[#allocation2 + $0x38] sm:$0xff] %vm318, %v3371
        %v3395 = vld [vmem:[#allocation3] sm:$0xff]
        %v3396 = vld [vmem:[#allocation3 + $0x8] sm:$0xff]
        %v3397 = vld [vmem:[#allocation3 + $0x10] sm:$0xff]
        %v3398 = vld [vmem:[#allocation3 + $0x18] sm:$0xff]
        %v3399 = vld [vmem:[#allocation3 + $0x20] sm:$0xff]
        %v3400 = vld [vmem:[#allocation3 + $0x28] sm:$0xff]
        %v3401 = vld [vmem:[#allocation3 + $0x30] sm:$0xff]
        %v3402 = vld [vmem:[#allocation3 + $0x38] sm:$0xff]
        %3411 = vrot.lane.b32.xlu0 %v3395, 110
        %v3412 = vpop.permute.xlu0 %3411
        %3413 = vrot.lane.b32.xlu0 %v3396, 110
        %v3414 = vpop.permute.xlu0 %3413
        %3415 = vrot.lane.b32.xlu0 %v3397, 110
        %v3416 = vpop.permute.xlu0 %3415
        %3417 = vrot.lane.b32.xlu0 %v3398, 110
        %v3418 = vpop.permute.xlu0 %3417
        %3419 = vrot.lane.b32.xlu0 %v3399, 110
        %v3420 = vpop.permute.xlu0 %3419
        %3421 = vrot.lane.b32.xlu0 %v3400, 110
        %v3422 = vpop.permute.xlu0 %3421
        %3423 = vrot.lane.b32.xlu0 %v3401, 110
        %v3424 = vpop.permute.xlu0 %3423
        %3425 = vrot.lane.b32.xlu0 %v3402, 110
        %v3426 = vpop.permute.xlu0 %3425
        %v3427 = vsel %vm462, %v3412, %v3414
        %v3428 = vsel %vm462, %v3414, %v3416
        %v3429 = vsel %vm462, %v3416, %v3418
        %v3430 = vsel %vm462, %v3418, %v3420
        %v3431 = vsel %vm462, %v3420, %v3422
        %v3432 = vsel %vm462, %v3422, %v3424
        %v3433 = vsel %vm462, %v3424, %v3426
        %3442 = vst [vmem:[#allocation2 + $0x40] sm:$0xff] %v3427
        %3443 = vst [vmem:[#allocation2 + $0x48] sm:$0xff] %v3428
        %3444 = vst [vmem:[#allocation2 + $0x50] sm:$0xff] %v3429
        %3445 = vst [vmem:[#allocation2 + $0x58] sm:$0xff] %v3430
        %3446 = vst [vmem:[#allocation2 + $0x60] sm:$0xff] %v3431
        %3447 = vst [vmem:[#allocation2 + $0x68] sm:$0xff] %v3432
        %3448 = vst [vmem:[#allocation2 + $0x70] sm:$0xff] %v3433
        %3449 = vst.msk [vmem:[#allocation2 + $0x78] sm:$0xff] %vm318, %v3426
        %v3450 = vld [vmem:[#allocation3] sm:$0xff]
        %v3451 = vld [vmem:[#allocation3 + $0x8] sm:$0xff]
        %v3452 = vld [vmem:[#allocation3 + $0x10] sm:$0xff]
        %v3453 = vld [vmem:[#allocation3 + $0x18] sm:$0xff]
        %v3454 = vld [vmem:[#allocation3 + $0x20] sm:$0xff]
        %v3455 = vld [vmem:[#allocation3 + $0x28] sm:$0xff]
        %v3456 = vld [vmem:[#allocation3 + $0x30] sm:$0xff]
        %v3457 = vld [vmem:[#allocation3 + $0x38] sm:$0xff]
        %3466 = vrot.lane.b32.xlu0 %v3450, 109
        %v3467 = vpop.permute.xlu0 %3466
        %3468 = vrot.lane.b32.xlu0 %v3451, 109
        %v3469 = vpop.permute.xlu0 %3468
        %3470 = vrot.lane.b32.xlu0 %v3452, 109
        %v3471 = vpop.permute.xlu0 %3470
        %3472 = vrot.lane.b32.xlu0 %v3453, 109
        %v3473 = vpop.permute.xlu0 %3472
        %3474 = vrot.lane.b32.xlu0 %v3454, 109
        %v3475 = vpop.permute.xlu0 %3474
        %3476 = vrot.lane.b32.xlu0 %v3455, 109
        %v3477 = vpop.permute.xlu0 %3476
        %3478 = vrot.lane.b32.xlu0 %v3456, 109
        %v3479 = vpop.permute.xlu0 %3478
        %3480 = vrot.lane.b32.xlu0 %v3457, 109
        %v3481 = vpop.permute.xlu0 %3480
        %v3482 = vsel %vm542, %v3467, %v3469
        %v3483 = vsel %vm542, %v3469, %v3471
        %v3484 = vsel %vm542, %v3471, %v3473
        %v3485 = vsel %vm542, %v3473, %v3475
        %v3486 = vsel %vm542, %v3475, %v3477
        %v3487 = vsel %vm542, %v3477, %v3479
        %v3488 = vsel %vm542, %v3479, %v3481
        %3497 = vst [vmem:[#allocation2 + $0x80] sm:$0xff] %v3482
        %3498 = vst [vmem:[#allocation2 + $0x88] sm:$0xff] %v3483
        %3499 = vst [vmem:[#allocation2 + $0x90] sm:$0xff] %v3484
        %3500 = vst [vmem:[#allocation2 + $0x98] sm:$0xff] %v3485
        %3501 = vst [vmem:[#allocation2 + $0xa0] sm:$0xff] %v3486
        %3502 = vst [vmem:[#allocation2 + $0xa8] sm:$0xff] %v3487
        %3503 = vst [vmem:[#allocation2 + $0xb0] sm:$0xff] %v3488
        %3504 = vst.msk [vmem:[#allocation2 + $0xb8] sm:$0xff] %vm318, %v3481
        %v3505 = vld [vmem:[#allocation3] sm:$0xff]
        %v3506 = vld [vmem:[#allocation3 + $0x8] sm:$0xff]
        %v3507 = vld [vmem:[#allocation3 + $0x10] sm:$0xff]
        %v3508 = vld [vmem:[#allocation3 + $0x18] sm:$0xff]
        %v3509 = vld [vmem:[#allocation3 + $0x20] sm:$0xff]
        %v3510 = vld [vmem:[#allocation3 + $0x28] sm:$0xff]
        %v3511 = vld [vmem:[#allocation3 + $0x30] sm:$0xff]
        %v3512 = vld [vmem:[#allocation3 + $0x38] sm:$0xff]
        %v3513 = vld [vmem:[#allocation3 + $0x40] sm:$0xff]
        %3523 = vrot.lane.b32.xlu0 %v3505, 101
        %v3524 = vpop.permute.xlu0 %3523
        %3525 = vrot.lane.b32.xlu0 %v3506, 101
        %v3526 = vpop.permute.xlu0 %3525
        %3527 = vrot.lane.b32.xlu0 %v3507, 101
        %v3528 = vpop.permute.xlu0 %3527
        %3529 = vrot.lane.b32.xlu0 %v3508, 101
        %v3530 = vpop.permute.xlu0 %3529
        %3531 = vrot.lane.b32.xlu0 %v3509, 101
        %v3532 = vpop.permute.xlu0 %3531
        %3533 = vrot.lane.b32.xlu0 %v3510, 101
        %v3534 = vpop.permute.xlu0 %3533
        %3535 = vrot.lane.b32.xlu0 %v3511, 101
        %v3536 = vpop.permute.xlu0 %3535
        %3537 = vrot.lane.b32.xlu0 %v3512, 101
        %v3538 = vpop.permute.xlu0 %3537
        %3539 = vrot.lane.b32.xlu0 %v3513, 101
        %v3540 = vpop.permute.xlu0 %3539
        %v3541 = vsel %vm631, %v3524, %v3526
        %v3542 = vsel %vm631, %v3526, %v3528
        %v3543 = vsel %vm631, %v3528, %v3530
        %v3544 = vsel %vm631, %v3530, %v3532
        %v3545 = vsel %vm631, %v3532, %v3534
        %v3546 = vsel %vm631, %v3534, %v3536
        %v3547 = vsel %vm631, %v3536, %v3538
        %v3548 = vsel %vm631, %v3538, %v3540
        %3557 = vst [vmem:[#allocation2 + $0xc0] sm:$0xff] %v3541
        %3558 = vst [vmem:[#allocation2 + $0xc8] sm:$0xff] %v3542
        %3559 = vst [vmem:[#allocation2 + $0xd0] sm:$0xff] %v3543
        %3560 = vst [vmem:[#allocation2 + $0xd8] sm:$0xff] %v3544
        %3561 = vst [vmem:[#allocation2 + $0xe0] sm:$0xff] %v3545
        %3562 = vst [vmem:[#allocation2 + $0xe8] sm:$0xff] %v3546
        %3563 = vst [vmem:[#allocation2 + $0xf0] sm:$0xff] %v3547
        %3564 = vst.msk [vmem:[#allocation2 + $0xf8] sm:$0xff] %vm318, %v3548
        %v3565 = vld [vmem:[#allocation3] sm:$0xff]
        %v3566 = vld [vmem:[#allocation3 + $0x8] sm:$0xff]
        %v3567 = vld [vmem:[#allocation3 + $0x10] sm:$0xff]
        %v3568 = vld [vmem:[#allocation3 + $0x18] sm:$0xff]
        %v3569 = vld [vmem:[#allocation3 + $0x20] sm:$0xff]
        %v3570 = vld [vmem:[#allocation3 + $0x28] sm:$0xff]
        %v3571 = vld [vmem:[#allocation3 + $0x30] sm:$0xff]
        %v3572 = vld [vmem:[#allocation3 + $0x38] sm:$0xff]
        %v3573 = vld [vmem:[#allocation3 + $0x40] sm:$0xff]
        %3583 = vrot.lane.b32.xlu0 %v3565, 100
        %v3584 = vpop.permute.xlu0 %3583
        %3585 = vrot.lane.b32.xlu0 %v3566, 100
        %v3586 = vpop.permute.xlu0 %3585
        %3587 = vrot.lane.b32.xlu0 %v3567, 100
        %v3588 = vpop.permute.xlu0 %3587
        %3589 = vrot.lane.b32.xlu0 %v3568, 100
        %v3590 = vpop.permute.xlu0 %3589
        %3591 = vrot.lane.b32.xlu0 %v3569, 100
        %v3592 = vpop.permute.xlu0 %3591
        %3593 = vrot.lane.b32.xlu0 %v3570, 100
        %v3594 = vpop.permute.xlu0 %3593
        %3595 = vrot.lane.b32.xlu0 %v3571, 100
        %v3596 = vpop.permute.xlu0 %3595
        %3597 = vrot.lane.b32.xlu0 %v3572, 100
        %v3598 = vpop.permute.xlu0 %3597
        %3599 = vrot.lane.b32.xlu0 %v3573, 100
        %v3600 = vpop.permute.xlu0 %3599
        %v3601 = vsel %vm721, %v3584, %v3586
        %v3602 = vsel %vm721, %v3586, %v3588
        %v3603 = vsel %vm721, %v3588, %v3590
        %v3604 = vsel %vm721, %v3590, %v3592
        %v3605 = vsel %vm721, %v3592, %v3594
        %v3606 = vsel %vm721, %v3594, %v3596
        %v3607 = vsel %vm721, %v3596, %v3598
        %v3608 = vsel %vm721, %v3598, %v3600
        %3617 = vst [vmem:[#allocation2 + $0x100] sm:$0xff] %v3601
        %3618 = vst [vmem:[#allocation2 + $0x108] sm:$0xff] %v3602
        %3619 = vst [vmem:[#allocation2 + $0x110] sm:$0xff] %v3603
        %3620 = vst [vmem:[#allocation2 + $0x118] sm:$0xff] %v3604
        %3621 = vst [vmem:[#allocation2 + $0x120] sm:$0xff] %v3605
        %3622 = vst [vmem:[#allocation2 + $0x128] sm:$0xff] %v3606
        %3623 = vst [vmem:[#allocation2 + $0x130] sm:$0xff] %v3607
        %3624 = vst.msk [vmem:[#allocation2 + $0x138] sm:$0xff] %vm318, %v3608
        %v3625 = vld [vmem:[#allocation3] sm:$0xff]
        %v3626 = vld [vmem:[#allocation3 + $0x8] sm:$0xff]
        %v3627 = vld [vmem:[#allocation3 + $0x10] sm:$0xff]
        %v3628 = vld [vmem:[#allocation3 + $0x18] sm:$0xff]
        %v3629 = vld [vmem:[#allocation3 + $0x20] sm:$0xff]
        %v3630 = vld [vmem:[#allocation3 + $0x28] sm:$0xff]
        %v3631 = vld [vmem:[#allocation3 + $0x30] sm:$0xff]
        %v3632 = vld [vmem:[#allocation3 + $0x38] sm:$0xff]
        %v3633 = vld [vmem:[#allocation3 + $0x40] sm:$0xff]
        %3643 = vrot.lane.b32.xlu0 %v3625, 99
        %v3644 = vpop.permute.xlu0 %3643
        %3645 = vrot.lane.b32.xlu0 %v3626, 99
        %v3646 = vpop.permute.xlu0 %3645
        %3647 = vrot.lane.b32.xlu0 %v3627, 99
        %v3648 = vpop.permute.xlu0 %3647
        %3649 = vrot.lane.b32.xlu0 %v3628, 99
        %v3650 = vpop.permute.xlu0 %3649
        %3651 = vrot.lane.b32.xlu0 %v3629, 99
        %v3652 = vpop.permute.xlu0 %3651
        %3653 = vrot.lane.b32.xlu0 %v3630, 99
        %v3654 = vpop.permute.xlu0 %3653
        %3655 = vrot.lane.b32.xlu0 %v3631, 99
        %v3656 = vpop.permute.xlu0 %3655
        %3657 = vrot.lane.b32.xlu0 %v3632, 99
        %v3658 = vpop.permute.xlu0 %3657
        %3659 = vrot.lane.b32.xlu0 %v3633, 99
        %v3660 = vpop.permute.xlu0 %3659
        %v3661 = vsel %vm811, %v3644, %v3646
        %v3662 = vsel %vm811, %v3646, %v3648
        %v3663 = vsel %vm811, %v3648, %v3650
        %v3664 = vsel %vm811, %v3650, %v3652
        %v3665 = vsel %vm811, %v3652, %v3654
        %v3666 = vsel %vm811, %v3654, %v3656
        %v3667 = vsel %vm811, %v3656, %v3658
        %v3668 = vsel %vm811, %v3658, %v3660
        %3677 = vst [vmem:[#allocation2 + $0x140] sm:$0xff] %v3661
        %3678 = vst [vmem:[#allocation2 + $0x148] sm:$0xff] %v3662
        %3679 = vst [vmem:[#allocation2 + $0x150] sm:$0xff] %v3663
        %3680 = vst [vmem:[#allocation2 + $0x158] sm:$0xff] %v3664
        %3681 = vst [vmem:[#allocation2 + $0x160] sm:$0xff] %v3665
        %3682 = vst [vmem:[#allocation2 + $0x168] sm:$0xff] %v3666
        %3683 = vst [vmem:[#allocation2 + $0x170] sm:$0xff] %v3667
        %3684 = vst.msk [vmem:[#allocation2 + $0x178] sm:$0xff] %vm318, %v3668
        %v3685 = vld [vmem:[#allocation3] sm:$0xff]
        %v3686 = vld [vmem:[#allocation3 + $0x8] sm:$0xff]
        %v3687 = vld [vmem:[#allocation3 + $0x10] sm:$0xff]
        %v3688 = vld [vmem:[#allocation3 + $0x18] sm:$0xff]
        %v3689 = vld [vmem:[#allocation3 + $0x20] sm:$0xff]
        %v3690 = vld [vmem:[#allocation3 + $0x28] sm:$0xff]
        %v3691 = vld [vmem:[#allocation3 + $0x30] sm:$0xff]
        %v3692 = vld [vmem:[#allocation3 + $0x38] sm:$0xff]
        %v3693 = vld [vmem:[#allocation3 + $0x40] sm:$0xff]
        %3703 = vrot.lane.b32.xlu0 %v3685, 91
        %v3704 = vpop.permute.xlu0 %3703
        %3705 = vrot.lane.b32.xlu0 %v3686, 91
        %v3706 = vpop.permute.xlu0 %3705
        %3707 = vrot.lane.b32.xlu0 %v3687, 91
        %v3708 = vpop.permute.xlu0 %3707
        %3709 = vrot.lane.b32.xlu0 %v3688, 91
        %v3710 = vpop.permute.xlu0 %3709
        %3711 = vrot.lane.b32.xlu0 %v3689, 91
        %v3712 = vpop.permute.xlu0 %3711
        %3713 = vrot.lane.b32.xlu0 %v3690, 91
        %v3714 = vpop.permute.xlu0 %3713
        %3715 = vrot.lane.b32.xlu0 %v3691, 91
        %v3716 = vpop.permute.xlu0 %3715
        %3717 = vrot.lane.b32.xlu0 %v3692, 91
        %v3718 = vpop.permute.xlu0 %3717
        %3719 = vrot.lane.b32.xlu0 %v3693, 91
        %v3720 = vpop.permute.xlu0 %3719
        %v3721 = vsel %vm901, %v3704, %v3706
        %v3722 = vsel %vm901, %v3706, %v3708
        %v3723 = vsel %vm901, %v3708, %v3710
        %v3724 = vsel %vm901, %v3710, %v3712
        %v3725 = vsel %vm901, %v3712, %v3714
        %v3726 = vsel %vm901, %v3714, %v3716
        %v3727 = vsel %vm901, %v3716, %v3718
        %v3728 = vsel %vm901, %v3718, %v3720
        %3737 = vst [vmem:[#allocation2 + $0x180] sm:$0xff] %v3721
        %3738 = vst [vmem:[#allocation2 + $0x188] sm:$0xff] %v3722
        %3739 = vst [vmem:[#allocation2 + $0x190] sm:$0xff] %v3723
        %3740 = vst [vmem:[#allocation2 + $0x198] sm:$0xff] %v3724
        %3741 = vst [vmem:[#allocation2 + $0x1a0] sm:$0xff] %v3725
        %3742 = vst [vmem:[#allocation2 + $0x1a8] sm:$0xff] %v3726
        %3743 = vst [vmem:[#allocation2 + $0x1b0] sm:$0xff] %v3727
        %3744 = vst.msk [vmem:[#allocation2 + $0x1b8] sm:$0xff] %vm318, %v3728
        %v3745 = vld [vmem:[#allocation3] sm:$0xff]
        %v3746 = vld [vmem:[#allocation3 + $0x8] sm:$0xff]
        %v3747 = vld [vmem:[#allocation3 + $0x10] sm:$0xff]
        %v3748 = vld [vmem:[#allocation3 + $0x18] sm:$0xff]
        %v3749 = vld [vmem:[#allocation3 + $0x20] sm:$0xff]
        %v3750 = vld [vmem:[#allocation3 + $0x28] sm:$0xff]
        %v3751 = vld [vmem:[#allocation3 + $0x30] sm:$0xff]
        %v3752 = vld [vmem:[#allocation3 + $0x38] sm:$0xff]
        %v3753 = vld [vmem:[#allocation3 + $0x40] sm:$0xff]
        %3763 = vrot.lane.b32.xlu0 %v3745, 90
        %v3764 = vpop.permute.xlu0 %3763
        %3765 = vrot.lane.b32.xlu0 %v3746, 90
        %v3766 = vpop.permute.xlu0 %3765
        %3767 = vrot.lane.b32.xlu0 %v3747, 90
        %v3768 = vpop.permute.xlu0 %3767
        %3769 = vrot.lane.b32.xlu0 %v3748, 90
        %v3770 = vpop.permute.xlu0 %3769
        %3771 = vrot.lane.b32.xlu0 %v3749, 90
        %v3772 = vpop.permute.xlu0 %3771
        %3773 = vrot.lane.b32.xlu0 %v3750, 90
        %v3774 = vpop.permute.xlu0 %3773
        %3775 = vrot.lane.b32.xlu0 %v3751, 90
        %v3776 = vpop.permute.xlu0 %3775
        %3777 = vrot.lane.b32.xlu0 %v3752, 90
        %v3778 = vpop.permute.xlu0 %3777
        %3779 = vrot.lane.b32.xlu0 %v3753, 90
        %v3780 = vpop.permute.xlu0 %3779
        %v3781 = vsel %vm991, %v3764, %v3766
        %v3782 = vsel %vm991, %v3766, %v3768
        %v3783 = vsel %vm991, %v3768, %v3770
        %v3784 = vsel %vm991, %v3770, %v3772
        %v3785 = vsel %vm991, %v3772, %v3774
        %v3786 = vsel %vm991, %v3774, %v3776
        %v3787 = vsel %vm991, %v3776, %v3778
        %v3788 = vsel %vm991, %v3778, %v3780
        %3797 = vst [vmem:[#allocation2 + $0x1c0] sm:$0xff] %v3781
        %3798 = vst [vmem:[#allocation2 + $0x1c8] sm:$0xff] %v3782
        %3799 = vst [vmem:[#allocation2 + $0x1d0] sm:$0xff] %v3783
        %3800 = vst [vmem:[#allocation2 + $0x1d8] sm:$0xff] %v3784
        %3801 = vst [vmem:[#allocation2 + $0x1e0] sm:$0xff] %v3785
        %3802 = vst [vmem:[#allocation2 + $0x1e8] sm:$0xff] %v3786
        %3803 = vst [vmem:[#allocation2 + $0x1f0] sm:$0xff] %v3787
        %3804 = vst.msk [vmem:[#allocation2 + $0x1f8] sm:$0xff] %vm318, %v3788
        %v3805 = vld [vmem:[#allocation3] sm:$0xff]
        %v3806 = vld [vmem:[#allocation3 + $0x8] sm:$0xff]
        %v3807 = vld [vmem:[#allocation3 + $0x10] sm:$0xff]
        %v3808 = vld [vmem:[#allocation3 + $0x18] sm:$0xff]
        %v3809 = vld [vmem:[#allocation3 + $0x20] sm:$0xff]
        %v3810 = vld [vmem:[#allocation3 + $0x28] sm:$0xff]
        %v3811 = vld [vmem:[#allocation3 + $0x30] sm:$0xff]
        %v3812 = vld [vmem:[#allocation3 + $0x38] sm:$0xff]
        %v3813 = vld [vmem:[#allocation3 + $0x40] sm:$0xff]
        %3823 = vrot.lane.b32.xlu0 %v3805, 89
        %v3824 = vpop.permute.xlu0 %3823
        %3825 = vrot.lane.b32.xlu0 %v3806, 89
        %v3826 = vpop.permute.xlu0 %3825
        %3827 = vrot.lane.b32.xlu0 %v3807, 89
        %v3828 = vpop.permute.xlu0 %3827
        %3829 = vrot.lane.b32.xlu0 %v3808, 89
        %v3830 = vpop.permute.xlu0 %3829
        %3831 = vrot.lane.b32.xlu0 %v3809, 89
        %v3832 = vpop.permute.xlu0 %3831
        %3833 = vrot.lane.b32.xlu0 %v3810, 89
        %v3834 = vpop.permute.xlu0 %3833
        %3835 = vrot.lane.b32.xlu0 %v3811, 89
        %v3836 = vpop.permute.xlu0 %3835
        %3837 = vrot.lane.b32.xlu0 %v3812, 89
        %v3838 = vpop.permute.xlu0 %3837
        %3839 = vrot.lane.b32.xlu0 %v3813, 89
        %v3840 = vpop.permute.xlu0 %3839
        %v3841 = vsel %vm1081, %v3824, %v3826
        %v3842 = vsel %vm1081, %v3826, %v3828
        %v3843 = vsel %vm1081, %v3828, %v3830
        %v3844 = vsel %vm1081, %v3830, %v3832
        %v3845 = vsel %vm1081, %v3832, %v3834
        %v3846 = vsel %vm1081, %v3834, %v3836
        %v3847 = vsel %vm1081, %v3836, %v3838
        %v3848 = vsel %vm1081, %v3838, %v3840
        %3857 = vst [vmem:[#allocation2 + $0x200] sm:$0xff] %v3841
        %3858 = vst [vmem:[#allocation2 + $0x208] sm:$0xff] %v3842
        %3859 = vst [vmem:[#allocation2 + $0x210] sm:$0xff] %v3843
        %3860 = vst [vmem:[#allocation2 + $0x218] sm:$0xff] %v3844
        %3861 = vst [vmem:[#allocation2 + $0x220] sm:$0xff] %v3845
        %3862 = vst [vmem:[#allocation2 + $0x228] sm:$0xff] %v3846
        %3863 = vst [vmem:[#allocation2 + $0x230] sm:$0xff] %v3847
        %3864 = vst.msk [vmem:[#allocation2 + $0x238] sm:$0xff] %vm318, %v3848
        %v3865 = vld [vmem:[#allocation3] sm:$0xff]
        %v3866 = vld [vmem:[#allocation3 + $0x8] sm:$0xff]
        %v3867 = vld [vmem:[#allocation3 + $0x10] sm:$0xff]
        %v3868 = vld [vmem:[#allocation3 + $0x18] sm:$0xff]
        %v3869 = vld [vmem:[#allocation3 + $0x20] sm:$0xff]
        %v3870 = vld [vmem:[#allocation3 + $0x28] sm:$0xff]
        %v3871 = vld [vmem:[#allocation3 + $0x30] sm:$0xff]
        %v3872 = vld [vmem:[#allocation3 + $0x38] sm:$0xff]
        %v3873 = vld [vmem:[#allocation3 + $0x40] sm:$0xff]
        %3883 = vrot.lane.b32.xlu0 %v3865, 11
        %v3884 = vpop.permute.xlu0 %3883
        %3885 = vrot.lane.b32.xlu0 %v3866, 11
        %v3886 = vpop.permute.xlu0 %3885
        %3887 = vrot.lane.b32.xlu0 %v3867, 11
        %v3888 = vpop.permute.xlu0 %3887
        %3889 = vrot.lane.b32.xlu0 %v3868, 11
        %v3890 = vpop.permute.xlu0 %3889
        %3891 = vrot.lane.b32.xlu0 %v3869, 11
        %v3892 = vpop.permute.xlu0 %3891
        %3893 = vrot.lane.b32.xlu0 %v3870, 11
        %v3894 = vpop.permute.xlu0 %3893
        %3895 = vrot.lane.b32.xlu0 %v3871, 11
        %v3896 = vpop.permute.xlu0 %3895
        %3897 = vrot.lane.b32.xlu0 %v3872, 11
        %v3898 = vpop.permute.xlu0 %3897
        %3899 = vrot.lane.b32.xlu0 %v3873, 11
        %v3900 = vpop.permute.xlu0 %3899
        %v3901 = vsel %vm1171, %v3884, %v3886
        %v3902 = vsel %vm1171, %v3886, %v3888
        %v3903 = vsel %vm1171, %v3888, %v3890
        %v3904 = vsel %vm1171, %v3890, %v3892
        %v3905 = vsel %vm1171, %v3892, %v3894
        %v3906 = vsel %vm1171, %v3894, %v3896
        %v3907 = vsel %vm1171, %v3896, %v3898
        %v3908 = vsel %vm1171, %v3898, %v3900
        %3917 = vst [vmem:[#allocation2 + $0x240] sm:$0xff] %v3901
        %3918 = vst [vmem:[#allocation2 + $0x248] sm:$0xff] %v3902
        %3919 = vst [vmem:[#allocation2 + $0x250] sm:$0xff] %v3903
        %3920 = vst [vmem:[#allocation2 + $0x258] sm:$0xff] %v3904
        %3921 = vst [vmem:[#allocation2 + $0x260] sm:$0xff] %v3905
        %3922 = vst [vmem:[#allocation2 + $0x268] sm:$0xff] %v3906
        %3923 = vst [vmem:[#allocation2 + $0x270] sm:$0xff] %v3907
        %3924 = vst.msk [vmem:[#allocation2 + $0x278] sm:$0xff] %vm318, %v3908
        %v3925 = vld [vmem:[#allocation3] sm:$0xff]
        %v3926 = vld [vmem:[#allocation3 + $0x8] sm:$0xff]
        %v3927 = vld [vmem:[#allocation3 + $0x10] sm:$0xff]
        %v3928 = vld [vmem:[#allocation3 + $0x18] sm:$0xff]
        %v3929 = vld [vmem:[#allocation3 + $0x20] sm:$0xff]
        %v3930 = vld [vmem:[#allocation3 + $0x28] sm:$0xff]
        %v3931 = vld [vmem:[#allocation3 + $0x30] sm:$0xff]
        %v3932 = vld [vmem:[#allocation3 + $0x38] sm:$0xff]
        %v3933 = vld [vmem:[#allocation3 + $0x40] sm:$0xff]
        %3943 = vrot.lane.b32.xlu0 %v3925, 10
        %v3944 = vpop.permute.xlu0 %3943
        %3945 = vrot.lane.b32.xlu0 %v3926, 10
        %v3946 = vpop.permute.xlu0 %3945
        %3947 = vrot.lane.b32.xlu0 %v3927, 10
        %v3948 = vpop.permute.xlu0 %3947
        %3949 = vrot.lane.b32.xlu0 %v3928, 10
        %v3950 = vpop.permute.xlu0 %3949
        %3951 = vrot.lane.b32.xlu0 %v3929, 10
        %v3952 = vpop.permute.xlu0 %3951
        %3953 = vrot.lane.b32.xlu0 %v3930, 10
        %v3954 = vpop.permute.xlu0 %3953
        %3955 = vrot.lane.b32.xlu0 %v3931, 10
        %v3956 = vpop.permute.xlu0 %3955
        %3957 = vrot.lane.b32.xlu0 %v3932, 10
        %v3958 = vpop.permute.xlu0 %3957
        %3959 = vrot.lane.b32.xlu0 %v3933, 10
        %v3960 = vpop.permute.xlu0 %3959
        %v3961 = vsel %vm1261, %v3944, %v3946
        %v3962 = vsel %vm1261, %v3946, %v3948
        %v3963 = vsel %vm1261, %v3948, %v3950
        %v3964 = vsel %vm1261, %v3950, %v3952
        %v3965 = vsel %vm1261, %v3952, %v3954
        %v3966 = vsel %vm1261, %v3954, %v3956
        %v3967 = vsel %vm1261, %v3956, %v3958
        %v3968 = vsel %vm1261, %v3958, %v3960
        %3977 = vst [vmem:[#allocation2 + $0x280] sm:$0xff] %v3961
        %3978 = vst [vmem:[#allocation2 + $0x288] sm:$0xff] %v3962
        %3979 = vst [vmem:[#allocation2 + $0x290] sm:$0xff] %v3963
        %3980 = vst [vmem:[#allocation2 + $0x298] sm:$0xff] %v3964
        %3981 = vst [vmem:[#allocation2 + $0x2a0] sm:$0xff] %v3965
        %3982 = vst [vmem:[#allocation2 + $0x2a8] sm:$0xff] %v3966
        %3983 = vst [vmem:[#allocation2 + $0x2b0] sm:$0xff] %v3967
        %3984 = vst.msk [vmem:[#allocation2 + $0x2b8] sm:$0xff] %vm318, %v3968
        %v3985 = vld [vmem:[#allocation3] sm:$0xff]
        %v3986 = vld [vmem:[#allocation3 + $0x8] sm:$0xff]
        %v3987 = vld [vmem:[#allocation3 + $0x10] sm:$0xff]
        %v3988 = vld [vmem:[#allocation3 + $0x18] sm:$0xff]
        %v3989 = vld [vmem:[#allocation3 + $0x20] sm:$0xff]
        %v3990 = vld [vmem:[#allocation3 + $0x28] sm:$0xff]
        %v3991 = vld [vmem:[#allocation3 + $0x30] sm:$0xff]
        %v3992 = vld [vmem:[#allocation3 + $0x38] sm:$0xff]
        %v3993 = vld [vmem:[#allocation3 + $0x40] sm:$0xff]
        %4003 = vrot.lane.b32.xlu0 %v3985, 9
        %v4004 = vpop.permute.xlu0 %4003
        %4005 = vrot.lane.b32.xlu0 %v3986, 9
        %v4006 = vpop.permute.xlu0 %4005
        %4007 = vrot.lane.b32.xlu0 %v3987, 9
        %v4008 = vpop.permute.xlu0 %4007
        %4009 = vrot.lane.b32.xlu0 %v3988, 9
        %v4010 = vpop.permute.xlu0 %4009
        %4011 = vrot.lane.b32.xlu0 %v3989, 9
        %v4012 = vpop.permute.xlu0 %4011
        %4013 = vrot.lane.b32.xlu0 %v3990, 9
        %v4014 = vpop.permute.xlu0 %4013
        %4015 = vrot.lane.b32.xlu0 %v3991, 9
        %v4016 = vpop.permute.xlu0 %4015
        %4017 = vrot.lane.b32.xlu0 %v3992, 9
        %v4018 = vpop.permute.xlu0 %4017
        %4019 = vrot.lane.b32.xlu0 %v3993, 9
        %v4020 = vpop.permute.xlu0 %4019
        %v4021 = vsel %vm1351, %v4004, %v4006
        %v4022 = vsel %vm1351, %v4006, %v4008
        %v4023 = vsel %vm1351, %v4008, %v4010
        %v4024 = vsel %vm1351, %v4010, %v4012
        %v4025 = vsel %vm1351, %v4012, %v4014
        %v4026 = vsel %vm1351, %v4014, %v4016
        %v4027 = vsel %vm1351, %v4016, %v4018
        %v4028 = vsel %vm1351, %v4018, %v4020
        %4037 = vst [vmem:[#allocation2 + $0x2c0] sm:$0xff] %v4021
        %4038 = vst [vmem:[#allocation2 + $0x2c8] sm:$0xff] %v4022
        %4039 = vst [vmem:[#allocation2 + $0x2d0] sm:$0xff] %v4023
        %4040 = vst [vmem:[#allocation2 + $0x2d8] sm:$0xff] %v4024
        %4041 = vst [vmem:[#allocation2 + $0x2e0] sm:$0xff] %v4025
        %4042 = vst [vmem:[#allocation2 + $0x2e8] sm:$0xff] %v4026
        %4043 = vst [vmem:[#allocation2 + $0x2f0] sm:$0xff] %v4027
        %4044 = vst.msk [vmem:[#allocation2 + $0x2f8] sm:$0xff] %vm318, %v4028
        %v4045 = vld [vmem:[#allocation3] sm:$0xff]
        %v4046 = vld [vmem:[#allocation3 + $0x8] sm:$0xff]
        %v4047 = vld [vmem:[#allocation3 + $0x10] sm:$0xff]
        %v4048 = vld [vmem:[#allocation3 + $0x18] sm:$0xff]
        %v4049 = vld [vmem:[#allocation3 + $0x20] sm:$0xff]
        %v4050 = vld [vmem:[#allocation3 + $0x28] sm:$0xff]
        %v4051 = vld [vmem:[#allocation3 + $0x30] sm:$0xff]
        %v4052 = vld [vmem:[#allocation3 + $0x38] sm:$0xff]
        %v4053 = vld [vmem:[#allocation3 + $0x40] sm:$0xff]
        %4063 = vrot.lane.b32.xlu0 %v4045, 1
        %v4064 = vpop.permute.xlu0 %4063
        %4065 = vrot.lane.b32.xlu0 %v4046, 1
        %v4066 = vpop.permute.xlu0 %4065
        %4067 = vrot.lane.b32.xlu0 %v4047, 1
        %v4068 = vpop.permute.xlu0 %4067
        %4069 = vrot.lane.b32.xlu0 %v4048, 1
        %v4070 = vpop.permute.xlu0 %4069
        %4071 = vrot.lane.b32.xlu0 %v4049, 1
        %v4072 = vpop.permute.xlu0 %4071
        %4073 = vrot.lane.b32.xlu0 %v4050, 1
        %v4074 = vpop.permute.xlu0 %4073
        %4075 = vrot.lane.b32.xlu0 %v4051, 1
        %v4076 = vpop.permute.xlu0 %4075
        %4077 = vrot.lane.b32.xlu0 %v4052, 1
        %v4078 = vpop.permute.xlu0 %4077
        %4079 = vrot.lane.b32.xlu0 %v4053, 1
        %v4080 = vpop.permute.xlu0 %4079
        %v4081 = vsel %vm1441, %v4064, %v4066
        %v4082 = vsel %vm1441, %v4066, %v4068
        %v4083 = vsel %vm1441, %v4068, %v4070
        %v4084 = vsel %vm1441, %v4070, %v4072
        %v4085 = vsel %vm1441, %v4072, %v4074
        %v4086 = vsel %vm1441, %v4074, %v4076
        %v4087 = vsel %vm1441, %v4076, %v4078
        %v4088 = vsel %vm1441, %v4078, %v4080
        %4097 = vst [vmem:[#allocation2 + $0x300] sm:$0xff] %v4081
        %4098 = vst [vmem:[#allocation2 + $0x308] sm:$0xff] %v4082
        %4099 = vst [vmem:[#allocation2 + $0x310] sm:$0xff] %v4083
        %4100 = vst [vmem:[#allocation2 + $0x318] sm:$0xff] %v4084
        %4101 = vst [vmem:[#allocation2 + $0x320] sm:$0xff] %v4085
        %4102 = vst [vmem:[#allocation2 + $0x328] sm:$0xff] %v4086
        %4103 = vst [vmem:[#allocation2 + $0x330] sm:$0xff] %v4087
        %4104 = vst.msk [vmem:[#allocation2 + $0x338] sm:$0xff] %vm318, %v4088
        %v4105 = vld [vmem:[#allocation3 + $0x8] sm:$0xff]
        %v4106 = vld [vmem:[#allocation3 + $0x10] sm:$0xff]
        %v4107 = vld [vmem:[#allocation3 + $0x18] sm:$0xff]
        %v4108 = vld [vmem:[#allocation3 + $0x20] sm:$0xff]
        %v4109 = vld [vmem:[#allocation3 + $0x28] sm:$0xff]
        %v4110 = vld [vmem:[#allocation3 + $0x30] sm:$0xff]
        %v4111 = vld [vmem:[#allocation3 + $0x38] sm:$0xff]
        %v4112 = vld [vmem:[#allocation3 + $0x40] sm:$0xff]
        %4113 = vst [vmem:[#allocation2 + $0x340] sm:$0xff] %v4105
        %4114 = vst [vmem:[#allocation2 + $0x348] sm:$0xff] %v4106
        %4115 = vst [vmem:[#allocation2 + $0x350] sm:$0xff] %v4107
        %4116 = vst [vmem:[#allocation2 + $0x358] sm:$0xff] %v4108
        %4117 = vst [vmem:[#allocation2 + $0x360] sm:$0xff] %v4109
        %4118 = vst [vmem:[#allocation2 + $0x368] sm:$0xff] %v4110
        %4119 = vst [vmem:[#allocation2 + $0x370] sm:$0xff] %v4111
        %4120 = vst.msk [vmem:[#allocation2 + $0x378] sm:$0xff] %vm318, %v4112
        %v4121 = vld [vmem:[#allocation3 + $0x8] sm:$0xff]
        %v4122 = vld [vmem:[#allocation3 + $0x10] sm:$0xff]
        %v4123 = vld [vmem:[#allocation3 + $0x18] sm:$0xff]
        %v4124 = vld [vmem:[#allocation3 + $0x20] sm:$0xff]
        %v4125 = vld [vmem:[#allocation3 + $0x28] sm:$0xff]
        %v4126 = vld [vmem:[#allocation3 + $0x30] sm:$0xff]
        %v4127 = vld [vmem:[#allocation3 + $0x38] sm:$0xff]
        %v4128 = vld [vmem:[#allocation3 + $0x40] sm:$0xff]
        %4137 = vrot.lane.b32.xlu0 %v4121, 127
        %v4138 = vpop.permute.xlu0 %4137
        %4139 = vrot.lane.b32.xlu0 %v4122, 127
        %v4140 = vpop.permute.xlu0 %4139
        %4141 = vrot.lane.b32.xlu0 %v4123, 127
        %v4142 = vpop.permute.xlu0 %4141
        %4143 = vrot.lane.b32.xlu0 %v4124, 127
        %v4144 = vpop.permute.xlu0 %4143
        %4145 = vrot.lane.b32.xlu0 %v4125, 127
        %v4146 = vpop.permute.xlu0 %4145
        %4147 = vrot.lane.b32.xlu0 %v4126, 127
        %v4148 = vpop.permute.xlu0 %4147
        %4149 = vrot.lane.b32.xlu0 %v4127, 127
        %v4150 = vpop.permute.xlu0 %4149
        %4151 = vrot.lane.b32.xlu0 %v4128, 127
        %v4152 = vpop.permute.xlu0 %4151
        %v4153 = vsel %vm1578, %v4138, %v4140
        %v4154 = vsel %vm1578, %v4140, %v4142
        %v4155 = vsel %vm1578, %v4142, %v4144
        %v4156 = vsel %vm1578, %v4144, %v4146
        %v4157 = vsel %vm1578, %v4146, %v4148
        %v4158 = vsel %vm1578, %v4148, %v4150
        %v4159 = vsel %vm1578, %v4150, %v4152
        %4168 = vst [vmem:[#allocation2 + $0x380] sm:$0xff] %v4153
        %4169 = vst [vmem:[#allocation2 + $0x388] sm:$0xff] %v4154
        %4170 = vst [vmem:[#allocation2 + $0x390] sm:$0xff] %v4155
        %4171 = vst [vmem:[#allocation2 + $0x398] sm:$0xff] %v4156
        %4172 = vst [vmem:[#allocation2 + $0x3a0] sm:$0xff] %v4157
        %4173 = vst [vmem:[#allocation2 + $0x3a8] sm:$0xff] %v4158
        %4174 = vst [vmem:[#allocation2 + $0x3b0] sm:$0xff] %v4159
        %4175 = vst.msk [vmem:[#allocation2 + $0x3b8] sm:$0xff] %vm318, %v4152
        %v4176 = vld [vmem:[#allocation3 + $0x8] sm:$0xff]
        %v4177 = vld [vmem:[#allocation3 + $0x10] sm:$0xff]
        %v4178 = vld [vmem:[#allocation3 + $0x18] sm:$0xff]
        %v4179 = vld [vmem:[#allocation3 + $0x20] sm:$0xff]
        %v4180 = vld [vmem:[#allocation3 + $0x28] sm:$0xff]
        %v4181 = vld [vmem:[#allocation3 + $0x30] sm:$0xff]
        %v4182 = vld [vmem:[#allocation3 + $0x38] sm:$0xff]
        %v4183 = vld [vmem:[#allocation3 + $0x40] sm:$0xff]
        %4192 = vrot.lane.b32.xlu0 %v4176, 119
        %v4193 = vpop.permute.xlu0 %4192
        %4194 = vrot.lane.b32.xlu0 %v4177, 119
        %v4195 = vpop.permute.xlu0 %4194
        %4196 = vrot.lane.b32.xlu0 %v4178, 119
        %v4197 = vpop.permute.xlu0 %4196
        %4198 = vrot.lane.b32.xlu0 %v4179, 119
        %v4199 = vpop.permute.xlu0 %4198
        %4200 = vrot.lane.b32.xlu0 %v4180, 119
        %v4201 = vpop.permute.xlu0 %4200
        %4202 = vrot.lane.b32.xlu0 %v4181, 119
        %v4203 = vpop.permute.xlu0 %4202
        %4204 = vrot.lane.b32.xlu0 %v4182, 119
        %v4205 = vpop.permute.xlu0 %4204
        %4206 = vrot.lane.b32.xlu0 %v4183, 119
        %v4207 = vpop.permute.xlu0 %4206
        %v4208 = vsel %vm1658, %v4193, %v4195
        %v4209 = vsel %vm1658, %v4195, %v4197
        %v4210 = vsel %vm1658, %v4197, %v4199
        %v4211 = vsel %vm1658, %v4199, %v4201
        %v4212 = vsel %vm1658, %v4201, %v4203
        %v4213 = vsel %vm1658, %v4203, %v4205
        %v4214 = vsel %vm1658, %v4205, %v4207
        %4223 = vst [vmem:[#allocation2 + $0x3c0] sm:$0xff] %v4208
        %4224 = vst [vmem:[#allocation2 + $0x3c8] sm:$0xff] %v4209
        %4225 = vst [vmem:[#allocation2 + $0x3d0] sm:$0xff] %v4210
        %4226 = vst [vmem:[#allocation2 + $0x3d8] sm:$0xff] %v4211
        %4227 = vst [vmem:[#allocation2 + $0x3e0] sm:$0xff] %v4212
        %4228 = vst [vmem:[#allocation2 + $0x3e8] sm:$0xff] %v4213
        %4229 = vst [vmem:[#allocation2 + $0x3f0] sm:$0xff] %v4214
        %4230 = vst.msk [vmem:[#allocation2 + $0x3f8] sm:$0xff] %vm318, %v4207
        %v4231 = vld [vmem:[#allocation3 + $0x8] sm:$0xff]
        %v4232 = vld [vmem:[#allocation3 + $0x10] sm:$0xff]
        %v4233 = vld [vmem:[#allocation3 + $0x18] sm:$0xff]
        %v4234 = vld [vmem:[#allocation3 + $0x20] sm:$0xff]
        %v4235 = vld [vmem:[#allocation3 + $0x28] sm:$0xff]
        %v4236 = vld [vmem:[#allocation3 + $0x30] sm:$0xff]
        %v4237 = vld [vmem:[#allocation3 + $0x38] sm:$0xff]
        %v4238 = vld [vmem:[#allocation3 + $0x40] sm:$0xff]
        %4247 = vrot.lane.b32.xlu0 %v4231, 118
        %v4248 = vpop.permute.xlu0 %4247
        %4249 = vrot.lane.b32.xlu0 %v4232, 118
        %v4250 = vpop.permute.xlu0 %4249
        %4251 = vrot.lane.b32.xlu0 %v4233, 118
        %v4252 = vpop.permute.xlu0 %4251
        %4253 = vrot.lane.b32.xlu0 %v4234, 118
        %v4254 = vpop.permute.xlu0 %4253
        %4255 = vrot.lane.b32.xlu0 %v4235, 118
        %v4256 = vpop.permute.xlu0 %4255
        %4257 = vrot.lane.b32.xlu0 %v4236, 118
        %v4258 = vpop.permute.xlu0 %4257
        %4259 = vrot.lane.b32.xlu0 %v4237, 118
        %v4260 = vpop.permute.xlu0 %4259
        %4261 = vrot.lane.b32.xlu0 %v4238, 118
        %v4262 = vpop.permute.xlu0 %4261
        %v4263 = vsel %vm1738, %v4248, %v4250
        %v4264 = vsel %vm1738, %v4250, %v4252
        %v4265 = vsel %vm1738, %v4252, %v4254
        %v4266 = vsel %vm1738, %v4254, %v4256
        %v4267 = vsel %vm1738, %v4256, %v4258
        %v4268 = vsel %vm1738, %v4258, %v4260
        %v4269 = vsel %vm1738, %v4260, %v4262
        %4278 = vst [vmem:[#allocation2 + $0x400] sm:$0xff] %v4263
        %4279 = vst [vmem:[#allocation2 + $0x408] sm:$0xff] %v4264
        %4280 = vst [vmem:[#allocation2 + $0x410] sm:$0xff] %v4265
        %4281 = vst [vmem:[#allocation2 + $0x418] sm:$0xff] %v4266
        %4282 = vst [vmem:[#allocation2 + $0x420] sm:$0xff] %v4267
        %4283 = vst [vmem:[#allocation2 + $0x428] sm:$0xff] %v4268
        %4284 = vst [vmem:[#allocation2 + $0x430] sm:$0xff] %v4269
        %4285 = vst.msk [vmem:[#allocation2 + $0x438] sm:$0xff] %vm318, %v4262
        %v4286 = vld [vmem:[#allocation3 + $0x8] sm:$0xff]
        %v4287 = vld [vmem:[#allocation3 + $0x10] sm:$0xff]
        %v4288 = vld [vmem:[#allocation3 + $0x18] sm:$0xff]
        %v4289 = vld [vmem:[#allocation3 + $0x20] sm:$0xff]
        %v4290 = vld [vmem:[#allocation3 + $0x28] sm:$0xff]
        %v4291 = vld [vmem:[#allocation3 + $0x30] sm:$0xff]
        %v4292 = vld [vmem:[#allocation3 + $0x38] sm:$0xff]
        %v4293 = vld [vmem:[#allocation3 + $0x40] sm:$0xff]
        %4302 = vrot.lane.b32.xlu0 %v4286, 117
        %v4303 = vpop.permute.xlu0 %4302
        %4304 = vrot.lane.b32.xlu0 %v4287, 117
        %v4305 = vpop.permute.xlu0 %4304
        %4306 = vrot.lane.b32.xlu0 %v4288, 117
        %v4307 = vpop.permute.xlu0 %4306
        %4308 = vrot.lane.b32.xlu0 %v4289, 117
        %v4309 = vpop.permute.xlu0 %4308
        %4310 = vrot.lane.b32.xlu0 %v4290, 117
        %v4311 = vpop.permute.xlu0 %4310
        %4312 = vrot.lane.b32.xlu0 %v4291, 117
        %v4313 = vpop.permute.xlu0 %4312
        %4314 = vrot.lane.b32.xlu0 %v4292, 117
        %v4315 = vpop.permute.xlu0 %4314
        %4316 = vrot.lane.b32.xlu0 %v4293, 117
        %v4317 = vpop.permute.xlu0 %4316
        %v4318 = vsel %vm1818, %v4303, %v4305
        %v4319 = vsel %vm1818, %v4305, %v4307
        %v4320 = vsel %vm1818, %v4307, %v4309
        %v4321 = vsel %vm1818, %v4309, %v4311
        %v4322 = vsel %vm1818, %v4311, %v4313
        %v4323 = vsel %vm1818, %v4313, %v4315
        %v4324 = vsel %vm1818, %v4315, %v4317
        %4333 = vst [vmem:[#allocation2 + $0x440] sm:$0xff] %v4318
        %4334 = vst [vmem:[#allocation2 + $0x448] sm:$0xff] %v4319
        %4335 = vst [vmem:[#allocation2 + $0x450] sm:$0xff] %v4320
        %4336 = vst [vmem:[#allocation2 + $0x458] sm:$0xff] %v4321
        %4337 = vst [vmem:[#allocation2 + $0x460] sm:$0xff] %v4322
        %4338 = vst [vmem:[#allocation2 + $0x468] sm:$0xff] %v4323
        %4339 = vst [vmem:[#allocation2 + $0x470] sm:$0xff] %v4324
        %4340 = vst.msk [vmem:[#allocation2 + $0x478] sm:$0xff] %vm318, %v4317
        %v4341 = vld [vmem:[#allocation3 + $0x8] sm:$0xff]
        %v4342 = vld [vmem:[#allocation3 + $0x10] sm:$0xff]
        %v4343 = vld [vmem:[#allocation3 + $0x18] sm:$0xff]
        %v4344 = vld [vmem:[#allocation3 + $0x20] sm:$0xff]
        %v4345 = vld [vmem:[#allocation3 + $0x28] sm:$0xff]
        %v4346 = vld [vmem:[#allocation3 + $0x30] sm:$0xff]
        %v4347 = vld [vmem:[#allocation3 + $0x38] sm:$0xff]
        %v4348 = vld [vmem:[#allocation3 + $0x40] sm:$0xff]
        %v4349 = vld [vmem:[#allocation3 + $0x48] sm:$0xff]
        %4359 = vrot.lane.b32.xlu0 %v4341, 39
        %v4360 = vpop.permute.xlu0 %4359
        %4361 = vrot.lane.b32.xlu0 %v4342, 39
        %v4362 = vpop.permute.xlu0 %4361
        %4363 = vrot.lane.b32.xlu0 %v4343, 39
        %v4364 = vpop.permute.xlu0 %4363
        %4365 = vrot.lane.b32.xlu0 %v4344, 39
        %v4366 = vpop.permute.xlu0 %4365
        %4367 = vrot.lane.b32.xlu0 %v4345, 39
        %v4368 = vpop.permute.xlu0 %4367
        %4369 = vrot.lane.b32.xlu0 %v4346, 39
        %v4370 = vpop.permute.xlu0 %4369
        %4371 = vrot.lane.b32.xlu0 %v4347, 39
        %v4372 = vpop.permute.xlu0 %4371
        %4373 = vrot.lane.b32.xlu0 %v4348, 39
        %v4374 = vpop.permute.xlu0 %4373
        %4375 = vrot.lane.b32.xlu0 %v4349, 39
        %v4376 = vpop.permute.xlu0 %4375
        %v4377 = vsel %vm1907, %v4360, %v4362
        %v4378 = vsel %vm1907, %v4362, %v4364
        %v4379 = vsel %vm1907, %v4364, %v4366
        %v4380 = vsel %vm1907, %v4366, %v4368
        %v4381 = vsel %vm1907, %v4368, %v4370
        %v4382 = vsel %vm1907, %v4370, %v4372
        %v4383 = vsel %vm1907, %v4372, %v4374
        %v4384 = vsel %vm1907, %v4374, %v4376
        %4393 = vst [vmem:[#allocation2 + $0x480] sm:$0xff] %v4377
        %4394 = vst [vmem:[#allocation2 + $0x488] sm:$0xff] %v4378
        %4395 = vst [vmem:[#allocation2 + $0x490] sm:$0xff] %v4379
        %4396 = vst [vmem:[#allocation2 + $0x498] sm:$0xff] %v4380
        %4397 = vst [vmem:[#allocation2 + $0x4a0] sm:$0xff] %v4381
        %4398 = vst [vmem:[#allocation2 + $0x4a8] sm:$0xff] %v4382
        %4399 = vst [vmem:[#allocation2 + $0x4b0] sm:$0xff] %v4383
        %4400 = vst.msk [vmem:[#allocation2 + $0x4b8] sm:$0xff] %vm318, %v4384
        %v4401 = vld [vmem:[#allocation3 + $0x8] sm:$0xff]
        %v4402 = vld [vmem:[#allocation3 + $0x10] sm:$0xff]
        %v4403 = vld [vmem:[#allocation3 + $0x18] sm:$0xff]
        %v4404 = vld [vmem:[#allocation3 + $0x20] sm:$0xff]
        %v4405 = vld [vmem:[#allocation3 + $0x28] sm:$0xff]
        %v4406 = vld [vmem:[#allocation3 + $0x30] sm:$0xff]
        %v4407 = vld [vmem:[#allocation3 + $0x38] sm:$0xff]
        %v4408 = vld [vmem:[#allocation3 + $0x40] sm:$0xff]
        %v4409 = vld [vmem:[#allocation3 + $0x48] sm:$0xff]
        %4419 = vrot.lane.b32.xlu0 %v4401, 38
        %v4420 = vpop.permute.xlu0 %4419
        %4421 = vrot.lane.b32.xlu0 %v4402, 38
        %v4422 = vpop.permute.xlu0 %4421
        %4423 = vrot.lane.b32.xlu0 %v4403, 38
        %v4424 = vpop.permute.xlu0 %4423
        %4425 = vrot.lane.b32.xlu0 %v4404, 38
        %v4426 = vpop.permute.xlu0 %4425
        %4427 = vrot.lane.b32.xlu0 %v4405, 38
        %v4428 = vpop.permute.xlu0 %4427
        %4429 = vrot.lane.b32.xlu0 %v4406, 38
        %v4430 = vpop.permute.xlu0 %4429
        %4431 = vrot.lane.b32.xlu0 %v4407, 38
        %v4432 = vpop.permute.xlu0 %4431
        %4433 = vrot.lane.b32.xlu0 %v4408, 38
        %v4434 = vpop.permute.xlu0 %4433
        %4435 = vrot.lane.b32.xlu0 %v4409, 38
        %v4436 = vpop.permute.xlu0 %4435
        %v4437 = vsel %vm1997, %v4420, %v4422
        %v4438 = vsel %vm1997, %v4422, %v4424
        %v4439 = vsel %vm1997, %v4424, %v4426
        %v4440 = vsel %vm1997, %v4426, %v4428
        %v4441 = vsel %vm1997, %v4428, %v4430
        %v4442 = vsel %vm1997, %v4430, %v4432
        %v4443 = vsel %vm1997, %v4432, %v4434
        %v4444 = vsel %vm1997, %v4434, %v4436
        %4453 = vst [vmem:[#allocation2 + $0x4c0] sm:$0xff] %v4437
        %4454 = vst [vmem:[#allocation2 + $0x4c8] sm:$0xff] %v4438
        %4455 = vst [vmem:[#allocation2 + $0x4d0] sm:$0xff] %v4439
        %4456 = vst [vmem:[#allocation2 + $0x4d8] sm:$0xff] %v4440
        %4457 = vst [vmem:[#allocation2 + $0x4e0] sm:$0xff] %v4441
        %4458 = vst [vmem:[#allocation2 + $0x4e8] sm:$0xff] %v4442
        %4459 = vst [vmem:[#allocation2 + $0x4f0] sm:$0xff] %v4443
        %4460 = vst.msk [vmem:[#allocation2 + $0x4f8] sm:$0xff] %vm318, %v4444
        %v4461 = vld [vmem:[#allocation3 + $0x8] sm:$0xff]
        %v4462 = vld [vmem:[#allocation3 + $0x10] sm:$0xff]
        %v4463 = vld [vmem:[#allocation3 + $0x18] sm:$0xff]
        %v4464 = vld [vmem:[#allocation3 + $0x20] sm:$0xff]
        %v4465 = vld [vmem:[#allocation3 + $0x28] sm:$0xff]
        %v4466 = vld [vmem:[#allocation3 + $0x30] sm:$0xff]
        %v4467 = vld [vmem:[#allocation3 + $0x38] sm:$0xff]
        %v4468 = vld [vmem:[#allocation3 + $0x40] sm:$0xff]
        %v4469 = vld [vmem:[#allocation3 + $0x48] sm:$0xff]
        %4479 = vrot.lane.b32.xlu0 %v4461, 37
        %v4480 = vpop.permute.xlu0 %4479
        %4481 = vrot.lane.b32.xlu0 %v4462, 37
        %v4482 = vpop.permute.xlu0 %4481
        %4483 = vrot.lane.b32.xlu0 %v4463, 37
        %v4484 = vpop.permute.xlu0 %4483
        %4485 = vrot.lane.b32.xlu0 %v4464, 37
        %v4486 = vpop.permute.xlu0 %4485
        %4487 = vrot.lane.b32.xlu0 %v4465, 37
        %v4488 = vpop.permute.xlu0 %4487
        %4489 = vrot.lane.b32.xlu0 %v4466, 37
        %v4490 = vpop.permute.xlu0 %4489
        %4491 = vrot.lane.b32.xlu0 %v4467, 37
        %v4492 = vpop.permute.xlu0 %4491
        %4493 = vrot.lane.b32.xlu0 %v4468, 37
        %v4494 = vpop.permute.xlu0 %4493
        %4495 = vrot.lane.b32.xlu0 %v4469, 37
        %v4496 = vpop.permute.xlu0 %4495
        %v4497 = vsel %vm2087, %v4480, %v4482
        %v4498 = vsel %vm2087, %v4482, %v4484
        %v4499 = vsel %vm2087, %v4484, %v4486
        %v4500 = vsel %vm2087, %v4486, %v4488
        %v4501 = vsel %vm2087, %v4488, %v4490
        %v4502 = vsel %vm2087, %v4490, %v4492
        %v4503 = vsel %vm2087, %v4492, %v4494
        %v4504 = vsel %vm2087, %v4494, %v4496
        %4513 = vst [vmem:[#allocation2 + $0x500] sm:$0xff] %v4497
        %4514 = vst [vmem:[#allocation2 + $0x508] sm:$0xff] %v4498
        %4515 = vst [vmem:[#allocation2 + $0x510] sm:$0xff] %v4499
        %4516 = vst [vmem:[#allocation2 + $0x518] sm:$0xff] %v4500
        %4517 = vst [vmem:[#allocation2 + $0x520] sm:$0xff] %v4501
        %4518 = vst [vmem:[#allocation2 + $0x528] sm:$0xff] %v4502
        %4519 = vst [vmem:[#allocation2 + $0x530] sm:$0xff] %v4503
        %4520 = vst.msk [vmem:[#allocation2 + $0x538] sm:$0xff] %vm318, %v4504
        %v4521 = vld [vmem:[#allocation3 + $0x8] sm:$0xff]
        %v4522 = vld [vmem:[#allocation3 + $0x10] sm:$0xff]
        %v4523 = vld [vmem:[#allocation3 + $0x18] sm:$0xff]
        %v4524 = vld [vmem:[#allocation3 + $0x20] sm:$0xff]
        %v4525 = vld [vmem:[#allocation3 + $0x28] sm:$0xff]
        %v4526 = vld [vmem:[#allocation3 + $0x30] sm:$0xff]
        %v4527 = vld [vmem:[#allocation3 + $0x38] sm:$0xff]
        %v4528 = vld [vmem:[#allocation3 + $0x40] sm:$0xff]
        %v4529 = vld [vmem:[#allocation3 + $0x48] sm:$0xff]
        %4539 = vrot.lane.b32.xlu0 %v4521, 29
        %v4540 = vpop.permute.xlu0 %4539
        %4541 = vrot.lane.b32.xlu0 %v4522, 29
        %v4542 = vpop.permute.xlu0 %4541
        %4543 = vrot.lane.b32.xlu0 %v4523, 29
        %v4544 = vpop.permute.xlu0 %4543
        %4545 = vrot.lane.b32.xlu0 %v4524, 29
        %v4546 = vpop.permute.xlu0 %4545
        %4547 = vrot.lane.b32.xlu0 %v4525, 29
        %v4548 = vpop.permute.xlu0 %4547
        %4549 = vrot.lane.b32.xlu0 %v4526, 29
        %v4550 = vpop.permute.xlu0 %4549
        %4551 = vrot.lane.b32.xlu0 %v4527, 29
        %v4552 = vpop.permute.xlu0 %4551
        %4553 = vrot.lane.b32.xlu0 %v4528, 29
        %v4554 = vpop.permute.xlu0 %4553
        %4555 = vrot.lane.b32.xlu0 %v4529, 29
        %v4556 = vpop.permute.xlu0 %4555
        %v4557 = vsel %vm2177, %v4540, %v4542
        %v4558 = vsel %vm2177, %v4542, %v4544
        %v4559 = vsel %vm2177, %v4544, %v4546
        %v4560 = vsel %vm2177, %v4546, %v4548
        %v4561 = vsel %vm2177, %v4548, %v4550
        %v4562 = vsel %vm2177, %v4550, %v4552
        %v4563 = vsel %vm2177, %v4552, %v4554
        %v4564 = vsel %vm2177, %v4554, %v4556
        %4573 = vst [vmem:[#allocation2 + $0x540] sm:$0xff] %v4557
        %4574 = vst [vmem:[#allocation2 + $0x548] sm:$0xff] %v4558
        %4575 = vst [vmem:[#allocation2 + $0x550] sm:$0xff] %v4559
        %4576 = vst [vmem:[#allocation2 + $0x558] sm:$0xff] %v4560
        %4577 = vst [vmem:[#allocation2 + $0x560] sm:$0xff] %v4561
        %4578 = vst [vmem:[#allocation2 + $0x568] sm:$0xff] %v4562
        %4579 = vst [vmem:[#allocation2 + $0x570] sm:$0xff] %v4563
        %4580 = vst.msk [vmem:[#allocation2 + $0x578] sm:$0xff] %vm318, %v4564
        %v4581 = vld [vmem:[#allocation3 + $0x8] sm:$0xff]
        %v4582 = vld [vmem:[#allocation3 + $0x10] sm:$0xff]
        %v4583 = vld [vmem:[#allocation3 + $0x18] sm:$0xff]
        %v4584 = vld [vmem:[#allocation3 + $0x20] sm:$0xff]
        %v4585 = vld [vmem:[#allocation3 + $0x28] sm:$0xff]
        %v4586 = vld [vmem:[#allocation3 + $0x30] sm:$0xff]
        %v4587 = vld [vmem:[#allocation3 + $0x38] sm:$0xff]
        %v4588 = vld [vmem:[#allocation3 + $0x40] sm:$0xff]
        %v4589 = vld [vmem:[#allocation3 + $0x48] sm:$0xff]
        %4599 = vrot.lane.b32.xlu0 %v4581, 28
        %v4600 = vpop.permute.xlu0 %4599
        %4601 = vrot.lane.b32.xlu0 %v4582, 28
        %v4602 = vpop.permute.xlu0 %4601
        %4603 = vrot.lane.b32.xlu0 %v4583, 28
        %v4604 = vpop.permute.xlu0 %4603
        %4605 = vrot.lane.b32.xlu0 %v4584, 28
        %v4606 = vpop.permute.xlu0 %4605
        %4607 = vrot.lane.b32.xlu0 %v4585, 28
        %v4608 = vpop.permute.xlu0 %4607
        %4609 = vrot.lane.b32.xlu0 %v4586, 28
        %v4610 = vpop.permute.xlu0 %4609
        %4611 = vrot.lane.b32.xlu0 %v4587, 28
        %v4612 = vpop.permute.xlu0 %4611
        %4613 = vrot.lane.b32.xlu0 %v4588, 28
        %v4614 = vpop.permute.xlu0 %4613
        %4615 = vrot.lane.b32.xlu0 %v4589, 28
        %v4616 = vpop.permute.xlu0 %4615
        %v4617 = vsel %vm2267, %v4600, %v4602
        %v4618 = vsel %vm2267, %v4602, %v4604
        %v4619 = vsel %vm2267, %v4604, %v4606
        %v4620 = vsel %vm2267, %v4606, %v4608
        %v4621 = vsel %vm2267, %v4608, %v4610
        %v4622 = vsel %vm2267, %v4610, %v4612
        %v4623 = vsel %vm2267, %v4612, %v4614
        %v4624 = vsel %vm2267, %v4614, %v4616
        %4633 = vst [vmem:[#allocation2 + $0x580] sm:$0xff] %v4617
        %4634 = vst [vmem:[#allocation2 + $0x588] sm:$0xff] %v4618
        %4635 = vst [vmem:[#allocation2 + $0x590] sm:$0xff] %v4619
        %4636 = vst [vmem:[#allocation2 + $0x598] sm:$0xff] %v4620
        %4637 = vst [vmem:[#allocation2 + $0x5a0] sm:$0xff] %v4621
        %4638 = vst [vmem:[#allocation2 + $0x5a8] sm:$0xff] %v4622
        %4639 = vst [vmem:[#allocation2 + $0x5b0] sm:$0xff] %v4623
        %4640 = vst.msk [vmem:[#allocation2 + $0x5b8] sm:$0xff] %vm318, %v4624
        %v4641 = vld [vmem:[#allocation3 + $0x8] sm:$0xff]
        %v4642 = vld [vmem:[#allocation3 + $0x10] sm:$0xff]
        %v4643 = vld [vmem:[#allocation3 + $0x18] sm:$0xff]
        %v4644 = vld [vmem:[#allocation3 + $0x20] sm:$0xff]
        %v4645 = vld [vmem:[#allocation3 + $0x28] sm:$0xff]
        %v4646 = vld [vmem:[#allocation3 + $0x30] sm:$0xff]
        %v4647 = vld [vmem:[#allocation3 + $0x38] sm:$0xff]
        %v4648 = vld [vmem:[#allocation3 + $0x40] sm:$0xff]
        %v4649 = vld [vmem:[#allocation3 + $0x48] sm:$0xff]
        %4659 = vrot.lane.b32.xlu0 %v4641, 27
        %v4660 = vpop.permute.xlu0 %4659
        %4661 = vrot.lane.b32.xlu0 %v4642, 27
        %v4662 = vpop.permute.xlu0 %4661
        %4663 = vrot.lane.b32.xlu0 %v4643, 27
        %v4664 = vpop.permute.xlu0 %4663
        %4665 = vrot.lane.b32.xlu0 %v4644, 27
        %v4666 = vpop.permute.xlu0 %4665
        %4667 = vrot.lane.b32.xlu0 %v4645, 27
        %v4668 = vpop.permute.xlu0 %4667
        %4669 = vrot.lane.b32.xlu0 %v4646, 27
        %v4670 = vpop.permute.xlu0 %4669
        %4671 = vrot.lane.b32.xlu0 %v4647, 27
        %v4672 = vpop.permute.xlu0 %4671
        %4673 = vrot.lane.b32.xlu0 %v4648, 27
        %v4674 = vpop.permute.xlu0 %4673
        %4675 = vrot.lane.b32.xlu0 %v4649, 27
        %v4676 = vpop.permute.xlu0 %4675
        %v4677 = vsel %vm2357, %v4660, %v4662
        %v4678 = vsel %vm2357, %v4662, %v4664
        %v4679 = vsel %vm2357, %v4664, %v4666
        %v4680 = vsel %vm2357, %v4666, %v4668
        %v4681 = vsel %vm2357, %v4668, %v4670
        %v4682 = vsel %vm2357, %v4670, %v4672
        %v4683 = vsel %vm2357, %v4672, %v4674
        %v4684 = vsel %vm2357, %v4674, %v4676
        %4693 = vst [vmem:[#allocation2 + $0x5c0] sm:$0xff] %v4677
        %4694 = vst [vmem:[#allocation2 + $0x5c8] sm:$0xff] %v4678
        %4695 = vst [vmem:[#allocation2 + $0x5d0] sm:$0xff] %v4679
        %4696 = vst [vmem:[#allocation2 + $0x5d8] sm:$0xff] %v4680
        %4697 = vst [vmem:[#allocation2 + $0x5e0] sm:$0xff] %v4681
        %4698 = vst [vmem:[#allocation2 + $0x5e8] sm:$0xff] %v4682
        %4699 = vst [vmem:[#allocation2 + $0x5f0] sm:$0xff] %v4683
        %4700 = vst.msk [vmem:[#allocation2 + $0x5f8] sm:$0xff] %vm318, %v4684
        %v4701 = vld [vmem:[#allocation3 + $0x8] sm:$0xff]
        %v4702 = vld [vmem:[#allocation3 + $0x10] sm:$0xff]
        %v4703 = vld [vmem:[#allocation3 + $0x18] sm:$0xff]
        %v4704 = vld [vmem:[#allocation3 + $0x20] sm:$0xff]
        %v4705 = vld [vmem:[#allocation3 + $0x28] sm:$0xff]
        %v4706 = vld [vmem:[#allocation3 + $0x30] sm:$0xff]
        %v4707 = vld [vmem:[#allocation3 + $0x38] sm:$0xff]
        %v4708 = vld [vmem:[#allocation3 + $0x40] sm:$0xff]
        %v4709 = vld [vmem:[#allocation3 + $0x48] sm:$0xff]
        %4719 = vrot.lane.b32.xlu0 %v4701, 19
        %v4720 = vpop.permute.xlu0 %4719
        %4721 = vrot.lane.b32.xlu0 %v4702, 19
        %v4722 = vpop.permute.xlu0 %4721
        %4723 = vrot.lane.b32.xlu0 %v4703, 19
        %v4724 = vpop.permute.xlu0 %4723
        %4725 = vrot.lane.b32.xlu0 %v4704, 19
        %v4726 = vpop.permute.xlu0 %4725
        %4727 = vrot.lane.b32.xlu0 %v4705, 19
        %v4728 = vpop.permute.xlu0 %4727
        %4729 = vrot.lane.b32.xlu0 %v4706, 19
        %v4730 = vpop.permute.xlu0 %4729
        %4731 = vrot.lane.b32.xlu0 %v4707, 19
        %v4732 = vpop.permute.xlu0 %4731
        %4733 = vrot.lane.b32.xlu0 %v4708, 19
        %v4734 = vpop.permute.xlu0 %4733
        %4735 = vrot.lane.b32.xlu0 %v4709, 19
        %v4736 = vpop.permute.xlu0 %4735
        %v4737 = vsel %vm2447, %v4720, %v4722
        %v4738 = vsel %vm2447, %v4722, %v4724
        %v4739 = vsel %vm2447, %v4724, %v4726
        %v4740 = vsel %vm2447, %v4726, %v4728
        %v4741 = vsel %vm2447, %v4728, %v4730
        %v4742 = vsel %vm2447, %v4730, %v4732
        %v4743 = vsel %vm2447, %v4732, %v4734
        %v4744 = vsel %vm2447, %v4734, %v4736
        %4753 = vst [vmem:[#allocation2 + $0x600] sm:$0xff] %v4737
        %4754 = vst [vmem:[#allocation2 + $0x608] sm:$0xff] %v4738
        %4755 = vst [vmem:[#allocation2 + $0x610] sm:$0xff] %v4739
        %4756 = vst [vmem:[#allocation2 + $0x618] sm:$0xff] %v4740
        %4757 = vst [vmem:[#allocation2 + $0x620] sm:$0xff] %v4741
        %4758 = vst [vmem:[#allocation2 + $0x628] sm:$0xff] %v4742
        %4759 = vst [vmem:[#allocation2 + $0x630] sm:$0xff] %v4743
        %4760 = vst.msk [vmem:[#allocation2 + $0x638] sm:$0xff] %vm318, %v4744
        %v4761 = vld [vmem:[#allocation3 + $0x8] sm:$0xff]
        %v4762 = vld [vmem:[#allocation3 + $0x10] sm:$0xff]
        %v4763 = vld [vmem:[#allocation3 + $0x18] sm:$0xff]
        %v4764 = vld [vmem:[#allocation3 + $0x20] sm:$0xff]
        %v4765 = vld [vmem:[#allocation3 + $0x28] sm:$0xff]
        %v4766 = vld [vmem:[#allocation3 + $0x30] sm:$0xff]
        %v4767 = vld [vmem:[#allocation3 + $0x38] sm:$0xff]
        %v4768 = vld [vmem:[#allocation3 + $0x40] sm:$0xff]
        %v4769 = vld [vmem:[#allocation3 + $0x48] sm:$0xff]
        %4779 = vrot.lane.b32.xlu0 %v4761, 18
        %v4780 = vpop.permute.xlu0 %4779
        %4781 = vrot.lane.b32.xlu0 %v4762, 18
        %v4782 = vpop.permute.xlu0 %4781
        %4783 = vrot.lane.b32.xlu0 %v4763, 18
        %v4784 = vpop.permute.xlu0 %4783
        %4785 = vrot.lane.b32.xlu0 %v4764, 18
        %v4786 = vpop.permute.xlu0 %4785
        %4787 = vrot.lane.b32.xlu0 %v4765, 18
        %v4788 = vpop.permute.xlu0 %4787
        %4789 = vrot.lane.b32.xlu0 %v4766, 18
        %v4790 = vpop.permute.xlu0 %4789
        %4791 = vrot.lane.b32.xlu0 %v4767, 18
        %v4792 = vpop.permute.xlu0 %4791
        %4793 = vrot.lane.b32.xlu0 %v4768, 18
        %v4794 = vpop.permute.xlu0 %4793
        %4795 = vrot.lane.b32.xlu0 %v4769, 18
        %v4796 = vpop.permute.xlu0 %4795
        %v4797 = vsel %vm2537, %v4780, %v4782
        %v4798 = vsel %vm2537, %v4782, %v4784
        %v4799 = vsel %vm2537, %v4784, %v4786
        %v4800 = vsel %vm2537, %v4786, %v4788
        %v4801 = vsel %vm2537, %v4788, %v4790
        %v4802 = vsel %vm2537, %v4790, %v4792
        %v4803 = vsel %vm2537, %v4792, %v4794
        %v4804 = vsel %vm2537, %v4794, %v4796
        %4813 = vst [vmem:[#allocation2 + $0x640] sm:$0xff] %v4797
        %4814 = vst [vmem:[#allocation2 + $0x648] sm:$0xff] %v4798
        %4815 = vst [vmem:[#allocation2 + $0x650] sm:$0xff] %v4799
        %4816 = vst [vmem:[#allocation2 + $0x658] sm:$0xff] %v4800
        %4817 = vst [vmem:[#allocation2 + $0x660] sm:$0xff] %v4801
        %4818 = vst [vmem:[#allocation2 + $0x668] sm:$0xff] %v4802
        %4819 = vst [vmem:[#allocation2 + $0x670] sm:$0xff] %v4803
        %4820 = vst.msk [vmem:[#allocation2 + $0x678] sm:$0xff] %vm318, %v4804
        %v4821 = vld [vmem:[#allocation3 + $0x8] sm:$0xff]
        %v4822 = vld [vmem:[#allocation3 + $0x10] sm:$0xff]
        %v4823 = vld [vmem:[#allocation3 + $0x18] sm:$0xff]
        %v4824 = vld [vmem:[#allocation3 + $0x20] sm:$0xff]
        %v4825 = vld [vmem:[#allocation3 + $0x28] sm:$0xff]
        %v4826 = vld [vmem:[#allocation3 + $0x30] sm:$0xff]
        %v4827 = vld [vmem:[#allocation3 + $0x38] sm:$0xff]
        %v4828 = vld [vmem:[#allocation3 + $0x40] sm:$0xff]
        %v4829 = vld [vmem:[#allocation3 + $0x48] sm:$0xff]
        %4839 = vrot.lane.b32.xlu0 %v4821, 17
        %v4840 = vpop.permute.xlu0 %4839
        %4841 = vrot.lane.b32.xlu0 %v4822, 17
        %v4842 = vpop.permute.xlu0 %4841
        %4843 = vrot.lane.b32.xlu0 %v4823, 17
        %v4844 = vpop.permute.xlu0 %4843
        %4845 = vrot.lane.b32.xlu0 %v4824, 17
        %v4846 = vpop.permute.xlu0 %4845
        %4847 = vrot.lane.b32.xlu0 %v4825, 17
        %v4848 = vpop.permute.xlu0 %4847
        %4849 = vrot.lane.b32.xlu0 %v4826, 17
        %v4850 = vpop.permute.xlu0 %4849
        %4851 = vrot.lane.b32.xlu0 %v4827, 17
        %v4852 = vpop.permute.xlu0 %4851
        %4853 = vrot.lane.b32.xlu0 %v4828, 17
        %v4854 = vpop.permute.xlu0 %4853
        %4855 = vrot.lane.b32.xlu0 %v4829, 17
        %v4856 = vpop.permute.xlu0 %4855
        %v4857 = vsel %vm2627, %v4840, %v4842
        %v4858 = vsel %vm2627, %v4842, %v4844
        %v4859 = vsel %vm2627, %v4844, %v4846
        %v4860 = vsel %vm2627, %v4846, %v4848
        %v4861 = vsel %vm2627, %v4848, %v4850
        %v4862 = vsel %vm2627, %v4850, %v4852
        %v4863 = vsel %vm2627, %v4852, %v4854
        %v4864 = vsel %vm2627, %v4854, %v4856
        %4873 = vst [vmem:[#allocation2 + $0x680] sm:$0xff] %v4857
        %4874 = vst [vmem:[#allocation2 + $0x688] sm:$0xff] %v4858
        %4875 = vst [vmem:[#allocation2 + $0x690] sm:$0xff] %v4859
        %4876 = vst [vmem:[#allocation2 + $0x698] sm:$0xff] %v4860
        %4877 = vst [vmem:[#allocation2 + $0x6a0] sm:$0xff] %v4861
        %4878 = vst [vmem:[#allocation2 + $0x6a8] sm:$0xff] %v4862
        %4879 = vst [vmem:[#allocation2 + $0x6b0] sm:$0xff] %v4863
        %4880 = vst.msk [vmem:[#allocation2 + $0x6b8] sm:$0xff] %vm318, %v4864
        %v4881 = vld [vmem:[#allocation10] sm:$0xff]
        %v4882 = vld [vmem:[#allocation10 + $0x8] sm:$0xff]
        %v4883 = vld [vmem:[#allocation10 + $0x10] sm:$0xff]
        %v4884 = vld [vmem:[#allocation10 + $0x18] sm:$0xff]
        %v4885 = vld [vmem:[#allocation2] sm:$0xff]
        %v4886 = vld [vmem:[#allocation2 + $0x8] sm:$0xff]
        %v4887 = vld [vmem:[#allocation2 + $0x10] sm:$0xff]
        %v4888 = vld [vmem:[#allocation2 + $0x18] sm:$0xff]
        %v4889 = vld [vmem:[#allocation2 + $0x20] sm:$0xff]
        %v4890 = vld [vmem:[#allocation2 + $0x28] sm:$0xff]
        %v4891 = vld [vmem:[#allocation2 + $0x30] sm:$0xff]
        %v4892 = vld [vmem:[#allocation2 + $0x38] sm:$0xff]
        %v4893 = vld [vmem:[#allocation2 + $0x40] sm:$0xff]
        %v4894 = vld [vmem:[#allocation2 + $0x48] sm:$0xff]
        %v4895 = vld [vmem:[#allocation2 + $0x50] sm:$0xff]
        %v4896 = vld [vmem:[#allocation2 + $0x58] sm:$0xff]
        %v4897 = vld [vmem:[#allocation2 + $0x60] sm:$0xff]
        %v4898 = vld [vmem:[#allocation2 + $0x68] sm:$0xff]
        %v4899 = vld [vmem:[#allocation2 + $0x70] sm:$0xff]
        %v4900 = vld [vmem:[#allocation2 + $0x78] sm:$0xff]
        %v4901 = vld [vmem:[#allocation2 + $0x80] sm:$0xff]
        %v4902 = vld [vmem:[#allocation2 + $0x88] sm:$0xff]
        %v4903 = vld [vmem:[#allocation2 + $0x90] sm:$0xff]
        %v4904 = vld [vmem:[#allocation2 + $0x98] sm:$0xff]
        %v4905 = vld [vmem:[#allocation2 + $0xa0] sm:$0xff]
        %v4906 = vld [vmem:[#allocation2 + $0xa8] sm:$0xff]
        %v4907 = vld [vmem:[#allocation2 + $0xb0] sm:$0xff]
        %v4908 = vld [vmem:[#allocation2 + $0xb8] sm:$0xff]
        %v4909 = vld [vmem:[#allocation2 + $0xc0] sm:$0xff]
        %v4910 = vld [vmem:[#allocation2 + $0xc8] sm:$0xff]
        %v4911 = vld [vmem:[#allocation2 + $0xd0] sm:$0xff]
        %v4912 = vld [vmem:[#allocation2 + $0xd8] sm:$0xff]
        %v4913 = vld [vmem:[#allocation2 + $0xe0] sm:$0xff]
        %v4914 = vld [vmem:[#allocation2 + $0xe8] sm:$0xff]
        %v4915 = vld [vmem:[#allocation2 + $0xf0] sm:$0xff]
        %v4916 = vld [vmem:[#allocation2 + $0xf8] sm:$0xff]
        %v4917 = vld [vmem:[#allocation2 + $0x100] sm:$0xff]
        %v4918 = vld [vmem:[#allocation2 + $0x108] sm:$0xff]
        %v4919 = vld [vmem:[#allocation2 + $0x110] sm:$0xff]
        %v4920 = vld [vmem:[#allocation2 + $0x118] sm:$0xff]
        %v4921 = vld [vmem:[#allocation2 + $0x120] sm:$0xff]
        %v4922 = vld [vmem:[#allocation2 + $0x128] sm:$0xff]
        %v4923 = vld [vmem:[#allocation2 + $0x130] sm:$0xff]
        %v4924 = vld [vmem:[#allocation2 + $0x138] sm:$0xff]
        %v4925 = vld [vmem:[#allocation2 + $0x140] sm:$0xff]
        %v4926 = vld [vmem:[#allocation2 + $0x148] sm:$0xff]
        %v4927 = vld [vmem:[#allocation2 + $0x150] sm:$0xff]
        %v4928 = vld [vmem:[#allocation2 + $0x158] sm:$0xff]
        %v4929 = vld [vmem:[#allocation2 + $0x160] sm:$0xff]
        %v4930 = vld [vmem:[#allocation2 + $0x168] sm:$0xff]
        %v4931 = vld [vmem:[#allocation2 + $0x170] sm:$0xff]
        %v4932 = vld [vmem:[#allocation2 + $0x178] sm:$0xff]
        %v4933 = vld [vmem:[#allocation2 + $0x180] sm:$0xff]
        %v4934 = vld [vmem:[#allocation2 + $0x188] sm:$0xff]
        %v4935 = vld [vmem:[#allocation2 + $0x190] sm:$0xff]
        %v4936 = vld [vmem:[#allocation2 + $0x198] sm:$0xff]
        %v4937 = vld [vmem:[#allocation2 + $0x1a0] sm:$0xff]
        %v4938 = vld [vmem:[#allocation2 + $0x1a8] sm:$0xff]
        %v4939 = vld [vmem:[#allocation2 + $0x1b0] sm:$0xff]
        %v4940 = vld [vmem:[#allocation2 + $0x1b8] sm:$0xff]
        %v4941 = vld [vmem:[#allocation2 + $0x1c0] sm:$0xff]
        %v4942 = vld [vmem:[#allocation2 + $0x1c8] sm:$0xff]
        %v4943 = vld [vmem:[#allocation2 + $0x1d0] sm:$0xff]
        %v4944 = vld [vmem:[#allocation2 + $0x1d8] sm:$0xff]
        %v4945 = vld [vmem:[#allocation2 + $0x1e0] sm:$0xff]
        %v4946 = vld [vmem:[#allocation2 + $0x1e8] sm:$0xff]
        %v4947 = vld [vmem:[#allocation2 + $0x1f0] sm:$0xff]
        %v4948 = vld [vmem:[#allocation2 + $0x1f8] sm:$0xff]
        %v4949 = vld [vmem:[#allocation2 + $0x200] sm:$0xff]
        %v4950 = vld [vmem:[#allocation2 + $0x208] sm:$0xff]
        %v4951 = vld [vmem:[#allocation2 + $0x210] sm:$0xff]
        %v4952 = vld [vmem:[#allocation2 + $0x218] sm:$0xff]
        %v4953 = vld [vmem:[#allocation2 + $0x220] sm:$0xff]
        %v4954 = vld [vmem:[#allocation2 + $0x228] sm:$0xff]
        %v4955 = vld [vmem:[#allocation2 + $0x230] sm:$0xff]
        %v4956 = vld [vmem:[#allocation2 + $0x238] sm:$0xff]
        %v4957 = vld [vmem:[#allocation2 + $0x240] sm:$0xff]
        %v4958 = vld [vmem:[#allocation2 + $0x248] sm:$0xff]
        %v4959 = vld [vmem:[#allocation2 + $0x250] sm:$0xff]
        %v4960 = vld [vmem:[#allocation2 + $0x258] sm:$0xff]
        %v4961 = vld [vmem:[#allocation2 + $0x260] sm:$0xff]
        %v4962 = vld [vmem:[#allocation2 + $0x268] sm:$0xff]
        %v4963 = vld [vmem:[#allocation2 + $0x270] sm:$0xff]
        %v4964 = vld [vmem:[#allocation2 + $0x278] sm:$0xff]
        %v4965 = vld [vmem:[#allocation2 + $0x280] sm:$0xff]
        %v4966 = vld [vmem:[#allocation2 + $0x288] sm:$0xff]
        %v4967 = vld [vmem:[#allocation2 + $0x290] sm:$0xff]
        %v4968 = vld [vmem:[#allocation2 + $0x298] sm:$0xff]
        %v4969 = vld [vmem:[#allocation2 + $0x2a0] sm:$0xff]
        %v4970 = vld [vmem:[#allocation2 + $0x2a8] sm:$0xff]
        %v4971 = vld [vmem:[#allocation2 + $0x2b0] sm:$0xff]
        %v4972 = vld [vmem:[#allocation2 + $0x2b8] sm:$0xff]
        %v4973 = vld [vmem:[#allocation2 + $0x2c0] sm:$0xff]
        %v4974 = vld [vmem:[#allocation2 + $0x2c8] sm:$0xff]
        %v4975 = vld [vmem:[#allocation2 + $0x2d0] sm:$0xff]
        %v4976 = vld [vmem:[#allocation2 + $0x2d8] sm:$0xff]
        %v4977 = vld [vmem:[#allocation2 + $0x2e0] sm:$0xff]
        %v4978 = vld [vmem:[#allocation2 + $0x2e8] sm:$0xff]
        %v4979 = vld [vmem:[#allocation2 + $0x2f0] sm:$0xff]
        %v4980 = vld [vmem:[#allocation2 + $0x2f8] sm:$0xff]
        %v4981 = vld [vmem:[#allocation2 + $0x300] sm:$0xff]
        %v4982 = vld [vmem:[#allocation2 + $0x308] sm:$0xff]
        %v4983 = vld [vmem:[#allocation2 + $0x310] sm:$0xff]
        %v4984 = vld [vmem:[#allocation2 + $0x318] sm:$0xff]
        %v4985 = vld [vmem:[#allocation2 + $0x320] sm:$0xff]
        %v4986 = vld [vmem:[#allocation2 + $0x328] sm:$0xff]
        %v4987 = vld [vmem:[#allocation2 + $0x330] sm:$0xff]
        %v4988 = vld [vmem:[#allocation2 + $0x338] sm:$0xff]
        %v4989 = vld [vmem:[#allocation2 + $0x340] sm:$0xff]
        %v4990 = vld [vmem:[#allocation2 + $0x348] sm:$0xff]
        %v4991 = vld [vmem:[#allocation2 + $0x350] sm:$0xff]
        %v4992 = vld [vmem:[#allocation2 + $0x358] sm:$0xff]
        %v4993 = vld [vmem:[#allocation2 + $0x360] sm:$0xff]
        %v4994 = vld [vmem:[#allocation2 + $0x368] sm:$0xff]
        %v4995 = vld [vmem:[#allocation2 + $0x370] sm:$0xff]
        %v4996 = vld [vmem:[#allocation2 + $0x378] sm:$0xff]
        %v4997 = vld [vmem:[#allocation2 + $0x380] sm:$0xff]
        %v4998 = vld [vmem:[#allocation2 + $0x388] sm:$0xff]
        %v4999 = vld [vmem:[#allocation2 + $0x390] sm:$0xff]
        %v5000 = vld [vmem:[#allocation2 + $0x398] sm:$0xff]
        %v5001 = vld [vmem:[#allocation2 + $0x3a0] sm:$0xff]
        %v5002 = vld [vmem:[#allocation2 + $0x3a8] sm:$0xff]
        %v5003 = vld [vmem:[#allocation2 + $0x3b0] sm:$0xff]
        %v5004 = vld [vmem:[#allocation2 + $0x3b8] sm:$0xff]
        %v5005 = vld [vmem:[#allocation2 + $0x3c0] sm:$0xff]
        %v5006 = vld [vmem:[#allocation2 + $0x3c8] sm:$0xff]
        %v5007 = vld [vmem:[#allocation2 + $0x3d0] sm:$0xff]
        %v5008 = vld [vmem:[#allocation2 + $0x3d8] sm:$0xff]
        %v5009 = vld [vmem:[#allocation2 + $0x3e0] sm:$0xff]
        %v5010 = vld [vmem:[#allocation2 + $0x3e8] sm:$0xff]
        %v5011 = vld [vmem:[#allocation2 + $0x3f0] sm:$0xff]
        %v5012 = vld [vmem:[#allocation2 + $0x3f8] sm:$0xff]
        %v5013 = vld [vmem:[#allocation2 + $0x400] sm:$0xff]
        %v5014 = vld [vmem:[#allocation2 + $0x408] sm:$0xff]
        %v5015 = vld [vmem:[#allocation2 + $0x410] sm:$0xff]
        %v5016 = vld [vmem:[#allocation2 + $0x418] sm:$0xff]
        %v5017 = vld [vmem:[#allocation2 + $0x420] sm:$0xff]
        %v5018 = vld [vmem:[#allocation2 + $0x428] sm:$0xff]
        %v5019 = vld [vmem:[#allocation2 + $0x430] sm:$0xff]
        %v5020 = vld [vmem:[#allocation2 + $0x438] sm:$0xff]
        %v5021 = vld [vmem:[#allocation2 + $0x440] sm:$0xff]
        %v5022 = vld [vmem:[#allocation2 + $0x448] sm:$0xff]
        %v5023 = vld [vmem:[#allocation2 + $0x450] sm:$0xff]
        %v5024 = vld [vmem:[#allocation2 + $0x458] sm:$0xff]
        %v5025 = vld [vmem:[#allocation2 + $0x460] sm:$0xff]
        %v5026 = vld [vmem:[#allocation2 + $0x468] sm:$0xff]
        %v5027 = vld [vmem:[#allocation2 + $0x470] sm:$0xff]
        %v5028 = vld [vmem:[#allocation2 + $0x478] sm:$0xff]
        %v5029 = vld [vmem:[#allocation2 + $0x480] sm:$0xff]
        %v5030 = vld [vmem:[#allocation2 + $0x488] sm:$0xff]
        %v5031 = vld [vmem:[#allocation2 + $0x490] sm:$0xff]
        %v5032 = vld [vmem:[#allocation2 + $0x498] sm:$0xff]
        %v5033 = vld [vmem:[#allocation2 + $0x4a0] sm:$0xff]
        %v5034 = vld [vmem:[#allocation2 + $0x4a8] sm:$0xff]
        %v5035 = vld [vmem:[#allocation2 + $0x4b0] sm:$0xff]
        %v5036 = vld [vmem:[#allocation2 + $0x4b8] sm:$0xff]
        %v5037 = vld [vmem:[#allocation2 + $0x4c0] sm:$0xff]
        %v5038 = vld [vmem:[#allocation2 + $0x4c8] sm:$0xff]
        %v5039 = vld [vmem:[#allocation2 + $0x4d0] sm:$0xff]
        %v5040 = vld [vmem:[#allocation2 + $0x4d8] sm:$0xff]
        %v5041 = vld [vmem:[#allocation2 + $0x4e0] sm:$0xff]
        %v5042 = vld [vmem:[#allocation2 + $0x4e8] sm:$0xff]
        %v5043 = vld [vmem:[#allocation2 + $0x4f0] sm:$0xff]
        %v5044 = vld [vmem:[#allocation2 + $0x4f8] sm:$0xff]
        %v5045 = vld [vmem:[#allocation2 + $0x500] sm:$0xff]
        %v5046 = vld [vmem:[#allocation2 + $0x508] sm:$0xff]
        %v5047 = vld [vmem:[#allocation2 + $0x510] sm:$0xff]
        %v5048 = vld [vmem:[#allocation2 + $0x518] sm:$0xff]
        %v5049 = vld [vmem:[#allocation2 + $0x520] sm:$0xff]
        %v5050 = vld [vmem:[#allocation2 + $0x528] sm:$0xff]
        %v5051 = vld [vmem:[#allocation2 + $0x530] sm:$0xff]
        %v5052 = vld [vmem:[#allocation2 + $0x538] sm:$0xff]
        %v5053 = vld [vmem:[#allocation2 + $0x540] sm:$0xff]
        %v5054 = vld [vmem:[#allocation2 + $0x548] sm:$0xff]
        %v5055 = vld [vmem:[#allocation2 + $0x550] sm:$0xff]
        %v5056 = vld [vmem:[#allocation2 + $0x558] sm:$0xff]
        %v5057 = vld [vmem:[#allocation2 + $0x560] sm:$0xff]
        %v5058 = vld [vmem:[#allocation2 + $0x568] sm:$0xff]
        %v5059 = vld [vmem:[#allocation2 + $0x570] sm:$0xff]
        %v5060 = vld [vmem:[#allocation2 + $0x578] sm:$0xff]
        %v5061 = vld [vmem:[#allocation2 + $0x580] sm:$0xff]
        %v5062 = vld [vmem:[#allocation2 + $0x588] sm:$0xff]
        %v5063 = vld [vmem:[#allocation2 + $0x590] sm:$0xff]
        %v5064 = vld [vmem:[#allocation2 + $0x598] sm:$0xff]
        %v5065 = vld [vmem:[#allocation2 + $0x5a0] sm:$0xff]
        %v5066 = vld [vmem:[#allocation2 + $0x5a8] sm:$0xff]
        %v5067 = vld [vmem:[#allocation2 + $0x5b0] sm:$0xff]
        %v5068 = vld [vmem:[#allocation2 + $0x5b8] sm:$0xff]
        %v5069 = vld [vmem:[#allocation2 + $0x5c0] sm:$0xff]
        %v5070 = vld [vmem:[#allocation2 + $0x5c8] sm:$0xff]
        %v5071 = vld [vmem:[#allocation2 + $0x5d0] sm:$0xff]
        %v5072 = vld [vmem:[#allocation2 + $0x5d8] sm:$0xff]
        %v5073 = vld [vmem:[#allocation2 + $0x5e0] sm:$0xff]
        %v5074 = vld [vmem:[#allocation2 + $0x5e8] sm:$0xff]
        %v5075 = vld [vmem:[#allocation2 + $0x5f0] sm:$0xff]
        %v5076 = vld [vmem:[#allocation2 + $0x5f8] sm:$0xff]
        %v5077 = vld [vmem:[#allocation2 + $0x600] sm:$0xff]
        %v5078 = vld [vmem:[#allocation2 + $0x608] sm:$0xff]
        %v5079 = vld [vmem:[#allocation2 + $0x610] sm:$0xff]
        %v5080 = vld [vmem:[#allocation2 + $0x618] sm:$0xff]
        %v5081 = vld [vmem:[#allocation2 + $0x620] sm:$0xff]
        %v5082 = vld [vmem:[#allocation2 + $0x628] sm:$0xff]
        %v5083 = vld [vmem:[#allocation2 + $0x630] sm:$0xff]
        %v5084 = vld [vmem:[#allocation2 + $0x638] sm:$0xff]
        %v5085 = vld [vmem:[#allocation2 + $0x640] sm:$0xff]
        %v5086 = vld [vmem:[#allocation2 + $0x648] sm:$0xff]
        %v5087 = vld [vmem:[#allocation2 + $0x650] sm:$0xff]
        %v5088 = vld [vmem:[#allocation2 + $0x658] sm:$0xff]
        %v5089 = vld [vmem:[#allocation2 + $0x660] sm:$0xff]
        %v5090 = vld [vmem:[#allocation2 + $0x668] sm:$0xff]
        %v5091 = vld [vmem:[#allocation2 + $0x670] sm:$0xff]
        %v5092 = vld [vmem:[#allocation2 + $0x678] sm:$0xff]
        %v5093 = vld [vmem:[#allocation2 + $0x680] sm:$0xff]
        %v5094 = vld [vmem:[#allocation2 + $0x688] sm:$0xff]
        %v5095 = vld [vmem:[#allocation2 + $0x690] sm:$0xff]
        %v5096 = vld [vmem:[#allocation2 + $0x698] sm:$0xff]
        %v5097 = vld [vmem:[#allocation2 + $0x6a0] sm:$0xff]
        %v5098 = vld [vmem:[#allocation2 + $0x6a8] sm:$0xff]
        %v5099 = vld [vmem:[#allocation2 + $0x6b0] sm:$0xff]
        %v5100 = vld [vmem:[#allocation2 + $0x6b8] sm:$0xff]
        %5102 = vset.pattern.permute.xlu0 1
        %5103 = vperm.xlu0 %5102, %v3338
        %v5104 = vpop.permute.xlu0 %5103
        %5107 = vset.pattern.permute.xlu0 1
        %5108 = vperm.xlu0 %5107, %v3339
        %v5109 = vpop.permute.xlu0 %5108
        %v5115 = vunpack.c.l.b16 %v4881
        %v5116 = vunpack.c.h.b16 %v4881
        %v5117 = vunpack.c.l.b16 %v4882
        %v5118 = vunpack.c.h.b16 %v4882
        %v5119 = vunpack.c.l.b16 %v4883
        %v5120 = vunpack.c.h.b16 %v4883
        %v5121 = vunpack.c.l.b16 %v4884
        %v5122 = vunpack.c.h.b16 %v4884
        %v5123 = vpack.c.b16 %v5119, %v5115
        %v5124 = vpack.c.b16 %v5120, %v5116
        %v5125 = vpack.c.b16 %v5121, %v5117
        %v5126 = vpack.c.b16 %v5122, %v5118
        %v5131 = vsel %vm2901, %v5126, 0
        %5133 = vmatprep.subr.bf16.mxu0 %v4886
        %5134 = vmatpush1.bf16.msra.mxu0 %v4885
        %5135 = vmatprep.subr.bf16.mxu0 %v4894
        %5136 = vmatpush1.bf16.msra.mxu0 %v4893
        %5137 = vmatprep.subr.bf16.mxu0 %v4902
        %5138 = vmatpush1.bf16.msra.mxu0 %v4901
        %5139 = vmatprep.subr.bf16.mxu0 %v4910
        %5140 = vmatpush1.bf16.msra.mxu0 %v4909
        %5141 = vmatprep.subr.bf16.mxu0 %v4918
        %5142 = vmatpush1.bf16.msra.mxu0 %v4917
        %5143 = vmatprep.subr.bf16.mxu0 %v4926
        %5144 = vmatpush1.bf16.msra.mxu0 %v4925
        %5145 = vmatprep.subr.bf16.mxu0 %v4934
        %5146 = vmatpush1.bf16.msra.mxu0 %v4933
        %5147 = vmatprep.subr.bf16.mxu0 %v4942
        %5148 = vmatpush1.bf16.msra.mxu0 %v4941
        %5149 = vmatprep.subr.bf16.mxu0 %v4950
        %5150 = vmatpush1.bf16.msra.mxu0 %v4949
        %5151 = vmatprep.subr.bf16.mxu0 %v4958
        %5152 = vmatpush1.bf16.msra.mxu0 %v4957
        %5153 = vmatprep.subr.bf16.mxu0 %v4966
        %5154 = vmatpush1.bf16.msra.mxu0 %v4965
        %5155 = vmatprep.subr.bf16.mxu0 %v4974
        %5156 = vmatpush1.bf16.msra.mxu0 %v4973
        %5157 = vmatprep.subr.bf16.mxu0 %v4982
        %5158 = vmatpush1.bf16.msra.mxu0 %v4981
        %5159 = vmatprep.subr.bf16.mxu0 %v4990
        %5160 = vmatpush1.bf16.msra.mxu0 %v4989
        %5161 = vmatprep.subr.bf16.mxu0 %v4998
        %5162 = vmatpush1.bf16.msra.mxu0 %v4997
        %5163 = vmatprep.subr.bf16.mxu0 %v5006
        %5164 = vmatpush1.bf16.msra.mxu0 %v5005
        %5165 = vmatprep.mubr.bf16.mxu0 %v5124
        %5166 = vmatmul.mubr.bf16.gmra.mrb[0].mxu0 %v5123
        %v5167 = vpop.f32.mrb[0].mxu0
        %v5168 = vadd.f32 %v5104, %v5167
        %v5169 = vpop.f32.mrb[0].mxu0
        %v5170 = vadd.f32 %v5104, %v5169
        %v5171 = vpop.f32.mrb[0].mxu0
        %v5172 = vadd.f32 %v5109, %v5171
        %v5173 = vpop.f32.mrb[0].mxu0
        %v5174 = vadd.f32 %v5109, %v5173
        %5175 = vdwg.mxu0
        %5176 = vmatprep.subr.bf16.mxu0 %v5014
        %5177 = vmatpush1.bf16.msra.mxu0 %v5013
        %5178 = vmatprep.subr.bf16.mxu0 %v5022
        %5179 = vmatpush1.bf16.msra.mxu0 %v5021
        %5180 = vmatprep.subr.bf16.mxu0 %v5030
        %5181 = vmatpush1.bf16.msra.mxu0 %v5029
        %5182 = vmatprep.subr.bf16.mxu0 %v5038
        %5183 = vmatpush1.bf16.msra.mxu0 %v5037
        %5184 = vmatprep.subr.bf16.mxu0 %v5046
        %5185 = vmatpush1.bf16.msra.mxu0 %v5045
        %5186 = vmatprep.subr.bf16.mxu0 %v5054
        %5187 = vmatpush1.bf16.msra.mxu0 %v5053
        %5188 = vmatprep.subr.bf16.mxu0 %v5062
        %5189 = vmatpush1.bf16.msra.mxu0 %v5061
        %5190 = vmatprep.subr.bf16.mxu0 %v5070
        %5191 = vmatpush1.bf16.msra.mxu0 %v5069
        %5192 = vmatprep.subr.bf16.mxu0 %v5078
        %5193 = vmatpush1.bf16.msra.mxu0 %v5077
        %5194 = vmatprep.subr.bf16.mxu0 %v5086
        %5195 = vmatpush1.bf16.msra.mxu0 %v5085
        %5196 = vmatprep.subr.bf16.mxu0 %v5094
        %5197 = vmatpush1.bf16.msra.mxu0 %v5093
        %5198 = vmatprep.subr.bf16.mxu0 0
        %5199 = vmatpush1.bf16.msra.mxu0 0
        %5200 = vmatprep.subr.bf16.mxu0 0
        %5201 = vmatpush1.bf16.msra.mxu0 0
        %5202 = vmatprep.subr.bf16.mxu0 0
        %5203 = vmatpush1.bf16.msra.mxu0 0
        %5204 = vmatprep.subr.bf16.mxu0 0
        %5205 = vmatpush1.bf16.msra.mxu0 0
        %5206 = vmatprep.subr.bf16.mxu0 0
        %5207 = vmatpush1.bf16.msra.mxu0 0
        %5208 = vmatprep.mubr.bf16.mxu0 %v5131
        %5209 = vmatmul.mubr.bf16.gmra.mrb[0].mxu0 %v5125
        %v5210 = vpop.f32.mrb[0].mxu0
        %v5211 = vadd.f32 %v5168, %v5210
        %v5212 = vpop.f32.mrb[0].mxu0
        %v5213 = vadd.f32 %v5170, %v5212
        %v5214 = vpop.f32.mrb[0].mxu0
        %v5215 = vadd.f32 %v5172, %v5214
        %v5216 = vpop.f32.mrb[0].mxu0
        %v5217 = vadd.f32 %v5174, %v5216
        %5218 = vdwg.mxu0
        %5219 = vmatprep.subr.bf16.mxu0 %v4888
        %5220 = vmatpush1.bf16.msra.mxu0 %v4887
        %5221 = vmatprep.subr.bf16.mxu0 %v4896
        %5222 = vmatpush1.bf16.msra.mxu0 %v4895
        %5223 = vmatprep.subr.bf16.mxu0 %v4904
        %5224 = vmatpush1.bf16.msra.mxu0 %v4903
        %5225 = vmatprep.subr.bf16.mxu0 %v4912
        %5226 = vmatpush1.bf16.msra.mxu0 %v4911
        %5227 = vmatprep.subr.bf16.mxu0 %v4920
        %5228 = vmatpush1.bf16.msra.mxu0 %v4919
        %5229 = vmatprep.subr.bf16.mxu0 %v4928
        %5230 = vmatpush1.bf16.msra.mxu0 %v4927
        %5231 = vmatprep.subr.bf16.mxu0 %v4936
        %5232 = vmatpush1.bf16.msra.mxu0 %v4935
        %5233 = vmatprep.subr.bf16.mxu0 %v4944
        %5234 = vmatpush1.bf16.msra.mxu0 %v4943
        %5235 = vmatprep.subr.bf16.mxu0 %v4952
        %5236 = vmatpush1.bf16.msra.mxu0 %v4951
        %5237 = vmatprep.subr.bf16.mxu0 %v4960
        %5238 = vmatpush1.bf16.msra.mxu0 %v4959
        %5239 = vmatprep.subr.bf16.mxu0 %v4968
        %5240 = vmatpush1.bf16.msra.mxu0 %v4967
        %5241 = vmatprep.subr.bf16.mxu0 %v4976
        %5242 = vmatpush1.bf16.msra.mxu0 %v4975
        %5243 = vmatprep.subr.bf16.mxu0 %v4984
        %5244 = vmatpush1.bf16.msra.mxu0 %v4983
        %5245 = vmatprep.subr.bf16.mxu0 %v4992
        %5246 = vmatpush1.bf16.msra.mxu0 %v4991
        %5247 = vmatprep.subr.bf16.mxu0 %v5000
        %5248 = vmatpush1.bf16.msra.mxu0 %v4999
        %5249 = vmatprep.subr.bf16.mxu0 %v5008
        %5250 = vmatpush1.bf16.msra.mxu0 %v5007
        %5251 = vmatprep.mubr.bf16.mxu0 %v5124
        %5252 = vmatmul.mubr.bf16.gmra.mrb[0].mxu0 %v5123
        %v5253 = vpop.f32.mrb[0].mxu0
        %v5254 = vadd.f32 %v5104, %v5253
        %v5255 = vpop.f32.mrb[0].mxu0
        %v5256 = vadd.f32 %v5104, %v5255
        %v5257 = vpop.f32.mrb[0].mxu0
        %v5258 = vadd.f32 %v5109, %v5257
        %v5259 = vpop.f32.mrb[0].mxu0
        %v5260 = vadd.f32 %v5109, %v5259
        %5261 = vdwg.mxu0
        %5262 = vmatprep.subr.bf16.mxu0 %v5016
        %5263 = vmatpush1.bf16.msra.mxu0 %v5015
        %5264 = vmatprep.subr.bf16.mxu0 %v5024
        %5265 = vmatpush1.bf16.msra.mxu0 %v5023
        %5266 = vmatprep.subr.bf16.mxu0 %v5032
        %5267 = vmatpush1.bf16.msra.mxu0 %v5031
        %5268 = vmatprep.subr.bf16.mxu0 %v5040
        %5269 = vmatpush1.bf16.msra.mxu0 %v5039
        %5270 = vmatprep.subr.bf16.mxu0 %v5048
        %5271 = vmatpush1.bf16.msra.mxu0 %v5047
        %5272 = vmatprep.subr.bf16.mxu0 %v5056
        %5273 = vmatpush1.bf16.msra.mxu0 %v5055
        %5274 = vmatprep.subr.bf16.mxu0 %v5064
        %5275 = vmatpush1.bf16.msra.mxu0 %v5063
        %5276 = vmatprep.subr.bf16.mxu0 %v5072
        %5277 = vmatpush1.bf16.msra.mxu0 %v5071
        %5278 = vmatprep.subr.bf16.mxu0 %v5080
        %5279 = vmatpush1.bf16.msra.mxu0 %v5079
        %5280 = vmatprep.subr.bf16.mxu0 %v5088
        %5281 = vmatpush1.bf16.msra.mxu0 %v5087
        %5282 = vmatprep.subr.bf16.mxu0 %v5096
        %5283 = vmatpush1.bf16.msra.mxu0 %v5095
        %5284 = vmatprep.subr.bf16.mxu0 0
        %5285 = vmatpush1.bf16.msra.mxu0 0
        %5286 = vmatprep.subr.bf16.mxu0 0
        %5287 = vmatpush1.bf16.msra.mxu0 0
        %5288 = vmatprep.subr.bf16.mxu0 0
        %5289 = vmatpush1.bf16.msra.mxu0 0
        %5290 = vmatprep.subr.bf16.mxu0 0
        %5291 = vmatpush1.bf16.msra.mxu0 0
        %5292 = vmatprep.subr.bf16.mxu0 0
        %5293 = vmatpush1.bf16.msra.mxu0 0
        %5294 = vmatprep.mubr.bf16.mxu0 %v5131
        %5295 = vmatmul.mubr.bf16.gmra.mrb[0].mxu0 %v5125
        %v5296 = vpop.f32.mrb[0].mxu0
        %v5297 = vadd.f32 %v5254, %v5296
        %v5298 = vpop.f32.mrb[0].mxu0
        %v5299 = vadd.f32 %v5256, %v5298
        %v5300 = vpop.f32.mrb[0].mxu0
        %v5301 = vadd.f32 %v5258, %v5300
        %v5302 = vpop.f32.mrb[0].mxu0
        %v5303 = vadd.f32 %v5260, %v5302
        %5304 = vdwg.mxu0
        %5305 = vmatprep.subr.bf16.mxu0 %v4890
        %5306 = vmatpush1.bf16.msra.mxu0 %v4889
        %5307 = vmatprep.subr.bf16.mxu0 %v4898
        %5308 = vmatpush1.bf16.msra.mxu0 %v4897
        %5309 = vmatprep.subr.bf16.mxu0 %v4906
        %5310 = vmatpush1.bf16.msra.mxu0 %v4905
        %5311 = vmatprep.subr.bf16.mxu0 %v4914
        %5312 = vmatpush1.bf16.msra.mxu0 %v4913
        %5313 = vmatprep.subr.bf16.mxu0 %v4922
        %5314 = vmatpush1.bf16.msra.mxu0 %v4921
        %5315 = vmatprep.subr.bf16.mxu0 %v4930
        %5316 = vmatpush1.bf16.msra.mxu0 %v4929
        %5317 = vmatprep.subr.bf16.mxu0 %v4938
        %5318 = vmatpush1.bf16.msra.mxu0 %v4937
        %5319 = vmatprep.subr.bf16.mxu0 %v4946
        %5320 = vmatpush1.bf16.msra.mxu0 %v4945
        %5321 = vmatprep.subr.bf16.mxu0 %v4954
        %5322 = vmatpush1.bf16.msra.mxu0 %v4953
        %5323 = vmatprep.subr.bf16.mxu0 %v4962
        %5324 = vmatpush1.bf16.msra.mxu0 %v4961
        %5325 = vmatprep.subr.bf16.mxu0 %v4970
        %5326 = vmatpush1.bf16.msra.mxu0 %v4969
        %5327 = vmatprep.subr.bf16.mxu0 %v4978
        %5328 = vmatpush1.bf16.msra.mxu0 %v4977
        %5329 = vmatprep.subr.bf16.mxu0 %v4986
        %5330 = vmatpush1.bf16.msra.mxu0 %v4985
        %5331 = vmatprep.subr.bf16.mxu0 %v4994
        %5332 = vmatpush1.bf16.msra.mxu0 %v4993
        %5333 = vmatprep.subr.bf16.mxu0 %v5002
        %5334 = vmatpush1.bf16.msra.mxu0 %v5001
        %5335 = vmatprep.subr.bf16.mxu0 %v5010
        %5336 = vmatpush1.bf16.msra.mxu0 %v5009
        %5337 = vmatprep.mubr.bf16.mxu0 %v5124
        %5338 = vmatmul.mubr.bf16.gmra.mrb[0].mxu0 %v5123
        %v5339 = vpop.f32.mrb[0].mxu0
        %v5340 = vadd.f32 %v5104, %v5339
        %v5341 = vpop.f32.mrb[0].mxu0
        %v5342 = vadd.f32 %v5104, %v5341
        %v5343 = vpop.f32.mrb[0].mxu0
        %v5344 = vadd.f32 %v5109, %v5343
        %v5345 = vpop.f32.mrb[0].mxu0
        %v5346 = vadd.f32 %v5109, %v5345
        %5347 = vdwg.mxu0
        %5348 = vmatprep.subr.bf16.mxu0 %v5018
        %5349 = vmatpush1.bf16.msra.mxu0 %v5017
        %5350 = vmatprep.subr.bf16.mxu0 %v5026
        %5351 = vmatpush1.bf16.msra.mxu0 %v5025
        %5352 = vmatprep.subr.bf16.mxu0 %v5034
        %5353 = vmatpush1.bf16.msra.mxu0 %v5033
        %5354 = vmatprep.subr.bf16.mxu0 %v5042
        %5355 = vmatpush1.bf16.msra.mxu0 %v5041
        %5356 = vmatprep.subr.bf16.mxu0 %v5050
        %5357 = vmatpush1.bf16.msra.mxu0 %v5049
        %5358 = vmatprep.subr.bf16.mxu0 %v5058
        %5359 = vmatpush1.bf16.msra.mxu0 %v5057
        %5360 = vmatprep.subr.bf16.mxu0 %v5066
        %5361 = vmatpush1.bf16.msra.mxu0 %v5065
        %5362 = vmatprep.subr.bf16.mxu0 %v5074
        %5363 = vmatpush1.bf16.msra.mxu0 %v5073
        %5364 = vmatprep.subr.bf16.mxu0 %v5082
        %5365 = vmatpush1.bf16.msra.mxu0 %v5081
        %5366 = vmatprep.subr.bf16.mxu0 %v5090
        %5367 = vmatpush1.bf16.msra.mxu0 %v5089
        %5368 = vmatprep.subr.bf16.mxu0 %v5098
        %5369 = vmatpush1.bf16.msra.mxu0 %v5097
        %5370 = vmatprep.subr.bf16.mxu0 0
        %5371 = vmatpush1.bf16.msra.mxu0 0
        %5372 = vmatprep.subr.bf16.mxu0 0
        %5373 = vmatpush1.bf16.msra.mxu0 0
        %5374 = vmatprep.subr.bf16.mxu0 0
        %5375 = vmatpush1.bf16.msra.mxu0 0
        %5376 = vmatprep.subr.bf16.mxu0 0
        %5377 = vmatpush1.bf16.msra.mxu0 0
        %5378 = vmatprep.subr.bf16.mxu0 0
        %5379 = vmatpush1.bf16.msra.mxu0 0
        %5380 = vmatprep.mubr.bf16.mxu0 %v5131
        %5381 = vmatmul.mubr.bf16.gmra.mrb[0].mxu0 %v5125
        %v5382 = vpop.f32.mrb[0].mxu0
        %v5383 = vadd.f32 %v5340, %v5382
        %v5384 = vpop.f32.mrb[0].mxu0
        %v5385 = vadd.f32 %v5342, %v5384
        %v5386 = vpop.f32.mrb[0].mxu0
        %v5387 = vadd.f32 %v5344, %v5386
        %v5388 = vpop.f32.mrb[0].mxu0
        %v5389 = vadd.f32 %v5346, %v5388
        %5390 = vdwg.mxu0
        %5391 = vmatprep.subr.bf16.mxu0 %v4892
        %5392 = vmatpush1.bf16.msra.mxu0 %v4891
        %5393 = vmatprep.subr.bf16.mxu0 %v4900
        %5394 = vmatpush1.bf16.msra.mxu0 %v4899
        %5395 = vmatprep.subr.bf16.mxu0 %v4908
        %5396 = vmatpush1.bf16.msra.mxu0 %v4907
        %5397 = vmatprep.subr.bf16.mxu0 %v4916
        %5398 = vmatpush1.bf16.msra.mxu0 %v4915
        %5399 = vmatprep.subr.bf16.mxu0 %v4924
        %5400 = vmatpush1.bf16.msra.mxu0 %v4923
        %5401 = vmatprep.subr.bf16.mxu0 %v4932
        %5402 = vmatpush1.bf16.msra.mxu0 %v4931
        %5403 = vmatprep.subr.bf16.mxu0 %v4940
        %5404 = vmatpush1.bf16.msra.mxu0 %v4939
        %5405 = vmatprep.subr.bf16.mxu0 %v4948
        %5406 = vmatpush1.bf16.msra.mxu0 %v4947
        %5407 = vmatprep.subr.bf16.mxu0 %v4956
        %5408 = vmatpush1.bf16.msra.mxu0 %v4955
        %5409 = vmatprep.subr.bf16.mxu0 %v4964
        %5410 = vmatpush1.bf16.msra.mxu0 %v4963
        %5411 = vmatprep.subr.bf16.mxu0 %v4972
        %5412 = vmatpush1.bf16.msra.mxu0 %v4971
        %5413 = vmatprep.subr.bf16.mxu0 %v4980
        %5414 = vmatpush1.bf16.msra.mxu0 %v4979
        %5415 = vmatprep.subr.bf16.mxu0 %v4988
        %5416 = vmatpush1.bf16.msra.mxu0 %v4987
        %5417 = vmatprep.subr.bf16.mxu0 %v4996
        %5418 = vmatpush1.bf16.msra.mxu0 %v4995
        %5419 = vmatprep.subr.bf16.mxu0 %v5004
        %5420 = vmatpush1.bf16.msra.mxu0 %v5003
        %5421 = vmatprep.subr.bf16.mxu0 %v5012
        %5422 = vmatpush1.bf16.msra.mxu0 %v5011
        %5423 = vmatprep.mubr.bf16.mxu0 %v5124
        %5424 = vmatmul.mubr.bf16.gmra.mrb[0].mxu0 %v5123
        %v5425 = vpop.f32.mrb[0].mxu0
        %v5426 = vadd.f32 %v5104, %v5425
        %v5427 = vpop.f32.mrb[0].mxu0
        %v5428 = vadd.f32 %v5104, %v5427
        %v5429 = vpop.f32.mrb[0].mxu0
        %v5430 = vadd.f32 %v5109, %v5429
        %v5431 = vpop.f32.mrb[0].mxu0
        %v5432 = vadd.f32 %v5109, %v5431
        %5433 = vdwg.mxu0
        %5434 = vmatprep.subr.bf16.mxu0 %v5020
        %5435 = vmatpush1.bf16.msra.mxu0 %v5019
        %5436 = vmatprep.subr.bf16.mxu0 %v5028
        %5437 = vmatpush1.bf16.msra.mxu0 %v5027
        %5438 = vmatprep.subr.bf16.mxu0 %v5036
        %5439 = vmatpush1.bf16.msra.mxu0 %v5035
        %5440 = vmatprep.subr.bf16.mxu0 %v5044
        %5441 = vmatpush1.bf16.msra.mxu0 %v5043
        %5442 = vmatprep.subr.bf16.mxu0 %v5052
        %5443 = vmatpush1.bf16.msra.mxu0 %v5051
        %5444 = vmatprep.subr.bf16.mxu0 %v5060
        %5445 = vmatpush1.bf16.msra.mxu0 %v5059
        %5446 = vmatprep.subr.bf16.mxu0 %v5068
        %5447 = vmatpush1.bf16.msra.mxu0 %v5067
        %5448 = vmatprep.subr.bf16.mxu0 %v5076
        %5449 = vmatpush1.bf16.msra.mxu0 %v5075
        %5450 = vmatprep.subr.bf16.mxu0 %v5084
        %5451 = vmatpush1.bf16.msra.mxu0 %v5083
        %5452 = vmatprep.subr.bf16.mxu0 %v5092
        %5453 = vmatpush1.bf16.msra.mxu0 %v5091
        %5454 = vmatprep.subr.bf16.mxu0 %v5100
        %5455 = vmatpush1.bf16.msra.mxu0 %v5099
        %5456 = vmatprep.subr.bf16.mxu0 0
        %5457 = vmatpush1.bf16.msra.mxu0 0
        %5458 = vmatprep.subr.bf16.mxu0 0
        %5459 = vmatpush1.bf16.msra.mxu0 0
        %5460 = vmatprep.subr.bf16.mxu0 0
        %5461 = vmatpush1.bf16.msra.mxu0 0
        %5462 = vmatprep.subr.bf16.mxu0 0
        %5463 = vmatpush1.bf16.msra.mxu0 0
        %5464 = vmatprep.subr.bf16.mxu0 0
        %5465 = vmatpush1.bf16.msra.mxu0 0
        %5466 = vmatprep.mubr.bf16.mxu0 %v5131
        %5467 = vmatmul.mubr.bf16.gmra.mrb[0].mxu0 %v5125
        %v5468 = vpop.f32.mrb[0].mxu0
        %v5469 = vadd.f32 %v5426, %v5468
        %v5470 = vpop.f32.mrb[0].mxu0
        %v5471 = vadd.f32 %v5428, %v5470
        %v5472 = vpop.f32.mrb[0].mxu0
        %v5473 = vadd.f32 %v5430, %v5472
        %v5474 = vpop.f32.mrb[0].mxu0
        %v5475 = vadd.f32 %v5432, %v5474
        %5476 = vdwg.mxu0
        %v5477 = vmax.f32 %v5211, 0.0
        %v5478 = vmax.f32 %v5213, 0.0
        %v5479 = vmax.f32 %v5297, 0.0
        %v5480 = vmax.f32 %v5299, 0.0
        %v5481 = vmax.f32 %v5383, 0.0
        %v5482 = vmax.f32 %v5385, 0.0
        %v5483 = vmax.f32 %v5469, 0.0
        %v5484 = vmax.f32 %v5471, 0.0
        %v5485 = vmax.f32 %v5215, 0.0
        %v5486 = vmax.f32 %v5217, 0.0
        %v5487 = vmax.f32 %v5301, 0.0
        %v5488 = vmax.f32 %v5303, 0.0
        %v5489 = vmax.f32 %v5387, 0.0
        %v5490 = vmax.f32 %v5389, 0.0
        %v5491 = vmax.f32 %v5473, 0.0
        %v5492 = vmax.f32 %v5475, 0.0
        %v5493 = vmul.f32 %v5477, %v3269
        %v5494 = vmul.f32 %v5478, %v3273
        %v5495 = vmul.f32 %v5479, %v3277
        %v5496 = vmul.f32 %v5480, %v3281
        %v5497 = vmul.f32 %v5481, %v3285
        %v5498 = vmul.f32 %v5482, %v3289
        %v5499 = vmul.f32 %v5483, %v3293
        %v5500 = vmul.f32 %v5484, %v3297
        %v5501 = vmul.f32 %v5485, %v3269
        %v5502 = vmul.f32 %v5486, %v3273
        %v5503 = vmul.f32 %v5487, %v3277
        %v5504 = vmul.f32 %v5488, %v3281
        %v5505 = vmul.f32 %v5489, %v3285
        %v5506 = vmul.f32 %v5490, %v3289
        %v5507 = vmul.f32 %v5491, %v3293
        %v5508 = vmul.f32 %v5492, %v3297
        %v5509 = vpack.c.bf16 %v5501, %v5493
        %v5510 = vpack.c.bf16 %v5502, %v5494
        %v5511 = vpack.c.bf16 %v5503, %v5495
        %v5512 = vpack.c.bf16 %v5504, %v5496
        %v5513 = vpack.c.bf16 %v5505, %v5497
        %v5514 = vpack.c.bf16 %v5506, %v5498
        %v5515 = vpack.c.bf16 %v5507, %v5499
        %v5516 = vpack.c.bf16 %v5508, %v5500
        %5517 = vst [vmem:[#allocation4 + $0x8] sm:$0xff] %v5509
        %5518 = vst [vmem:[#allocation4 + $0x10] sm:$0xff] %v5510
        %5519 = vst [vmem:[#allocation4 + $0x18] sm:$0xff] %v5511
        %5520 = vst [vmem:[#allocation4 + $0x20] sm:$0xff] %v5512
        %5521 = vst [vmem:[#allocation4 + $0x28] sm:$0xff] %v5513
        %5522 = vst [vmem:[#allocation4 + $0x30] sm:$0xff] %v5514
        %5523 = vst [vmem:[#allocation4 + $0x38] sm:$0xff] %v5515
        %5524 = vst.msk [vmem:[#allocation4 + $0x40] sm:$0xff] %vm318, %v5516
        %v5525 = vld [vmem:[%s4] sm:$0xff]
        %v5526 = vld [vmem:[%s4 + $0x8] sm:$0xff]
        %v5527 = vld [vmem:[#allocation4] sm:$0xff]
        %v5528 = vld [vmem:[#allocation4 + $0x8] sm:$0xff]
        %v5529 = vld [vmem:[#allocation4 + $0x10] sm:$0xff]
        %v5530 = vld [vmem:[#allocation4 + $0x18] sm:$0xff]
        %v5531 = vld [vmem:[#allocation4 + $0x20] sm:$0xff]
        %v5532 = vld [vmem:[#allocation4 + $0x28] sm:$0xff]
        %v5533 = vld [vmem:[#allocation4 + $0x30] sm:$0xff]
        %v5534 = vld [vmem:[#allocation4 + $0x38] sm:$0xff]
        %5543 = vrot.lane.b32.xlu0 %v5527, 111
        %v5544 = vpop.permute.xlu0 %5543
        %5545 = vrot.lane.b32.xlu0 %v5528, 111
        %v5546 = vpop.permute.xlu0 %5545
        %5547 = vrot.lane.b32.xlu0 %v5529, 111
        %v5548 = vpop.permute.xlu0 %5547
        %5549 = vrot.lane.b32.xlu0 %v5530, 111
        %v5550 = vpop.permute.xlu0 %5549
        %5551 = vrot.lane.b32.xlu0 %v5531, 111
        %v5552 = vpop.permute.xlu0 %5551
        %5553 = vrot.lane.b32.xlu0 %v5532, 111
        %v5554 = vpop.permute.xlu0 %5553
        %5555 = vrot.lane.b32.xlu0 %v5533, 111
        %v5556 = vpop.permute.xlu0 %5555
        %5557 = vrot.lane.b32.xlu0 %v5534, 111
        %v5558 = vpop.permute.xlu0 %5557
        %v5559 = vsel %vm382, %v5544, %v5546
        %v5560 = vsel %vm382, %v5546, %v5548
        %v5561 = vsel %vm382, %v5548, %v5550
        %v5562 = vsel %vm382, %v5550, %v5552
        %v5563 = vsel %vm382, %v5552, %v5554
        %v5564 = vsel %vm382, %v5554, %v5556
        %v5565 = vsel %vm382, %v5556, %v5558
        %5574 = vst [vmem:[#allocation2] sm:$0xff] %v5559
        %5575 = vst [vmem:[#allocation2 + $0x8] sm:$0xff] %v5560
        %5576 = vst [vmem:[#allocation2 + $0x10] sm:$0xff] %v5561
        %5577 = vst [vmem:[#allocation2 + $0x18] sm:$0xff] %v5562
        %5578 = vst [vmem:[#allocation2 + $0x20] sm:$0xff] %v5563
        %5579 = vst [vmem:[#allocation2 + $0x28] sm:$0xff] %v5564
        %5580 = vst [vmem:[#allocation2 + $0x30] sm:$0xff] %v5565
        %5581 = vst.msk [vmem:[#allocation2 + $0x38] sm:$0xff] %vm318, %v5558
        %v5582 = vld [vmem:[#allocation4] sm:$0xff]
        %v5583 = vld [vmem:[#allocation4 + $0x8] sm:$0xff]
        %v5584 = vld [vmem:[#allocation4 + $0x10] sm:$0xff]
        %v5585 = vld [vmem:[#allocation4 + $0x18] sm:$0xff]
        %v5586 = vld [vmem:[#allocation4 + $0x20] sm:$0xff]
        %v5587 = vld [vmem:[#allocation4 + $0x28] sm:$0xff]
        %v5588 = vld [vmem:[#allocation4 + $0x30] sm:$0xff]
        %v5589 = vld [vmem:[#allocation4 + $0x38] sm:$0xff]
        %5598 = vrot.lane.b32.xlu0 %v5582, 110
        %v5599 = vpop.permute.xlu0 %5598
        %5600 = vrot.lane.b32.xlu0 %v5583, 110
        %v5601 = vpop.permute.xlu0 %5600
        %5602 = vrot.lane.b32.xlu0 %v5584, 110
        %v5603 = vpop.permute.xlu0 %5602
        %5604 = vrot.lane.b32.xlu0 %v5585, 110
        %v5605 = vpop.permute.xlu0 %5604
        %5606 = vrot.lane.b32.xlu0 %v5586, 110
        %v5607 = vpop.permute.xlu0 %5606
        %5608 = vrot.lane.b32.xlu0 %v5587, 110
        %v5609 = vpop.permute.xlu0 %5608
        %5610 = vrot.lane.b32.xlu0 %v5588, 110
        %v5611 = vpop.permute.xlu0 %5610
        %5612 = vrot.lane.b32.xlu0 %v5589, 110
        %v5613 = vpop.permute.xlu0 %5612
        %v5614 = vsel %vm462, %v5599, %v5601
        %v5615 = vsel %vm462, %v5601, %v5603
        %v5616 = vsel %vm462, %v5603, %v5605
        %v5617 = vsel %vm462, %v5605, %v5607
        %v5618 = vsel %vm462, %v5607, %v5609
        %v5619 = vsel %vm462, %v5609, %v5611
        %v5620 = vsel %vm462, %v5611, %v5613
        %5629 = vst [vmem:[#allocation2 + $0x40] sm:$0xff] %v5614
        %5630 = vst [vmem:[#allocation2 + $0x48] sm:$0xff] %v5615
        %5631 = vst [vmem:[#allocation2 + $0x50] sm:$0xff] %v5616
        %5632 = vst [vmem:[#allocation2 + $0x58] sm:$0xff] %v5617
        %5633 = vst [vmem:[#allocation2 + $0x60] sm:$0xff] %v5618
        %5634 = vst [vmem:[#allocation2 + $0x68] sm:$0xff] %v5619
        %5635 = vst [vmem:[#allocation2 + $0x70] sm:$0xff] %v5620
        %5636 = vst.msk [vmem:[#allocation2 + $0x78] sm:$0xff] %vm318, %v5613
        %v5637 = vld [vmem:[#allocation4] sm:$0xff]
        %v5638 = vld [vmem:[#allocation4 + $0x8] sm:$0xff]
        %v5639 = vld [vmem:[#allocation4 + $0x10] sm:$0xff]
        %v5640 = vld [vmem:[#allocation4 + $0x18] sm:$0xff]
        %v5641 = vld [vmem:[#allocation4 + $0x20] sm:$0xff]
        %v5642 = vld [vmem:[#allocation4 + $0x28] sm:$0xff]
        %v5643 = vld [vmem:[#allocation4 + $0x30] sm:$0xff]
        %v5644 = vld [vmem:[#allocation4 + $0x38] sm:$0xff]
        %5653 = vrot.lane.b32.xlu0 %v5637, 109
        %v5654 = vpop.permute.xlu0 %5653
        %5655 = vrot.lane.b32.xlu0 %v5638, 109
        %v5656 = vpop.permute.xlu0 %5655
        %5657 = vrot.lane.b32.xlu0 %v5639, 109
        %v5658 = vpop.permute.xlu0 %5657
        %5659 = vrot.lane.b32.xlu0 %v5640, 109
        %v5660 = vpop.permute.xlu0 %5659
        %5661 = vrot.lane.b32.xlu0 %v5641, 109
        %v5662 = vpop.permute.xlu0 %5661
        %5663 = vrot.lane.b32.xlu0 %v5642, 109
        %v5664 = vpop.permute.xlu0 %5663
        %5665 = vrot.lane.b32.xlu0 %v5643, 109
        %v5666 = vpop.permute.xlu0 %5665
        %5667 = vrot.lane.b32.xlu0 %v5644, 109
        %v5668 = vpop.permute.xlu0 %5667
        %v5669 = vsel %vm542, %v5654, %v5656
        %v5670 = vsel %vm542, %v5656, %v5658
        %v5671 = vsel %vm542, %v5658, %v5660
        %v5672 = vsel %vm542, %v5660, %v5662
        %v5673 = vsel %vm542, %v5662, %v5664
        %v5674 = vsel %vm542, %v5664, %v5666
        %v5675 = vsel %vm542, %v5666, %v5668
        %5684 = vst [vmem:[#allocation2 + $0x80] sm:$0xff] %v5669
        %5685 = vst [vmem:[#allocation2 + $0x88] sm:$0xff] %v5670
        %5686 = vst [vmem:[#allocation2 + $0x90] sm:$0xff] %v5671
        %5687 = vst [vmem:[#allocation2 + $0x98] sm:$0xff] %v5672
        %5688 = vst [vmem:[#allocation2 + $0xa0] sm:$0xff] %v5673
        %5689 = vst [vmem:[#allocation2 + $0xa8] sm:$0xff] %v5674
        %5690 = vst [vmem:[#allocation2 + $0xb0] sm:$0xff] %v5675
        %5691 = vst.msk [vmem:[#allocation2 + $0xb8] sm:$0xff] %vm318, %v5668
        %v5692 = vld [vmem:[#allocation4] sm:$0xff]
        %v5693 = vld [vmem:[#allocation4 + $0x8] sm:$0xff]
        %v5694 = vld [vmem:[#allocation4 + $0x10] sm:$0xff]
        %v5695 = vld [vmem:[#allocation4 + $0x18] sm:$0xff]
        %v5696 = vld [vmem:[#allocation4 + $0x20] sm:$0xff]
        %v5697 = vld [vmem:[#allocation4 + $0x28] sm:$0xff]
        %v5698 = vld [vmem:[#allocation4 + $0x30] sm:$0xff]
        %v5699 = vld [vmem:[#allocation4 + $0x38] sm:$0xff]
        %v5700 = vld [vmem:[#allocation4 + $0x40] sm:$0xff]
        %5710 = vrot.lane.b32.xlu0 %v5692, 101
        %v5711 = vpop.permute.xlu0 %5710
        %5712 = vrot.lane.b32.xlu0 %v5693, 101
        %v5713 = vpop.permute.xlu0 %5712
        %5714 = vrot.lane.b32.xlu0 %v5694, 101
        %v5715 = vpop.permute.xlu0 %5714
        %5716 = vrot.lane.b32.xlu0 %v5695, 101
        %v5717 = vpop.permute.xlu0 %5716
        %5718 = vrot.lane.b32.xlu0 %v5696, 101
        %v5719 = vpop.permute.xlu0 %5718
        %5720 = vrot.lane.b32.xlu0 %v5697, 101
        %v5721 = vpop.permute.xlu0 %5720
        %5722 = vrot.lane.b32.xlu0 %v5698, 101
        %v5723 = vpop.permute.xlu0 %5722
        %5724 = vrot.lane.b32.xlu0 %v5699, 101
        %v5725 = vpop.permute.xlu0 %5724
        %5726 = vrot.lane.b32.xlu0 %v5700, 101
        %v5727 = vpop.permute.xlu0 %5726
        %v5728 = vsel %vm631, %v5711, %v5713
        %v5729 = vsel %vm631, %v5713, %v5715
        %v5730 = vsel %vm631, %v5715, %v5717
        %v5731 = vsel %vm631, %v5717, %v5719
        %v5732 = vsel %vm631, %v5719, %v5721
        %v5733 = vsel %vm631, %v5721, %v5723
        %v5734 = vsel %vm631, %v5723, %v5725
        %v5735 = vsel %vm631, %v5725, %v5727
        %5744 = vst [vmem:[#allocation2 + $0xc0] sm:$0xff] %v5728
        %5745 = vst [vmem:[#allocation2 + $0xc8] sm:$0xff] %v5729
        %5746 = vst [vmem:[#allocation2 + $0xd0] sm:$0xff] %v5730
        %5747 = vst [vmem:[#allocation2 + $0xd8] sm:$0xff] %v5731
        %5748 = vst [vmem:[#allocation2 + $0xe0] sm:$0xff] %v5732
        %5749 = vst [vmem:[#allocation2 + $0xe8] sm:$0xff] %v5733
        %5750 = vst [vmem:[#allocation2 + $0xf0] sm:$0xff] %v5734
        %5751 = vst.msk [vmem:[#allocation2 + $0xf8] sm:$0xff] %vm318, %v5735
        %v5752 = vld [vmem:[#allocation4] sm:$0xff]
        %v5753 = vld [vmem:[#allocation4 + $0x8] sm:$0xff]
        %v5754 = vld [vmem:[#allocation4 + $0x10] sm:$0xff]
        %v5755 = vld [vmem:[#allocation4 + $0x18] sm:$0xff]
        %v5756 = vld [vmem:[#allocation4 + $0x20] sm:$0xff]
        %v5757 = vld [vmem:[#allocation4 + $0x28] sm:$0xff]
        %v5758 = vld [vmem:[#allocation4 + $0x30] sm:$0xff]
        %v5759 = vld [vmem:[#allocation4 + $0x38] sm:$0xff]
        %v5760 = vld [vmem:[#allocation4 + $0x40] sm:$0xff]
        %5770 = vrot.lane.b32.xlu0 %v5752, 100
        %v5771 = vpop.permute.xlu0 %5770
        %5772 = vrot.lane.b32.xlu0 %v5753, 100
        %v5773 = vpop.permute.xlu0 %5772
        %5774 = vrot.lane.b32.xlu0 %v5754, 100
        %v5775 = vpop.permute.xlu0 %5774
        %5776 = vrot.lane.b32.xlu0 %v5755, 100
        %v5777 = vpop.permute.xlu0 %5776
        %5778 = vrot.lane.b32.xlu0 %v5756, 100
        %v5779 = vpop.permute.xlu0 %5778
        %5780 = vrot.lane.b32.xlu0 %v5757, 100
        %v5781 = vpop.permute.xlu0 %5780
        %5782 = vrot.lane.b32.xlu0 %v5758, 100
        %v5783 = vpop.permute.xlu0 %5782
        %5784 = vrot.lane.b32.xlu0 %v5759, 100
        %v5785 = vpop.permute.xlu0 %5784
        %5786 = vrot.lane.b32.xlu0 %v5760, 100
        %v5787 = vpop.permute.xlu0 %5786
        %v5788 = vsel %vm721, %v5771, %v5773
        %v5789 = vsel %vm721, %v5773, %v5775
        %v5790 = vsel %vm721, %v5775, %v5777
        %v5791 = vsel %vm721, %v5777, %v5779
        %v5792 = vsel %vm721, %v5779, %v5781
        %v5793 = vsel %vm721, %v5781, %v5783
        %v5794 = vsel %vm721, %v5783, %v5785
        %v5795 = vsel %vm721, %v5785, %v5787
        %5804 = vst [vmem:[#allocation2 + $0x100] sm:$0xff] %v5788
        %5805 = vst [vmem:[#allocation2 + $0x108] sm:$0xff] %v5789
        %5806 = vst [vmem:[#allocation2 + $0x110] sm:$0xff] %v5790
        %5807 = vst [vmem:[#allocation2 + $0x118] sm:$0xff] %v5791
        %5808 = vst [vmem:[#allocation2 + $0x120] sm:$0xff] %v5792
        %5809 = vst [vmem:[#allocation2 + $0x128] sm:$0xff] %v5793
        %5810 = vst [vmem:[#allocation2 + $0x130] sm:$0xff] %v5794
        %5811 = vst.msk [vmem:[#allocation2 + $0x138] sm:$0xff] %vm318, %v5795
        %v5812 = vld [vmem:[#allocation4] sm:$0xff]
        %v5813 = vld [vmem:[#allocation4 + $0x8] sm:$0xff]
        %v5814 = vld [vmem:[#allocation4 + $0x10] sm:$0xff]
        %v5815 = vld [vmem:[#allocation4 + $0x18] sm:$0xff]
        %v5816 = vld [vmem:[#allocation4 + $0x20] sm:$0xff]
        %v5817 = vld [vmem:[#allocation4 + $0x28] sm:$0xff]
        %v5818 = vld [vmem:[#allocation4 + $0x30] sm:$0xff]
        %v5819 = vld [vmem:[#allocation4 + $0x38] sm:$0xff]
        %v5820 = vld [vmem:[#allocation4 + $0x40] sm:$0xff]
        %5830 = vrot.lane.b32.xlu0 %v5812, 99
        %v5831 = vpop.permute.xlu0 %5830
        %5832 = vrot.lane.b32.xlu0 %v5813, 99
        %v5833 = vpop.permute.xlu0 %5832
        %5834 = vrot.lane.b32.xlu0 %v5814, 99
        %v5835 = vpop.permute.xlu0 %5834
        %5836 = vrot.lane.b32.xlu0 %v5815, 99
        %v5837 = vpop.permute.xlu0 %5836
        %5838 = vrot.lane.b32.xlu0 %v5816, 99
        %v5839 = vpop.permute.xlu0 %5838
        %5840 = vrot.lane.b32.xlu0 %v5817, 99
        %v5841 = vpop.permute.xlu0 %5840
        %5842 = vrot.lane.b32.xlu0 %v5818, 99
        %v5843 = vpop.permute.xlu0 %5842
        %5844 = vrot.lane.b32.xlu0 %v5819, 99
        %v5845 = vpop.permute.xlu0 %5844
        %5846 = vrot.lane.b32.xlu0 %v5820, 99
        %v5847 = vpop.permute.xlu0 %5846
        %v5848 = vsel %vm811, %v5831, %v5833
        %v5849 = vsel %vm811, %v5833, %v5835
        %v5850 = vsel %vm811, %v5835, %v5837
        %v5851 = vsel %vm811, %v5837, %v5839
        %v5852 = vsel %vm811, %v5839, %v5841
        %v5853 = vsel %vm811, %v5841, %v5843
        %v5854 = vsel %vm811, %v5843, %v5845
        %v5855 = vsel %vm811, %v5845, %v5847
        %5864 = vst [vmem:[#allocation2 + $0x140] sm:$0xff] %v5848
        %5865 = vst [vmem:[#allocation2 + $0x148] sm:$0xff] %v5849
        %5866 = vst [vmem:[#allocation2 + $0x150] sm:$0xff] %v5850
        %5867 = vst [vmem:[#allocation2 + $0x158] sm:$0xff] %v5851
        %5868 = vst [vmem:[#allocation2 + $0x160] sm:$0xff] %v5852
        %5869 = vst [vmem:[#allocation2 + $0x168] sm:$0xff] %v5853
        %5870 = vst [vmem:[#allocation2 + $0x170] sm:$0xff] %v5854
        %5871 = vst.msk [vmem:[#allocation2 + $0x178] sm:$0xff] %vm318, %v5855
        %v5872 = vld [vmem:[#allocation4] sm:$0xff]
        %v5873 = vld [vmem:[#allocation4 + $0x8] sm:$0xff]
        %v5874 = vld [vmem:[#allocation4 + $0x10] sm:$0xff]
        %v5875 = vld [vmem:[#allocation4 + $0x18] sm:$0xff]
        %v5876 = vld [vmem:[#allocation4 + $0x20] sm:$0xff]
        %v5877 = vld [vmem:[#allocation4 + $0x28] sm:$0xff]
        %v5878 = vld [vmem:[#allocation4 + $0x30] sm:$0xff]
        %v5879 = vld [vmem:[#allocation4 + $0x38] sm:$0xff]
        %v5880 = vld [vmem:[#allocation4 + $0x40] sm:$0xff]
        %5890 = vrot.lane.b32.xlu0 %v5872, 91
        %v5891 = vpop.permute.xlu0 %5890
        %5892 = vrot.lane.b32.xlu0 %v5873, 91
        %v5893 = vpop.permute.xlu0 %5892
        %5894 = vrot.lane.b32.xlu0 %v5874, 91
        %v5895 = vpop.permute.xlu0 %5894
        %5896 = vrot.lane.b32.xlu0 %v5875, 91
        %v5897 = vpop.permute.xlu0 %5896
        %5898 = vrot.lane.b32.xlu0 %v5876, 91
        %v5899 = vpop.permute.xlu0 %5898
        %5900 = vrot.lane.b32.xlu0 %v5877, 91
        %v5901 = vpop.permute.xlu0 %5900
        %5902 = vrot.lane.b32.xlu0 %v5878, 91
        %v5903 = vpop.permute.xlu0 %5902
        %5904 = vrot.lane.b32.xlu0 %v5879, 91
        %v5905 = vpop.permute.xlu0 %5904
        %5906 = vrot.lane.b32.xlu0 %v5880, 91
        %v5907 = vpop.permute.xlu0 %5906
        %v5908 = vsel %vm901, %v5891, %v5893
        %v5909 = vsel %vm901, %v5893, %v5895
        %v5910 = vsel %vm901, %v5895, %v5897
        %v5911 = vsel %vm901, %v5897, %v5899
        %v5912 = vsel %vm901, %v5899, %v5901
        %v5913 = vsel %vm901, %v5901, %v5903
        %v5914 = vsel %vm901, %v5903, %v5905
        %v5915 = vsel %vm901, %v5905, %v5907
        %5924 = vst [vmem:[#allocation2 + $0x180] sm:$0xff] %v5908
        %5925 = vst [vmem:[#allocation2 + $0x188] sm:$0xff] %v5909
        %5926 = vst [vmem:[#allocation2 + $0x190] sm:$0xff] %v5910
        %5927 = vst [vmem:[#allocation2 + $0x198] sm:$0xff] %v5911
        %5928 = vst [vmem:[#allocation2 + $0x1a0] sm:$0xff] %v5912
        %5929 = vst [vmem:[#allocation2 + $0x1a8] sm:$0xff] %v5913
        %5930 = vst [vmem:[#allocation2 + $0x1b0] sm:$0xff] %v5914
        %5931 = vst.msk [vmem:[#allocation2 + $0x1b8] sm:$0xff] %vm318, %v5915
        %v5932 = vld [vmem:[#allocation4] sm:$0xff]
        %v5933 = vld [vmem:[#allocation4 + $0x8] sm:$0xff]
        %v5934 = vld [vmem:[#allocation4 + $0x10] sm:$0xff]
        %v5935 = vld [vmem:[#allocation4 + $0x18] sm:$0xff]
        %v5936 = vld [vmem:[#allocation4 + $0x20] sm:$0xff]
        %v5937 = vld [vmem:[#allocation4 + $0x28] sm:$0xff]
        %v5938 = vld [vmem:[#allocation4 + $0x30] sm:$0xff]
        %v5939 = vld [vmem:[#allocation4 + $0x38] sm:$0xff]
        %v5940 = vld [vmem:[#allocation4 + $0x40] sm:$0xff]
        %5950 = vrot.lane.b32.xlu0 %v5932, 90
        %v5951 = vpop.permute.xlu0 %5950
        %5952 = vrot.lane.b32.xlu0 %v5933, 90
        %v5953 = vpop.permute.xlu0 %5952
        %5954 = vrot.lane.b32.xlu0 %v5934, 90
        %v5955 = vpop.permute.xlu0 %5954
        %5956 = vrot.lane.b32.xlu0 %v5935, 90
        %v5957 = vpop.permute.xlu0 %5956
        %5958 = vrot.lane.b32.xlu0 %v5936, 90
        %v5959 = vpop.permute.xlu0 %5958
        %5960 = vrot.lane.b32.xlu0 %v5937, 90
        %v5961 = vpop.permute.xlu0 %5960
        %5962 = vrot.lane.b32.xlu0 %v5938, 90
        %v5963 = vpop.permute.xlu0 %5962
        %5964 = vrot.lane.b32.xlu0 %v5939, 90
        %v5965 = vpop.permute.xlu0 %5964
        %5966 = vrot.lane.b32.xlu0 %v5940, 90
        %v5967 = vpop.permute.xlu0 %5966
        %v5968 = vsel %vm991, %v5951, %v5953
        %v5969 = vsel %vm991, %v5953, %v5955
        %v5970 = vsel %vm991, %v5955, %v5957
        %v5971 = vsel %vm991, %v5957, %v5959
        %v5972 = vsel %vm991, %v5959, %v5961
        %v5973 = vsel %vm991, %v5961, %v5963
        %v5974 = vsel %vm991, %v5963, %v5965
        %v5975 = vsel %vm991, %v5965, %v5967
        %5984 = vst [vmem:[#allocation2 + $0x1c0] sm:$0xff] %v5968
        %5985 = vst [vmem:[#allocation2 + $0x1c8] sm:$0xff] %v5969
        %5986 = vst [vmem:[#allocation2 + $0x1d0] sm:$0xff] %v5970
        %5987 = vst [vmem:[#allocation2 + $0x1d8] sm:$0xff] %v5971
        %5988 = vst [vmem:[#allocation2 + $0x1e0] sm:$0xff] %v5972
        %5989 = vst [vmem:[#allocation2 + $0x1e8] sm:$0xff] %v5973
        %5990 = vst [vmem:[#allocation2 + $0x1f0] sm:$0xff] %v5974
        %5991 = vst.msk [vmem:[#allocation2 + $0x1f8] sm:$0xff] %vm318, %v5975
        %v5992 = vld [vmem:[#allocation4] sm:$0xff]
        %v5993 = vld [vmem:[#allocation4 + $0x8] sm:$0xff]
        %v5994 = vld [vmem:[#allocation4 + $0x10] sm:$0xff]
        %v5995 = vld [vmem:[#allocation4 + $0x18] sm:$0xff]
        %v5996 = vld [vmem:[#allocation4 + $0x20] sm:$0xff]
        %v5997 = vld [vmem:[#allocation4 + $0x28] sm:$0xff]
        %v5998 = vld [vmem:[#allocation4 + $0x30] sm:$0xff]
        %v5999 = vld [vmem:[#allocation4 + $0x38] sm:$0xff]
        %v6000 = vld [vmem:[#allocation4 + $0x40] sm:$0xff]
        %6010 = vrot.lane.b32.xlu0 %v5992, 89
        %v6011 = vpop.permute.xlu0 %6010
        %6012 = vrot.lane.b32.xlu0 %v5993, 89
        %v6013 = vpop.permute.xlu0 %6012
        %6014 = vrot.lane.b32.xlu0 %v5994, 89
        %v6015 = vpop.permute.xlu0 %6014
        %6016 = vrot.lane.b32.xlu0 %v5995, 89
        %v6017 = vpop.permute.xlu0 %6016
        %6018 = vrot.lane.b32.xlu0 %v5996, 89
        %v6019 = vpop.permute.xlu0 %6018
        %6020 = vrot.lane.b32.xlu0 %v5997, 89
        %v6021 = vpop.permute.xlu0 %6020
        %6022 = vrot.lane.b32.xlu0 %v5998, 89
        %v6023 = vpop.permute.xlu0 %6022
        %6024 = vrot.lane.b32.xlu0 %v5999, 89
        %v6025 = vpop.permute.xlu0 %6024
        %6026 = vrot.lane.b32.xlu0 %v6000, 89
        %v6027 = vpop.permute.xlu0 %6026
        %v6028 = vsel %vm1081, %v6011, %v6013
        %v6029 = vsel %vm1081, %v6013, %v6015
        %v6030 = vsel %vm1081, %v6015, %v6017
        %v6031 = vsel %vm1081, %v6017, %v6019
        %v6032 = vsel %vm1081, %v6019, %v6021
        %v6033 = vsel %vm1081, %v6021, %v6023
        %v6034 = vsel %vm1081, %v6023, %v6025
        %v6035 = vsel %vm1081, %v6025, %v6027
        %6044 = vst [vmem:[#allocation2 + $0x200] sm:$0xff] %v6028
        %6045 = vst [vmem:[#allocation2 + $0x208] sm:$0xff] %v6029
        %6046 = vst [vmem:[#allocation2 + $0x210] sm:$0xff] %v6030
        %6047 = vst [vmem:[#allocation2 + $0x218] sm:$0xff] %v6031
        %6048 = vst [vmem:[#allocation2 + $0x220] sm:$0xff] %v6032
        %6049 = vst [vmem:[#allocation2 + $0x228] sm:$0xff] %v6033
        %6050 = vst [vmem:[#allocation2 + $0x230] sm:$0xff] %v6034
        %6051 = vst.msk [vmem:[#allocation2 + $0x238] sm:$0xff] %vm318, %v6035
        %v6052 = vld [vmem:[#allocation4] sm:$0xff]
        %v6053 = vld [vmem:[#allocation4 + $0x8] sm:$0xff]
        %v6054 = vld [vmem:[#allocation4 + $0x10] sm:$0xff]
        %v6055 = vld [vmem:[#allocation4 + $0x18] sm:$0xff]
        %v6056 = vld [vmem:[#allocation4 + $0x20] sm:$0xff]
        %v6057 = vld [vmem:[#allocation4 + $0x28] sm:$0xff]
        %v6058 = vld [vmem:[#allocation4 + $0x30] sm:$0xff]
        %v6059 = vld [vmem:[#allocation4 + $0x38] sm:$0xff]
        %v6060 = vld [vmem:[#allocation4 + $0x40] sm:$0xff]
        %6070 = vrot.lane.b32.xlu0 %v6052, 11
        %v6071 = vpop.permute.xlu0 %6070
        %6072 = vrot.lane.b32.xlu0 %v6053, 11
        %v6073 = vpop.permute.xlu0 %6072
        %6074 = vrot.lane.b32.xlu0 %v6054, 11
        %v6075 = vpop.permute.xlu0 %6074
        %6076 = vrot.lane.b32.xlu0 %v6055, 11
        %v6077 = vpop.permute.xlu0 %6076
        %6078 = vrot.lane.b32.xlu0 %v6056, 11
        %v6079 = vpop.permute.xlu0 %6078
        %6080 = vrot.lane.b32.xlu0 %v6057, 11
        %v6081 = vpop.permute.xlu0 %6080
        %6082 = vrot.lane.b32.xlu0 %v6058, 11
        %v6083 = vpop.permute.xlu0 %6082
        %6084 = vrot.lane.b32.xlu0 %v6059, 11
        %v6085 = vpop.permute.xlu0 %6084
        %6086 = vrot.lane.b32.xlu0 %v6060, 11
        %v6087 = vpop.permute.xlu0 %6086
        %v6088 = vsel %vm1171, %v6071, %v6073
        %v6089 = vsel %vm1171, %v6073, %v6075
        %v6090 = vsel %vm1171, %v6075, %v6077
        %v6091 = vsel %vm1171, %v6077, %v6079
        %v6092 = vsel %vm1171, %v6079, %v6081
        %v6093 = vsel %vm1171, %v6081, %v6083
        %v6094 = vsel %vm1171, %v6083, %v6085
        %v6095 = vsel %vm1171, %v6085, %v6087
        %6104 = vst [vmem:[#allocation2 + $0x240] sm:$0xff] %v6088
        %6105 = vst [vmem:[#allocation2 + $0x248] sm:$0xff] %v6089
        %6106 = vst [vmem:[#allocation2 + $0x250] sm:$0xff] %v6090
        %6107 = vst [vmem:[#allocation2 + $0x258] sm:$0xff] %v6091
        %6108 = vst [vmem:[#allocation2 + $0x260] sm:$0xff] %v6092
        %6109 = vst [vmem:[#allocation2 + $0x268] sm:$0xff] %v6093
        %6110 = vst [vmem:[#allocation2 + $0x270] sm:$0xff] %v6094
        %6111 = vst.msk [vmem:[#allocation2 + $0x278] sm:$0xff] %vm318, %v6095
        %v6112 = vld [vmem:[#allocation4] sm:$0xff]
        %v6113 = vld [vmem:[#allocation4 + $0x8] sm:$0xff]
        %v6114 = vld [vmem:[#allocation4 + $0x10] sm:$0xff]
        %v6115 = vld [vmem:[#allocation4 + $0x18] sm:$0xff]
        %v6116 = vld [vmem:[#allocation4 + $0x20] sm:$0xff]
        %v6117 = vld [vmem:[#allocation4 + $0x28] sm:$0xff]
        %v6118 = vld [vmem:[#allocation4 + $0x30] sm:$0xff]
        %v6119 = vld [vmem:[#allocation4 + $0x38] sm:$0xff]
        %v6120 = vld [vmem:[#allocation4 + $0x40] sm:$0xff]
        %6130 = vrot.lane.b32.xlu0 %v6112, 10
        %v6131 = vpop.permute.xlu0 %6130
        %6132 = vrot.lane.b32.xlu0 %v6113, 10
        %v6133 = vpop.permute.xlu0 %6132
        %6134 = vrot.lane.b32.xlu0 %v6114, 10
        %v6135 = vpop.permute.xlu0 %6134
        %6136 = vrot.lane.b32.xlu0 %v6115, 10
        %v6137 = vpop.permute.xlu0 %6136
        %6138 = vrot.lane.b32.xlu0 %v6116, 10
        %v6139 = vpop.permute.xlu0 %6138
        %6140 = vrot.lane.b32.xlu0 %v6117, 10
        %v6141 = vpop.permute.xlu0 %6140
        %6142 = vrot.lane.b32.xlu0 %v6118, 10
        %v6143 = vpop.permute.xlu0 %6142
        %6144 = vrot.lane.b32.xlu0 %v6119, 10
        %v6145 = vpop.permute.xlu0 %6144
        %6146 = vrot.lane.b32.xlu0 %v6120, 10
        %v6147 = vpop.permute.xlu0 %6146
        %v6148 = vsel %vm1261, %v6131, %v6133
        %v6149 = vsel %vm1261, %v6133, %v6135
        %v6150 = vsel %vm1261, %v6135, %v6137
        %v6151 = vsel %vm1261, %v6137, %v6139
        %v6152 = vsel %vm1261, %v6139, %v6141
        %v6153 = vsel %vm1261, %v6141, %v6143
        %v6154 = vsel %vm1261, %v6143, %v6145
        %v6155 = vsel %vm1261, %v6145, %v6147
        %6164 = vst [vmem:[#allocation2 + $0x280] sm:$0xff] %v6148
        %6165 = vst [vmem:[#allocation2 + $0x288] sm:$0xff] %v6149
        %6166 = vst [vmem:[#allocation2 + $0x290] sm:$0xff] %v6150
        %6167 = vst [vmem:[#allocation2 + $0x298] sm:$0xff] %v6151
        %6168 = vst [vmem:[#allocation2 + $0x2a0] sm:$0xff] %v6152
        %6169 = vst [vmem:[#allocation2 + $0x2a8] sm:$0xff] %v6153
        %6170 = vst [vmem:[#allocation2 + $0x2b0] sm:$0xff] %v6154
        %6171 = vst.msk [vmem:[#allocation2 + $0x2b8] sm:$0xff] %vm318, %v6155
        %v6172 = vld [vmem:[#allocation4] sm:$0xff]
        %v6173 = vld [vmem:[#allocation4 + $0x8] sm:$0xff]
        %v6174 = vld [vmem:[#allocation4 + $0x10] sm:$0xff]
        %v6175 = vld [vmem:[#allocation4 + $0x18] sm:$0xff]
        %v6176 = vld [vmem:[#allocation4 + $0x20] sm:$0xff]
        %v6177 = vld [vmem:[#allocation4 + $0x28] sm:$0xff]
        %v6178 = vld [vmem:[#allocation4 + $0x30] sm:$0xff]
        %v6179 = vld [vmem:[#allocation4 + $0x38] sm:$0xff]
        %v6180 = vld [vmem:[#allocation4 + $0x40] sm:$0xff]
        %6190 = vrot.lane.b32.xlu0 %v6172, 9
        %v6191 = vpop.permute.xlu0 %6190
        %6192 = vrot.lane.b32.xlu0 %v6173, 9
        %v6193 = vpop.permute.xlu0 %6192
        %6194 = vrot.lane.b32.xlu0 %v6174, 9
        %v6195 = vpop.permute.xlu0 %6194
        %6196 = vrot.lane.b32.xlu0 %v6175, 9
        %v6197 = vpop.permute.xlu0 %6196
        %6198 = vrot.lane.b32.xlu0 %v6176, 9
        %v6199 = vpop.permute.xlu0 %6198
        %6200 = vrot.lane.b32.xlu0 %v6177, 9
        %v6201 = vpop.permute.xlu0 %6200
        %6202 = vrot.lane.b32.xlu0 %v6178, 9
        %v6203 = vpop.permute.xlu0 %6202
        %6204 = vrot.lane.b32.xlu0 %v6179, 9
        %v6205 = vpop.permute.xlu0 %6204
        %6206 = vrot.lane.b32.xlu0 %v6180, 9
        %v6207 = vpop.permute.xlu0 %6206
        %v6208 = vsel %vm1351, %v6191, %v6193
        %v6209 = vsel %vm1351, %v6193, %v6195
        %v6210 = vsel %vm1351, %v6195, %v6197
        %v6211 = vsel %vm1351, %v6197, %v6199
        %v6212 = vsel %vm1351, %v6199, %v6201
        %v6213 = vsel %vm1351, %v6201, %v6203
        %v6214 = vsel %vm1351, %v6203, %v6205
        %v6215 = vsel %vm1351, %v6205, %v6207
        %6224 = vst [vmem:[#allocation2 + $0x2c0] sm:$0xff] %v6208
        %6225 = vst [vmem:[#allocation2 + $0x2c8] sm:$0xff] %v6209
        %6226 = vst [vmem:[#allocation2 + $0x2d0] sm:$0xff] %v6210
        %6227 = vst [vmem:[#allocation2 + $0x2d8] sm:$0xff] %v6211
        %6228 = vst [vmem:[#allocation2 + $0x2e0] sm:$0xff] %v6212
        %6229 = vst [vmem:[#allocation2 + $0x2e8] sm:$0xff] %v6213
        %6230 = vst [vmem:[#allocation2 + $0x2f0] sm:$0xff] %v6214
        %6231 = vst.msk [vmem:[#allocation2 + $0x2f8] sm:$0xff] %vm318, %v6215
        %v6232 = vld [vmem:[#allocation4] sm:$0xff]
        %v6233 = vld [vmem:[#allocation4 + $0x8] sm:$0xff]
        %v6234 = vld [vmem:[#allocation4 + $0x10] sm:$0xff]
        %v6235 = vld [vmem:[#allocation4 + $0x18] sm:$0xff]
        %v6236 = vld [vmem:[#allocation4 + $0x20] sm:$0xff]
        %v6237 = vld [vmem:[#allocation4 + $0x28] sm:$0xff]
        %v6238 = vld [vmem:[#allocation4 + $0x30] sm:$0xff]
        %v6239 = vld [vmem:[#allocation4 + $0x38] sm:$0xff]
        %v6240 = vld [vmem:[#allocation4 + $0x40] sm:$0xff]
        %6250 = vrot.lane.b32.xlu0 %v6232, 1
        %v6251 = vpop.permute.xlu0 %6250
        %6252 = vrot.lane.b32.xlu0 %v6233, 1
        %v6253 = vpop.permute.xlu0 %6252
        %6254 = vrot.lane.b32.xlu0 %v6234, 1
        %v6255 = vpop.permute.xlu0 %6254
        %6256 = vrot.lane.b32.xlu0 %v6235, 1
        %v6257 = vpop.permute.xlu0 %6256
        %6258 = vrot.lane.b32.xlu0 %v6236, 1
        %v6259 = vpop.permute.xlu0 %6258
        %6260 = vrot.lane.b32.xlu0 %v6237, 1
        %v6261 = vpop.permute.xlu0 %6260
        %6262 = vrot.lane.b32.xlu0 %v6238, 1
        %v6263 = vpop.permute.xlu0 %6262
        %6264 = vrot.lane.b32.xlu0 %v6239, 1
        %v6265 = vpop.permute.xlu0 %6264
        %6266 = vrot.lane.b32.xlu0 %v6240, 1
        %v6267 = vpop.permute.xlu0 %6266
        %v6268 = vsel %vm1441, %v6251, %v6253
        %v6269 = vsel %vm1441, %v6253, %v6255
        %v6270 = vsel %vm1441, %v6255, %v6257
        %v6271 = vsel %vm1441, %v6257, %v6259
        %v6272 = vsel %vm1441, %v6259, %v6261
        %v6273 = vsel %vm1441, %v6261, %v6263
        %v6274 = vsel %vm1441, %v6263, %v6265
        %v6275 = vsel %vm1441, %v6265, %v6267
        %6284 = vst [vmem:[#allocation2 + $0x300] sm:$0xff] %v6268
        %6285 = vst [vmem:[#allocation2 + $0x308] sm:$0xff] %v6269
        %6286 = vst [vmem:[#allocation2 + $0x310] sm:$0xff] %v6270
        %6287 = vst [vmem:[#allocation2 + $0x318] sm:$0xff] %v6271
        %6288 = vst [vmem:[#allocation2 + $0x320] sm:$0xff] %v6272
        %6289 = vst [vmem:[#allocation2 + $0x328] sm:$0xff] %v6273
        %6290 = vst [vmem:[#allocation2 + $0x330] sm:$0xff] %v6274
        %6291 = vst.msk [vmem:[#allocation2 + $0x338] sm:$0xff] %vm318, %v6275
        %v6292 = vld [vmem:[#allocation4 + $0x8] sm:$0xff]
        %v6293 = vld [vmem:[#allocation4 + $0x10] sm:$0xff]
        %v6294 = vld [vmem:[#allocation4 + $0x18] sm:$0xff]
        %v6295 = vld [vmem:[#allocation4 + $0x20] sm:$0xff]
        %v6296 = vld [vmem:[#allocation4 + $0x28] sm:$0xff]
        %v6297 = vld [vmem:[#allocation4 + $0x30] sm:$0xff]
        %v6298 = vld [vmem:[#allocation4 + $0x38] sm:$0xff]
        %v6299 = vld [vmem:[#allocation4 + $0x40] sm:$0xff]
        %6300 = vst [vmem:[#allocation2 + $0x340] sm:$0xff] %v6292
        %6301 = vst [vmem:[#allocation2 + $0x348] sm:$0xff] %v6293
        %6302 = vst [vmem:[#allocation2 + $0x350] sm:$0xff] %v6294
        %6303 = vst [vmem:[#allocation2 + $0x358] sm:$0xff] %v6295
        %6304 = vst [vmem:[#allocation2 + $0x360] sm:$0xff] %v6296
        %6305 = vst [vmem:[#allocation2 + $0x368] sm:$0xff] %v6297
        %6306 = vst [vmem:[#allocation2 + $0x370] sm:$0xff] %v6298
        %6307 = vst.msk [vmem:[#allocation2 + $0x378] sm:$0xff] %vm318, %v6299
        %v6308 = vld [vmem:[#allocation4 + $0x8] sm:$0xff]
        %v6309 = vld [vmem:[#allocation4 + $0x10] sm:$0xff]
        %v6310 = vld [vmem:[#allocation4 + $0x18] sm:$0xff]
        %v6311 = vld [vmem:[#allocation4 + $0x20] sm:$0xff]
        %v6312 = vld [vmem:[#allocation4 + $0x28] sm:$0xff]
        %v6313 = vld [vmem:[#allocation4 + $0x30] sm:$0xff]
        %v6314 = vld [vmem:[#allocation4 + $0x38] sm:$0xff]
        %v6315 = vld [vmem:[#allocation4 + $0x40] sm:$0xff]
        %6324 = vrot.lane.b32.xlu0 %v6308, 127
        %v6325 = vpop.permute.xlu0 %6324
        %6326 = vrot.lane.b32.xlu0 %v6309, 127
        %v6327 = vpop.permute.xlu0 %6326
        %6328 = vrot.lane.b32.xlu0 %v6310, 127
        %v6329 = vpop.permute.xlu0 %6328
        %6330 = vrot.lane.b32.xlu0 %v6311, 127
        %v6331 = vpop.permute.xlu0 %6330
        %6332 = vrot.lane.b32.xlu0 %v6312, 127
        %v6333 = vpop.permute.xlu0 %6332
        %6334 = vrot.lane.b32.xlu0 %v6313, 127
        %v6335 = vpop.permute.xlu0 %6334
        %6336 = vrot.lane.b32.xlu0 %v6314, 127
        %v6337 = vpop.permute.xlu0 %6336
        %6338 = vrot.lane.b32.xlu0 %v6315, 127
        %v6339 = vpop.permute.xlu0 %6338
        %v6340 = vsel %vm1578, %v6325, %v6327
        %v6341 = vsel %vm1578, %v6327, %v6329
        %v6342 = vsel %vm1578, %v6329, %v6331
        %v6343 = vsel %vm1578, %v6331, %v6333
        %v6344 = vsel %vm1578, %v6333, %v6335
        %v6345 = vsel %vm1578, %v6335, %v6337
        %v6346 = vsel %vm1578, %v6337, %v6339
        %6355 = vst [vmem:[#allocation2 + $0x380] sm:$0xff] %v6340
        %6356 = vst [vmem:[#allocation2 + $0x388] sm:$0xff] %v6341
        %6357 = vst [vmem:[#allocation2 + $0x390] sm:$0xff] %v6342
        %6358 = vst [vmem:[#allocation2 + $0x398] sm:$0xff] %v6343
        %6359 = vst [vmem:[#allocation2 + $0x3a0] sm:$0xff] %v6344
        %6360 = vst [vmem:[#allocation2 + $0x3a8] sm:$0xff] %v6345
        %6361 = vst [vmem:[#allocation2 + $0x3b0] sm:$0xff] %v6346
        %6362 = vst.msk [vmem:[#allocation2 + $0x3b8] sm:$0xff] %vm318, %v6339
        %v6363 = vld [vmem:[#allocation4 + $0x8] sm:$0xff]
        %v6364 = vld [vmem:[#allocation4 + $0x10] sm:$0xff]
        %v6365 = vld [vmem:[#allocation4 + $0x18] sm:$0xff]
        %v6366 = vld [vmem:[#allocation4 + $0x20] sm:$0xff]
        %v6367 = vld [vmem:[#allocation4 + $0x28] sm:$0xff]
        %v6368 = vld [vmem:[#allocation4 + $0x30] sm:$0xff]
        %v6369 = vld [vmem:[#allocation4 + $0x38] sm:$0xff]
        %v6370 = vld [vmem:[#allocation4 + $0x40] sm:$0xff]
        %6379 = vrot.lane.b32.xlu0 %v6363, 119
        %v6380 = vpop.permute.xlu0 %6379
        %6381 = vrot.lane.b32.xlu0 %v6364, 119
        %v6382 = vpop.permute.xlu0 %6381
        %6383 = vrot.lane.b32.xlu0 %v6365, 119
        %v6384 = vpop.permute.xlu0 %6383
        %6385 = vrot.lane.b32.xlu0 %v6366, 119
        %v6386 = vpop.permute.xlu0 %6385
        %6387 = vrot.lane.b32.xlu0 %v6367, 119
        %v6388 = vpop.permute.xlu0 %6387
        %6389 = vrot.lane.b32.xlu0 %v6368, 119
        %v6390 = vpop.permute.xlu0 %6389
        %6391 = vrot.lane.b32.xlu0 %v6369, 119
        %v6392 = vpop.permute.xlu0 %6391
        %6393 = vrot.lane.b32.xlu0 %v6370, 119
        %v6394 = vpop.permute.xlu0 %6393
        %v6395 = vsel %vm1658, %v6380, %v6382
        %v6396 = vsel %vm1658, %v6382, %v6384
        %v6397 = vsel %vm1658, %v6384, %v6386
        %v6398 = vsel %vm1658, %v6386, %v6388
        %v6399 = vsel %vm1658, %v6388, %v6390
        %v6400 = vsel %vm1658, %v6390, %v6392
        %v6401 = vsel %vm1658, %v6392, %v6394
        %6410 = vst [vmem:[#allocation2 + $0x3c0] sm:$0xff] %v6395
        %6411 = vst [vmem:[#allocation2 + $0x3c8] sm:$0xff] %v6396
        %6412 = vst [vmem:[#allocation2 + $0x3d0] sm:$0xff] %v6397
        %6413 = vst [vmem:[#allocation2 + $0x3d8] sm:$0xff] %v6398
        %6414 = vst [vmem:[#allocation2 + $0x3e0] sm:$0xff] %v6399
        %6415 = vst [vmem:[#allocation2 + $0x3e8] sm:$0xff] %v6400
        %6416 = vst [vmem:[#allocation2 + $0x3f0] sm:$0xff] %v6401
        %6417 = vst.msk [vmem:[#allocation2 + $0x3f8] sm:$0xff] %vm318, %v6394
        %v6418 = vld [vmem:[#allocation4 + $0x8] sm:$0xff]
        %v6419 = vld [vmem:[#allocation4 + $0x10] sm:$0xff]
        %v6420 = vld [vmem:[#allocation4 + $0x18] sm:$0xff]
        %v6421 = vld [vmem:[#allocation4 + $0x20] sm:$0xff]
        %v6422 = vld [vmem:[#allocation4 + $0x28] sm:$0xff]
        %v6423 = vld [vmem:[#allocation4 + $0x30] sm:$0xff]
        %v6424 = vld [vmem:[#allocation4 + $0x38] sm:$0xff]
        %v6425 = vld [vmem:[#allocation4 + $0x40] sm:$0xff]
        %6434 = vrot.lane.b32.xlu0 %v6418, 118
        %v6435 = vpop.permute.xlu0 %6434
        %6436 = vrot.lane.b32.xlu0 %v6419, 118
        %v6437 = vpop.permute.xlu0 %6436
        %6438 = vrot.lane.b32.xlu0 %v6420, 118
        %v6439 = vpop.permute.xlu0 %6438
        %6440 = vrot.lane.b32.xlu0 %v6421, 118
        %v6441 = vpop.permute.xlu0 %6440
        %6442 = vrot.lane.b32.xlu0 %v6422, 118
        %v6443 = vpop.permute.xlu0 %6442
        %6444 = vrot.lane.b32.xlu0 %v6423, 118
        %v6445 = vpop.permute.xlu0 %6444
        %6446 = vrot.lane.b32.xlu0 %v6424, 118
        %v6447 = vpop.permute.xlu0 %6446
        %6448 = vrot.lane.b32.xlu0 %v6425, 118
        %v6449 = vpop.permute.xlu0 %6448
        %v6450 = vsel %vm1738, %v6435, %v6437
        %v6451 = vsel %vm1738, %v6437, %v6439
        %v6452 = vsel %vm1738, %v6439, %v6441
        %v6453 = vsel %vm1738, %v6441, %v6443
        %v6454 = vsel %vm1738, %v6443, %v6445
        %v6455 = vsel %vm1738, %v6445, %v6447
        %v6456 = vsel %vm1738, %v6447, %v6449
        %6465 = vst [vmem:[#allocation2 + $0x400] sm:$0xff] %v6450
        %6466 = vst [vmem:[#allocation2 + $0x408] sm:$0xff] %v6451
        %6467 = vst [vmem:[#allocation2 + $0x410] sm:$0xff] %v6452
        %6468 = vst [vmem:[#allocation2 + $0x418] sm:$0xff] %v6453
        %6469 = vst [vmem:[#allocation2 + $0x420] sm:$0xff] %v6454
        %6470 = vst [vmem:[#allocation2 + $0x428] sm:$0xff] %v6455
        %6471 = vst [vmem:[#allocation2 + $0x430] sm:$0xff] %v6456
        %6472 = vst.msk [vmem:[#allocation2 + $0x438] sm:$0xff] %vm318, %v6449
        %v6473 = vld [vmem:[#allocation4 + $0x8] sm:$0xff]
        %v6474 = vld [vmem:[#allocation4 + $0x10] sm:$0xff]
        %v6475 = vld [vmem:[#allocation4 + $0x18] sm:$0xff]
        %v6476 = vld [vmem:[#allocation4 + $0x20] sm:$0xff]
        %v6477 = vld [vmem:[#allocation4 + $0x28] sm:$0xff]
        %v6478 = vld [vmem:[#allocation4 + $0x30] sm:$0xff]
        %v6479 = vld [vmem:[#allocation4 + $0x38] sm:$0xff]
        %v6480 = vld [vmem:[#allocation4 + $0x40] sm:$0xff]
        %6489 = vrot.lane.b32.xlu0 %v6473, 117
        %v6490 = vpop.permute.xlu0 %6489
        %6491 = vrot.lane.b32.xlu0 %v6474, 117
        %v6492 = vpop.permute.xlu0 %6491
        %6493 = vrot.lane.b32.xlu0 %v6475, 117
        %v6494 = vpop.permute.xlu0 %6493
        %6495 = vrot.lane.b32.xlu0 %v6476, 117
        %v6496 = vpop.permute.xlu0 %6495
        %6497 = vrot.lane.b32.xlu0 %v6477, 117
        %v6498 = vpop.permute.xlu0 %6497
        %6499 = vrot.lane.b32.xlu0 %v6478, 117
        %v6500 = vpop.permute.xlu0 %6499
        %6501 = vrot.lane.b32.xlu0 %v6479, 117
        %v6502 = vpop.permute.xlu0 %6501
        %6503 = vrot.lane.b32.xlu0 %v6480, 117
        %v6504 = vpop.permute.xlu0 %6503
        %v6505 = vsel %vm1818, %v6490, %v6492
        %v6506 = vsel %vm1818, %v6492, %v6494
        %v6507 = vsel %vm1818, %v6494, %v6496
        %v6508 = vsel %vm1818, %v6496, %v6498
        %v6509 = vsel %vm1818, %v6498, %v6500
        %v6510 = vsel %vm1818, %v6500, %v6502
        %v6511 = vsel %vm1818, %v6502, %v6504
        %6520 = vst [vmem:[#allocation2 + $0x440] sm:$0xff] %v6505
        %6521 = vst [vmem:[#allocation2 + $0x448] sm:$0xff] %v6506
        %6522 = vst [vmem:[#allocation2 + $0x450] sm:$0xff] %v6507
        %6523 = vst [vmem:[#allocation2 + $0x458] sm:$0xff] %v6508
        %6524 = vst [vmem:[#allocation2 + $0x460] sm:$0xff] %v6509
        %6525 = vst [vmem:[#allocation2 + $0x468] sm:$0xff] %v6510
        %6526 = vst [vmem:[#allocation2 + $0x470] sm:$0xff] %v6511
        %6527 = vst.msk [vmem:[#allocation2 + $0x478] sm:$0xff] %vm318, %v6504
        %v6528 = vld [vmem:[#allocation4 + $0x8] sm:$0xff]
        %v6529 = vld [vmem:[#allocation4 + $0x10] sm:$0xff]
        %v6530 = vld [vmem:[#allocation4 + $0x18] sm:$0xff]
        %v6531 = vld [vmem:[#allocation4 + $0x20] sm:$0xff]
        %v6532 = vld [vmem:[#allocation4 + $0x28] sm:$0xff]
        %v6533 = vld [vmem:[#allocation4 + $0x30] sm:$0xff]
        %v6534 = vld [vmem:[#allocation4 + $0x38] sm:$0xff]
        %v6535 = vld [vmem:[#allocation4 + $0x40] sm:$0xff]
        %v6536 = vld [vmem:[#allocation4 + $0x48] sm:$0xff]
        %6546 = vrot.lane.b32.xlu0 %v6528, 39
        %v6547 = vpop.permute.xlu0 %6546
        %6548 = vrot.lane.b32.xlu0 %v6529, 39
        %v6549 = vpop.permute.xlu0 %6548
        %6550 = vrot.lane.b32.xlu0 %v6530, 39
        %v6551 = vpop.permute.xlu0 %6550
        %6552 = vrot.lane.b32.xlu0 %v6531, 39
        %v6553 = vpop.permute.xlu0 %6552
        %6554 = vrot.lane.b32.xlu0 %v6532, 39
        %v6555 = vpop.permute.xlu0 %6554
        %6556 = vrot.lane.b32.xlu0 %v6533, 39
        %v6557 = vpop.permute.xlu0 %6556
        %6558 = vrot.lane.b32.xlu0 %v6534, 39
        %v6559 = vpop.permute.xlu0 %6558
        %6560 = vrot.lane.b32.xlu0 %v6535, 39
        %v6561 = vpop.permute.xlu0 %6560
        %6562 = vrot.lane.b32.xlu0 %v6536, 39
        %v6563 = vpop.permute.xlu0 %6562
        %v6564 = vsel %vm1907, %v6547, %v6549
        %v6565 = vsel %vm1907, %v6549, %v6551
        %v6566 = vsel %vm1907, %v6551, %v6553
        %v6567 = vsel %vm1907, %v6553, %v6555
        %v6568 = vsel %vm1907, %v6555, %v6557
        %v6569 = vsel %vm1907, %v6557, %v6559
        %v6570 = vsel %vm1907, %v6559, %v6561
        %v6571 = vsel %vm1907, %v6561, %v6563
        %6580 = vst [vmem:[#allocation2 + $0x480] sm:$0xff] %v6564
        %6581 = vst [vmem:[#allocation2 + $0x488] sm:$0xff] %v6565
        %6582 = vst [vmem:[#allocation2 + $0x490] sm:$0xff] %v6566
        %6583 = vst [vmem:[#allocation2 + $0x498] sm:$0xff] %v6567
        %6584 = vst [vmem:[#allocation2 + $0x4a0] sm:$0xff] %v6568
        %6585 = vst [vmem:[#allocation2 + $0x4a8] sm:$0xff] %v6569
        %6586 = vst [vmem:[#allocation2 + $0x4b0] sm:$0xff] %v6570
        %6587 = vst.msk [vmem:[#allocation2 + $0x4b8] sm:$0xff] %vm318, %v6571
        %v6588 = vld [vmem:[#allocation4 + $0x8] sm:$0xff]
        %v6589 = vld [vmem:[#allocation4 + $0x10] sm:$0xff]
        %v6590 = vld [vmem:[#allocation4 + $0x18] sm:$0xff]
        %v6591 = vld [vmem:[#allocation4 + $0x20] sm:$0xff]
        %v6592 = vld [vmem:[#allocation4 + $0x28] sm:$0xff]
        %v6593 = vld [vmem:[#allocation4 + $0x30] sm:$0xff]
        %v6594 = vld [vmem:[#allocation4 + $0x38] sm:$0xff]
        %v6595 = vld [vmem:[#allocation4 + $0x40] sm:$0xff]
        %v6596 = vld [vmem:[#allocation4 + $0x48] sm:$0xff]
        %6606 = vrot.lane.b32.xlu0 %v6588, 38
        %v6607 = vpop.permute.xlu0 %6606
        %6608 = vrot.lane.b32.xlu0 %v6589, 38
        %v6609 = vpop.permute.xlu0 %6608
        %6610 = vrot.lane.b32.xlu0 %v6590, 38
        %v6611 = vpop.permute.xlu0 %6610
        %6612 = vrot.lane.b32.xlu0 %v6591, 38
        %v6613 = vpop.permute.xlu0 %6612
        %6614 = vrot.lane.b32.xlu0 %v6592, 38
        %v6615 = vpop.permute.xlu0 %6614
        %6616 = vrot.lane.b32.xlu0 %v6593, 38
        %v6617 = vpop.permute.xlu0 %6616
        %6618 = vrot.lane.b32.xlu0 %v6594, 38
        %v6619 = vpop.permute.xlu0 %6618
        %6620 = vrot.lane.b32.xlu0 %v6595, 38
        %v6621 = vpop.permute.xlu0 %6620
        %6622 = vrot.lane.b32.xlu0 %v6596, 38
        %v6623 = vpop.permute.xlu0 %6622
        %v6624 = vsel %vm1997, %v6607, %v6609
        %v6625 = vsel %vm1997, %v6609, %v6611
        %v6626 = vsel %vm1997, %v6611, %v6613
        %v6627 = vsel %vm1997, %v6613, %v6615
        %v6628 = vsel %vm1997, %v6615, %v6617
        %v6629 = vsel %vm1997, %v6617, %v6619
        %v6630 = vsel %vm1997, %v6619, %v6621
        %v6631 = vsel %vm1997, %v6621, %v6623
        %6640 = vst [vmem:[#allocation2 + $0x4c0] sm:$0xff] %v6624
        %6641 = vst [vmem:[#allocation2 + $0x4c8] sm:$0xff] %v6625
        %6642 = vst [vmem:[#allocation2 + $0x4d0] sm:$0xff] %v6626
        %6643 = vst [vmem:[#allocation2 + $0x4d8] sm:$0xff] %v6627
        %6644 = vst [vmem:[#allocation2 + $0x4e0] sm:$0xff] %v6628
        %6645 = vst [vmem:[#allocation2 + $0x4e8] sm:$0xff] %v6629
        %6646 = vst [vmem:[#allocation2 + $0x4f0] sm:$0xff] %v6630
        %6647 = vst.msk [vmem:[#allocation2 + $0x4f8] sm:$0xff] %vm318, %v6631
        %v6648 = vld [vmem:[#allocation4 + $0x8] sm:$0xff]
        %v6649 = vld [vmem:[#allocation4 + $0x10] sm:$0xff]
        %v6650 = vld [vmem:[#allocation4 + $0x18] sm:$0xff]
        %v6651 = vld [vmem:[#allocation4 + $0x20] sm:$0xff]
        %v6652 = vld [vmem:[#allocation4 + $0x28] sm:$0xff]
        %v6653 = vld [vmem:[#allocation4 + $0x30] sm:$0xff]
        %v6654 = vld [vmem:[#allocation4 + $0x38] sm:$0xff]
        %v6655 = vld [vmem:[#allocation4 + $0x40] sm:$0xff]
        %v6656 = vld [vmem:[#allocation4 + $0x48] sm:$0xff]
        %6666 = vrot.lane.b32.xlu0 %v6648, 37
        %v6667 = vpop.permute.xlu0 %6666
        %6668 = vrot.lane.b32.xlu0 %v6649, 37
        %v6669 = vpop.permute.xlu0 %6668
        %6670 = vrot.lane.b32.xlu0 %v6650, 37
        %v6671 = vpop.permute.xlu0 %6670
        %6672 = vrot.lane.b32.xlu0 %v6651, 37
        %v6673 = vpop.permute.xlu0 %6672
        %6674 = vrot.lane.b32.xlu0 %v6652, 37
        %v6675 = vpop.permute.xlu0 %6674
        %6676 = vrot.lane.b32.xlu0 %v6653, 37
        %v6677 = vpop.permute.xlu0 %6676
        %6678 = vrot.lane.b32.xlu0 %v6654, 37
        %v6679 = vpop.permute.xlu0 %6678
        %6680 = vrot.lane.b32.xlu0 %v6655, 37
        %v6681 = vpop.permute.xlu0 %6680
        %6682 = vrot.lane.b32.xlu0 %v6656, 37
        %v6683 = vpop.permute.xlu0 %6682
        %v6684 = vsel %vm2087, %v6667, %v6669
        %v6685 = vsel %vm2087, %v6669, %v6671
        %v6686 = vsel %vm2087, %v6671, %v6673
        %v6687 = vsel %vm2087, %v6673, %v6675
        %v6688 = vsel %vm2087, %v6675, %v6677
        %v6689 = vsel %vm2087, %v6677, %v6679
        %v6690 = vsel %vm2087, %v6679, %v6681
        %v6691 = vsel %vm2087, %v6681, %v6683
        %6700 = vst [vmem:[#allocation2 + $0x500] sm:$0xff] %v6684
        %6701 = vst [vmem:[#allocation2 + $0x508] sm:$0xff] %v6685
        %6702 = vst [vmem:[#allocation2 + $0x510] sm:$0xff] %v6686
        %6703 = vst [vmem:[#allocation2 + $0x518] sm:$0xff] %v6687
        %6704 = vst [vmem:[#allocation2 + $0x520] sm:$0xff] %v6688
        %6705 = vst [vmem:[#allocation2 + $0x528] sm:$0xff] %v6689
        %6706 = vst [vmem:[#allocation2 + $0x530] sm:$0xff] %v6690
        %6707 = vst.msk [vmem:[#allocation2 + $0x538] sm:$0xff] %vm318, %v6691
        %v6708 = vld [vmem:[#allocation4 + $0x8] sm:$0xff]
        %v6709 = vld [vmem:[#allocation4 + $0x10] sm:$0xff]
        %v6710 = vld [vmem:[#allocation4 + $0x18] sm:$0xff]
        %v6711 = vld [vmem:[#allocation4 + $0x20] sm:$0xff]
        %v6712 = vld [vmem:[#allocation4 + $0x28] sm:$0xff]
        %v6713 = vld [vmem:[#allocation4 + $0x30] sm:$0xff]
        %v6714 = vld [vmem:[#allocation4 + $0x38] sm:$0xff]
        %v6715 = vld [vmem:[#allocation4 + $0x40] sm:$0xff]
        %v6716 = vld [vmem:[#allocation4 + $0x48] sm:$0xff]
        %6726 = vrot.lane.b32.xlu0 %v6708, 29
        %v6727 = vpop.permute.xlu0 %6726
        %6728 = vrot.lane.b32.xlu0 %v6709, 29
        %v6729 = vpop.permute.xlu0 %6728
        %6730 = vrot.lane.b32.xlu0 %v6710, 29
        %v6731 = vpop.permute.xlu0 %6730
        %6732 = vrot.lane.b32.xlu0 %v6711, 29
        %v6733 = vpop.permute.xlu0 %6732
        %6734 = vrot.lane.b32.xlu0 %v6712, 29
        %v6735 = vpop.permute.xlu0 %6734
        %6736 = vrot.lane.b32.xlu0 %v6713, 29
        %v6737 = vpop.permute.xlu0 %6736
        %6738 = vrot.lane.b32.xlu0 %v6714, 29
        %v6739 = vpop.permute.xlu0 %6738
        %6740 = vrot.lane.b32.xlu0 %v6715, 29
        %v6741 = vpop.permute.xlu0 %6740
        %6742 = vrot.lane.b32.xlu0 %v6716, 29
        %v6743 = vpop.permute.xlu0 %6742
        %v6744 = vsel %vm2177, %v6727, %v6729
        %v6745 = vsel %vm2177, %v6729, %v6731
        %v6746 = vsel %vm2177, %v6731, %v6733
        %v6747 = vsel %vm2177, %v6733, %v6735
        %v6748 = vsel %vm2177, %v6735, %v6737
        %v6749 = vsel %vm2177, %v6737, %v6739
        %v6750 = vsel %vm2177, %v6739, %v6741
        %v6751 = vsel %vm2177, %v6741, %v6743
        %6760 = vst [vmem:[#allocation2 + $0x540] sm:$0xff] %v6744
        %6761 = vst [vmem:[#allocation2 + $0x548] sm:$0xff] %v6745
        %6762 = vst [vmem:[#allocation2 + $0x550] sm:$0xff] %v6746
        %6763 = vst [vmem:[#allocation2 + $0x558] sm:$0xff] %v6747
        %6764 = vst [vmem:[#allocation2 + $0x560] sm:$0xff] %v6748
        %6765 = vst [vmem:[#allocation2 + $0x568] sm:$0xff] %v6749
        %6766 = vst [vmem:[#allocation2 + $0x570] sm:$0xff] %v6750
        %6767 = vst.msk [vmem:[#allocation2 + $0x578] sm:$0xff] %vm318, %v6751
        %v6768 = vld [vmem:[#allocation4 + $0x8] sm:$0xff]
        %v6769 = vld [vmem:[#allocation4 + $0x10] sm:$0xff]
        %v6770 = vld [vmem:[#allocation4 + $0x18] sm:$0xff]
        %v6771 = vld [vmem:[#allocation4 + $0x20] sm:$0xff]
        %v6772 = vld [vmem:[#allocation4 + $0x28] sm:$0xff]
        %v6773 = vld [vmem:[#allocation4 + $0x30] sm:$0xff]
        %v6774 = vld [vmem:[#allocation4 + $0x38] sm:$0xff]
        %v6775 = vld [vmem:[#allocation4 + $0x40] sm:$0xff]
        %v6776 = vld [vmem:[#allocation4 + $0x48] sm:$0xff]
        %6786 = vrot.lane.b32.xlu0 %v6768, 28
        %v6787 = vpop.permute.xlu0 %6786
        %6788 = vrot.lane.b32.xlu0 %v6769, 28
        %v6789 = vpop.permute.xlu0 %6788
        %6790 = vrot.lane.b32.xlu0 %v6770, 28
        %v6791 = vpop.permute.xlu0 %6790
        %6792 = vrot.lane.b32.xlu0 %v6771, 28
        %v6793 = vpop.permute.xlu0 %6792
        %6794 = vrot.lane.b32.xlu0 %v6772, 28
        %v6795 = vpop.permute.xlu0 %6794
        %6796 = vrot.lane.b32.xlu0 %v6773, 28
        %v6797 = vpop.permute.xlu0 %6796
        %6798 = vrot.lane.b32.xlu0 %v6774, 28
        %v6799 = vpop.permute.xlu0 %6798
        %6800 = vrot.lane.b32.xlu0 %v6775, 28
        %v6801 = vpop.permute.xlu0 %6800
        %6802 = vrot.lane.b32.xlu0 %v6776, 28
        %v6803 = vpop.permute.xlu0 %6802
        %v6804 = vsel %vm2267, %v6787, %v6789
        %v6805 = vsel %vm2267, %v6789, %v6791
        %v6806 = vsel %vm2267, %v6791, %v6793
        %v6807 = vsel %vm2267, %v6793, %v6795
        %v6808 = vsel %vm2267, %v6795, %v6797
        %v6809 = vsel %vm2267, %v6797, %v6799
        %v6810 = vsel %vm2267, %v6799, %v6801
        %v6811 = vsel %vm2267, %v6801, %v6803
        %6820 = vst [vmem:[#allocation2 + $0x580] sm:$0xff] %v6804
        %6821 = vst [vmem:[#allocation2 + $0x588] sm:$0xff] %v6805
        %6822 = vst [vmem:[#allocation2 + $0x590] sm:$0xff] %v6806
        %6823 = vst [vmem:[#allocation2 + $0x598] sm:$0xff] %v6807
        %6824 = vst [vmem:[#allocation2 + $0x5a0] sm:$0xff] %v6808
        %6825 = vst [vmem:[#allocation2 + $0x5a8] sm:$0xff] %v6809
        %6826 = vst [vmem:[#allocation2 + $0x5b0] sm:$0xff] %v6810
        %6827 = vst.msk [vmem:[#allocation2 + $0x5b8] sm:$0xff] %vm318, %v6811
        %v6828 = vld [vmem:[#allocation4 + $0x8] sm:$0xff]
        %v6829 = vld [vmem:[#allocation4 + $0x10] sm:$0xff]
        %v6830 = vld [vmem:[#allocation4 + $0x18] sm:$0xff]
        %v6831 = vld [vmem:[#allocation4 + $0x20] sm:$0xff]
        %v6832 = vld [vmem:[#allocation4 + $0x28] sm:$0xff]
        %v6833 = vld [vmem:[#allocation4 + $0x30] sm:$0xff]
        %v6834 = vld [vmem:[#allocation4 + $0x38] sm:$0xff]
        %v6835 = vld [vmem:[#allocation4 + $0x40] sm:$0xff]
        %v6836 = vld [vmem:[#allocation4 + $0x48] sm:$0xff]
        %6846 = vrot.lane.b32.xlu0 %v6828, 27
        %v6847 = vpop.permute.xlu0 %6846
        %6848 = vrot.lane.b32.xlu0 %v6829, 27
        %v6849 = vpop.permute.xlu0 %6848
        %6850 = vrot.lane.b32.xlu0 %v6830, 27
        %v6851 = vpop.permute.xlu0 %6850
        %6852 = vrot.lane.b32.xlu0 %v6831, 27
        %v6853 = vpop.permute.xlu0 %6852
        %6854 = vrot.lane.b32.xlu0 %v6832, 27
        %v6855 = vpop.permute.xlu0 %6854
        %6856 = vrot.lane.b32.xlu0 %v6833, 27
        %v6857 = vpop.permute.xlu0 %6856
        %6858 = vrot.lane.b32.xlu0 %v6834, 27
        %v6859 = vpop.permute.xlu0 %6858
        %6860 = vrot.lane.b32.xlu0 %v6835, 27
        %v6861 = vpop.permute.xlu0 %6860
        %6862 = vrot.lane.b32.xlu0 %v6836, 27
        %v6863 = vpop.permute.xlu0 %6862
        %v6864 = vsel %vm2357, %v6847, %v6849
        %v6865 = vsel %vm2357, %v6849, %v6851
        %v6866 = vsel %vm2357, %v6851, %v6853
        %v6867 = vsel %vm2357, %v6853, %v6855
        %v6868 = vsel %vm2357, %v6855, %v6857
        %v6869 = vsel %vm2357, %v6857, %v6859
        %v6870 = vsel %vm2357, %v6859, %v6861
        %v6871 = vsel %vm2357, %v6861, %v6863
        %6880 = vst [vmem:[#allocation2 + $0x5c0] sm:$0xff] %v6864
        %6881 = vst [vmem:[#allocation2 + $0x5c8] sm:$0xff] %v6865
        %6882 = vst [vmem:[#allocation2 + $0x5d0] sm:$0xff] %v6866
        %6883 = vst [vmem:[#allocation2 + $0x5d8] sm:$0xff] %v6867
        %6884 = vst [vmem:[#allocation2 + $0x5e0] sm:$0xff] %v6868
        %6885 = vst [vmem:[#allocation2 + $0x5e8] sm:$0xff] %v6869
        %6886 = vst [vmem:[#allocation2 + $0x5f0] sm:$0xff] %v6870
        %6887 = vst.msk [vmem:[#allocation2 + $0x5f8] sm:$0xff] %vm318, %v6871
        %v6888 = vld [vmem:[#allocation4 + $0x8] sm:$0xff]
        %v6889 = vld [vmem:[#allocation4 + $0x10] sm:$0xff]
        %v6890 = vld [vmem:[#allocation4 + $0x18] sm:$0xff]
        %v6891 = vld [vmem:[#allocation4 + $0x20] sm:$0xff]
        %v6892 = vld [vmem:[#allocation4 + $0x28] sm:$0xff]
        %v6893 = vld [vmem:[#allocation4 + $0x30] sm:$0xff]
        %v6894 = vld [vmem:[#allocation4 + $0x38] sm:$0xff]
        %v6895 = vld [vmem:[#allocation4 + $0x40] sm:$0xff]
        %v6896 = vld [vmem:[#allocation4 + $0x48] sm:$0xff]
        %6906 = vrot.lane.b32.xlu0 %v6888, 19
        %v6907 = vpop.permute.xlu0 %6906
        %6908 = vrot.lane.b32.xlu0 %v6889, 19
        %v6909 = vpop.permute.xlu0 %6908
        %6910 = vrot.lane.b32.xlu0 %v6890, 19
        %v6911 = vpop.permute.xlu0 %6910
        %6912 = vrot.lane.b32.xlu0 %v6891, 19
        %v6913 = vpop.permute.xlu0 %6912
        %6914 = vrot.lane.b32.xlu0 %v6892, 19
        %v6915 = vpop.permute.xlu0 %6914
        %6916 = vrot.lane.b32.xlu0 %v6893, 19
        %v6917 = vpop.permute.xlu0 %6916
        %6918 = vrot.lane.b32.xlu0 %v6894, 19
        %v6919 = vpop.permute.xlu0 %6918
        %6920 = vrot.lane.b32.xlu0 %v6895, 19
        %v6921 = vpop.permute.xlu0 %6920
        %6922 = vrot.lane.b32.xlu0 %v6896, 19
        %v6923 = vpop.permute.xlu0 %6922
        %v6924 = vsel %vm2447, %v6907, %v6909
        %v6925 = vsel %vm2447, %v6909, %v6911
        %v6926 = vsel %vm2447, %v6911, %v6913
        %v6927 = vsel %vm2447, %v6913, %v6915
        %v6928 = vsel %vm2447, %v6915, %v6917
        %v6929 = vsel %vm2447, %v6917, %v6919
        %v6930 = vsel %vm2447, %v6919, %v6921
        %v6931 = vsel %vm2447, %v6921, %v6923
        %6940 = vst [vmem:[#allocation2 + $0x600] sm:$0xff] %v6924
        %6941 = vst [vmem:[#allocation2 + $0x608] sm:$0xff] %v6925
        %6942 = vst [vmem:[#allocation2 + $0x610] sm:$0xff] %v6926
        %6943 = vst [vmem:[#allocation2 + $0x618] sm:$0xff] %v6927
        %6944 = vst [vmem:[#allocation2 + $0x620] sm:$0xff] %v6928
        %6945 = vst [vmem:[#allocation2 + $0x628] sm:$0xff] %v6929
        %6946 = vst [vmem:[#allocation2 + $0x630] sm:$0xff] %v6930
        %6947 = vst.msk [vmem:[#allocation2 + $0x638] sm:$0xff] %vm318, %v6931
        %v6948 = vld [vmem:[#allocation4 + $0x8] sm:$0xff]
        %v6949 = vld [vmem:[#allocation4 + $0x10] sm:$0xff]
        %v6950 = vld [vmem:[#allocation4 + $0x18] sm:$0xff]
        %v6951 = vld [vmem:[#allocation4 + $0x20] sm:$0xff]
        %v6952 = vld [vmem:[#allocation4 + $0x28] sm:$0xff]
        %v6953 = vld [vmem:[#allocation4 + $0x30] sm:$0xff]
        %v6954 = vld [vmem:[#allocation4 + $0x38] sm:$0xff]
        %v6955 = vld [vmem:[#allocation4 + $0x40] sm:$0xff]
        %v6956 = vld [vmem:[#allocation4 + $0x48] sm:$0xff]
        %6966 = vrot.lane.b32.xlu0 %v6948, 18
        %v6967 = vpop.permute.xlu0 %6966
        %6968 = vrot.lane.b32.xlu0 %v6949, 18
        %v6969 = vpop.permute.xlu0 %6968
        %6970 = vrot.lane.b32.xlu0 %v6950, 18
        %v6971 = vpop.permute.xlu0 %6970
        %6972 = vrot.lane.b32.xlu0 %v6951, 18
        %v6973 = vpop.permute.xlu0 %6972
        %6974 = vrot.lane.b32.xlu0 %v6952, 18
        %v6975 = vpop.permute.xlu0 %6974
        %6976 = vrot.lane.b32.xlu0 %v6953, 18
        %v6977 = vpop.permute.xlu0 %6976
        %6978 = vrot.lane.b32.xlu0 %v6954, 18
        %v6979 = vpop.permute.xlu0 %6978
        %6980 = vrot.lane.b32.xlu0 %v6955, 18
        %v6981 = vpop.permute.xlu0 %6980
        %6982 = vrot.lane.b32.xlu0 %v6956, 18
        %v6983 = vpop.permute.xlu0 %6982
        %v6984 = vsel %vm2537, %v6967, %v6969
        %v6985 = vsel %vm2537, %v6969, %v6971
        %v6986 = vsel %vm2537, %v6971, %v6973
        %v6987 = vsel %vm2537, %v6973, %v6975
        %v6988 = vsel %vm2537, %v6975, %v6977
        %v6989 = vsel %vm2537, %v6977, %v6979
        %v6990 = vsel %vm2537, %v6979, %v6981
        %v6991 = vsel %vm2537, %v6981, %v6983
        %7000 = vst [vmem:[#allocation2 + $0x640] sm:$0xff] %v6984
        %7001 = vst [vmem:[#allocation2 + $0x648] sm:$0xff] %v6985
        %7002 = vst [vmem:[#allocation2 + $0x650] sm:$0xff] %v6986
        %7003 = vst [vmem:[#allocation2 + $0x658] sm:$0xff] %v6987
        %7004 = vst [vmem:[#allocation2 + $0x660] sm:$0xff] %v6988
        %7005 = vst [vmem:[#allocation2 + $0x668] sm:$0xff] %v6989
        %7006 = vst [vmem:[#allocation2 + $0x670] sm:$0xff] %v6990
        %7007 = vst.msk [vmem:[#allocation2 + $0x678] sm:$0xff] %vm318, %v6991
        %v7008 = vld [vmem:[#allocation4 + $0x8] sm:$0xff]
        %v7009 = vld [vmem:[#allocation4 + $0x10] sm:$0xff]
        %v7010 = vld [vmem:[#allocation4 + $0x18] sm:$0xff]
        %v7011 = vld [vmem:[#allocation4 + $0x20] sm:$0xff]
        %v7012 = vld [vmem:[#allocation4 + $0x28] sm:$0xff]
        %v7013 = vld [vmem:[#allocation4 + $0x30] sm:$0xff]
        %v7014 = vld [vmem:[#allocation4 + $0x38] sm:$0xff]
        %v7015 = vld [vmem:[#allocation4 + $0x40] sm:$0xff]
        %v7016 = vld [vmem:[#allocation4 + $0x48] sm:$0xff]
        %7026 = vrot.lane.b32.xlu0 %v7008, 17
        %v7027 = vpop.permute.xlu0 %7026
        %7028 = vrot.lane.b32.xlu0 %v7009, 17
        %v7029 = vpop.permute.xlu0 %7028
        %7030 = vrot.lane.b32.xlu0 %v7010, 17
        %v7031 = vpop.permute.xlu0 %7030
        %7032 = vrot.lane.b32.xlu0 %v7011, 17
        %v7033 = vpop.permute.xlu0 %7032
        %7034 = vrot.lane.b32.xlu0 %v7012, 17
        %v7035 = vpop.permute.xlu0 %7034
        %7036 = vrot.lane.b32.xlu0 %v7013, 17
        %v7037 = vpop.permute.xlu0 %7036
        %7038 = vrot.lane.b32.xlu0 %v7014, 17
        %v7039 = vpop.permute.xlu0 %7038
        %7040 = vrot.lane.b32.xlu0 %v7015, 17
        %v7041 = vpop.permute.xlu0 %7040
        %7042 = vrot.lane.b32.xlu0 %v7016, 17
        %v7043 = vpop.permute.xlu0 %7042
        %v7044 = vsel %vm2627, %v7027, %v7029
        %v7045 = vsel %vm2627, %v7029, %v7031
        %v7046 = vsel %vm2627, %v7031, %v7033
        %v7047 = vsel %vm2627, %v7033, %v7035
        %v7048 = vsel %vm2627, %v7035, %v7037
        %v7049 = vsel %vm2627, %v7037, %v7039
        %v7050 = vsel %vm2627, %v7039, %v7041
        %v7051 = vsel %vm2627, %v7041, %v7043
        %7060 = vst [vmem:[#allocation2 + $0x680] sm:$0xff] %v7044
        %7061 = vst [vmem:[#allocation2 + $0x688] sm:$0xff] %v7045
        %7062 = vst [vmem:[#allocation2 + $0x690] sm:$0xff] %v7046
        %7063 = vst [vmem:[#allocation2 + $0x698] sm:$0xff] %v7047
        %7064 = vst [vmem:[#allocation2 + $0x6a0] sm:$0xff] %v7048
        %7065 = vst [vmem:[#allocation2 + $0x6a8] sm:$0xff] %v7049
        %7066 = vst [vmem:[#allocation2 + $0x6b0] sm:$0xff] %v7050
        %7067 = vst.msk [vmem:[#allocation2 + $0x6b8] sm:$0xff] %vm318, %v7051
        %v7068 = vld [vmem:[#allocation11] sm:$0xff]
        %v7069 = vld [vmem:[#allocation11 + $0x8] sm:$0xff]
        %v7070 = vld [vmem:[#allocation11 + $0x10] sm:$0xff]
        %v7071 = vld [vmem:[#allocation11 + $0x18] sm:$0xff]
        %v7072 = vld [vmem:[#allocation2] sm:$0xff]
        %v7073 = vld [vmem:[#allocation2 + $0x8] sm:$0xff]
        %v7074 = vld [vmem:[#allocation2 + $0x10] sm:$0xff]
        %v7075 = vld [vmem:[#allocation2 + $0x18] sm:$0xff]
        %v7076 = vld [vmem:[#allocation2 + $0x20] sm:$0xff]
        %v7077 = vld [vmem:[#allocation2 + $0x28] sm:$0xff]
        %v7078 = vld [vmem:[#allocation2 + $0x30] sm:$0xff]
        %v7079 = vld [vmem:[#allocation2 + $0x38] sm:$0xff]
        %v7080 = vld [vmem:[#allocation2 + $0x40] sm:$0xff]
        %v7081 = vld [vmem:[#allocation2 + $0x48] sm:$0xff]
        %v7082 = vld [vmem:[#allocation2 + $0x50] sm:$0xff]
        %v7083 = vld [vmem:[#allocation2 + $0x58] sm:$0xff]
        %v7084 = vld [vmem:[#allocation2 + $0x60] sm:$0xff]
        %v7085 = vld [vmem:[#allocation2 + $0x68] sm:$0xff]
        %v7086 = vld [vmem:[#allocation2 + $0x70] sm:$0xff]
        %v7087 = vld [vmem:[#allocation2 + $0x78] sm:$0xff]
        %v7088 = vld [vmem:[#allocation2 + $0x80] sm:$0xff]
        %v7089 = vld [vmem:[#allocation2 + $0x88] sm:$0xff]
        %v7090 = vld [vmem:[#allocation2 + $0x90] sm:$0xff]
        %v7091 = vld [vmem:[#allocation2 + $0x98] sm:$0xff]
        %v7092 = vld [vmem:[#allocation2 + $0xa0] sm:$0xff]
        %v7093 = vld [vmem:[#allocation2 + $0xa8] sm:$0xff]
        %v7094 = vld [vmem:[#allocation2 + $0xb0] sm:$0xff]
        %v7095 = vld [vmem:[#allocation2 + $0xb8] sm:$0xff]
        %v7096 = vld [vmem:[#allocation2 + $0xc0] sm:$0xff]
        %v7097 = vld [vmem:[#allocation2 + $0xc8] sm:$0xff]
        %v7098 = vld [vmem:[#allocation2 + $0xd0] sm:$0xff]
        %v7099 = vld [vmem:[#allocation2 + $0xd8] sm:$0xff]
        %v7100 = vld [vmem:[#allocation2 + $0xe0] sm:$0xff]
        %v7101 = vld [vmem:[#allocation2 + $0xe8] sm:$0xff]
        %v7102 = vld [vmem:[#allocation2 + $0xf0] sm:$0xff]
        %v7103 = vld [vmem:[#allocation2 + $0xf8] sm:$0xff]
        %v7104 = vld [vmem:[#allocation2 + $0x100] sm:$0xff]
        %v7105 = vld [vmem:[#allocation2 + $0x108] sm:$0xff]
        %v7106 = vld [vmem:[#allocation2 + $0x110] sm:$0xff]
        %v7107 = vld [vmem:[#allocation2 + $0x118] sm:$0xff]
        %v7108 = vld [vmem:[#allocation2 + $0x120] sm:$0xff]
        %v7109 = vld [vmem:[#allocation2 + $0x128] sm:$0xff]
        %v7110 = vld [vmem:[#allocation2 + $0x130] sm:$0xff]
        %v7111 = vld [vmem:[#allocation2 + $0x138] sm:$0xff]
        %v7112 = vld [vmem:[#allocation2 + $0x140] sm:$0xff]
        %v7113 = vld [vmem:[#allocation2 + $0x148] sm:$0xff]
        %v7114 = vld [vmem:[#allocation2 + $0x150] sm:$0xff]
        %v7115 = vld [vmem:[#allocation2 + $0x158] sm:$0xff]
        %v7116 = vld [vmem:[#allocation2 + $0x160] sm:$0xff]
        %v7117 = vld [vmem:[#allocation2 + $0x168] sm:$0xff]
        %v7118 = vld [vmem:[#allocation2 + $0x170] sm:$0xff]
        %v7119 = vld [vmem:[#allocation2 + $0x178] sm:$0xff]
        %v7120 = vld [vmem:[#allocation2 + $0x180] sm:$0xff]
        %v7121 = vld [vmem:[#allocation2 + $0x188] sm:$0xff]
        %v7122 = vld [vmem:[#allocation2 + $0x190] sm:$0xff]
        %v7123 = vld [vmem:[#allocation2 + $0x198] sm:$0xff]
        %v7124 = vld [vmem:[#allocation2 + $0x1a0] sm:$0xff]
        %v7125 = vld [vmem:[#allocation2 + $0x1a8] sm:$0xff]
        %v7126 = vld [vmem:[#allocation2 + $0x1b0] sm:$0xff]
        %v7127 = vld [vmem:[#allocation2 + $0x1b8] sm:$0xff]
        %v7128 = vld [vmem:[#allocation2 + $0x1c0] sm:$0xff]
        %v7129 = vld [vmem:[#allocation2 + $0x1c8] sm:$0xff]
        %v7130 = vld [vmem:[#allocation2 + $0x1d0] sm:$0xff]
        %v7131 = vld [vmem:[#allocation2 + $0x1d8] sm:$0xff]
        %v7132 = vld [vmem:[#allocation2 + $0x1e0] sm:$0xff]
        %v7133 = vld [vmem:[#allocation2 + $0x1e8] sm:$0xff]
        %v7134 = vld [vmem:[#allocation2 + $0x1f0] sm:$0xff]
        %v7135 = vld [vmem:[#allocation2 + $0x1f8] sm:$0xff]
        %v7136 = vld [vmem:[#allocation2 + $0x200] sm:$0xff]
        %v7137 = vld [vmem:[#allocation2 + $0x208] sm:$0xff]
        %v7138 = vld [vmem:[#allocation2 + $0x210] sm:$0xff]
        %v7139 = vld [vmem:[#allocation2 + $0x218] sm:$0xff]
        %v7140 = vld [vmem:[#allocation2 + $0x220] sm:$0xff]
        %v7141 = vld [vmem:[#allocation2 + $0x228] sm:$0xff]
        %v7142 = vld [vmem:[#allocation2 + $0x230] sm:$0xff]
        %v7143 = vld [vmem:[#allocation2 + $0x238] sm:$0xff]
        %v7144 = vld [vmem:[#allocation2 + $0x240] sm:$0xff]
        %v7145 = vld [vmem:[#allocation2 + $0x248] sm:$0xff]
        %v7146 = vld [vmem:[#allocation2 + $0x250] sm:$0xff]
        %v7147 = vld [vmem:[#allocation2 + $0x258] sm:$0xff]
        %v7148 = vld [vmem:[#allocation2 + $0x260] sm:$0xff]
        %v7149 = vld [vmem:[#allocation2 + $0x268] sm:$0xff]
        %v7150 = vld [vmem:[#allocation2 + $0x270] sm:$0xff]
        %v7151 = vld [vmem:[#allocation2 + $0x278] sm:$0xff]
        %v7152 = vld [vmem:[#allocation2 + $0x280] sm:$0xff]
        %v7153 = vld [vmem:[#allocation2 + $0x288] sm:$0xff]
        %v7154 = vld [vmem:[#allocation2 + $0x290] sm:$0xff]
        %v7155 = vld [vmem:[#allocation2 + $0x298] sm:$0xff]
        %v7156 = vld [vmem:[#allocation2 + $0x2a0] sm:$0xff]
        %v7157 = vld [vmem:[#allocation2 + $0x2a8] sm:$0xff]
        %v7158 = vld [vmem:[#allocation2 + $0x2b0] sm:$0xff]
        %v7159 = vld [vmem:[#allocation2 + $0x2b8] sm:$0xff]
        %v7160 = vld [vmem:[#allocation2 + $0x2c0] sm:$0xff]
        %v7161 = vld [vmem:[#allocation2 + $0x2c8] sm:$0xff]
        %v7162 = vld [vmem:[#allocation2 + $0x2d0] sm:$0xff]
        %v7163 = vld [vmem:[#allocation2 + $0x2d8] sm:$0xff]
        %v7164 = vld [vmem:[#allocation2 + $0x2e0] sm:$0xff]
        %v7165 = vld [vmem:[#allocation2 + $0x2e8] sm:$0xff]
        %v7166 = vld [vmem:[#allocation2 + $0x2f0] sm:$0xff]
        %v7167 = vld [vmem:[#allocation2 + $0x2f8] sm:$0xff]
        %v7168 = vld [vmem:[#allocation2 + $0x300] sm:$0xff]
        %v7169 = vld [vmem:[#allocation2 + $0x308] sm:$0xff]
        %v7170 = vld [vmem:[#allocation2 + $0x310] sm:$0xff]
        %v7171 = vld [vmem:[#allocation2 + $0x318] sm:$0xff]
        %v7172 = vld [vmem:[#allocation2 + $0x320] sm:$0xff]
        %v7173 = vld [vmem:[#allocation2 + $0x328] sm:$0xff]
        %v7174 = vld [vmem:[#allocation2 + $0x330] sm:$0xff]
        %v7175 = vld [vmem:[#allocation2 + $0x338] sm:$0xff]
        %v7176 = vld [vmem:[#allocation2 + $0x340] sm:$0xff]
        %v7177 = vld [vmem:[#allocation2 + $0x348] sm:$0xff]
        %v7178 = vld [vmem:[#allocation2 + $0x350] sm:$0xff]
        %v7179 = vld [vmem:[#allocation2 + $0x358] sm:$0xff]
        %v7180 = vld [vmem:[#allocation2 + $0x360] sm:$0xff]
        %v7181 = vld [vmem:[#allocation2 + $0x368] sm:$0xff]
        %v7182 = vld [vmem:[#allocation2 + $0x370] sm:$0xff]
        %v7183 = vld [vmem:[#allocation2 + $0x378] sm:$0xff]
        %v7184 = vld [vmem:[#allocation2 + $0x380] sm:$0xff]
        %v7185 = vld [vmem:[#allocation2 + $0x388] sm:$0xff]
        %v7186 = vld [vmem:[#allocation2 + $0x390] sm:$0xff]
        %v7187 = vld [vmem:[#allocation2 + $0x398] sm:$0xff]
        %v7188 = vld [vmem:[#allocation2 + $0x3a0] sm:$0xff]
        %v7189 = vld [vmem:[#allocation2 + $0x3a8] sm:$0xff]
        %v7190 = vld [vmem:[#allocation2 + $0x3b0] sm:$0xff]
        %v7191 = vld [vmem:[#allocation2 + $0x3b8] sm:$0xff]
        %v7192 = vld [vmem:[#allocation2 + $0x3c0] sm:$0xff]
        %v7193 = vld [vmem:[#allocation2 + $0x3c8] sm:$0xff]
        %v7194 = vld [vmem:[#allocation2 + $0x3d0] sm:$0xff]
        %v7195 = vld [vmem:[#allocation2 + $0x3d8] sm:$0xff]
        %v7196 = vld [vmem:[#allocation2 + $0x3e0] sm:$0xff]
        %v7197 = vld [vmem:[#allocation2 + $0x3e8] sm:$0xff]
        %v7198 = vld [vmem:[#allocation2 + $0x3f0] sm:$0xff]
        %v7199 = vld [vmem:[#allocation2 + $0x3f8] sm:$0xff]
        %v7200 = vld [vmem:[#allocation2 + $0x400] sm:$0xff]
        %v7201 = vld [vmem:[#allocation2 + $0x408] sm:$0xff]
        %v7202 = vld [vmem:[#allocation2 + $0x410] sm:$0xff]
        %v7203 = vld [vmem:[#allocation2 + $0x418] sm:$0xff]
        %v7204 = vld [vmem:[#allocation2 + $0x420] sm:$0xff]
        %v7205 = vld [vmem:[#allocation2 + $0x428] sm:$0xff]
        %v7206 = vld [vmem:[#allocation2 + $0x430] sm:$0xff]
        %v7207 = vld [vmem:[#allocation2 + $0x438] sm:$0xff]
        %v7208 = vld [vmem:[#allocation2 + $0x440] sm:$0xff]
        %v7209 = vld [vmem:[#allocation2 + $0x448] sm:$0xff]
        %v7210 = vld [vmem:[#allocation2 + $0x450] sm:$0xff]
        %v7211 = vld [vmem:[#allocation2 + $0x458] sm:$0xff]
        %v7212 = vld [vmem:[#allocation2 + $0x460] sm:$0xff]
        %v7213 = vld [vmem:[#allocation2 + $0x468] sm:$0xff]
        %v7214 = vld [vmem:[#allocation2 + $0x470] sm:$0xff]
        %v7215 = vld [vmem:[#allocation2 + $0x478] sm:$0xff]
        %v7216 = vld [vmem:[#allocation2 + $0x480] sm:$0xff]
        %v7217 = vld [vmem:[#allocation2 + $0x488] sm:$0xff]
        %v7218 = vld [vmem:[#allocation2 + $0x490] sm:$0xff]
        %v7219 = vld [vmem:[#allocation2 + $0x498] sm:$0xff]
        %v7220 = vld [vmem:[#allocation2 + $0x4a0] sm:$0xff]
        %v7221 = vld [vmem:[#allocation2 + $0x4a8] sm:$0xff]
        %v7222 = vld [vmem:[#allocation2 + $0x4b0] sm:$0xff]
        %v7223 = vld [vmem:[#allocation2 + $0x4b8] sm:$0xff]
        %v7224 = vld [vmem:[#allocation2 + $0x4c0] sm:$0xff]
        %v7225 = vld [vmem:[#allocation2 + $0x4c8] sm:$0xff]
        %v7226 = vld [vmem:[#allocation2 + $0x4d0] sm:$0xff]
        %v7227 = vld [vmem:[#allocation2 + $0x4d8] sm:$0xff]
        %v7228 = vld [vmem:[#allocation2 + $0x4e0] sm:$0xff]
        %v7229 = vld [vmem:[#allocation2 + $0x4e8] sm:$0xff]
        %v7230 = vld [vmem:[#allocation2 + $0x4f0] sm:$0xff]
        %v7231 = vld [vmem:[#allocation2 + $0x4f8] sm:$0xff]
        %v7232 = vld [vmem:[#allocation2 + $0x500] sm:$0xff]
        %v7233 = vld [vmem:[#allocation2 + $0x508] sm:$0xff]
        %v7234 = vld [vmem:[#allocation2 + $0x510] sm:$0xff]
        %v7235 = vld [vmem:[#allocation2 + $0x518] sm:$0xff]
        %v7236 = vld [vmem:[#allocation2 + $0x520] sm:$0xff]
        %v7237 = vld [vmem:[#allocation2 + $0x528] sm:$0xff]
        %v7238 = vld [vmem:[#allocation2 + $0x530] sm:$0xff]
        %v7239 = vld [vmem:[#allocation2 + $0x538] sm:$0xff]
        %v7240 = vld [vmem:[#allocation2 + $0x540] sm:$0xff]
        %v7241 = vld [vmem:[#allocation2 + $0x548] sm:$0xff]
        %v7242 = vld [vmem:[#allocation2 + $0x550] sm:$0xff]
        %v7243 = vld [vmem:[#allocation2 + $0x558] sm:$0xff]
        %v7244 = vld [vmem:[#allocation2 + $0x560] sm:$0xff]
        %v7245 = vld [vmem:[#allocation2 + $0x568] sm:$0xff]
        %v7246 = vld [vmem:[#allocation2 + $0x570] sm:$0xff]
        %v7247 = vld [vmem:[#allocation2 + $0x578] sm:$0xff]
        %v7248 = vld [vmem:[#allocation2 + $0x580] sm:$0xff]
        %v7249 = vld [vmem:[#allocation2 + $0x588] sm:$0xff]
        %v7250 = vld [vmem:[#allocation2 + $0x590] sm:$0xff]
        %v7251 = vld [vmem:[#allocation2 + $0x598] sm:$0xff]
        %v7252 = vld [vmem:[#allocation2 + $0x5a0] sm:$0xff]
        %v7253 = vld [vmem:[#allocation2 + $0x5a8] sm:$0xff]
        %v7254 = vld [vmem:[#allocation2 + $0x5b0] sm:$0xff]
        %v7255 = vld [vmem:[#allocation2 + $0x5b8] sm:$0xff]
        %v7256 = vld [vmem:[#allocation2 + $0x5c0] sm:$0xff]
        %v7257 = vld [vmem:[#allocation2 + $0x5c8] sm:$0xff]
        %v7258 = vld [vmem:[#allocation2 + $0x5d0] sm:$0xff]
        %v7259 = vld [vmem:[#allocation2 + $0x5d8] sm:$0xff]
        %v7260 = vld [vmem:[#allocation2 + $0x5e0] sm:$0xff]
        %v7261 = vld [vmem:[#allocation2 + $0x5e8] sm:$0xff]
        %v7262 = vld [vmem:[#allocation2 + $0x5f0] sm:$0xff]
        %v7263 = vld [vmem:[#allocation2 + $0x5f8] sm:$0xff]
        %v7264 = vld [vmem:[#allocation2 + $0x600] sm:$0xff]
        %v7265 = vld [vmem:[#allocation2 + $0x608] sm:$0xff]
        %v7266 = vld [vmem:[#allocation2 + $0x610] sm:$0xff]
        %v7267 = vld [vmem:[#allocation2 + $0x618] sm:$0xff]
        %v7268 = vld [vmem:[#allocation2 + $0x620] sm:$0xff]
        %v7269 = vld [vmem:[#allocation2 + $0x628] sm:$0xff]
        %v7270 = vld [vmem:[#allocation2 + $0x630] sm:$0xff]
        %v7271 = vld [vmem:[#allocation2 + $0x638] sm:$0xff]
        %v7272 = vld [vmem:[#allocation2 + $0x640] sm:$0xff]
        %v7273 = vld [vmem:[#allocation2 + $0x648] sm:$0xff]
        %v7274 = vld [vmem:[#allocation2 + $0x650] sm:$0xff]
        %v7275 = vld [vmem:[#allocation2 + $0x658] sm:$0xff]
        %v7276 = vld [vmem:[#allocation2 + $0x660] sm:$0xff]
        %v7277 = vld [vmem:[#allocation2 + $0x668] sm:$0xff]
        %v7278 = vld [vmem:[#allocation2 + $0x670] sm:$0xff]
        %v7279 = vld [vmem:[#allocation2 + $0x678] sm:$0xff]
        %v7280 = vld [vmem:[#allocation2 + $0x680] sm:$0xff]
        %v7281 = vld [vmem:[#allocation2 + $0x688] sm:$0xff]
        %v7282 = vld [vmem:[#allocation2 + $0x690] sm:$0xff]
        %v7283 = vld [vmem:[#allocation2 + $0x698] sm:$0xff]
        %v7284 = vld [vmem:[#allocation2 + $0x6a0] sm:$0xff]
        %v7285 = vld [vmem:[#allocation2 + $0x6a8] sm:$0xff]
        %v7286 = vld [vmem:[#allocation2 + $0x6b0] sm:$0xff]
        %v7287 = vld [vmem:[#allocation2 + $0x6b8] sm:$0xff]
        %7289 = vset.pattern.permute.xlu0 2
        %7290 = vperm.xlu0 %7289, %v5525
        %v7291 = vpop.permute.xlu0 %7290
        %7294 = vset.pattern.permute.xlu0 2
        %7295 = vperm.xlu0 %7294, %v5526
        %v7296 = vpop.permute.xlu0 %7295
        %v7302 = vunpack.c.l.b16 %v7068
        %v7303 = vunpack.c.h.b16 %v7068
        %v7304 = vunpack.c.l.b16 %v7069
        %v7305 = vunpack.c.h.b16 %v7069
        %v7306 = vunpack.c.l.b16 %v7070
        %v7307 = vunpack.c.h.b16 %v7070
        %v7308 = vunpack.c.l.b16 %v7071
        %v7309 = vunpack.c.h.b16 %v7071
        %v7310 = vpack.c.b16 %v7306, %v7302
        %v7311 = vpack.c.b16 %v7307, %v7303
        %v7312 = vpack.c.b16 %v7308, %v7304
        %v7313 = vpack.c.b16 %v7309, %v7305
        %v7318 = vsel %vm2901, %v7313, 0
        %7320 = vmatprep.subr.bf16.mxu0 %v7073
        %7321 = vmatpush1.bf16.msra.mxu0 %v7072
        %7322 = vmatprep.subr.bf16.mxu0 %v7081
        %7323 = vmatpush1.bf16.msra.mxu0 %v7080
        %7324 = vmatprep.subr.bf16.mxu0 %v7089
        %7325 = vmatpush1.bf16.msra.mxu0 %v7088
        %7326 = vmatprep.subr.bf16.mxu0 %v7097
        %7327 = vmatpush1.bf16.msra.mxu0 %v7096
        %7328 = vmatprep.subr.bf16.mxu0 %v7105
        %7329 = vmatpush1.bf16.msra.mxu0 %v7104
        %7330 = vmatprep.subr.bf16.mxu0 %v7113
        %7331 = vmatpush1.bf16.msra.mxu0 %v7112
        %7332 = vmatprep.subr.bf16.mxu0 %v7121
        %7333 = vmatpush1.bf16.msra.mxu0 %v7120
        %7334 = vmatprep.subr.bf16.mxu0 %v7129
        %7335 = vmatpush1.bf16.msra.mxu0 %v7128
        %7336 = vmatprep.subr.bf16.mxu0 %v7137
        %7337 = vmatpush1.bf16.msra.mxu0 %v7136
        %7338 = vmatprep.subr.bf16.mxu0 %v7145
        %7339 = vmatpush1.bf16.msra.mxu0 %v7144
        %7340 = vmatprep.subr.bf16.mxu0 %v7153
        %7341 = vmatpush1.bf16.msra.mxu0 %v7152
        %7342 = vmatprep.subr.bf16.mxu0 %v7161
        %7343 = vmatpush1.bf16.msra.mxu0 %v7160
        %7344 = vmatprep.subr.bf16.mxu0 %v7169
        %7345 = vmatpush1.bf16.msra.mxu0 %v7168
        %7346 = vmatprep.subr.bf16.mxu0 %v7177
        %7347 = vmatpush1.bf16.msra.mxu0 %v7176
        %7348 = vmatprep.subr.bf16.mxu0 %v7185
        %7349 = vmatpush1.bf16.msra.mxu0 %v7184
        %7350 = vmatprep.subr.bf16.mxu0 %v7193
        %7351 = vmatpush1.bf16.msra.mxu0 %v7192
        %7352 = vmatprep.mubr.bf16.mxu0 %v7311
        %7353 = vmatmul.mubr.bf16.gmra.mrb[0].mxu0 %v7310
        %v7354 = vpop.f32.mrb[0].mxu0
        %v7355 = vadd.f32 %v7291, %v7354
        %v7356 = vpop.f32.mrb[0].mxu0
        %v7357 = vadd.f32 %v7291, %v7356
        %v7358 = vpop.f32.mrb[0].mxu0
        %v7359 = vadd.f32 %v7296, %v7358
        %v7360 = vpop.f32.mrb[0].mxu0
        %v7361 = vadd.f32 %v7296, %v7360
        %7362 = vdwg.mxu0
        %7363 = vmatprep.subr.bf16.mxu0 %v7201
        %7364 = vmatpush1.bf16.msra.mxu0 %v7200
        %7365 = vmatprep.subr.bf16.mxu0 %v7209
        %7366 = vmatpush1.bf16.msra.mxu0 %v7208
        %7367 = vmatprep.subr.bf16.mxu0 %v7217
        %7368 = vmatpush1.bf16.msra.mxu0 %v7216
        %7369 = vmatprep.subr.bf16.mxu0 %v7225
        %7370 = vmatpush1.bf16.msra.mxu0 %v7224
        %7371 = vmatprep.subr.bf16.mxu0 %v7233
        %7372 = vmatpush1.bf16.msra.mxu0 %v7232
        %7373 = vmatprep.subr.bf16.mxu0 %v7241
        %7374 = vmatpush1.bf16.msra.mxu0 %v7240
        %7375 = vmatprep.subr.bf16.mxu0 %v7249
        %7376 = vmatpush1.bf16.msra.mxu0 %v7248
        %7377 = vmatprep.subr.bf16.mxu0 %v7257
        %7378 = vmatpush1.bf16.msra.mxu0 %v7256
        %7379 = vmatprep.subr.bf16.mxu0 %v7265
        %7380 = vmatpush1.bf16.msra.mxu0 %v7264
        %7381 = vmatprep.subr.bf16.mxu0 %v7273
        %7382 = vmatpush1.bf16.msra.mxu0 %v7272
        %7383 = vmatprep.subr.bf16.mxu0 %v7281
        %7384 = vmatpush1.bf16.msra.mxu0 %v7280
        %7385 = vmatprep.subr.bf16.mxu0 0
        %7386 = vmatpush1.bf16.msra.mxu0 0
        %7387 = vmatprep.subr.bf16.mxu0 0
        %7388 = vmatpush1.bf16.msra.mxu0 0
        %7389 = vmatprep.subr.bf16.mxu0 0
        %7390 = vmatpush1.bf16.msra.mxu0 0
        %7391 = vmatprep.subr.bf16.mxu0 0
        %7392 = vmatpush1.bf16.msra.mxu0 0
        %7393 = vmatprep.subr.bf16.mxu0 0
        %7394 = vmatpush1.bf16.msra.mxu0 0
        %7395 = vmatprep.mubr.bf16.mxu0 %v7318
        %7396 = vmatmul.mubr.bf16.gmra.mrb[0].mxu0 %v7312
        %v7397 = vpop.f32.mrb[0].mxu0
        %v7398 = vadd.f32 %v7355, %v7397
        %v7399 = vpop.f32.mrb[0].mxu0
        %v7400 = vadd.f32 %v7357, %v7399
        %v7401 = vpop.f32.mrb[0].mxu0
        %v7402 = vadd.f32 %v7359, %v7401
        %v7403 = vpop.f32.mrb[0].mxu0
        %v7404 = vadd.f32 %v7361, %v7403
        %7405 = vdwg.mxu0
        %7406 = vmatprep.subr.bf16.mxu0 %v7075
        %7407 = vmatpush1.bf16.msra.mxu0 %v7074
        %7408 = vmatprep.subr.bf16.mxu0 %v7083
        %7409 = vmatpush1.bf16.msra.mxu0 %v7082
        %7410 = vmatprep.subr.bf16.mxu0 %v7091
        %7411 = vmatpush1.bf16.msra.mxu0 %v7090
        %7412 = vmatprep.subr.bf16.mxu0 %v7099
        %7413 = vmatpush1.bf16.msra.mxu0 %v7098
        %7414 = vmatprep.subr.bf16.mxu0 %v7107
        %7415 = vmatpush1.bf16.msra.mxu0 %v7106
        %7416 = vmatprep.subr.bf16.mxu0 %v7115
        %7417 = vmatpush1.bf16.msra.mxu0 %v7114
        %7418 = vmatprep.subr.bf16.mxu0 %v7123
        %7419 = vmatpush1.bf16.msra.mxu0 %v7122
        %7420 = vmatprep.subr.bf16.mxu0 %v7131
        %7421 = vmatpush1.bf16.msra.mxu0 %v7130
        %7422 = vmatprep.subr.bf16.mxu0 %v7139
        %7423 = vmatpush1.bf16.msra.mxu0 %v7138
        %7424 = vmatprep.subr.bf16.mxu0 %v7147
        %7425 = vmatpush1.bf16.msra.mxu0 %v7146
        %7426 = vmatprep.subr.bf16.mxu0 %v7155
        %7427 = vmatpush1.bf16.msra.mxu0 %v7154
        %7428 = vmatprep.subr.bf16.mxu0 %v7163
        %7429 = vmatpush1.bf16.msra.mxu0 %v7162
        %7430 = vmatprep.subr.bf16.mxu0 %v7171
        %7431 = vmatpush1.bf16.msra.mxu0 %v7170
        %7432 = vmatprep.subr.bf16.mxu0 %v7179
        %7433 = vmatpush1.bf16.msra.mxu0 %v7178
        %7434 = vmatprep.subr.bf16.mxu0 %v7187
        %7435 = vmatpush1.bf16.msra.mxu0 %v7186
        %7436 = vmatprep.subr.bf16.mxu0 %v7195
        %7437 = vmatpush1.bf16.msra.mxu0 %v7194
        %7438 = vmatprep.mubr.bf16.mxu0 %v7311
        %7439 = vmatmul.mubr.bf16.gmra.mrb[0].mxu0 %v7310
        %v7440 = vpop.f32.mrb[0].mxu0
        %v7441 = vadd.f32 %v7291, %v7440
        %v7442 = vpop.f32.mrb[0].mxu0
        %v7443 = vadd.f32 %v7291, %v7442
        %v7444 = vpop.f32.mrb[0].mxu0
        %v7445 = vadd.f32 %v7296, %v7444
        %v7446 = vpop.f32.mrb[0].mxu0
        %v7447 = vadd.f32 %v7296, %v7446
        %7448 = vdwg.mxu0
        %7449 = vmatprep.subr.bf16.mxu0 %v7203
        %7450 = vmatpush1.bf16.msra.mxu0 %v7202
        %7451 = vmatprep.subr.bf16.mxu0 %v7211
        %7452 = vmatpush1.bf16.msra.mxu0 %v7210
        %7453 = vmatprep.subr.bf16.mxu0 %v7219
        %7454 = vmatpush1.bf16.msra.mxu0 %v7218
        %7455 = vmatprep.subr.bf16.mxu0 %v7227
        %7456 = vmatpush1.bf16.msra.mxu0 %v7226
        %7457 = vmatprep.subr.bf16.mxu0 %v7235
        %7458 = vmatpush1.bf16.msra.mxu0 %v7234
        %7459 = vmatprep.subr.bf16.mxu0 %v7243
        %7460 = vmatpush1.bf16.msra.mxu0 %v7242
        %7461 = vmatprep.subr.bf16.mxu0 %v7251
        %7462 = vmatpush1.bf16.msra.mxu0 %v7250
        %7463 = vmatprep.subr.bf16.mxu0 %v7259
        %7464 = vmatpush1.bf16.msra.mxu0 %v7258
        %7465 = vmatprep.subr.bf16.mxu0 %v7267
        %7466 = vmatpush1.bf16.msra.mxu0 %v7266
        %7467 = vmatprep.subr.bf16.mxu0 %v7275
        %7468 = vmatpush1.bf16.msra.mxu0 %v7274
        %7469 = vmatprep.subr.bf16.mxu0 %v7283
        %7470 = vmatpush1.bf16.msra.mxu0 %v7282
        %7471 = vmatprep.subr.bf16.mxu0 0
        %7472 = vmatpush1.bf16.msra.mxu0 0
        %7473 = vmatprep.subr.bf16.mxu0 0
        %7474 = vmatpush1.bf16.msra.mxu0 0
        %7475 = vmatprep.subr.bf16.mxu0 0
        %7476 = vmatpush1.bf16.msra.mxu0 0
        %7477 = vmatprep.subr.bf16.mxu0 0
        %7478 = vmatpush1.bf16.msra.mxu0 0
        %7479 = vmatprep.subr.bf16.mxu0 0
        %7480 = vmatpush1.bf16.msra.mxu0 0
        %7481 = vmatprep.mubr.bf16.mxu0 %v7318
        %7482 = vmatmul.mubr.bf16.gmra.mrb[0].mxu0 %v7312
        %v7483 = vpop.f32.mrb[0].mxu0
        %v7484 = vadd.f32 %v7441, %v7483
        %v7485 = vpop.f32.mrb[0].mxu0
        %v7486 = vadd.f32 %v7443, %v7485
        %v7487 = vpop.f32.mrb[0].mxu0
        %v7488 = vadd.f32 %v7445, %v7487
        %v7489 = vpop.f32.mrb[0].mxu0
        %v7490 = vadd.f32 %v7447, %v7489
        %7491 = vdwg.mxu0
        %7492 = vmatprep.subr.bf16.mxu0 %v7077
        %7493 = vmatpush1.bf16.msra.mxu0 %v7076
        %7494 = vmatprep.subr.bf16.mxu0 %v7085
        %7495 = vmatpush1.bf16.msra.mxu0 %v7084
        %7496 = vmatprep.subr.bf16.mxu0 %v7093
        %7497 = vmatpush1.bf16.msra.mxu0 %v7092
        %7498 = vmatprep.subr.bf16.mxu0 %v7101
        %7499 = vmatpush1.bf16.msra.mxu0 %v7100
        %7500 = vmatprep.subr.bf16.mxu0 %v7109
        %7501 = vmatpush1.bf16.msra.mxu0 %v7108
        %7502 = vmatprep.subr.bf16.mxu0 %v7117
        %7503 = vmatpush1.bf16.msra.mxu0 %v7116
        %7504 = vmatprep.subr.bf16.mxu0 %v7125
        %7505 = vmatpush1.bf16.msra.mxu0 %v7124
        %7506 = vmatprep.subr.bf16.mxu0 %v7133
        %7507 = vmatpush1.bf16.msra.mxu0 %v7132
        %7508 = vmatprep.subr.bf16.mxu0 %v7141
        %7509 = vmatpush1.bf16.msra.mxu0 %v7140
        %7510 = vmatprep.subr.bf16.mxu0 %v7149
        %7511 = vmatpush1.bf16.msra.mxu0 %v7148
        %7512 = vmatprep.subr.bf16.mxu0 %v7157
        %7513 = vmatpush1.bf16.msra.mxu0 %v7156
        %7514 = vmatprep.subr.bf16.mxu0 %v7165
        %7515 = vmatpush1.bf16.msra.mxu0 %v7164
        %7516 = vmatprep.subr.bf16.mxu0 %v7173
        %7517 = vmatpush1.bf16.msra.mxu0 %v7172
        %7518 = vmatprep.subr.bf16.mxu0 %v7181
        %7519 = vmatpush1.bf16.msra.mxu0 %v7180
        %7520 = vmatprep.subr.bf16.mxu0 %v7189
        %7521 = vmatpush1.bf16.msra.mxu0 %v7188
        %7522 = vmatprep.subr.bf16.mxu0 %v7197
        %7523 = vmatpush1.bf16.msra.mxu0 %v7196
        %7524 = vmatprep.mubr.bf16.mxu0 %v7311
        %7525 = vmatmul.mubr.bf16.gmra.mrb[0].mxu0 %v7310
        %v7526 = vpop.f32.mrb[0].mxu0
        %v7527 = vadd.f32 %v7291, %v7526
        %v7528 = vpop.f32.mrb[0].mxu0
        %v7529 = vadd.f32 %v7291, %v7528
        %v7530 = vpop.f32.mrb[0].mxu0
        %v7531 = vadd.f32 %v7296, %v7530
        %v7532 = vpop.f32.mrb[0].mxu0
        %v7533 = vadd.f32 %v7296, %v7532
        %7534 = vdwg.mxu0
        %7535 = vmatprep.subr.bf16.mxu0 %v7205
        %7536 = vmatpush1.bf16.msra.mxu0 %v7204
        %7537 = vmatprep.subr.bf16.mxu0 %v7213
        %7538 = vmatpush1.bf16.msra.mxu0 %v7212
        %7539 = vmatprep.subr.bf16.mxu0 %v7221
        %7540 = vmatpush1.bf16.msra.mxu0 %v7220
        %7541 = vmatprep.subr.bf16.mxu0 %v7229
        %7542 = vmatpush1.bf16.msra.mxu0 %v7228
        %7543 = vmatprep.subr.bf16.mxu0 %v7237
        %7544 = vmatpush1.bf16.msra.mxu0 %v7236
        %7545 = vmatprep.subr.bf16.mxu0 %v7245
        %7546 = vmatpush1.bf16.msra.mxu0 %v7244
        %7547 = vmatprep.subr.bf16.mxu0 %v7253
        %7548 = vmatpush1.bf16.msra.mxu0 %v7252
        %7549 = vmatprep.subr.bf16.mxu0 %v7261
        %7550 = vmatpush1.bf16.msra.mxu0 %v7260
        %7551 = vmatprep.subr.bf16.mxu0 %v7269
        %7552 = vmatpush1.bf16.msra.mxu0 %v7268
        %7553 = vmatprep.subr.bf16.mxu0 %v7277
        %7554 = vmatpush1.bf16.msra.mxu0 %v7276
        %7555 = vmatprep.subr.bf16.mxu0 %v7285
        %7556 = vmatpush1.bf16.msra.mxu0 %v7284
        %7557 = vmatprep.subr.bf16.mxu0 0
        %7558 = vmatpush1.bf16.msra.mxu0 0
        %7559 = vmatprep.subr.bf16.mxu0 0
        %7560 = vmatpush1.bf16.msra.mxu0 0
        %7561 = vmatprep.subr.bf16.mxu0 0
        %7562 = vmatpush1.bf16.msra.mxu0 0
        %7563 = vmatprep.subr.bf16.mxu0 0
        %7564 = vmatpush1.bf16.msra.mxu0 0
        %7565 = vmatprep.subr.bf16.mxu0 0
        %7566 = vmatpush1.bf16.msra.mxu0 0
        %7567 = vmatprep.mubr.bf16.mxu0 %v7318
        %7568 = vmatmul.mubr.bf16.gmra.mrb[0].mxu0 %v7312
        %v7569 = vpop.f32.mrb[0].mxu0
        %v7570 = vadd.f32 %v7527, %v7569
        %v7571 = vpop.f32.mrb[0].mxu0
        %v7572 = vadd.f32 %v7529, %v7571
        %v7573 = vpop.f32.mrb[0].mxu0
        %v7574 = vadd.f32 %v7531, %v7573
        %v7575 = vpop.f32.mrb[0].mxu0
        %v7576 = vadd.f32 %v7533, %v7575
        %7577 = vdwg.mxu0
        %7578 = vmatprep.subr.bf16.mxu0 %v7079
        %7579 = vmatpush1.bf16.msra.mxu0 %v7078
        %7580 = vmatprep.subr.bf16.mxu0 %v7087
        %7581 = vmatpush1.bf16.msra.mxu0 %v7086
        %7582 = vmatprep.subr.bf16.mxu0 %v7095
        %7583 = vmatpush1.bf16.msra.mxu0 %v7094
        %7584 = vmatprep.subr.bf16.mxu0 %v7103
        %7585 = vmatpush1.bf16.msra.mxu0 %v7102
        %7586 = vmatprep.subr.bf16.mxu0 %v7111
        %7587 = vmatpush1.bf16.msra.mxu0 %v7110
        %7588 = vmatprep.subr.bf16.mxu0 %v7119
        %7589 = vmatpush1.bf16.msra.mxu0 %v7118
        %7590 = vmatprep.subr.bf16.mxu0 %v7127
        %7591 = vmatpush1.bf16.msra.mxu0 %v7126
        %7592 = vmatprep.subr.bf16.mxu0 %v7135
        %7593 = vmatpush1.bf16.msra.mxu0 %v7134
        %7594 = vmatprep.subr.bf16.mxu0 %v7143
        %7595 = vmatpush1.bf16.msra.mxu0 %v7142
        %7596 = vmatprep.subr.bf16.mxu0 %v7151
        %7597 = vmatpush1.bf16.msra.mxu0 %v7150
        %7598 = vmatprep.subr.bf16.mxu0 %v7159
        %7599 = vmatpush1.bf16.msra.mxu0 %v7158
        %7600 = vmatprep.subr.bf16.mxu0 %v7167
        %7601 = vmatpush1.bf16.msra.mxu0 %v7166
        %7602 = vmatprep.subr.bf16.mxu0 %v7175
        %7603 = vmatpush1.bf16.msra.mxu0 %v7174
        %7604 = vmatprep.subr.bf16.mxu0 %v7183
        %7605 = vmatpush1.bf16.msra.mxu0 %v7182
        %7606 = vmatprep.subr.bf16.mxu0 %v7191
        %7607 = vmatpush1.bf16.msra.mxu0 %v7190
        %7608 = vmatprep.subr.bf16.mxu0 %v7199
        %7609 = vmatpush1.bf16.msra.mxu0 %v7198
        %7610 = vmatprep.mubr.bf16.mxu0 %v7311
        %7611 = vmatmul.mubr.bf16.gmra.mrb[0].mxu0 %v7310
        %v7612 = vpop.f32.mrb[0].mxu0
        %v7613 = vadd.f32 %v7291, %v7612
        %v7614 = vpop.f32.mrb[0].mxu0
        %v7615 = vadd.f32 %v7291, %v7614
        %v7616 = vpop.f32.mrb[0].mxu0
        %v7617 = vadd.f32 %v7296, %v7616
        %v7618 = vpop.f32.mrb[0].mxu0
        %v7619 = vadd.f32 %v7296, %v7618
        %7620 = vdwg.mxu0
        %7621 = vmatprep.subr.bf16.mxu0 %v7207
        %7622 = vmatpush1.bf16.msra.mxu0 %v7206
        %7623 = vmatprep.subr.bf16.mxu0 %v7215
        %7624 = vmatpush1.bf16.msra.mxu0 %v7214
        %7625 = vmatprep.subr.bf16.mxu0 %v7223
        %7626 = vmatpush1.bf16.msra.mxu0 %v7222
        %7627 = vmatprep.subr.bf16.mxu0 %v7231
        %7628 = vmatpush1.bf16.msra.mxu0 %v7230
        %7629 = vmatprep.subr.bf16.mxu0 %v7239
        %7630 = vmatpush1.bf16.msra.mxu0 %v7238
        %7631 = vmatprep.subr.bf16.mxu0 %v7247
        %7632 = vmatpush1.bf16.msra.mxu0 %v7246
        %7633 = vmatprep.subr.bf16.mxu0 %v7255
        %7634 = vmatpush1.bf16.msra.mxu0 %v7254
        %7635 = vmatprep.subr.bf16.mxu0 %v7263
        %7636 = vmatpush1.bf16.msra.mxu0 %v7262
        %7637 = vmatprep.subr.bf16.mxu0 %v7271
        %7638 = vmatpush1.bf16.msra.mxu0 %v7270
        %7639 = vmatprep.subr.bf16.mxu0 %v7279
        %7640 = vmatpush1.bf16.msra.mxu0 %v7278
        %7641 = vmatprep.subr.bf16.mxu0 %v7287
        %7642 = vmatpush1.bf16.msra.mxu0 %v7286
        %7643 = vmatprep.subr.bf16.mxu0 0
        %7644 = vmatpush1.bf16.msra.mxu0 0
        %7645 = vmatprep.subr.bf16.mxu0 0
        %7646 = vmatpush1.bf16.msra.mxu0 0
        %7647 = vmatprep.subr.bf16.mxu0 0
        %7648 = vmatpush1.bf16.msra.mxu0 0
        %7649 = vmatprep.subr.bf16.mxu0 0
        %7650 = vmatpush1.bf16.msra.mxu0 0
        %7651 = vmatprep.subr.bf16.mxu0 0
        %7652 = vmatpush1.bf16.msra.mxu0 0
        %7653 = vmatprep.mubr.bf16.mxu0 %v7318
        %7654 = vmatmul.mubr.bf16.gmra.mrb[0].mxu0 %v7312
        %v7655 = vpop.f32.mrb[0].mxu0
        %v7656 = vadd.f32 %v7613, %v7655
        %v7657 = vpop.f32.mrb[0].mxu0
        %v7658 = vadd.f32 %v7615, %v7657
        %v7659 = vpop.f32.mrb[0].mxu0
        %v7660 = vadd.f32 %v7617, %v7659
        %v7661 = vpop.f32.mrb[0].mxu0
        %v7662 = vadd.f32 %v7619, %v7661
        %7663 = vdwg.mxu0
        %v7664 = vld [vmem:[#allocation3 + $0x8] sm:$0xff]
        %v7665 = vld [vmem:[#allocation3 + $0x10] sm:$0xff]
        %v7666 = vld [vmem:[#allocation3 + $0x18] sm:$0xff]
        %v7667 = vld [vmem:[#allocation3 + $0x20] sm:$0xff]
        %v7668 = vld [vmem:[#allocation3 + $0x28] sm:$0xff]
        %v7669 = vld [vmem:[#allocation3 + $0x30] sm:$0xff]
        %v7670 = vld [vmem:[#allocation3 + $0x38] sm:$0xff]
        %v7671 = vld [vmem:[#allocation3 + $0x40] sm:$0xff]
        %v7672 = vunpack.c.l.bf16 %v7664
        %v7673 = vunpack.c.l.bf16 %v7665
        %v7674 = vunpack.c.l.bf16 %v7666
        %v7675 = vunpack.c.l.bf16 %v7667
        %v7676 = vunpack.c.l.bf16 %v7668
        %v7677 = vunpack.c.l.bf16 %v7669
        %v7678 = vunpack.c.l.bf16 %v7670
        %v7679 = vunpack.c.l.bf16 %v7671
        %v7680 = vunpack.c.h.bf16 %v7664
        %v7681 = vunpack.c.h.bf16 %v7665
        %v7682 = vunpack.c.h.bf16 %v7666
        %v7683 = vunpack.c.h.bf16 %v7667
        %v7684 = vunpack.c.h.bf16 %v7668
        %v7685 = vunpack.c.h.bf16 %v7669
        %v7686 = vunpack.c.h.bf16 %v7670
        %v7687 = vunpack.c.h.bf16 %v7671
        %v7688 = vadd.f32 %v7672, %v7398
        %v7689 = vadd.f32 %v7673, %v7400
        %v7690 = vadd.f32 %v7674, %v7484
        %v7691 = vadd.f32 %v7675, %v7486
        %v7692 = vadd.f32 %v7676, %v7570
        %v7693 = vadd.f32 %v7677, %v7572
        %v7694 = vadd.f32 %v7678, %v7656
        %v7695 = vadd.f32 %v7679, %v7658
        %v7696 = vadd.f32 %v7680, %v7402
        %v7697 = vadd.f32 %v7681, %v7404
        %v7698 = vadd.f32 %v7682, %v7488
        %v7699 = vadd.f32 %v7683, %v7490
        %v7700 = vadd.f32 %v7684, %v7574
        %v7701 = vadd.f32 %v7685, %v7576
        %v7702 = vadd.f32 %v7686, %v7660
        %v7703 = vadd.f32 %v7687, %v7662
        %v7704 = vmax.f32 %v7688, 0.0
        %v7705 = vmax.f32 %v7689, 0.0
        %v7706 = vmax.f32 %v7690, 0.0
        %v7707 = vmax.f32 %v7691, 0.0
        %v7708 = vmax.f32 %v7692, 0.0
        %v7709 = vmax.f32 %v7693, 0.0
        %v7710 = vmax.f32 %v7694, 0.0
        %v7711 = vmax.f32 %v7695, 0.0
        %v7712 = vmax.f32 %v7696, 0.0
        %v7713 = vmax.f32 %v7697, 0.0
        %v7714 = vmax.f32 %v7698, 0.0
        %v7715 = vmax.f32 %v7699, 0.0
        %v7716 = vmax.f32 %v7700, 0.0
        %v7717 = vmax.f32 %v7701, 0.0
        %v7718 = vmax.f32 %v7702, 0.0
        %v7719 = vmax.f32 %v7703, 0.0
        %v7720 = vpack.c.bf16 %v7712, %v7704
        %v7721 = vpack.c.bf16 %v7713, %v7705
        %v7722 = vpack.c.bf16 %v7714, %v7706
        %v7723 = vpack.c.bf16 %v7715, %v7707
        %v7724 = vpack.c.bf16 %v7716, %v7708
        %v7725 = vpack.c.bf16 %v7717, %v7709
        %v7726 = vpack.c.bf16 %v7718, %v7710
        %v7727 = vpack.c.bf16 %v7719, %v7711
        %v7736 = vunpack.c.l.b16 %v7720
        %v7737 = vunpack.c.l.b16 %v7721
        %v7738 = vunpack.c.l.b16 %v7722
        %v7739 = vunpack.c.l.b16 %v7723
        %v7740 = vunpack.c.l.b16 %v7724
        %v7741 = vunpack.c.l.b16 %v7725
        %v7742 = vunpack.c.l.b16 %v7726
        %v7743 = vunpack.c.l.b16 %v7727
        %v7744 = vunpack.c.h.b16 %v7720
        %v7745 = vunpack.c.h.b16 %v7721
        %v7746 = vunpack.c.h.b16 %v7722
        %v7747 = vunpack.c.h.b16 %v7723
        %v7748 = vunpack.c.h.b16 %v7724
        %v7749 = vunpack.c.h.b16 %v7725
        %v7750 = vunpack.c.h.b16 %v7726
        %v7751 = vunpack.c.h.b16 %v7727
        %v7752 = vpack.c.b16 %v7737, %v7736
        %v7753 = vpack.c.b16 %v7739, %v7738
        %v7754 = vpack.c.b16 %v7741, %v7740
        %v7755 = vpack.c.b16 %v7743, %v7742
        %v7756 = vpack.c.b16 %v7745, %v7744
        %v7757 = vpack.c.b16 %v7747, %v7746
        %v7758 = vpack.c.b16 %v7749, %v7748
        %v7759 = vpack.c.b16 %v7751, %v7750
        %7768 = vst [vmem:[%s313] sm:$0xff] %v7752
        %7769 = vst [vmem:[%s313 + $0x8] sm:$0xff] %v7753
        %7770 = vst [vmem:[%s313 + $0x10] sm:$0xff] %v7754
        %vm7771 = vcmask 1043456
        %vm7772 = vcmask 850948
        %vm7773 = vmor %vm7772, %vm7771
        %7774 = vst.msk [vmem:[%s313 + $0x18] sm:$0xff] %vm7773, %v7755
        %7775 = vst [vmem:[%s313 + $0x20] sm:$0xff] %v7756
        %7776 = vst [vmem:[%s313 + $0x28] sm:$0xff] %v7757
        %7777 = vst [vmem:[%s313 + $0x30] sm:$0xff] %v7758
        %7778 = vst.msk [vmem:[%s313 + $0x38] sm:$0xff] %vm7773, %v7759
        %s7779 = sand.u32 %s164, 1
        %s7780 = scalar_lea.sflag [#allocation7], %s7779
        %s7781 = sand.u32 %s164, 1
        %s7782 = smul.addr %s7781, 64
        %s7783 = scalar_lea.vmem [#allocation13], %s7782
        // Predicated region
        $region61: #{tpu_custom_call.1} parent=43 // pred_check
          %p7784 = pneg %p174
        $region62: #{tpu_custom_call.1} parent=43 // pred_check_branch
          %7786 = sbr.rel (%p7784) target = $region64
        $region63: #{tpu_custom_call.1} parent=43 // pred_region
          %s7788 = ssub.s32 1024, 1024
          %7789 = vsyncadd %s7780, %s7788
          %s7790 = smul.addr %s25, 16
          %s7791 = smul.addr %s7790, 64
          %s7792 = scalar_lea.hbm %s6, %s7791
          %s7793 = sshll.u32 %s7783, 4
          %s7794 = int_to_ptr.vmem [resolvable:$true] %s7793
          %7799 = dma.vmem_to_hbm [thread:$0]  %s7794, 1024, %s7792, %s7780, 512, 512, 32
        $region64: #{tpu_custom_call.1} parent=43 // pred_fallthru
          _
      $region44: #{tpu_custom_call.1} parent=5 // pred_fallthru
        _
      %p7800 = scmp.le.s32.totalorder 2, %s20
      // Predicated region
      $region65: #{tpu_custom_call.1} parent=5 // pred_check
        %p7801 = pneg %p7800
      $region66: #{tpu_custom_call.1} parent=5 // pred_check_branch
        %7803 = sbr.rel (%p7801) target = $region68
      $region67: #{tpu_custom_call.1} parent=5 // pred_region
        %s7804 = ssub.s32 %s20, 2
        // Predicated region
        $region69: #{tpu_custom_call.1} parent=67 // pred_check
          %p7805 = pneg %p180
        $region70: #{tpu_custom_call.1} parent=67 // pred_check_branch
          %7807 = sbr.rel (%p7805) target = $region72
        $region71: #{tpu_custom_call.1} parent=67 // pred_region
          %s7808 = sand.u32 %s165, 1
          %s7809 = scalar_lea.sflag [#allocation7], %s7808
          %s7810 = sand.u32 %s165, 1
          %s7811 = smul.addr %s7810, 64
          %s7812 = scalar_lea.vmem [#allocation13], %s7811
          %7813 = dma.done %s7809, 1024
        $region72: #{tpu_custom_call.1} parent=67 // pred_fallthru
          _
      $region68: #{tpu_custom_call.1} parent=5 // pred_fallthru
        _
    $region6: #{tpu_custom_call.1} parent=1 // loop_footer
      %s24 = sadd.s32 1, %s20
    $region7: #{tpu_custom_call.1} parent=1 // loop_footer_branch
      %19 = sbr.rel target = $region3
    $region8: #{tpu_custom_call.1} parent=1 // loop_exit
      _
    %7814 = vsyncpa [#allocation6], 1
    %s7815 = scalar_lea.sflag [#allocation6], 1
    %7816 = vsyncpa %s7815, 1
    %7817 = vsyncpa [#allocation9], 1
    %7818 = vsyncpa [#allocation12], 1
    %7819 = vsyncpa [#allocation7], 1
    %s7820 = scalar_lea.sflag [#allocation7], 1
    %7821 = vsyncpa %s7820, 1

</llo_original>
